<compile_context>
chip_gen: v6e
topology: v6e:2x2x1
jax: 0.10.0
libtpu: 0.0.40
codegen_flags: <defaults>
</compile_context>

<pallas_src>
import functools

import jax
import jax.numpy as jnp
from jax import lax
from jax.experimental import pallas as pl
from jax.experimental.pallas import tpu as pltpu


def _ceil_to(x, m):
    return ((x + m - 1) // m) * m


def _pad_k(K):
    kp = _ceil_to(K, 16)
    return kp if kp <= 2048 else _ceil_to(K, 512)


def _normalize_pad(pad):
    if isinstance(pad, int):
        return ((pad, pad),) * 3
    return tuple(tuple(p) for p in pad)


# ----------------------------------------------------------------------------
# Pallas GEMM kernel: out = relu?(x @ w + b [+ skip]); bf16 MXU, f32 epilogue,
# bf16 store.  Grid (M, N, K) with f32 VMEM accumulator over the K axis.
# ----------------------------------------------------------------------------
def _gemm_kernel(*args, post_relu, has_skip):
    if has_skip:
        x_ref, w_ref, b_ref, s_ref, o_ref, acc_ref = args
    else:
        x_ref, w_ref, b_ref, o_ref, acc_ref = args
        s_ref = None
    k = pl.program_id(2)
    nk = pl.num_programs(2)

    @pl.when(k == 0)
    def _():
        acc_ref[...] = jnp.zeros_like(acc_ref)

    acc_ref[...] += jnp.dot(x_ref[...], w_ref[...],
                            preferred_element_type=jnp.float32)

    @pl.when(k == nk - 1)
    def _():
        out = acc_ref[...] + b_ref[...]                 # f32 epilogue
        if s_ref is not None:
            out = out + s_ref[...].astype(jnp.float32)  # fused residual add
        if post_relu:
            out = jnp.maximum(out, 0.0)
        o_ref[...] = out.astype(o_ref.dtype)            # cast only at the store


def pallas_gemm(x, w_p, b, *, post_relu=False, skip=None):
    """x: (M, K); w_p: (K_pad, O_pad) pre-padded bf16; b: (O,) f32.
    skip: optional (M, O) added in the epilogue.  Returns (M, O) bf16."""
    M, K = x.shape
    K_pad, O_pad = w_p.shape
    O = b.shape[0]

    tm = 512 if M >= 512 else (256 if M >= 256 else 128)
    tn = 256 if O_pad >= 256 else O_pad        # O_pad is 128 or a multiple of 256
    tk = K_pad if K_pad <= 2048 else 512

    M_pad = _ceil_to(M, tm)
    nm, nn, nk = M_pad // tm, O_pad // tn, K_pad // tk

    x_p = jnp.pad(x.astype(jnp.bfloat16), ((0, M_pad - M), (0, K_pad - K)))
    b_p = jnp.pad(b.astype(jnp.float32), ((0, O_pad - O),)).reshape(1, O_pad)

    operands = [x_p, w_p, b_p]
    in_specs = [
        pl.BlockSpec((tm, tk), lambda i, j, k: (i, k)),
        pl.BlockSpec((tk, tn), lambda i, j, k: (k, j)),
        pl.BlockSpec((1, tn), lambda i, j, k: (0, j)),
    ]
    if skip is not None:
        s_p = jnp.pad(skip.astype(jnp.bfloat16),
                      ((0, M_pad - M), (0, O_pad - O)))
        operands.append(s_p)
        in_specs.append(pl.BlockSpec((tm, tn), lambda i, j, k: (i, j)))

    flops = 2 * M_pad * K_pad * O_pad
    bytes_accessed = (x_p.size + w_p.size) * 2 + b_p.size * 4 + M_pad * O_pad * 2

    out = pl.pallas_call(
        functools.partial(_gemm_kernel, post_relu=post_relu,
                          has_skip=skip is not None),
        out_shape=jax.ShapeDtypeStruct((M_pad, O_pad), jnp.bfloat16),
        grid=(nm, nn, nk),
        in_specs=in_specs,
        out_specs=pl.BlockSpec((tm, tn), lambda i, j, k: (i, j)),
        scratch_shapes=[pltpu.VMEM((tm, tn), jnp.float32)],
        compiler_params=pltpu.CompilerParams(
            dimension_semantics=("parallel", "parallel", "arbitrary"),
            vmem_limit_bytes=32 * 1024 * 1024),
        cost_estimate=pl.CostEstimate(flops=flops, transcendentals=0,
                                      bytes_accessed=bytes_accessed),
    )(*operands)
    return out[:M, :O]


# ----------------------------------------------------------------------------
# Pallas VectorQuantizer kernel.  N axis is "parallel"; per-tile loss / count
# partial sums go to grid-indexed outputs and are reduced outside the kernel.
# ----------------------------------------------------------------------------
def _vq_kernel(z_ref, e_ref, esq_ref, q_ref, sq_ref, cnt_ref, *,
               n_valid, block_n):
    i = pl.program_id(0)
    z_bf = z_ref[...]                                    # (tn, Dp) bf16
    e = e_ref[...]                                       # (Ep, Dp) f32
    e_bf = e.astype(jnp.bfloat16)

    # distances up to the row-constant ||z||^2 (argmin-invariant); bf16 MXU.
    ze = lax.dot_general(z_bf, e_bf, (((1,), (1,)), ((), ())),
                         preferred_element_type=jnp.float32)     # (tn, Ep)
    d = esq_ref[...] - 2.0 * ze      # padded codes carry a huge ||e||^2 sentinel

    e_pad = d.shape[1]
    dmin = jnp.min(d, axis=1, keepdims=True)
    iota = lax.broadcasted_iota(jnp.int32, d.shape, 1)
    cand = jnp.where(d <= dmin, iota, e_pad)
    first = jnp.min(cand, axis=1, keepdims=True)         # first-occurrence tie-break
    enc = (iota == first).astype(jnp.float32)            # one-hot (tn, Ep)

    q = jnp.dot(enc, e, preferred_element_type=jnp.float32)      # exact codebook
    q_ref[...] = q.astype(q_ref.dtype)

    z32 = z_bf.astype(jnp.float32)
    row = lax.broadcasted_iota(jnp.int32, (block_n, 1), 0) + i * block_n
    valid = (row < n_valid).astype(jnp.float32)           # mask of real rows
    diff = q - z32
    sq = jnp.sum(jnp.sum(diff * diff, axis=1, keepdims=True) * valid)
    sq_ref[...] = jnp.broadcast_to(sq, sq_ref.shape)
    cnt_ref[...] = jnp.sum(enc * valid, axis=0, keepdims=True).reshape(cnt_ref.shape)


def pallas_vq(z_flat, e_p, esq, commitment_cost):
    """z_flat: (N, D); e_p: (E_pad, D_pad) f32; esq: (1, E_pad) f32 (sentinel-padded)."""
    N, D = z_flat.shape
    E_pad, D_pad = e_p.shape
    tn = 512
    N_pad = _ceil_to(N, tn)
    nt = N_pad // tn

    z_p = jnp.pad(z_flat.astype(jnp.bfloat16), ((0, N_pad - N), (0, D_pad - D)))

    kernel = functools.partial(_vq_kernel, n_valid=N, block_n=tn)

    q, sq_part, cnt_part = pl.pallas_call(
        kernel,
        out_shape=(
            jax.ShapeDtypeStruct((N_pad, D_pad), jnp.bfloat16),
            jax.ShapeDtypeStruct((nt, 1, 128), jnp.float32),
            jax.ShapeDtypeStruct((nt, 1, E_pad), jnp.float32),
        ),
        grid=(nt,),
        in_specs=[
            pl.BlockSpec((tn, D_pad), lambda i: (i, 0)),
            pl.BlockSpec((E_pad, D_pad), lambda i: (0, 0)),
            pl.BlockSpec((1, E_pad), lambda i: (0, 0)),
        ],
        out_specs=(
            pl.BlockSpec((tn, D_pad), lambda i: (i, 0)),
            pl.BlockSpec((1, 1, 128), lambda i: (i, 0, 0)),
            pl.BlockSpec((1, 1, E_pad), lambda i: (i, 0, 0)),
        ),
        compiler_params=pltpu.CompilerParams(
            dimension_semantics=("parallel",),
            vmem_limit_bytes=32 * 1024 * 1024),
    )(z_p, e_p, esq)

    # tiny finalize outside the kernel (keeps the grid axis parallel)
    sq_sum = jnp.sum(sq_part[:, 0, 0])
    counts = jnp.sum(cnt_part[:, 0, :], axis=0)           # padded codes are 0
    mse = sq_sum / float(N * D)
    loss = (1.0 + float(commitment_cost)) * mse            # forward value of VQ loss
    avg = counts / float(N)
    perplexity = jnp.exp(-jnp.sum(avg * jnp.log(avg + 1e-10)))
    return q[:N, :D], loss, perplexity


# ----------------------------------------------------------------------------
# Conv3d (channels-last) via im2col (XLA glue, bf16) + Pallas GEMM.
# ----------------------------------------------------------------------------
def conv3d(x, w_p, b, *, k, stride=1, pad=0, post_relu=False, skip=None):
    """x: (B,D,H,W,Cin) bf16; w_p: pre-padded (K_pad, O_pad) bf16; b: (O,) f32."""
    B, D, H, W, Cin = x.shape
    pd, ph, pw = _normalize_pad(pad)
    xp = jnp.pad(x, ((0, 0), pd, ph, pw, (0, 0)))
    Do = (D + pd[0] + pd[1] - k) // stride + 1
    Ho = (H + ph[0] + ph[1] - k) // stride + 1
    Wo = (W + pw[0] + pw[1] - k) // stride + 1
    M = B * Do * Ho * Wo

    if k == 1 and stride == 1:
        patches = xp.reshape(M, Cin)
    else:
        # TODO(synk): fuse this gather into the GEMM kernel (halo windows).
        cols = []
        for kd in range(k):
            for kh in range(k):
                for kw in range(k):
                    cols.append(xp[:, kd:kd + stride * Do:stride,
                                   kh:kh + stride * Ho:stride,
                                   kw:kw + stride * Wo:stride, :])
        patches = jnp.stack(cols, axis=4).reshape(M, k * k * k * Cin)

    skip_flat = None if skip is None else skip.reshape(M, skip.shape[-1])
    out = pallas_gemm(patches, w_p, b, post_relu=post_relu, skip=skip_flat)
    return out.reshape(B, Do, Ho, Wo, b.shape[0])


# ----------------------------------------------------------------------------
# ConvTranspose3d(k=4, s=2, p=1), all 8 subpixel phases fused into ONE GEMM:
# shared 3x3x3 input window, output columns = (phase_d, phase_h, phase_w, Cout).
# ----------------------------------------------------------------------------
def conv_transpose3d_s2(x, w_p, b8, *, post_relu=False):
    """x: (B,D,H,W,Cin) bf16; w_p: (27*Cin -> pad, 8*Cout -> pad) bf16;
    b8: (8*Cout,) f32.  Returns (B, 2D, 2H, 2W, Cout) bf16."""
    B, D, H, W, Cin = x.shape
    Cout = b8.shape[0] // 8
    xp = jnp.pad(x, ((0, 0), (1, 1), (1, 1), (1, 1), (0, 0)))
    cols = []
    for cd in range(3):
        for ch in range(3):
            for cw in range(3):
                cols.append(xp[:, cd:cd + D, ch:ch + H, cw:cw + W, :])
    patches = jnp.stack(cols, axis=4).reshape(B * D * H * W, 27 * Cin)
    out = pallas_gemm(patches, w_p, b8, post_relu=post_relu)     # (M, 8*Cout)
    y = out.reshape(B, D, H, W, 2, 2, 2, Cout)
    y = y.transpose(0, 1, 4, 2, 5, 3, 6, 7)                      # spatial interleave
    return y.reshape(B, 2 * D, 2 * H, 2 * W, Cout)


# ----------------------------------------------------------------------------
# VQVAE parameters (PyTorch layout) + one-time GEMM-layout preparation.
# ----------------------------------------------------------------------------
def _init(key, shape, scale=0.1):
    return scale * jax.random.normal(key, shape, jnp.float32)


def make_params(key, in_channels, num_hiddens, num_residual_layers,
                num_residual_hiddens, num_embeddings, embedding_dim):
    H, H2, Rh = num_hiddens, num_hiddens // 2, num_residual_hiddens
    keys = iter(jax.random.split(key, 64))
    p = {}
    p["enc_w1"], p["enc_b1"] = _init(next(keys), (H2, in_channels, 4, 4, 4)), _init(next(keys), (H2,))
    p["enc_w2"], p["enc_b2"] = _init(next(keys), (H, H2, 4, 4, 4)), _init(next(keys), (H,))
    p["enc_w3"], p["enc_b3"] = _init(next(keys), (H, H, 3, 3, 3)), _init(next(keys), (H,))
    p["enc_res"] = tuple((_init(next(keys), (Rh, H, 3, 3, 3)),
                          _init(next(keys), (H, Rh, 1, 1, 1)))
                         for _ in range(num_residual_layers))
    p["pre_w"], p["pre_b"] = _init(next(keys), (embedding_dim, H, 1, 1, 1)), _init(next(keys), (embedding_dim,))
    p["embedding"] = jax.random.uniform(next(keys), (num_embeddings, embedding_dim),
                                        jnp.float32,
                                        minval=-1.0 / num_embeddings,
                                        maxval=1.0 / num_embeddings)
    p["dec_w1"], p["dec_b1"] = _init(next(keys), (H, embedding_dim, 3, 3, 3)), _init(next(keys), (H,))
    p["dec_res"] = tuple((_init(next(keys), (Rh, H, 3, 3, 3)),
                          _init(next(keys), (H, Rh, 1, 1, 1)))
                         for _ in range(num_residual_layers))
    p["dec_wt1"], p["dec_bt1"] = _init(next(keys), (H, H2, 4, 4, 4)), _init(next(keys), (H2,))
    p["dec_wt2"], p["dec_bt2"] = _init(next(keys), (H2, 3, 4, 4, 4)), _init(next(keys), (3,))
    return p


def _pad_gemm_weight(wmat):
    K, O = wmat.shape
    K_pad = _pad_k(K)
    O_pad = 128 if O <= 128 else _ceil_to(O, 256)
    return jnp.pad(wmat, ((0, K_pad - K), (0, O_pad - O))).astype(jnp.bfloat16)


def prepare_params(p):
    """One-time (outside jit) conversion of PyTorch-layout params to padded
    bf16 GEMM matrices + the fused conv-transpose / VQ codebook layouts."""

    def conv(w, b=None):
        cout, cin, k = w.shape[0], w.shape[1], w.shape[2]
        wmat = jnp.transpose(w, (2, 3, 4, 1, 0)).reshape(k ** 3 * cin, cout)
        if b is None:
            b = jnp.zeros((cout,), jnp.float32)
        return _pad_gemm_weight(wmat), b.astype(jnp.float32)

    def convt(w, b):   # w: (Cin, Cout, 4, 4, 4) PyTorch ConvTranspose layout
        cin, cout = w.shape[0], w.shape[1]
        # per-axis tap selection: S[phase, window_offset, kernel_tap]
        s = jnp.zeros((2, 3, 4), jnp.float32)
        s = s.at[0, 0, 3].set(1.0).at[0, 1, 1].set(1.0)
        s = s.at[1, 1, 2].set(1.0).at[1, 2, 0].set(1.0)
        wf = jnp.einsum("dap,ebq,fcr,iopqr->abcidefo", s, s, s,
                        w.astype(jnp.float32))
        wmat = wf.reshape(27 * cin, 8 * cout)
        b8 = jnp.tile(b.astype(jnp.float32), 8)
        return _pad_gemm_weight(wmat), b8

    q = {}
    q["enc_w1"], q["enc_b1"] = conv(p["enc_w1"], p["enc_b1"])
    q["enc_w2"], q["enc_b2"] = conv(p["enc_w2"], p["enc_b2"])
    q["enc_w3"], q["enc_b3"] = conv(p["enc_w3"], p["enc_b3"])
    q["enc_res"] = tuple(conv(w1) + conv(w2) for (w1, w2) in p["enc_res"])
    q["pre_w"], q["pre_b"] = conv(p["pre_w"], p["pre_b"])
    # VQ codebook: lane-dense padding; padded codes get a huge ||e||^2 sentinel
    e = p["embedding"].astype(jnp.float32)
    E, D = e.shape
    E_pad, D_pad = _ceil_to(E, 128), _ceil_to(D, 128)
    e_p = jnp.pad(e, ((0, E_pad - E), (0, D_pad - D)))
    esq = jnp.sum(e_p * e_p, axis=1)
    esq = jnp.where(jnp.arange(E_pad) < E, esq, 1e30).reshape(1, E_pad)
    q["vq_e_p"], q["vq_esq"] = e_p, esq
    q["dec_w1"], q["dec_b1"] = conv(p["dec_w1"], p["dec_b1"])
    q["dec_res"] = tuple(conv(w1) + conv(w2) for (w1, w2) in p["dec_res"])
    q["dec_wt1"], q["dec_bt1"] = convt(p["dec_wt1"], p["dec_bt1"])
    q["dec_wt2"], q["dec_bt2"] = convt(p["dec_wt2"], p["dec_bt2"])
    return q


# ----------------------------------------------------------------------------
# Forward
# ----------------------------------------------------------------------------
def residual_stack(x, res_params):
    if not res_params:
        return jnp.maximum(x, 0)
    n = len(res_params)
    for idx, (w1, b1, w2, b2) in enumerate(res_params):
        last = idx == n - 1
        h = conv3d(jnp.maximum(x, 0), w1, b1, k=3, stride=1, pad=1, post_relu=True)
        # 1x1x1 conv with fused residual add; stack's trailing ReLU fused on last
        x = conv3d(h, w2, b2, k=1, stride=1, pad=0, skip=x, post_relu=last)
    return x


def vqvae_forward(params, x_ncdhw, *, commitment_cost):
    p = params
    x = jnp.transpose(x_ncdhw, (0, 2, 3, 4, 1)).astype(jnp.bfloat16)  # -> NDHWC bf16
    # ---- Encoder ----
    h = conv3d(x, p["enc_w1"], p["enc_b1"], k=4, stride=2, pad=1, post_relu=True)
    h = conv3d(h, p["enc_w2"], p["enc_b2"], k=4, stride=2, pad=1, post_relu=True)
    h = conv3d(h, p["enc_w3"], p["enc_b3"], k=3, stride=1, pad=1)
    h = residual_stack(h, p["enc_res"])
    # ---- pre-VQ 1x1x1 conv ----
    z = conv3d(h, p["pre_w"], p["pre_b"], k=1, stride=1, pad=0)
    # ---- Vector quantizer ----
    B, Dz, Hz, Wz, C = z.shape
    z_flat = z.reshape(-1, C)                       # channels-last: no transpose
    q_flat, loss, perplexity = pallas_vq(z_flat, p["vq_e_p"], p["vq_esq"],
                                         commitment_cost)
    quantized = q_flat.reshape(B, Dz, Hz, Wz, C)
    # ---- Decoder ----
    d = conv3d(quantized, p["dec_w1"], p["dec_b1"], k=3, stride=1, pad=1)
    d = residual_stack(d, p["dec_res"])
    d = conv_transpose3d_s2(d, p["dec_wt1"], p["dec_bt1"], post_relu=True)
    xr = conv_transpose3d_s2(d, p["dec_wt2"], p["dec_bt2"])
    x_recon = jnp.transpose(xr.astype(jnp.float32), (0, 4, 1, 2, 3))  # -> NCDHW
    return loss, x_recon, perplexity


if __name__ == "__main__":
    in_channels = 3
    num_hiddens = 16
    num_residual_layers = 2
    num_residual_hiddens = 8
    num_embeddings = 32
    embedding_dim = 8
    commitment_cost = 0.25

    key = jax.random.PRNGKey(0)
    pkey, xkey = jax.random.split(key)
    params_pt = make_params(pkey, in_channels, num_hiddens, num_residual_layers,
                            num_residual_hiddens, num_embeddings, embedding_dim)
    params = prepare_params(params_pt)   # one-time GEMM-layout prep, outside jit
    x = jax.random.normal(xkey, (2, in_channels, 8, 8, 8), jnp.float32)  # NCDHW

    fwd = jax.jit(functools.partial(vqvae_forward, commitment_cost=commitment_cost))
    loss, x_recon, perplexity = fwd(params, x)
    jax.block_until_ready((loss, x_recon, perplexity))

    assert x_recon.shape == (2, 3, 8, 8, 8)
    assert loss.shape == () and perplexity.shape == ()
    assert bool(jnp.isfinite(loss)) and bool(jnp.isfinite(perplexity))
    print("KERNEL_OK")
</pallas_src>

<mosaic_0001>
module attributes {stable_mosaic.version = 11 : i64} {
  func.func @_gemm_kernel(%arg0: i32, %arg1: i32, %arg2: i32, %arg3: memref<128x192xbf16, #tpu.memory_space<vmem>>, %arg4: memref<192x128xbf16, #tpu.memory_space<vmem>>, %arg5: memref<1x128xf32, #tpu.memory_space<vmem>>, %arg6: memref<128x128xbf16, #tpu.memory_space<vmem>>, %arg7: memref<128x128xf32, #tpu.memory_space<vmem>>) attributes {dimension_semantics = [#tpu.dimension_semantics<parallel>, #tpu.dimension_semantics<parallel>, #tpu.dimension_semantics<arbitrary>], iteration_bounds = array<i64: 1, 1, 1>, scalar_prefetch = 0 : i64, scratch_operands = 1 : i64, tpu.core_type = #tpu.core_type<tc>, window_params = [{transform_indices = @transform_0, window_bounds = array<i64: 128, 192>}, {transform_indices = @transform_1, window_bounds = array<i64: 192, 128>}, {transform_indices = @transform_2, window_bounds = array<i64: 1, 128>}, {transform_indices = @transform_3, window_bounds = array<i64: 128, 128>}]} {
    %c0_i32 = arith.constant 0 : i32
    %0 = arith.cmpi eq, %arg2, %c0_i32 : i32
    %1 = arith.extui %0 : i1 to i32
    %c0_i32_0 = arith.constant 0 : i32
    %2 = arith.cmpi ne, %1, %c0_i32_0 : i32
    scf.if %2 {
      %cst_10 = arith.constant 0.000000e+00 : f32
      %12 = vector.broadcast %cst_10 : f32 to vector<128x128xf32>
      %c0_11 = arith.constant 0 : index
      %c0_12 = arith.constant 0 : index
      %13 = vector.load %arg7[%c0_11, %c0_12] : memref<128x128xf32, #tpu.memory_space<vmem>>, vector<128x128xf32>
      tpu.vector_store %arg7[%c0_11, %c0_12], %12 {strides = array<i32>} : memref<128x128xf32, #tpu.memory_space<vmem>>, vector<128x128xf32>,
    } else {
    }
    %c0 = arith.constant 0 : index
    %c0_1 = arith.constant 0 : index
    %3 = vector.load %arg7[%c0, %c0_1] : memref<128x128xf32, #tpu.memory_space<vmem>>, vector<128x128xf32>
    %c0_2 = arith.constant 0 : index
    %c0_3 = arith.constant 0 : index
    %4 = vector.load %arg3[%c0_2, %c0_3] : memref<128x192xbf16, #tpu.memory_space<vmem>>, vector<128x192xbf16>
    %c0_4 = arith.constant 0 : index
    %c0_5 = arith.constant 0 : index
    %5 = vector.load %arg4[%c0_4, %c0_5] : memref<192x128xbf16, #tpu.memory_space<vmem>>, vector<192x128xbf16>
    %cst = arith.constant dense<0.000000e+00> : vector<128x128xf32>
    %6 = tpu.matmul %4, %5, %cst {dimension_numbers = #tpu.dot_dimension_numbers<[1], [0], [0], [1], [0, 0, 1, 1], [], []>} : vector<128x192xbf16>, vector<192x128xbf16>, vector<128x128xf32> -> vector<128x128xf32>
    %7 = arith.addf %3, %6 : vector<128x128xf32>
    %c0_6 = arith.constant 0 : index
    %c0_7 = arith.constant 0 : index
    %8 = vector.load %arg7[%c0_6, %c0_7] : memref<128x128xf32, #tpu.memory_space<vmem>>, vector<128x128xf32>
    tpu.vector_store %arg7[%c0_6, %c0_7], %7 {strides = array<i32>} : memref<128x128xf32, #tpu.memory_space<vmem>>, vector<128x128xf32>,
    %c0_i32_8 = arith.constant 0 : i32
    %9 = arith.cmpi eq, %arg2, %c0_i32_8 : i32
    %10 = arith.extui %9 : i1 to i32
    %c0_i32_9 = arith.constant 0 : i32
    %11 = arith.cmpi ne, %10, %c0_i32_9 : i32
    scf.if %11 {
      %c0_10 = arith.constant 0 : index
      %c0_11 = arith.constant 0 : index
      %12 = vector.load %arg7[%c0_10, %c0_11] : memref<128x128xf32, #tpu.memory_space<vmem>>, vector<128x128xf32>
      %c0_12 = arith.constant 0 : index
      %c0_13 = arith.constant 0 : index
      %13 = vector.load %arg5[%c0_12, %c0_13] : memref<1x128xf32, #tpu.memory_space<vmem>>, vector<1x128xf32>
      %14 = vector.broadcast %13 : vector<1x128xf32> to vector<128x128xf32>
      %15 = arith.addf %12, %14 : vector<128x128xf32>
      %cst_14 = arith.constant 0.000000e+00 : f32
      %16 = vector.broadcast %cst_14 : f32 to vector<128x128xf32>
      %17 = arith.maximumf %15, %16 : vector<128x128xf32>
      %18 = arith.truncf %17 : vector<128x128xf32> to vector<128x128xbf16>
      %c0_15 = arith.constant 0 : index
      %c0_16 = arith.constant 0 : index
      %19 = vector.load %arg6[%c0_15, %c0_16] : memref<128x128xbf16, #tpu.memory_space<vmem>>, vector<128x128xbf16>
      tpu.vector_store %arg6[%c0_15, %c0_16], %18 {strides = array<i32>} : memref<128x128xbf16, #tpu.memory_space<vmem>>, vector<128x128xbf16>,
    } else {
    }
    return
  }
  func.func @transform_0(%arg0: i32, %arg1: i32, %arg2: i32) -> (i32, i32) {
    %c0_i32 = arith.constant 0 : i32
    return %arg0, %arg2 : i32, i32
  }
  func.func @transform_1(%arg0: i32, %arg1: i32, %arg2: i32) -> (i32, i32) {
    %c0_i32 = arith.constant 0 : i32
    return %arg2, %arg1 : i32, i32
  }
  func.func @transform_2(%arg0: i32, %arg1: i32, %arg2: i32) -> (i32, i32) {
    %c0_i32 = arith.constant 0 : i32
    %c0_i32_0 = arith.constant 0 : i32
    return %c0_i32, %arg1 : i32, i32
  }
  func.func @transform_3(%arg0: i32, %arg1: i32, %arg2: i32) -> (i32, i32) {
    %c0_i32 = arith.constant 0 : i32
    return %arg0, %arg1 : i32, i32
  }
}

module attributes {stable_mosaic.version = 11 : i64} {
  func.func @_gemm_kernel(%arg0: i32, %arg1: i32, %arg2: i32, %arg3: memref<128x512xbf16, #tpu.memory_space<vmem>>, %arg4: memref<512x128xbf16, #tpu.memory_space<vmem>>, %arg5: memref<1x128xf32, #tpu.memory_space<vmem>>, %arg6: memref<128x128xbf16, #tpu.memory_space<vmem>>, %arg7: memref<128x128xf32, #tpu.memory_space<vmem>>) attributes {dimension_semantics = [#tpu.dimension_semantics<parallel>, #tpu.dimension_semantics<parallel>, #tpu.dimension_semantics<arbitrary>], iteration_bounds = array<i64: 1, 1, 1>, scalar_prefetch = 0 : i64, scratch_operands = 1 : i64, tpu.core_type = #tpu.core_type<tc>, window_params = [{transform_indices = @transform_0, window_bounds = array<i64: 128, 512>}, {transform_indices = @transform_1, window_bounds = array<i64: 512, 128>}, {transform_indices = @transform_2, window_bounds = array<i64: 1, 128>}, {transform_indices = @transform_3, window_bounds = array<i64: 128, 128>}]} {
    %c0_i32 = arith.constant 0 : i32
    %0 = arith.cmpi eq, %arg2, %c0_i32 : i32
    %1 = arith.extui %0 : i1 to i32
    %c0_i32_0 = arith.constant 0 : i32
    %2 = arith.cmpi ne, %1, %c0_i32_0 : i32
    scf.if %2 {
      %cst_10 = arith.constant 0.000000e+00 : f32
      %12 = vector.broadcast %cst_10 : f32 to vector<128x128xf32>
      %c0_11 = arith.constant 0 : index
      %c0_12 = arith.constant 0 : index
      %13 = vector.load %arg7[%c0_11, %c0_12] : memref<128x128xf32, #tpu.memory_space<vmem>>, vector<128x128xf32>
      tpu.vector_store %arg7[%c0_11, %c0_12], %12 {strides = array<i32>} : memref<128x128xf32, #tpu.memory_space<vmem>>, vector<128x128xf32>,
    } else {
    }
    %c0 = arith.constant 0 : index
    %c0_1 = arith.constant 0 : index
    %3 = vector.load %arg7[%c0, %c0_1] : memref<128x128xf32, #tpu.memory_space<vmem>>, vector<128x128xf32>
    %c0_2 = arith.constant 0 : index
    %c0_3 = arith.constant 0 : index
    %4 = vector.load %arg3[%c0_2, %c0_3] : memref<128x512xbf16, #tpu.memory_space<vmem>>, vector<128x512xbf16>
    %c0_4 = arith.constant 0 : index
    %c0_5 = arith.constant 0 : index
    %5 = vector.load %arg4[%c0_4, %c0_5] : memref<512x128xbf16, #tpu.memory_space<vmem>>, vector<512x128xbf16>
    %cst = arith.constant dense<0.000000e+00> : vector<128x128xf32>
    %6 = tpu.matmul %4, %5, %cst {dimension_numbers = #tpu.dot_dimension_numbers<[1], [0], [0], [1], [0, 0, 1, 1], [], []>} : vector<128x512xbf16>, vector<512x128xbf16>, vector<128x128xf32> -> vector<128x128xf32>
    %7 = arith.addf %3, %6 : vector<128x128xf32>
    %c0_6 = arith.constant 0 : index
    %c0_7 = arith.constant 0 : index
    %8 = vector.load %arg7[%c0_6, %c0_7] : memref<128x128xf32, #tpu.memory_space<vmem>>, vector<128x128xf32>
    tpu.vector_store %arg7[%c0_6, %c0_7], %7 {strides = array<i32>} : memref<128x128xf32, #tpu.memory_space<vmem>>, vector<128x128xf32>,
    %c0_i32_8 = arith.constant 0 : i32
    %9 = arith.cmpi eq, %arg2, %c0_i32_8 : i32
    %10 = arith.extui %9 : i1 to i32
    %c0_i32_9 = arith.constant 0 : i32
    %11 = arith.cmpi ne, %10, %c0_i32_9 : i32
    scf.if %11 {
      %c0_10 = arith.constant 0 : index
      %c0_11 = arith.constant 0 : index
      %12 = vector.load %arg7[%c0_10, %c0_11] : memref<128x128xf32, #tpu.memory_space<vmem>>, vector<128x128xf32>
      %c0_12 = arith.constant 0 : index
      %c0_13 = arith.constant 0 : index
      %13 = vector.load %arg5[%c0_12, %c0_13] : memref<1x128xf32, #tpu.memory_space<vmem>>, vector<1x128xf32>
      %14 = vector.broadcast %13 : vector<1x128xf32> to vector<128x128xf32>
      %15 = arith.addf %12, %14 : vector<128x128xf32>
      %cst_14 = arith.constant 0.000000e+00 : f32
      %16 = vector.broadcast %cst_14 : f32 to vector<128x128xf32>
      %17 = arith.maximumf %15, %16 : vector<128x128xf32>
      %18 = arith.truncf %17 : vector<128x128xf32> to vector<128x128xbf16>
      %c0_15 = arith.constant 0 : index
      %c0_16 = arith.constant 0 : index
      %19 = vector.load %arg6[%c0_15, %c0_16] : memref<128x128xbf16, #tpu.memory_space<vmem>>, vector<128x128xbf16>
      tpu.vector_store %arg6[%c0_15, %c0_16], %18 {strides = array<i32>} : memref<128x128xbf16, #tpu.memory_space<vmem>>, vector<128x128xbf16>,
    } else {
    }
    return
  }
  func.func @transform_0(%arg0: i32, %arg1: i32, %arg2: i32) -> (i32, i32) {
    %c0_i32 = arith.constant 0 : i32
    return %arg0, %arg2 : i32, i32
  }
  func.func @transform_1(%arg0: i32, %arg1: i32, %arg2: i32) -> (i32, i32) {
    %c0_i32 = arith.constant 0 : i32
    return %arg2, %arg1 : i32, i32
  }
  func.func @transform_2(%arg0: i32, %arg1: i32, %arg2: i32) -> (i32, i32) {
    %c0_i32 = arith.constant 0 : i32
    %c0_i32_0 = arith.constant 0 : i32
    return %c0_i32, %arg1 : i32, i32
  }
  func.func @transform_3(%arg0: i32, %arg1: i32, %arg2: i32) -> (i32, i32) {
    %c0_i32 = arith.constant 0 : i32
    return %arg0, %arg1 : i32, i32
  }
}

module attributes {stable_mosaic.version = 11 : i64} {
  func.func @_gemm_kernel(%arg0: i32, %arg1: i32, %arg2: i32, %arg3: memref<128x432xbf16, #tpu.memory_space<vmem>>, %arg4: memref<432x128xbf16, #tpu.memory_space<vmem>>, %arg5: memref<1x128xf32, #tpu.memory_space<vmem>>, %arg6: memref<128x128xbf16, #tpu.memory_space<vmem>>, %arg7: memref<128x128xf32, #tpu.memory_space<vmem>>) attributes {dimension_semantics = [#tpu.dimension_semantics<parallel>, #tpu.dimension_semantics<parallel>, #tpu.dimension_semantics<arbitrary>], iteration_bounds = array<i64: 1, 1, 1>, scalar_prefetch = 0 : i64, scratch_operands = 1 : i64, tpu.core_type = #tpu.core_type<tc>, window_params = [{transform_indices = @transform_0, window_bounds = array<i64: 128, 432>}, {transform_indices = @transform_1, window_bounds = array<i64: 432, 128>}, {transform_indices = @transform_2, window_bounds = array<i64: 1, 128>}, {transform_indices = @transform_3, window_bounds = array<i64: 128, 128>}]} {
    %c0_i32 = arith.constant 0 : i32
    %0 = arith.cmpi eq, %arg2, %c0_i32 : i32
    %1 = arith.extui %0 : i1 to i32
    %c0_i32_0 = arith.constant 0 : i32
    %2 = arith.cmpi ne, %1, %c0_i32_0 : i32
    scf.if %2 {
      %cst_10 = arith.constant 0.000000e+00 : f32
      %12 = vector.broadcast %cst_10 : f32 to vector<128x128xf32>
      %c0_11 = arith.constant 0 : index
      %c0_12 = arith.constant 0 : index
      %13 = vector.load %arg7[%c0_11, %c0_12] : memref<128x128xf32, #tpu.memory_space<vmem>>, vector<128x128xf32>
      tpu.vector_store %arg7[%c0_11, %c0_12], %12 {strides = array<i32>} : memref<128x128xf32, #tpu.memory_space<vmem>>, vector<128x128xf32>,
    } else {
    }
    %c0 = arith.constant 0 : index
    %c0_1 = arith.constant 0 : index
    %3 = vector.load %arg7[%c0, %c0_1] : memref<128x128xf32, #tpu.memory_space<vmem>>, vector<128x128xf32>
    %c0_2 = arith.constant 0 : index
    %c0_3 = arith.constant 0 : index
    %4 = vector.load %arg3[%c0_2, %c0_3] : memref<128x432xbf16, #tpu.memory_space<vmem>>, vector<128x432xbf16>
    %c0_4 = arith.constant 0 : index
    %c0_5 = arith.constant 0 : index
    %5 = vector.load %arg4[%c0_4, %c0_5] : memref<432x128xbf16, #tpu.memory_space<vmem>>, vector<432x128xbf16>
    %cst = arith.constant dense<0.000000e+00> : vector<128x128xf32>
    %6 = tpu.matmul %4, %5, %cst {dimension_numbers = #tpu.dot_dimension_numbers<[1], [0], [0], [1], [0, 0, 1, 1], [], []>} : vector<128x432xbf16>, vector<432x128xbf16>, vector<128x128xf32> -> vector<128x128xf32>
    %7 = arith.addf %3, %6 : vector<128x128xf32>
    %c0_6 = arith.constant 0 : index
    %c0_7 = arith.constant 0 : index
    %8 = vector.load %arg7[%c0_6, %c0_7] : memref<128x128xf32, #tpu.memory_space<vmem>>, vector<128x128xf32>
    tpu.vector_store %arg7[%c0_6, %c0_7], %7 {strides = array<i32>} : memref<128x128xf32, #tpu.memory_space<vmem>>, vector<128x128xf32>,
    %c0_i32_8 = arith.constant 0 : i32
    %9 = arith.cmpi eq, %arg2, %c0_i32_8 : i32
    %10 = arith.extui %9 : i1 to i32
    %c0_i32_9 = arith.constant 0 : i32
    %11 = arith.cmpi ne, %10, %c0_i32_9 : i32
    scf.if %11 {
      %c0_10 = arith.constant 0 : index
      %c0_11 = arith.constant 0 : index
      %12 = vector.load %arg7[%c0_10, %c0_11] : memref<128x128xf32, #tpu.memory_space<vmem>>, vector<128x128xf32>
      %c0_12 = arith.constant 0 : index
      %c0_13 = arith.constant 0 : index
      %13 = vector.load %arg5[%c0_12, %c0_13] : memref<1x128xf32, #tpu.memory_space<vmem>>, vector<1x128xf32>
      %14 = vector.broadcast %13 : vector<1x128xf32> to vector<128x128xf32>
      %15 = arith.addf %12, %14 : vector<128x128xf32>
      %16 = arith.truncf %15 : vector<128x128xf32> to vector<128x128xbf16>
      %c0_14 = arith.constant 0 : index
      %c0_15 = arith.constant 0 : index
      %17 = vector.load %arg6[%c0_14, %c0_15] : memref<128x128xbf16, #tpu.memory_space<vmem>>, vector<128x128xbf16>
      tpu.vector_store %arg6[%c0_14, %c0_15], %16 {strides = array<i32>} : memref<128x128xbf16, #tpu.memory_space<vmem>>, vector<128x128xbf16>,
    } else {
    }
    return
  }
  func.func @transform_0(%arg0: i32, %arg1: i32, %arg2: i32) -> (i32, i32) {
    %c0_i32 = arith.constant 0 : i32
    return %arg0, %arg2 : i32, i32
  }
  func.func @transform_1(%arg0: i32, %arg1: i32, %arg2: i32) -> (i32, i32) {
    %c0_i32 = arith.constant 0 : i32
    return %arg2, %arg1 : i32, i32
  }
  func.func @transform_2(%arg0: i32, %arg1: i32, %arg2: i32) -> (i32, i32) {
    %c0_i32 = arith.constant 0 : i32
    %c0_i32_0 = arith.constant 0 : i32
    return %c0_i32, %arg1 : i32, i32
  }
  func.func @transform_3(%arg0: i32, %arg1: i32, %arg2: i32) -> (i32, i32) {
    %c0_i32 = arith.constant 0 : i32
    return %arg0, %arg1 : i32, i32
  }
}

module attributes {stable_mosaic.version = 11 : i64} {
  func.func @_gemm_kernel(%arg0: i32, %arg1: i32, %arg2: i32, %arg3: memref<128x432xbf16, #tpu.memory_space<vmem>>, %arg4: memref<432x128xbf16, #tpu.memory_space<vmem>>, %arg5: memref<1x128xf32, #tpu.memory_space<vmem>>, %arg6: memref<128x128xbf16, #tpu.memory_space<vmem>>, %arg7: memref<128x128xf32, #tpu.memory_space<vmem>>) attributes {dimension_semantics = [#tpu.dimension_semantics<parallel>, #tpu.dimension_semantics<parallel>, #tpu.dimension_semantics<arbitrary>], iteration_bounds = array<i64: 1, 1, 1>, scalar_prefetch = 0 : i64, scratch_operands = 1 : i64, tpu.core_type = #tpu.core_type<tc>, window_params = [{transform_indices = @transform_0, window_bounds = array<i64: 128, 432>}, {transform_indices = @transform_1, window_bounds = array<i64: 432, 128>}, {transform_indices = @transform_2, window_bounds = array<i64: 1, 128>}, {transform_indices = @transform_3, window_bounds = array<i64: 128, 128>}]} {
    %c0_i32 = arith.constant 0 : i32
    %0 = arith.cmpi eq, %arg2, %c0_i32 : i32
    %1 = arith.extui %0 : i1 to i32
    %c0_i32_0 = arith.constant 0 : i32
    %2 = arith.cmpi ne, %1, %c0_i32_0 : i32
    scf.if %2 {
      %cst_10 = arith.constant 0.000000e+00 : f32
      %12 = vector.broadcast %cst_10 : f32 to vector<128x128xf32>
      %c0_11 = arith.constant 0 : index
      %c0_12 = arith.constant 0 : index
      %13 = vector.load %arg7[%c0_11, %c0_12] : memref<128x128xf32, #tpu.memory_space<vmem>>, vector<128x128xf32>
      tpu.vector_store %arg7[%c0_11, %c0_12], %12 {strides = array<i32>} : memref<128x128xf32, #tpu.memory_space<vmem>>, vector<128x128xf32>,
    } else {
    }
    %c0 = arith.constant 0 : index
    %c0_1 = arith.constant 0 : index
    %3 = vector.load %arg7[%c0, %c0_1] : memref<128x128xf32, #tpu.memory_space<vmem>>, vector<128x128xf32>
    %c0_2 = arith.constant 0 : index
    %c0_3 = arith.constant 0 : index
    %4 = vector.load %arg3[%c0_2, %c0_3] : memref<128x432xbf16, #tpu.memory_space<vmem>>, vector<128x432xbf16>
    %c0_4 = arith.constant 0 : index
    %c0_5 = arith.constant 0 : index
    %5 = vector.load %arg4[%c0_4, %c0_5] : memref<432x128xbf16, #tpu.memory_space<vmem>>, vector<432x128xbf16>
    %cst = arith.constant dense<0.000000e+00> : vector<128x128xf32>
    %6 = tpu.matmul %4, %5, %cst {dimension_numbers = #tpu.dot_dimension_numbers<[1], [0], [0], [1], [0, 0, 1, 1], [], []>} : vector<128x432xbf16>, vector<432x128xbf16>, vector<128x128xf32> -> vector<128x128xf32>
    %7 = arith.addf %3, %6 : vector<128x128xf32>
    %c0_6 = arith.constant 0 : index
    %c0_7 = arith.constant 0 : index
    %8 = vector.load %arg7[%c0_6, %c0_7] : memref<128x128xf32, #tpu.memory_space<vmem>>, vector<128x128xf32>
    tpu.vector_store %arg7[%c0_6, %c0_7], %7 {strides = array<i32>} : memref<128x128xf32, #tpu.memory_space<vmem>>, vector<128x128xf32>,
    %c0_i32_8 = arith.constant 0 : i32
    %9 = arith.cmpi eq, %arg2, %c0_i32_8 : i32
    %10 = arith.extui %9 : i1 to i32
    %c0_i32_9 = arith.constant 0 : i32
    %11 = arith.cmpi ne, %10, %c0_i32_9 : i32
    scf.if %11 {
      %c0_10 = arith.constant 0 : index
      %c0_11 = arith.constant 0 : index
      %12 = vector.load %arg7[%c0_10, %c0_11] : memref<128x128xf32, #tpu.memory_space<vmem>>, vector<128x128xf32>
      %c0_12 = arith.constant 0 : index
      %c0_13 = arith.constant 0 : index
      %13 = vector.load %arg5[%c0_12, %c0_13] : memref<1x128xf32, #tpu.memory_space<vmem>>, vector<1x128xf32>
      %14 = vector.broadcast %13 : vector<1x128xf32> to vector<128x128xf32>
      %15 = arith.addf %12, %14 : vector<128x128xf32>
      %cst_14 = arith.constant 0.000000e+00 : f32
      %16 = vector.broadcast %cst_14 : f32 to vector<128x128xf32>
      %17 = arith.maximumf %15, %16 : vector<128x128xf32>
      %18 = arith.truncf %17 : vector<128x128xf32> to vector<128x128xbf16>
      %c0_15 = arith.constant 0 : index
      %c0_16 = arith.constant 0 : index
      %19 = vector.load %arg6[%c0_15, %c0_16] : memref<128x128xbf16, #tpu.memory_space<vmem>>, vector<128x128xbf16>
      tpu.vector_store %arg6[%c0_15, %c0_16], %18 {strides = array<i32>} : memref<128x128xbf16, #tpu.memory_space<vmem>>, vector<128x128xbf16>,
    } else {
    }
    return
  }
  func.func @transform_0(%arg0: i32, %arg1: i32, %arg2: i32) -> (i32, i32) {
    %c0_i32 = arith.constant 0 : i32
    return %arg0, %arg2 : i32, i32
  }
  func.func @transform_1(%arg0: i32, %arg1: i32, %arg2: i32) -> (i32, i32) {
    %c0_i32 = arith.constant 0 : i32
    return %arg2, %arg1 : i32, i32
  }
  func.func @transform_2(%arg0: i32, %arg1: i32, %arg2: i32) -> (i32, i32) {
    %c0_i32 = arith.constant 0 : i32
    %c0_i32_0 = arith.constant 0 : i32
    return %c0_i32, %arg1 : i32, i32
  }
  func.func @transform_3(%arg0: i32, %arg1: i32, %arg2: i32) -> (i32, i32) {
    %c0_i32 = arith.constant 0 : i32
    return %arg0, %arg1 : i32, i32
  }
}

module attributes {stable_mosaic.version = 11 : i64} {
  func.func @_gemm_kernel(%arg0: i32, %arg1: i32, %arg2: i32, %arg3: memref<128x16xbf16, #tpu.memory_space<vmem>>, %arg4: memref<16x128xbf16, #tpu.memory_space<vmem>>, %arg5: memref<1x128xf32, #tpu.memory_space<vmem>>, %arg6: memref<128x128xbf16, #tpu.memory_space<vmem>>, %arg7: memref<128x128xbf16, #tpu.memory_space<vmem>>, %arg8: memref<128x128xf32, #tpu.memory_space<vmem>>) attributes {dimension_semantics = [#tpu.dimension_semantics<parallel>, #tpu.dimension_semantics<parallel>, #tpu.dimension_semantics<arbitrary>], iteration_bounds = array<i64: 1, 1, 1>, scalar_prefetch = 0 : i64, scratch_operands = 1 : i64, tpu.core_type = #tpu.core_type<tc>, window_params = [{transform_indices = @transform_0, window_bounds = array<i64: 128, 16>}, {transform_indices = @transform_1, window_bounds = array<i64: 16, 128>}, {transform_indices = @transform_2, window_bounds = array<i64: 1, 128>}, {transform_indices = @transform_3, window_bounds = array<i64: 128, 128>}, {transform_indices = @transform_4, window_bounds = array<i64: 128, 128>}]} {
    %c0_i32 = arith.constant 0 : i32
    %0 = arith.cmpi eq, %arg2, %c0_i32 : i32
    %1 = arith.extui %0 : i1 to i32
    %c0_i32_0 = arith.constant 0 : i32
    %2 = arith.cmpi ne, %1, %c0_i32_0 : i32
    scf.if %2 {
      %cst_10 = arith.constant 0.000000e+00 : f32
      %12 = vector.broadcast %cst_10 : f32 to vector<128x128xf32>
      %c0_11 = arith.constant 0 : index
      %c0_12 = arith.constant 0 : index
      %13 = vector.load %arg8[%c0_11, %c0_12] : memref<128x128xf32, #tpu.memory_space<vmem>>, vector<128x128xf32>
      tpu.vector_store %arg8[%c0_11, %c0_12], %12 {strides = array<i32>} : memref<128x128xf32, #tpu.memory_space<vmem>>, vector<128x128xf32>,
    } else {
    }
    %c0 = arith.constant 0 : index
    %c0_1 = arith.constant 0 : index
    %3 = vector.load %arg8[%c0, %c0_1] : memref<128x128xf32, #tpu.memory_space<vmem>>, vector<128x128xf32>
    %c0_2 = arith.constant 0 : index
    %c0_3 = arith.constant 0 : index
    %4 = vector.load %arg3[%c0_2, %c0_3] : memref<128x16xbf16, #tpu.memory_space<vmem>>, vector<128x16xbf16>
    %c0_4 = arith.constant 0 : index
    %c0_5 = arith.constant 0 : index
    %5 = vector.load %arg4[%c0_4, %c0_5] : memref<16x128xbf16, #tpu.memory_space<vmem>>, vector<16x128xbf16>
    %cst = arith.constant dense<0.000000e+00> : vector<128x128xf32>
    %6 = tpu.matmul %4, %5, %cst {dimension_numbers = #tpu.dot_dimension_numbers<[1], [0], [0], [1], [0, 0, 1, 1], [], []>} : vector<128x16xbf16>, vector<16x128xbf16>, vector<128x128xf32> -> vector<128x128xf32>
    %7 = arith.addf %3, %6 : vector<128x128xf32>
    %c0_6 = arith.constant 0 : index
    %c0_7 = arith.constant 0 : index
    %8 = vector.load %arg8[%c0_6, %c0_7] : memref<128x128xf32, #tpu.memory_space<vmem>>, vector<128x128xf32>
    tpu.vector_store %arg8[%c0_6, %c0_7], %7 {strides = array<i32>} : memref<128x128xf32, #tpu.memory_space<vmem>>, vector<128x128xf32>,
    %c0_i32_8 = arith.constant 0 : i32
    %9 = arith.cmpi eq, %arg2, %c0_i32_8 : i32
    %10 = arith.extui %9 : i1 to i32
    %c0_i32_9 = arith.constant 0 : i32
    %11 = arith.cmpi ne, %10, %c0_i32_9 : i32
    scf.if %11 {
      %c0_10 = arith.constant 0 : index
      %c0_11 = arith.constant 0 : index
      %12 = vector.load %arg8[%c0_10, %c0_11] : memref<128x128xf32, #tpu.memory_space<vmem>>, vector<128x128xf32>
      %c0_12 = arith.constant 0 : index
      %c0_13 = arith.constant 0 : index
      %13 = vector.load %arg5[%c0_12, %c0_13] : memref<1x128xf32, #tpu.memory_space<vmem>>, vector<1x128xf32>
      %14 = vector.broadcast %13 : vector<1x128xf32> to vector<128x128xf32>
      %15 = arith.addf %12, %14 : vector<128x128xf32>
      %c0_14 = arith.constant 0 : index
      %c0_15 = arith.constant 0 : index
      %16 = vector.load %arg6[%c0_14, %c0_15] : memref<128x128xbf16, #tpu.memory_space<vmem>>, vector<128x128xbf16>
      %17 = arith.extf %16 : vector<128x128xbf16> to vector<128x128xf32>
      %18 = arith.addf %15, %17 : vector<128x128xf32>
      %cst_16 = arith.constant 0.000000e+00 : f32
      %19 = vector.broadcast %cst_16 : f32 to vector<128x128xf32>
      %20 = arith.maximumf %18, %19 : vector<128x128xf32>
      %21 = arith.truncf %20 : vector<128x128xf32> to vector<128x128xbf16>
      %c0_17 = arith.constant 0 : index
      %c0_18 = arith.constant 0 : index
      %22 = vector.load %arg7[%c0_17, %c0_18] : memref<128x128xbf16, #tpu.memory_space<vmem>>, vector<128x128xbf16>
      tpu.vector_store %arg7[%c0_17, %c0_18], %21 {strides = array<i32>} : memref<128x128xbf16, #tpu.memory_space<vmem>>, vector<128x128xbf16>,
    } else {
    }
    return
  }
  func.func @transform_0(%arg0: i32, %arg1: i32, %arg2: i32) -> (i32, i32) {
    %c0_i32 = arith.constant 0 : i32
    return %arg0, %arg2 : i32, i32
  }
  func.func @transform_1(%arg0: i32, %arg1: i32, %arg2: i32) -> (i32, i32) {
    %c0_i32 = arith.constant 0 : i32
    return %arg2, %arg1 : i32, i32
  }
  func.func @transform_2(%arg0: i32, %arg1: i32, %arg2: i32) -> (i32, i32) {
    %c0_i32 = arith.constant 0 : i32
    %c0_i32_0 = arith.constant 0 : i32
    return %c0_i32, %arg1 : i32, i32
  }
  func.func @transform_3(%arg0: i32, %arg1: i32, %arg2: i32) -> (i32, i32) {
    %c0_i32 = arith.constant 0 : i32
    return %arg0, %arg1 : i32, i32
  }
  func.func @transform_4(%arg0: i32, %arg1: i32, %arg2: i32) -> (i32, i32) {
    %c0_i32 = arith.constant 0 : i32
    return %arg0, %arg1 : i32, i32
  }
}

module attributes {stable_mosaic.version = 11 : i64} {
  func.func @_gemm_kernel(%arg0: i32, %arg1: i32, %arg2: i32, %arg3: memref<128x16xbf16, #tpu.memory_space<vmem>>, %arg4: memref<16x128xbf16, #tpu.memory_space<vmem>>, %arg5: memref<1x128xf32, #tpu.memory_space<vmem>>, %arg6: memref<128x128xbf16, #tpu.memory_space<vmem>>, %arg7: memref<128x128xbf16, #tpu.memory_space<vmem>>, %arg8: memref<128x128xf32, #tpu.memory_space<vmem>>) attributes {dimension_semantics = [#tpu.dimension_semantics<parallel>, #tpu.dimension_semantics<parallel>, #tpu.dimension_semantics<arbitrary>], iteration_bounds = array<i64: 1, 1, 1>, scalar_prefetch = 0 : i64, scratch_operands = 1 : i64, tpu.core_type = #tpu.core_type<tc>, window_params = [{transform_indices = @transform_0, window_bounds = array<i64: 128, 16>}, {transform_indices = @transform_1, window_bounds = array<i64: 16, 128>}, {transform_indices = @transform_2, window_bounds = array<i64: 1, 128>}, {transform_indices = @transform_3, window_bounds = array<i64: 128, 128>}, {transform_indices = @transform_4, window_bounds = array<i64: 128, 128>}]} {
    %c0_i32 = arith.constant 0 : i32
    %0 = arith.cmpi eq, %arg2, %c0_i32 : i32
    %1 = arith.extui %0 : i1 to i32
    %c0_i32_0 = arith.constant 0 : i32
    %2 = arith.cmpi ne, %1, %c0_i32_0 : i32
    scf.if %2 {
      %cst_10 = arith.constant 0.000000e+00 : f32
      %12 = vector.broadcast %cst_10 : f32 to vector<128x128xf32>
      %c0_11 = arith.constant 0 : index
      %c0_12 = arith.constant 0 : index
      %13 = vector.load %arg8[%c0_11, %c0_12] : memref<128x128xf32, #tpu.memory_space<vmem>>, vector<128x128xf32>
      tpu.vector_store %arg8[%c0_11, %c0_12], %12 {strides = array<i32>} : memref<128x128xf32, #tpu.memory_space<vmem>>, vector<128x128xf32>,
    } else {
    }
    %c0 = arith.constant 0 : index
    %c0_1 = arith.constant 0 : index
    %3 = vector.load %arg8[%c0, %c0_1] : memref<128x128xf32, #tpu.memory_space<vmem>>, vector<128x128xf32>
    %c0_2 = arith.constant 0 : index
    %c0_3 = arith.constant 0 : index
    %4 = vector.load %arg3[%c0_2, %c0_3] : memref<128x16xbf16, #tpu.memory_space<vmem>>, vector<128x16xbf16>
    %c0_4 = arith.constant 0 : index
    %c0_5 = arith.constant 0 : index
    %5 = vector.load %arg4[%c0_4, %c0_5] : memref<16x128xbf16, #tpu.memory_space<vmem>>, vector<16x128xbf16>
    %cst = arith.constant dense<0.000000e+00> : vector<128x128xf32>
    %6 = tpu.matmul %4, %5, %cst {dimension_numbers = #tpu.dot_dimension_numbers<[1], [0], [0], [1], [0, 0, 1, 1], [], []>} : vector<128x16xbf16>, vector<16x128xbf16>, vector<128x128xf32> -> vector<128x128xf32>
    %7 = arith.addf %3, %6 : vector<128x128xf32>
    %c0_6 = arith.constant 0 : index
    %c0_7 = arith.constant 0 : index
    %8 = vector.load %arg8[%c0_6, %c0_7] : memref<128x128xf32, #tpu.memory_space<vmem>>, vector<128x128xf32>
    tpu.vector_store %arg8[%c0_6, %c0_7], %7 {strides = array<i32>} : memref<128x128xf32, #tpu.memory_space<vmem>>, vector<128x128xf32>,
    %c0_i32_8 = arith.constant 0 : i32
    %9 = arith.cmpi eq, %arg2, %c0_i32_8 : i32
    %10 = arith.extui %9 : i1 to i32
    %c0_i32_9 = arith.constant 0 : i32
    %11 = arith.cmpi ne, %10, %c0_i32_9 : i32
    scf.if %11 {
      %c0_10 = arith.constant 0 : index
      %c0_11 = arith.constant 0 : index
      %12 = vector.load %arg8[%c0_10, %c0_11] : memref<128x128xf32, #tpu.memory_space<vmem>>, vector<128x128xf32>
      %c0_12 = arith.constant 0 : index
      %c0_13 = arith.constant 0 : index
      %13 = vector.load %arg5[%c0_12, %c0_13] : memref<1x128xf32, #tpu.memory_space<vmem>>, vector<1x128xf32>
      %14 = vector.broadcast %13 : vector<1x128xf32> to vector<128x128xf32>
      %15 = arith.addf %12, %14 : vector<128x128xf32>
      %c0_14 = arith.constant 0 : index
      %c0_15 = arith.constant 0 : index
      %16 = vector.load %arg6[%c0_14, %c0_15] : memref<128x128xbf16, #tpu.memory_space<vmem>>, vector<128x128xbf16>
      %17 = arith.extf %16 : vector<128x128xbf16> to vector<128x128xf32>
      %18 = arith.addf %15, %17 : vector<128x128xf32>
      %19 = arith.truncf %18 : vector<128x128xf32> to vector<128x128xbf16>
      %c0_16 = arith.constant 0 : index
      %c0_17 = arith.constant 0 : index
      %20 = vector.load %arg7[%c0_16, %c0_17] : memref<128x128xbf16, #tpu.memory_space<vmem>>, vector<128x128xbf16>
      tpu.vector_store %arg7[%c0_16, %c0_17], %19 {strides = array<i32>} : memref<128x128xbf16, #tpu.memory_space<vmem>>, vector<128x128xbf16>,
    } else {
    }
    return
  }
  func.func @transform_0(%arg0: i32, %arg1: i32, %arg2: i32) -> (i32, i32) {
    %c0_i32 = arith.constant 0 : i32
    return %arg0, %arg2 : i32, i32
  }
  func.func @transform_1(%arg0: i32, %arg1: i32, %arg2: i32) -> (i32, i32) {
    %c0_i32 = arith.constant 0 : i32
    return %arg2, %arg1 : i32, i32
  }
  func.func @transform_2(%arg0: i32, %arg1: i32, %arg2: i32) -> (i32, i32) {
    %c0_i32 = arith.constant 0 : i32
    %c0_i32_0 = arith.constant 0 : i32
    return %c0_i32, %arg1 : i32, i32
  }
  func.func @transform_3(%arg0: i32, %arg1: i32, %arg2: i32) -> (i32, i32) {
    %c0_i32 = arith.constant 0 : i32
    return %arg0, %arg1 : i32, i32
  }
  func.func @transform_4(%arg0: i32, %arg1: i32, %arg2: i32) -> (i32, i32) {
    %c0_i32 = arith.constant 0 : i32
    return %arg0, %arg1 : i32, i32
  }
}

module attributes {stable_mosaic.version = 11 : i64} {
  func.func @_gemm_kernel(%arg0: i32, %arg1: i32, %arg2: i32, %arg3: memref<128x16xbf16, #tpu.memory_space<vmem>>, %arg4: memref<16x128xbf16, #tpu.memory_space<vmem>>, %arg5: memref<1x128xf32, #tpu.memory_space<vmem>>, %arg6: memref<128x128xbf16, #tpu.memory_space<vmem>>, %arg7: memref<128x128xf32, #tpu.memory_space<vmem>>) attributes {dimension_semantics = [#tpu.dimension_semantics<parallel>, #tpu.dimension_semantics<parallel>, #tpu.dimension_semantics<arbitrary>], iteration_bounds = array<i64: 1, 1, 1>, scalar_prefetch = 0 : i64, scratch_operands = 1 : i64, tpu.core_type = #tpu.core_type<tc>, window_params = [{transform_indices = @transform_0, window_bounds = array<i64: 128, 16>}, {transform_indices = @transform_1, window_bounds = array<i64: 16, 128>}, {transform_indices = @transform_2, window_bounds = array<i64: 1, 128>}, {transform_indices = @transform_3, window_bounds = array<i64: 128, 128>}]} {
    %c0_i32 = arith.constant 0 : i32
    %0 = arith.cmpi eq, %arg2, %c0_i32 : i32
    %1 = arith.extui %0 : i1 to i32
    %c0_i32_0 = arith.constant 0 : i32
    %2 = arith.cmpi ne, %1, %c0_i32_0 : i32
    scf.if %2 {
      %cst_10 = arith.constant 0.000000e+00 : f32
      %12 = vector.broadcast %cst_10 : f32 to vector<128x128xf32>
      %c0_11 = arith.constant 0 : index
      %c0_12 = arith.constant 0 : index
      %13 = vector.load %arg7[%c0_11, %c0_12] : memref<128x128xf32, #tpu.memory_space<vmem>>, vector<128x128xf32>
      tpu.vector_store %arg7[%c0_11, %c0_12], %12 {strides = array<i32>} : memref<128x128xf32, #tpu.memory_space<vmem>>, vector<128x128xf32>,
    } else {
    }
    %c0 = arith.constant 0 : index
    %c0_1 = arith.constant 0 : index
    %3 = vector.load %arg7[%c0, %c0_1] : memref<128x128xf32, #tpu.memory_space<vmem>>, vector<128x128xf32>
    %c0_2 = arith.constant 0 : index
    %c0_3 = arith.constant 0 : index
    %4 = vector.load %arg3[%c0_2, %c0_3] : memref<128x16xbf16, #tpu.memory_space<vmem>>, vector<128x16xbf16>
    %c0_4 = arith.constant 0 : index
    %c0_5 = arith.constant 0 : index
    %5 = vector.load %arg4[%c0_4, %c0_5] : memref<16x128xbf16, #tpu.memory_space<vmem>>, vector<16x128xbf16>
    %cst = arith.constant dense<0.000000e+00> : vector<128x128xf32>
    %6 = tpu.matmul %4, %5, %cst {dimension_numbers = #tpu.dot_dimension_numbers<[1], [0], [0], [1], [0, 0, 1, 1], [], []>} : vector<128x16xbf16>, vector<16x128xbf16>, vector<128x128xf32> -> vector<128x128xf32>
    %7 = arith.addf %3, %6 : vector<128x128xf32>
    %c0_6 = arith.constant 0 : index
    %c0_7 = arith.constant 0 : index
    %8 = vector.load %arg7[%c0_6, %c0_7] : memref<128x128xf32, #tpu.memory_space<vmem>>, vector<128x128xf32>
    tpu.vector_store %arg7[%c0_6, %c0_7], %7 {strides = array<i32>} : memref<128x128xf32, #tpu.memory_space<vmem>>, vector<128x128xf32>,
    %c0_i32_8 = arith.constant 0 : i32
    %9 = arith.cmpi eq, %arg2, %c0_i32_8 : i32
    %10 = arith.extui %9 : i1 to i32
    %c0_i32_9 = arith.constant 0 : i32
    %11 = arith.cmpi ne, %10, %c0_i32_9 : i32
    scf.if %11 {
      %c0_10 = arith.constant 0 : index
      %c0_11 = arith.constant 0 : index
      %12 = vector.load %arg7[%c0_10, %c0_11] : memref<128x128xf32, #tpu.memory_space<vmem>>, vector<128x128xf32>
      %c0_12 = arith.constant 0 : index
      %c0_13 = arith.constant 0 : index
      %13 = vector.load %arg5[%c0_12, %c0_13] : memref<1x128xf32, #tpu.memory_space<vmem>>, vector<1x128xf32>
      %14 = vector.broadcast %13 : vector<1x128xf32> to vector<128x128xf32>
      %15 = arith.addf %12, %14 : vector<128x128xf32>
      %16 = arith.truncf %15 : vector<128x128xf32> to vector<128x128xbf16>
      %c0_14 = arith.constant 0 : index
      %c0_15 = arith.constant 0 : index
      %17 = vector.load %arg6[%c0_14, %c0_15] : memref<128x128xbf16, #tpu.memory_space<vmem>>, vector<128x128xbf16>
      tpu.vector_store %arg6[%c0_14, %c0_15], %16 {strides = array<i32>} : memref<128x128xbf16, #tpu.memory_space<vmem>>, vector<128x128xbf16>,
    } else {
    }
    return
  }
  func.func @transform_0(%arg0: i32, %arg1: i32, %arg2: i32) -> (i32, i32) {
    %c0_i32 = arith.constant 0 : i32
    return %arg0, %arg2 : i32, i32
  }
  func.func @transform_1(%arg0: i32, %arg1: i32, %arg2: i32) -> (i32, i32) {
    %c0_i32 = arith.constant 0 : i32
    return %arg2, %arg1 : i32, i32
  }
  func.func @transform_2(%arg0: i32, %arg1: i32, %arg2: i32) -> (i32, i32) {
    %c0_i32 = arith.constant 0 : i32
    %c0_i32_0 = arith.constant 0 : i32
    return %c0_i32, %arg1 : i32, i32
  }
  func.func @transform_3(%arg0: i32, %arg1: i32, %arg2: i32) -> (i32, i32) {
    %c0_i32 = arith.constant 0 : i32
    return %arg0, %arg1 : i32, i32
  }
}

module attributes {stable_mosaic.version = 11 : i64} {
  func.func @_vq_kernel(%arg0: i32, %arg1: memref<512x128xbf16, #tpu.memory_space<vmem>>, %arg2: memref<128x128xf32, #tpu.memory_space<vmem>>, %arg3: memref<1x128xf32, #tpu.memory_space<vmem>>, %arg4: memref<512x128xbf16, #tpu.memory_space<vmem>>, %arg5: memref<1x1x128xf32, #tpu.memory_space<vmem>>, %arg6: memref<1x1x128xf32, #tpu.memory_space<vmem>>) attributes {dimension_semantics = [#tpu.dimension_semantics<parallel>], iteration_bounds = array<i64: 1>, scalar_prefetch = 0 : i64, scratch_operands = 0 : i64, tpu.core_type = #tpu.core_type<tc>, window_params = [{transform_indices = @transform_0, window_bounds = array<i64: 512, 128>}, {pipeline_mode = #tpu.pipeline_mode<synchronous>, transform_indices = @transform_1, window_bounds = array<i64: 128, 128>}, {pipeline_mode = #tpu.pipeline_mode<synchronous>, transform_indices = @transform_2, window_bounds = array<i64: 1, 128>}, {transform_indices = @transform_3, window_bounds = array<i64: 512, 128>}, {transform_indices = @transform_4, window_bounds = array<i64: 1, 1, 128>}, {transform_indices = @transform_5, window_bounds = array<i64: 1, 1, 128>}]} {
    %c0 = arith.constant 0 : index
    %c0_0 = arith.constant 0 : index
    %0 = vector.load %arg1[%c0, %c0_0] : memref<512x128xbf16, #tpu.memory_space<vmem>>, vector<512x128xbf16>
    %c0_1 = arith.constant 0 : index
    %c0_2 = arith.constant 0 : index
    %1 = vector.load %arg2[%c0_1, %c0_2] : memref<128x128xf32, #tpu.memory_space<vmem>>, vector<128x128xf32>
    %2 = arith.truncf %1 : vector<128x128xf32> to vector<128x128xbf16>
    %cst = arith.constant dense<0.000000e+00> : vector<512x128xf32>
    %3 = tpu.matmul %0, %2, %cst {dimension_numbers = #tpu.dot_dimension_numbers<[1], [1], [0], [0], [0, 0, 1, 0], [], []>} : vector<512x128xbf16>, vector<128x128xbf16>, vector<512x128xf32> -> vector<512x128xf32>
    %c0_3 = arith.constant 0 : index
    %c0_4 = arith.constant 0 : index
    %4 = vector.load %arg3[%c0_3, %c0_4] : memref<1x128xf32, #tpu.memory_space<vmem>>, vector<1x128xf32>
    %cst_5 = arith.constant 2.000000e+00 : f32
    %5 = vector.broadcast %cst_5 : f32 to vector<512x128xf32>
    %6 = arith.mulf %5, %3 : vector<512x128xf32>
    %7 = vector.broadcast %4 : vector<1x128xf32> to vector<512x128xf32>
    %8 = arith.subf %7, %6 : vector<512x128xf32>
    %cst_6 = arith.constant dense<0x7F800000> : vector<512xf32>
    %9 = vector.multi_reduction <minimumf>, %8, %cst_6 [1] : vector<512x128xf32> to vector<512xf32>
    %10 = vector.shape_cast %9 : vector<512xf32> to vector<512x1xf32>
    %11 = tpu.iota {dimensions = array<i32: 1>} : vector<512x128xi32>
    %12 = vector.broadcast %10 : vector<512x1xf32> to vector<512x128xf32>
    %13 = arith.cmpf ole, %8, %12 : vector<512x128xf32>
    %c128_i32 = arith.constant 128 : i32
    %14 = vector.broadcast %c128_i32 : i32 to vector<512x128xi32>
    %15 = arith.select %13, %11, %14 : vector<512x128xi1>, vector<512x128xi32>
    %cst_7 = arith.constant dense<2147483647> : vector<512xi32>
    %16 = vector.multi_reduction <minsi>, %15, %cst_7 [1] : vector<512x128xi32> to vector<512xi32>
    %17 = vector.shape_cast %16 : vector<512xi32> to vector<512x1xi32>
    %18 = vector.broadcast %17 : vector<512x1xi32> to vector<512x128xi32>
    %19 = arith.cmpi eq, %11, %18 : vector<512x128xi32>
    %20 = arith.extui %19 : vector<512x128xi1> to vector<512x128xi32>
    %21 = arith.sitofp %20 : vector<512x128xi32> to vector<512x128xf32>
    %cst_8 = arith.constant dense<0.000000e+00> : vector<512x128xf32>
    %22 = tpu.matmul %21, %1, %cst_8 {dimension_numbers = #tpu.dot_dimension_numbers<[1], [0], [0], [1], [0, 0, 1, 1], [], []>} : vector<512x128xf32>, vector<128x128xf32>, vector<512x128xf32> -> vector<512x128xf32>
    %23 = arith.truncf %22 : vector<512x128xf32> to vector<512x128xbf16>
    %c0_9 = arith.constant 0 : index
    %c0_10 = arith.constant 0 : index
    %24 = vector.load %arg4[%c0_9, %c0_10] : memref<512x128xbf16, #tpu.memory_space<vmem>>, vector<512x128xbf16>
    tpu.vector_store %arg4[%c0_9, %c0_10], %23 {strides = array<i32>} : memref<512x128xbf16, #tpu.memory_space<vmem>>, vector<512x128xbf16>,
    %25 = arith.extf %0 : vector<512x128xbf16> to vector<512x128xf32>
    %26 = tpu.iota {dimensions = array<i32: 0>} : vector<512x1xi32>
    %c512_i32 = arith.constant 512 : i32
    %27 = arith.muli %arg0, %c512_i32 : i32
    %28 = vector.broadcast %27 : i32 to vector<512x1xi32>
    %29 = arith.addi %26, %28 : vector<512x1xi32>
    %c16_i32 = arith.constant 16 : i32
    %30 = vector.broadcast %c16_i32 : i32 to vector<512x1xi32>
    %31 = arith.cmpi slt, %29, %30 : vector<512x1xi32>
    %32 = arith.extui %31 : vector<512x1xi1> to vector<512x1xi32>
    %33 = arith.sitofp %32 : vector<512x1xi32> to vector<512x1xf32>
    %34 = arith.subf %22, %25 : vector<512x128xf32>
    %35 = arith.mulf %34, %34 : vector<512x128xf32>
    %cst_11 = arith.constant dense<0.000000e+00> : vector<512xf32>
    %36 = vector.multi_reduction <add>, %35, %cst_11 [1] : vector<512x128xf32> to vector<512xf32>
    %37 = vector.shape_cast %36 : vector<512xf32> to vector<512x1xf32>
    %38 = arith.mulf %37, %33 : vector<512x1xf32>
    %39 = vector.shape_cast %38 : vector<512x1xf32> to vector<1x512x1xf32>
    %cst_12 = arith.constant dense<0.000000e+00> : vector<1xf32>
    %40 = vector.multi_reduction <add>, %39, %cst_12 [1, 2] : vector<1x512x1xf32> to vector<1xf32>
    %41 = vector.shape_cast %40 : vector<1xf32> to vector<1x1x1xf32>
    %42 = vector.extract %41[0, 0, 0] : f32 from vector<1x1x1xf32>
    %43 = vector.broadcast %42 : f32 to vector<1x1x128xf32>
    %c0_13 = arith.constant 0 : index
    %c0_14 = arith.constant 0 : index
    %c0_15 = arith.constant 0 : index
    %44 = vector.load %arg5[%c0_13, %c0_14, %c0_15] : memref<1x1x128xf32, #tpu.memory_space<vmem>>, vector<1x1x128xf32>
    tpu.vector_store %arg5[%c0_13, %c0_14, %c0_15], %43 {strides = array<i32>} : memref<1x1x128xf32, #tpu.memory_space<vmem>>, vector<1x1x128xf32>,
    %45 = vector.broadcast %33 : vector<512x1xf32> to vector<512x128xf32>
    %46 = arith.mulf %21, %45 : vector<512x128xf32>
    %cst_16 = arith.constant dense<0.000000e+00> : vector<128xf32>
    %47 = vector.multi_reduction <add>, %46, %cst_16 [0] : vector<512x128xf32> to vector<128xf32>
    %48 = vector.shape_cast %47 : vector<128xf32> to vector<1x128xf32>
    %49 = vector.shape_cast %48 : vector<1x128xf32> to vector<1x1x128xf32>
    %c0_17 = arith.constant 0 : index
    %c0_18 = arith.constant 0 : index
    %c0_19 = arith.constant 0 : index
    %50 = vector.load %arg6[%c0_17, %c0_18, %c0_19] : memref<1x1x128xf32, #tpu.memory_space<vmem>>, vector<1x1x128xf32>
    tpu.vector_store %arg6[%c0_17, %c0_18, %c0_19], %49 {strides = array<i32>} : memref<1x1x128xf32, #tpu.memory_space<vmem>>, vector<1x1x128xf32>,
    return
  }
  func.func @transform_0(%arg0: i32) -> (i32, i32) {
    %c0_i32 = arith.constant 0 : i32
    %c0_i32_0 = arith.constant 0 : i32
    return %arg0, %c0_i32 : i32, i32
  }
  func.func @transform_1(%arg0: i32) -> (i32, i32) {
    %c0_i32 = arith.constant 0 : i32
    %c0_i32_0 = arith.constant 0 : i32
    %c0_i32_1 = arith.constant 0 : i32
    return %c0_i32, %c0_i32_0 : i32, i32
  }
  func.func @transform_2(%arg0: i32) -> (i32, i32) {
    %c0_i32 = arith.constant 0 : i32
    %c0_i32_0 = arith.constant 0 : i32
    %c0_i32_1 = arith.constant 0 : i32
    return %c0_i32, %c0_i32_0 : i32, i32
  }
  func.func @transform_3(%arg0: i32) -> (i32, i32) {
    %c0_i32 = arith.constant 0 : i32
    %c0_i32_0 = arith.constant 0 : i32
    return %arg0, %c0_i32 : i32, i32
  }
  func.func @transform_4(%arg0: i32) -> (i32, i32, i32) {
    %c0_i32 = arith.constant 0 : i32
    %c0_i32_0 = arith.constant 0 : i32
    %c0_i32_1 = arith.constant 0 : i32
    return %arg0, %c0_i32, %c0_i32_0 : i32, i32, i32
  }
  func.func @transform_5(%arg0: i32) -> (i32, i32, i32) {
    %c0_i32 = arith.constant 0 : i32
    %c0_i32_0 = arith.constant 0 : i32
    %c0_i32_1 = arith.constant 0 : i32
    return %arg0, %c0_i32, %c0_i32_0 : i32, i32, i32
  }
}

module attributes {stable_mosaic.version = 11 : i64} {
  func.func @_gemm_kernel(%arg0: i32, %arg1: i32, %arg2: i32, %arg3: memref<128x224xbf16, #tpu.memory_space<vmem>>, %arg4: memref<224x128xbf16, #tpu.memory_space<vmem>>, %arg5: memref<1x128xf32, #tpu.memory_space<vmem>>, %arg6: memref<128x128xbf16, #tpu.memory_space<vmem>>, %arg7: memref<128x128xf32, #tpu.memory_space<vmem>>) attributes {dimension_semantics = [#tpu.dimension_semantics<parallel>, #tpu.dimension_semantics<parallel>, #tpu.dimension_semantics<arbitrary>], iteration_bounds = array<i64: 1, 1, 1>, scalar_prefetch = 0 : i64, scratch_operands = 1 : i64, tpu.core_type = #tpu.core_type<tc>, window_params = [{transform_indices = @transform_0, window_bounds = array<i64: 128, 224>}, {transform_indices = @transform_1, window_bounds = array<i64: 224, 128>}, {transform_indices = @transform_2, window_bounds = array<i64: 1, 128>}, {transform_indices = @transform_3, window_bounds = array<i64: 128, 128>}]} {
    %c0_i32 = arith.constant 0 : i32
    %0 = arith.cmpi eq, %arg2, %c0_i32 : i32
    %1 = arith.extui %0 : i1 to i32
    %c0_i32_0 = arith.constant 0 : i32
    %2 = arith.cmpi ne, %1, %c0_i32_0 : i32
    scf.if %2 {
      %cst_10 = arith.constant 0.000000e+00 : f32
      %12 = vector.broadcast %cst_10 : f32 to vector<128x128xf32>
      %c0_11 = arith.constant 0 : index
      %c0_12 = arith.constant 0 : index
      %13 = vector.load %arg7[%c0_11, %c0_12] : memref<128x128xf32, #tpu.memory_space<vmem>>, vector<128x128xf32>
      tpu.vector_store %arg7[%c0_11, %c0_12], %12 {strides = array<i32>} : memref<128x128xf32, #tpu.memory_space<vmem>>, vector<128x128xf32>,
    } else {
    }
    %c0 = arith.constant 0 : index
    %c0_1 = arith.constant 0 : index
    %3 = vector.load %arg7[%c0, %c0_1] : memref<128x128xf32, #tpu.memory_space<vmem>>, vector<128x128xf32>
    %c0_2 = arith.constant 0 : index
    %c0_3 = arith.constant 0 : index
    %4 = vector.load %arg3[%c0_2, %c0_3] : memref<128x224xbf16, #tpu.memory_space<vmem>>, vector<128x224xbf16>
    %c0_4 = arith.constant 0 : index
    %c0_5 = arith.constant 0 : index
    %5 = vector.load %arg4[%c0_4, %c0_5] : memref<224x128xbf16, #tpu.memory_space<vmem>>, vector<224x128xbf16>
    %cst = arith.constant dense<0.000000e+00> : vector<128x128xf32>
    %6 = tpu.matmul %4, %5, %cst {dimension_numbers = #tpu.dot_dimension_numbers<[1], [0], [0], [1], [0, 0, 1, 1], [], []>} : vector<128x224xbf16>, vector<224x128xbf16>, vector<128x128xf32> -> vector<128x128xf32>
    %7 = arith.addf %3, %6 : vector<128x128xf32>
    %c0_6 = arith.constant 0 : index
    %c0_7 = arith.constant 0 : index
    %8 = vector.load %arg7[%c0_6, %c0_7] : memref<128x128xf32, #tpu.memory_space<vmem>>, vector<128x128xf32>
    tpu.vector_store %arg7[%c0_6, %c0_7], %7 {strides = array<i32>} : memref<128x128xf32, #tpu.memory_space<vmem>>, vector<128x128xf32>,
    %c0_i32_8 = arith.constant 0 : i32
    %9 = arith.cmpi eq, %arg2, %c0_i32_8 : i32
    %10 = arith.extui %9 : i1 to i32
    %c0_i32_9 = arith.constant 0 : i32
    %11 = arith.cmpi ne, %10, %c0_i32_9 : i32
    scf.if %11 {
      %c0_10 = arith.constant 0 : index
      %c0_11 = arith.constant 0 : index
      %12 = vector.load %arg7[%c0_10, %c0_11] : memref<128x128xf32, #tpu.memory_space<vmem>>, vector<128x128xf32>
      %c0_12 = arith.constant 0 : index
      %c0_13 = arith.constant 0 : index
      %13 = vector.load %arg5[%c0_12, %c0_13] : memref<1x128xf32, #tpu.memory_space<vmem>>, vector<1x128xf32>
      %14 = vector.broadcast %13 : vector<1x128xf32> to vector<128x128xf32>
      %15 = arith.addf %12, %14 : vector<128x128xf32>
      %16 = arith.truncf %15 : vector<128x128xf32> to vector<128x128xbf16>
      %c0_14 = arith.constant 0 : index
      %c0_15 = arith.constant 0 : index
      %17 = vector.load %arg6[%c0_14, %c0_15] : memref<128x128xbf16, #tpu.memory_space<vmem>>, vector<128x128xbf16>
      tpu.vector_store %arg6[%c0_14, %c0_15], %16 {strides = array<i32>} : memref<128x128xbf16, #tpu.memory_space<vmem>>, vector<128x128xbf16>,
    } else {
    }
    return
  }
  func.func @transform_0(%arg0: i32, %arg1: i32, %arg2: i32) -> (i32, i32) {
    %c0_i32 = arith.constant 0 : i32
    return %arg0, %arg2 : i32, i32
  }
  func.func @transform_1(%arg0: i32, %arg1: i32, %arg2: i32) -> (i32, i32) {
    %c0_i32 = arith.constant 0 : i32
    return %arg2, %arg1 : i32, i32
  }
  func.func @transform_2(%arg0: i32, %arg1: i32, %arg2: i32) -> (i32, i32) {
    %c0_i32 = arith.constant 0 : i32
    %c0_i32_0 = arith.constant 0 : i32
    return %c0_i32, %arg1 : i32, i32
  }
  func.func @transform_3(%arg0: i32, %arg1: i32, %arg2: i32) -> (i32, i32) {
    %c0_i32 = arith.constant 0 : i32
    return %arg0, %arg1 : i32, i32
  }
}

</mosaic_0001>

<llo_original>
// kernel: vqvae_forward.16
$region0: #{vqvae_forward.16}
  #allocation0 [shape = 'u32[]', space=smem, size = 0x4, offset = 0x4, fixed_abs, tag = 'smem constant byte address 0x4 - core index']
  #allocation1 [shape = 'u32[144,128]{1,0:T(1,128)}', space=vmem, size = 0x12000, scoped, tag = 'internal scratch']
  #allocation2 [shape = 'f32[128,128]{1,0:T(8,128)}', space=vmem, size = 0x10000, scoped, tag = 'scratch operand']
  %s0 = inlined_call_operand.vmem [shape: bf16[128,192], index: 0, kind: input, shape index: {}]
  %s1 = inlined_call_operand.vmem [shape: bf16[192,128], index: 1, kind: input, shape index: {}]
  %s2 = inlined_call_operand.vmem [shape: f32[1,128], index: 2, kind: input, shape index: {}]
  %s3 = inlined_call_operand.vmem [shape: bf16[128,128], index: 3, kind: output, shape index: {}]
  %s4 = sld [smem:[#allocation0]]
  $region30: #{vqvae_forward.16} parent=0
    _
  %s6 = ssub.s32 1, %s4
  %s7 = scalar_select 0, %s6, %s4
  // Predicated region
  $region2: #{vqvae_forward.16} parent=0 // pred_check
    _
  $region3: #{vqvae_forward.16} parent=0 // pred_check_branch
    %9 = sbr.rel (0) target = $region5
  $region4: #{vqvae_forward.16} parent=0 // pred_region
    _
  $region5: #{vqvae_forward.16} parent=0 // pred_fallthru
    _
  // Predicated region
  $region6: #{vqvae_forward.16} parent=0 // pred_check
    _
  $region7: #{vqvae_forward.16} parent=0 // pred_check_branch
    %11 = sbr.rel (0) target = $region9
  $region8: #{vqvae_forward.16} parent=0 // pred_region
    _
  $region9: #{vqvae_forward.16} parent=0 // pred_fallthru
    _
  // Predicated region
  $region10: #{vqvae_forward.16} parent=0 // pred_check
    _
  $region11: #{vqvae_forward.16} parent=0 // pred_check_branch
    %13 = sbr.rel (0) target = $region13
  $region12: #{vqvae_forward.16} parent=0 // pred_region
    _
  $region13: #{vqvae_forward.16} parent=0 // pred_fallthru
    _
  %p15 = scmp.eq.s32.totalorder 0, 0
  // Predicated region
  $region14: #{vqvae_forward.16} parent=0 // pred_check
    %p16 = pneg %p15
  $region15: #{vqvae_forward.16} parent=0 // pred_check_branch
    %18 = sbr.rel (%p16) target = $region17
  $region16: #{vqvae_forward.16} parent=0 // pred_region
    %19 = vst [vmem:[#allocation2] sm:$0xff] 0.0
    %20 = vst [vmem:[#allocation2 + $0x8] sm:$0xff] 0.0
    %21 = vst [vmem:[#allocation2 + $0x10] sm:$0xff] 0.0
    %22 = vst [vmem:[#allocation2 + $0x18] sm:$0xff] 0.0
    %23 = vst [vmem:[#allocation2 + $0x20] sm:$0xff] 0.0
    %24 = vst [vmem:[#allocation2 + $0x28] sm:$0xff] 0.0
    %25 = vst [vmem:[#allocation2 + $0x30] sm:$0xff] 0.0
    %26 = vst [vmem:[#allocation2 + $0x38] sm:$0xff] 0.0
    %27 = vst [vmem:[#allocation2 + $0x40] sm:$0xff] 0.0
    %28 = vst [vmem:[#allocation2 + $0x48] sm:$0xff] 0.0
    %29 = vst [vmem:[#allocation2 + $0x50] sm:$0xff] 0.0
    %30 = vst [vmem:[#allocation2 + $0x58] sm:$0xff] 0.0
    %31 = vst [vmem:[#allocation2 + $0x60] sm:$0xff] 0.0
    %32 = vst [vmem:[#allocation2 + $0x68] sm:$0xff] 0.0
    %33 = vst [vmem:[#allocation2 + $0x70] sm:$0xff] 0.0
    %34 = vst [vmem:[#allocation2 + $0x78] sm:$0xff] 0.0
  $region17: #{vqvae_forward.16} parent=0 // pred_fallthru
    _
  %v35 = vld [vmem:[#allocation2] sm:$0xff]
  %v36 = vld [vmem:[#allocation2 + $0x8] sm:$0xff]
  %v37 = vld [vmem:[#allocation2 + $0x10] sm:$0xff]
  %v38 = vld [vmem:[#allocation2 + $0x18] sm:$0xff]
  %v39 = vld [vmem:[#allocation2 + $0x20] sm:$0xff]
  %v40 = vld [vmem:[#allocation2 + $0x28] sm:$0xff]
  %v41 = vld [vmem:[#allocation2 + $0x30] sm:$0xff]
  %v42 = vld [vmem:[#allocation2 + $0x38] sm:$0xff]
  %v43 = vld [vmem:[#allocation2 + $0x40] sm:$0xff]
  %v44 = vld [vmem:[#allocation2 + $0x48] sm:$0xff]
  %v45 = vld [vmem:[#allocation2 + $0x50] sm:$0xff]
  %v46 = vld [vmem:[#allocation2 + $0x58] sm:$0xff]
  %v47 = vld [vmem:[#allocation2 + $0x60] sm:$0xff]
  %v48 = vld [vmem:[#allocation2 + $0x68] sm:$0xff]
  %v49 = vld [vmem:[#allocation2 + $0x70] sm:$0xff]
  %v50 = vld [vmem:[#allocation2 + $0x78] sm:$0xff]
  %v51 = vld [vmem:[%s0] sm:$0xff]
  %v52 = vld [vmem:[%s0 + $0x8] sm:$0xff]
  %v53 = vld [vmem:[%s0 + $0x10] sm:$0xff]
  %v54 = vld [vmem:[%s0 + $0x18] sm:$0xff]
  %v55 = vld [vmem:[%s0 + $0x20] sm:$0xff]
  %v56 = vld [vmem:[%s0 + $0x28] sm:$0xff]
  %v57 = vld [vmem:[%s0 + $0x30] sm:$0xff]
  %v58 = vld [vmem:[%s0 + $0x38] sm:$0xff]
  %v59 = vld [vmem:[%s0 + $0x40] sm:$0xff]
  %v60 = vld [vmem:[%s0 + $0x48] sm:$0xff]
  %v61 = vld [vmem:[%s0 + $0x50] sm:$0xff]
  %v62 = vld [vmem:[%s0 + $0x58] sm:$0xff]
  %v63 = vld [vmem:[%s0 + $0x60] sm:$0xff]
  %v64 = vld [vmem:[%s0 + $0x68] sm:$0xff]
  %v65 = vld [vmem:[%s0 + $0x70] sm:$0xff]
  %v66 = vld [vmem:[%s0 + $0x78] sm:$0xff]
  %v67 = vld [vmem:[%s1] sm:$0xf]
  %v68 = vld [vmem:[%s1 + $0x4] sm:$0xf]
  %v69 = vld [vmem:[%s1 + $0x8] sm:$0xf]
  %v70 = vld [vmem:[%s1 + $0xc] sm:$0xf]
  %v71 = vld [vmem:[%s1 + $0x10] sm:$0xf]
  %v72 = vld [vmem:[%s1 + $0x14] sm:$0xf]
  %v73 = vld [vmem:[%s1 + $0x18] sm:$0xf]
  %v74 = vld [vmem:[%s1 + $0x1c] sm:$0xf]
  %v75 = vld [vmem:[%s1 + $0x20] sm:$0xf]
  %v76 = vld [vmem:[%s1 + $0x24] sm:$0xf]
  %v77 = vld [vmem:[%s1 + $0x28] sm:$0xf]
  %v78 = vld [vmem:[%s1 + $0x2c] sm:$0xf]
  %v79 = vld [vmem:[%s1 + $0x30] sm:$0xf]
  %v80 = vld [vmem:[%s1 + $0x34] sm:$0xf]
  %v81 = vld [vmem:[%s1 + $0x38] sm:$0xf]
  %v82 = vld [vmem:[%s1 + $0x3c] sm:$0xf]
  %v83 = vld [vmem:[%s1 + $0x40] sm:$0xf]
  %v84 = vld [vmem:[%s1 + $0x44] sm:$0xf]
  %v85 = vld [vmem:[%s1 + $0x48] sm:$0xf]
  %v86 = vld [vmem:[%s1 + $0x4c] sm:$0xf]
  %v87 = vld [vmem:[%s1 + $0x50] sm:$0xf]
  %v88 = vld [vmem:[%s1 + $0x54] sm:$0xf]
  %v89 = vld [vmem:[%s1 + $0x58] sm:$0xf]
  %v90 = vld [vmem:[%s1 + $0x5c] sm:$0xf]
  %v107 = vunpack.c.l.b16 %v51
  %v108 = vunpack.c.h.b16 %v51
  %v109 = vunpack.c.l.b16 %v52
  %v110 = vunpack.c.h.b16 %v52
  %v111 = vunpack.c.l.b16 %v53
  %v112 = vunpack.c.h.b16 %v53
  %v113 = vunpack.c.l.b16 %v54
  %v114 = vunpack.c.h.b16 %v54
  %v115 = vunpack.c.l.b16 %v55
  %v116 = vunpack.c.h.b16 %v55
  %v117 = vunpack.c.l.b16 %v56
  %v118 = vunpack.c.h.b16 %v56
  %v119 = vunpack.c.l.b16 %v57
  %v120 = vunpack.c.h.b16 %v57
  %v121 = vunpack.c.l.b16 %v58
  %v122 = vunpack.c.h.b16 %v58
  %v123 = vunpack.c.l.b16 %v59
  %v124 = vunpack.c.h.b16 %v59
  %v125 = vunpack.c.l.b16 %v60
  %v126 = vunpack.c.h.b16 %v60
  %v127 = vunpack.c.l.b16 %v61
  %v128 = vunpack.c.h.b16 %v61
  %v129 = vunpack.c.l.b16 %v62
  %v130 = vunpack.c.h.b16 %v62
  %v131 = vunpack.c.l.b16 %v63
  %v132 = vunpack.c.h.b16 %v63
  %v133 = vunpack.c.l.b16 %v64
  %v134 = vunpack.c.h.b16 %v64
  %v135 = vunpack.c.l.b16 %v65
  %v136 = vunpack.c.h.b16 %v65
  %v137 = vunpack.c.l.b16 %v66
  %v138 = vunpack.c.h.b16 %v66
  %v139 = vpack.c.b16 %v109, %v107
  %v140 = vpack.c.b16 %v110, %v108
  %v141 = vpack.c.b16 %v113, %v111
  %v142 = vpack.c.b16 %v114, %v112
  %v143 = vpack.c.b16 %v117, %v115
  %v144 = vpack.c.b16 %v118, %v116
  %v145 = vpack.c.b16 %v121, %v119
  %v146 = vpack.c.b16 %v122, %v120
  %v147 = vpack.c.b16 %v125, %v123
  %v148 = vpack.c.b16 %v126, %v124
  %v149 = vpack.c.b16 %v129, %v127
  %v150 = vpack.c.b16 %v130, %v128
  %v151 = vpack.c.b16 %v133, %v131
  %v152 = vpack.c.b16 %v134, %v132
  %v153 = vpack.c.b16 %v137, %v135
  %v154 = vpack.c.b16 %v138, %v136
  %v187 = vunpack.c.l.b16 %v67
  %v188 = vunpack.c.l.b16 %v68
  %v189 = vunpack.c.l.b16 %v69
  %v190 = vunpack.c.l.b16 %v70
  %v191 = vunpack.c.l.b16 %v71
  %v192 = vunpack.c.l.b16 %v72
  %v193 = vunpack.c.l.b16 %v73
  %v194 = vunpack.c.l.b16 %v74
  %v195 = vunpack.c.l.b16 %v75
  %v196 = vunpack.c.l.b16 %v76
  %v197 = vunpack.c.l.b16 %v77
  %v198 = vunpack.c.l.b16 %v78
  %v199 = vunpack.c.l.b16 %v79
  %v200 = vunpack.c.l.b16 %v80
  %v201 = vunpack.c.l.b16 %v81
  %v202 = vunpack.c.l.b16 %v82
  %v203 = vunpack.c.l.b16 %v83
  %v204 = vunpack.c.l.b16 %v84
  %v205 = vunpack.c.l.b16 %v85
  %v206 = vunpack.c.l.b16 %v86
  %v207 = vunpack.c.l.b16 %v87
  %v208 = vunpack.c.l.b16 %v88
  %v209 = vunpack.c.l.b16 %v89
  %v210 = vunpack.c.l.b16 %v90
  %v211 = vpack.c.b16 %v188, %v187
  %v212 = vpack.c.b16 %v190, %v189
  %v213 = vpack.c.b16 %v192, %v191
  %v214 = vpack.c.b16 %v194, %v193
  %v215 = vpack.c.b16 %v196, %v195
  %v216 = vpack.c.b16 %v198, %v197
  %v217 = vpack.c.b16 %v200, %v199
  %v218 = vpack.c.b16 %v202, %v201
  %v219 = vpack.c.b16 %v204, %v203
  %v220 = vpack.c.b16 %v206, %v205
  %v221 = vpack.c.b16 %v208, %v207
  %v222 = vpack.c.b16 %v210, %v209
  %vm235 = vcmask 523264
  %v237 = vsel %vm235, %v140, 0
  %v240 = vsel %vm235, %v142, 0
  %v243 = vsel %vm235, %v144, 0
  %v246 = vsel %vm235, %v146, 0
  %v249 = vsel %vm235, %v148, 0
  %v252 = vsel %vm235, %v150, 0
  %v255 = vsel %vm235, %v152, 0
  %v258 = vsel %vm235, %v154, 0
  %260 = vmatprep.subr.bf16.mxu0 0
  %261 = vmatpush1.bf16.msra.mxu0 %v218
  %262 = vmatprep.subr.bf16.mxu0 0
  %263 = vmatpush1.bf16.msra.mxu0 %v217
  %264 = vmatprep.subr.bf16.mxu0 0
  %265 = vmatpush1.bf16.msra.mxu0 %v216
  %266 = vmatprep.subr.bf16.mxu0 0
  %267 = vmatpush1.bf16.msra.mxu0 %v215
  %268 = vmatprep.subr.bf16.mxu0 0
  %269 = vmatpush1.bf16.msra.mxu0 %v214
  %270 = vmatprep.subr.bf16.mxu0 0
  %271 = vmatpush1.bf16.msra.mxu0 %v213
  %272 = vmatprep.subr.bf16.mxu0 0
  %273 = vmatpush1.bf16.msra.mxu0 %v212
  %274 = vmatprep.subr.bf16.mxu0 0
  %275 = vmatpush1.bf16.msra.mxu0 %v211
  %276 = vmatprep.subr.bf16.mxu0 0
  %277 = vmatpush2.bf16.msra.mxu0 0
  %278 = vmatprep.subr.bf16.mxu0 0
  %279 = vmatpush2.bf16.msra.mxu0 0
  %280 = vmatprep.subr.bf16.mxu0 0
  %281 = vmatpush2.bf16.msra.mxu0 0
  %282 = vmatprep.subr.bf16.mxu0 0
  %283 = vmatpush2.bf16.msra.mxu0 0
  %284 = vmatprep.subr.bf16.mxu0 0
  %285 = vmatpush2.bf16.msra.mxu0 %v222
  %286 = vmatprep.subr.bf16.mxu0 0
  %287 = vmatpush2.bf16.msra.mxu0 %v221
  %288 = vmatprep.subr.bf16.mxu0 0
  %289 = vmatpush2.bf16.msra.mxu0 %v220
  %290 = vmatprep.subr.bf16.mxu0 0
  %291 = vmatpush2.bf16.msra.mxu0 %v219
  %292 = vmatprep.mubr.bf16.mxu0 %v237
  %293 = vmatmul.mubr.bf16.gmra.mxu0 %v139
  %v294 = vpop.f32.mrf.mxu0
  %v295 = vadd.f32 0.0, %v294
  %v296 = vpop.f32.mrf.mxu0
  %v297 = vpop.f32.mrf.mxu0
  %v298 = vadd.f32 0.0, %v297
  %v299 = vpop.f32.mrf.mxu0
  %300 = vmatprep.mubr.bf16.mxu0 %v240
  %301 = vmatmul.mubr.bf16.gmra.mxu0 %v141
  %v302 = vpop.f32.mrf.mxu0
  %v303 = vadd.f32 0.0, %v302
  %v304 = vpop.f32.mrf.mxu0
  %v305 = vpop.f32.mrf.mxu0
  %v306 = vadd.f32 0.0, %v305
  %v307 = vpop.f32.mrf.mxu0
  %308 = vmatprep.mubr.bf16.mxu0 %v243
  %309 = vmatmul.mubr.bf16.gmra.mxu0 %v143
  %v310 = vpop.f32.mrf.mxu0
  %v311 = vadd.f32 0.0, %v310
  %v312 = vpop.f32.mrf.mxu0
  %v313 = vpop.f32.mrf.mxu0
  %v314 = vadd.f32 0.0, %v313
  %v315 = vpop.f32.mrf.mxu0
  %316 = vmatprep.mubr.bf16.mxu0 %v246
  %317 = vmatmul.mubr.bf16.gmra.mxu0 %v145
  %v318 = vpop.f32.mrf.mxu0
  %v319 = vadd.f32 0.0, %v318
  %v320 = vpop.f32.mrf.mxu0
  %v321 = vpop.f32.mrf.mxu0
  %v322 = vadd.f32 0.0, %v321
  %v323 = vpop.f32.mrf.mxu0
  %324 = vmatprep.mubr.bf16.mxu0 %v249
  %325 = vmatmul.mubr.bf16.gmra.mxu0 %v147
  %v326 = vpop.f32.mrf.mxu0
  %v327 = vadd.f32 0.0, %v326
  %v328 = vpop.f32.mrf.mxu0
  %v329 = vpop.f32.mrf.mxu0
  %v330 = vadd.f32 0.0, %v329
  %v331 = vpop.f32.mrf.mxu0
  %332 = vmatprep.mubr.bf16.mxu0 %v252
  %333 = vmatmul.mubr.bf16.gmra.mxu0 %v149
  %v334 = vpop.f32.mrf.mxu0
  %v335 = vadd.f32 0.0, %v334
  %v336 = vpop.f32.mrf.mxu0
  %v337 = vpop.f32.mrf.mxu0
  %v338 = vadd.f32 0.0, %v337
  %v339 = vpop.f32.mrf.mxu0
  %340 = vmatprep.mubr.bf16.mxu0 %v255
  %341 = vmatmul.mubr.bf16.gmra.mxu0 %v151
  %v342 = vpop.f32.mrf.mxu0
  %v343 = vadd.f32 0.0, %v342
  %v344 = vpop.f32.mrf.mxu0
  %v345 = vpop.f32.mrf.mxu0
  %v346 = vadd.f32 0.0, %v345
  %v347 = vpop.f32.mrf.mxu0
  %348 = vmatprep.mubr.bf16.mxu0 %v258
  %349 = vmatmul.mubr.bf16.gmra.mxu0 %v153
  %v350 = vpop.f32.mrf.mxu0
  %v351 = vadd.f32 0.0, %v350
  %v352 = vpop.f32.mrf.mxu0
  %v353 = vpop.f32.mrf.mxu0
  %v354 = vadd.f32 0.0, %v353
  %v355 = vpop.f32.mrf.mxu0
  %356 = vdwg.mxu0
  %v357 = vadd.f32 %v35, %v295
  %v358 = vadd.f32 %v36, %v298
  %v359 = vadd.f32 %v37, %v303
  %v360 = vadd.f32 %v38, %v306
  %v361 = vadd.f32 %v39, %v311
  %v362 = vadd.f32 %v40, %v314
  %v363 = vadd.f32 %v41, %v319
  %v364 = vadd.f32 %v42, %v322
  %v365 = vadd.f32 %v43, %v327
  %v366 = vadd.f32 %v44, %v330
  %v367 = vadd.f32 %v45, %v335
  %v368 = vadd.f32 %v46, %v338
  %v369 = vadd.f32 %v47, %v343
  %v370 = vadd.f32 %v48, %v346
  %v371 = vadd.f32 %v49, %v351
  %v372 = vadd.f32 %v50, %v354
  %373 = vst [vmem:[#allocation2] sm:$0xff] %v357
  %374 = vst [vmem:[#allocation2 + $0x8] sm:$0xff] %v358
  %375 = vst [vmem:[#allocation2 + $0x10] sm:$0xff] %v359
  %376 = vst [vmem:[#allocation2 + $0x18] sm:$0xff] %v360
  %377 = vst [vmem:[#allocation2 + $0x20] sm:$0xff] %v361
  %378 = vst [vmem:[#allocation2 + $0x28] sm:$0xff] %v362
  %379 = vst [vmem:[#allocation2 + $0x30] sm:$0xff] %v363
  %380 = vst [vmem:[#allocation2 + $0x38] sm:$0xff] %v364
  %381 = vst [vmem:[#allocation2 + $0x40] sm:$0xff] %v365
  %382 = vst [vmem:[#allocation2 + $0x48] sm:$0xff] %v366
  %383 = vst [vmem:[#allocation2 + $0x50] sm:$0xff] %v367
  %384 = vst [vmem:[#allocation2 + $0x58] sm:$0xff] %v368
  %385 = vst [vmem:[#allocation2 + $0x60] sm:$0xff] %v369
  %386 = vst [vmem:[#allocation2 + $0x68] sm:$0xff] %v370
  %387 = vst [vmem:[#allocation2 + $0x70] sm:$0xff] %v371
  %388 = vst [vmem:[#allocation2 + $0x78] sm:$0xff] %v372
  // Predicated region
  $region18: #{vqvae_forward.16} parent=0 // pred_check
    %p389 = pneg %p15
  $region19: #{vqvae_forward.16} parent=0 // pred_check_branch
    %391 = sbr.rel (%p389) target = $region21
  $region20: #{vqvae_forward.16} parent=0 // pred_region
    %v392 = vld [vmem:[#allocation2] sm:$0xff]
    %v393 = vld [vmem:[#allocation2 + $0x8] sm:$0xff]
    %v394 = vld [vmem:[#allocation2 + $0x10] sm:$0xff]
    %v395 = vld [vmem:[#allocation2 + $0x18] sm:$0xff]
    %v396 = vld [vmem:[#allocation2 + $0x20] sm:$0xff]
    %v397 = vld [vmem:[#allocation2 + $0x28] sm:$0xff]
    %v398 = vld [vmem:[#allocation2 + $0x30] sm:$0xff]
    %v399 = vld [vmem:[#allocation2 + $0x38] sm:$0xff]
    %v400 = vld [vmem:[#allocation2 + $0x40] sm:$0xff]
    %v401 = vld [vmem:[#allocation2 + $0x48] sm:$0xff]
    %v402 = vld [vmem:[#allocation2 + $0x50] sm:$0xff]
    %v403 = vld [vmem:[#allocation2 + $0x58] sm:$0xff]
    %v404 = vld [vmem:[#allocation2 + $0x60] sm:$0xff]
    %v405 = vld [vmem:[#allocation2 + $0x68] sm:$0xff]
    %v406 = vld [vmem:[#allocation2 + $0x70] sm:$0xff]
    %v407 = vld [vmem:[#allocation2 + $0x78] sm:$0xff]
    %v408 = vld [vmem:[%s2] sm:$0x1]
    %v410 = vlaneseq
    %v411 = vshrl.u32 %v410, 7
    %v412 = vsub.s32 0, %v411
    %v413 = vrot.slane %v408, %v412
    %v415 = vadd.f32 %v392, %v413
    %v416 = vadd.f32 %v393, %v413
    %v417 = vadd.f32 %v394, %v413
    %v418 = vadd.f32 %v395, %v413
    %v419 = vadd.f32 %v396, %v413
    %v420 = vadd.f32 %v397, %v413
    %v421 = vadd.f32 %v398, %v413
    %v422 = vadd.f32 %v399, %v413
    %v423 = vadd.f32 %v400, %v413
    %v424 = vadd.f32 %v401, %v413
    %v425 = vadd.f32 %v402, %v413
    %v426 = vadd.f32 %v403, %v413
    %v427 = vadd.f32 %v404, %v413
    %v428 = vadd.f32 %v405, %v413
    %v429 = vadd.f32 %v406, %v413
    %v430 = vadd.f32 %v407, %v413
    %v431 = vmax.f32 %v415, 0.0
    %v432 = vmax.f32 %v416, 0.0
    %v433 = vmax.f32 %v417, 0.0
    %v434 = vmax.f32 %v418, 0.0
    %v435 = vmax.f32 %v419, 0.0
    %v436 = vmax.f32 %v420, 0.0
    %v437 = vmax.f32 %v421, 0.0
    %v438 = vmax.f32 %v422, 0.0
    %v439 = vmax.f32 %v423, 0.0
    %v440 = vmax.f32 %v424, 0.0
    %v441 = vmax.f32 %v425, 0.0
    %v442 = vmax.f32 %v426, 0.0
    %v443 = vmax.f32 %v427, 0.0
    %v444 = vmax.f32 %v428, 0.0
    %v445 = vmax.f32 %v429, 0.0
    %v446 = vmax.f32 %v430, 0.0
    %v447 = vpack.c.bf16 %v432, %v431
    %v448 = vpack.c.bf16 %v434, %v433
    %v449 = vpack.c.bf16 %v436, %v435
    %v450 = vpack.c.bf16 %v438, %v437
    %v451 = vpack.c.bf16 %v440, %v439
    %v452 = vpack.c.bf16 %v442, %v441
    %v453 = vpack.c.bf16 %v444, %v443
    %v454 = vpack.c.bf16 %v446, %v445
    %v463 = vunpack.c.l.b16 %v447
    %v464 = vunpack.c.h.b16 %v447
    %v465 = vunpack.c.l.b16 %v448
    %v466 = vunpack.c.h.b16 %v448
    %v467 = vunpack.c.l.b16 %v449
    %v468 = vunpack.c.h.b16 %v449
    %v469 = vunpack.c.l.b16 %v450
    %v470 = vunpack.c.h.b16 %v450
    %v471 = vunpack.c.l.b16 %v451
    %v472 = vunpack.c.h.b16 %v451
    %v473 = vunpack.c.l.b16 %v452
    %v474 = vunpack.c.h.b16 %v452
    %v475 = vunpack.c.l.b16 %v453
    %v476 = vunpack.c.h.b16 %v453
    %v477 = vunpack.c.l.b16 %v454
    %v478 = vunpack.c.h.b16 %v454
    %v479 = vpack.c.b16 %v463, %v463
    %v480 = vpack.c.b16 %v464, %v464
    %v481 = vpack.c.b16 %v465, %v465
    %v482 = vpack.c.b16 %v466, %v466
    %v483 = vpack.c.b16 %v467, %v467
    %v484 = vpack.c.b16 %v468, %v468
    %v485 = vpack.c.b16 %v469, %v469
    %v486 = vpack.c.b16 %v470, %v470
    %v487 = vpack.c.b16 %v471, %v471
    %v488 = vpack.c.b16 %v472, %v472
    %v489 = vpack.c.b16 %v473, %v473
    %v490 = vpack.c.b16 %v474, %v474
    %v491 = vpack.c.b16 %v475, %v475
    %v492 = vpack.c.b16 %v476, %v476
    %v493 = vpack.c.b16 %v477, %v477
    %v494 = vpack.c.b16 %v478, %v478
    %511 = vst [vmem:[%s3] sm:$0xf] %v479
    %512 = vst [vmem:[%s3 + $0x4] sm:$0xf] %v480
    %513 = vst [vmem:[%s3 + $0x8] sm:$0xf] %v481
    %514 = vst [vmem:[%s3 + $0xc] sm:$0xf] %v482
    %515 = vst [vmem:[%s3 + $0x10] sm:$0xf] %v483
    %516 = vst [vmem:[%s3 + $0x14] sm:$0xf] %v484
    %517 = vst [vmem:[%s3 + $0x18] sm:$0xf] %v485
    %518 = vst [vmem:[%s3 + $0x1c] sm:$0xf] %v486
    %519 = vst [vmem:[%s3 + $0x20] sm:$0xf] %v487
    %520 = vst [vmem:[%s3 + $0x24] sm:$0xf] %v488
    %521 = vst [vmem:[%s3 + $0x28] sm:$0xf] %v489
    %522 = vst [vmem:[%s3 + $0x2c] sm:$0xf] %v490
    %523 = vst [vmem:[%s3 + $0x30] sm:$0xf] %v491
    %524 = vst [vmem:[%s3 + $0x34] sm:$0xf] %v492
    %525 = vst [vmem:[%s3 + $0x38] sm:$0xf] %v493
    %526 = vst [vmem:[%s3 + $0x3c] sm:$0xf] %v494
  $region21: #{vqvae_forward.16} parent=0 // pred_fallthru
    _
  // Predicated region
  $region22: #{vqvae_forward.16} parent=0 // pred_check
    _
  $region23: #{vqvae_forward.16} parent=0 // pred_check_branch
    %528 = sbr.rel (0) target = $region25
  $region24: #{vqvae_forward.16} parent=0 // pred_region
    _
  $region25: #{vqvae_forward.16} parent=0 // pred_fallthru
    _
  // Predicated region
  $region26: #{vqvae_forward.16} parent=0 // pred_check
    _
  $region27: #{vqvae_forward.16} parent=0 // pred_check_branch
    %530 = sbr.rel (0) target = $region29
  $region28: #{vqvae_forward.16} parent=0 // pred_region
    _
  $region29: #{vqvae_forward.16} parent=0 // pred_fallthru
    _

// kernel: vqvae_forward.17
$region0: #{vqvae_forward.17}
  #allocation0 [shape = 'u32[]', space=smem, size = 0x4, offset = 0x4, fixed_abs, tag = 'smem constant byte address 0x4 - core index']
  #allocation1 [shape = 'u32[144,128]{1,0:T(1,128)}', space=vmem, size = 0x12000, scoped, tag = 'internal scratch']
  #allocation2 [shape = 'f32[128,128]{1,0:T(8,128)}', space=vmem, size = 0x10000, scoped, tag = 'scratch operand']
  %s0 = inlined_call_operand.vmem [shape: bf16[128,512], index: 0, kind: input, shape index: {}]
  %s1 = inlined_call_operand.vmem [shape: bf16[512,128], index: 1, kind: input, shape index: {}]
  %s2 = inlined_call_operand.vmem [shape: f32[1,128], index: 2, kind: input, shape index: {}]
  %s3 = inlined_call_operand.vmem [shape: bf16[128,128], index: 3, kind: output, shape index: {}]
  %s4 = sld [smem:[#allocation0]]
  $region30: #{vqvae_forward.17} parent=0
    _
  %s6 = ssub.s32 1, %s4
  %s7 = scalar_select 0, %s6, %s4
  // Predicated region
  $region2: #{vqvae_forward.17} parent=0 // pred_check
    _
  $region3: #{vqvae_forward.17} parent=0 // pred_check_branch
    %9 = sbr.rel (0) target = $region5
  $region4: #{vqvae_forward.17} parent=0 // pred_region
    _
  $region5: #{vqvae_forward.17} parent=0 // pred_fallthru
    _
  // Predicated region
  $region6: #{vqvae_forward.17} parent=0 // pred_check
    _
  $region7: #{vqvae_forward.17} parent=0 // pred_check_branch
    %11 = sbr.rel (0) target = $region9
  $region8: #{vqvae_forward.17} parent=0 // pred_region
    _
  $region9: #{vqvae_forward.17} parent=0 // pred_fallthru
    _
  // Predicated region
  $region10: #{vqvae_forward.17} parent=0 // pred_check
    _
  $region11: #{vqvae_forward.17} parent=0 // pred_check_branch
    %13 = sbr.rel (0) target = $region13
  $region12: #{vqvae_forward.17} parent=0 // pred_region
    _
  $region13: #{vqvae_forward.17} parent=0 // pred_fallthru
    _
  %p15 = scmp.eq.s32.totalorder 0, 0
  // Predicated region
  $region14: #{vqvae_forward.17} parent=0 // pred_check
    %p16 = pneg %p15
  $region15: #{vqvae_forward.17} parent=0 // pred_check_branch
    %18 = sbr.rel (%p16) target = $region17
  $region16: #{vqvae_forward.17} parent=0 // pred_region
    %19 = vst [vmem:[#allocation2] sm:$0xff] 0.0
    %20 = vst [vmem:[#allocation2 + $0x8] sm:$0xff] 0.0
    %21 = vst [vmem:[#allocation2 + $0x10] sm:$0xff] 0.0
    %22 = vst [vmem:[#allocation2 + $0x18] sm:$0xff] 0.0
    %23 = vst [vmem:[#allocation2 + $0x20] sm:$0xff] 0.0
    %24 = vst [vmem:[#allocation2 + $0x28] sm:$0xff] 0.0
    %25 = vst [vmem:[#allocation2 + $0x30] sm:$0xff] 0.0
    %26 = vst [vmem:[#allocation2 + $0x38] sm:$0xff] 0.0
    %27 = vst [vmem:[#allocation2 + $0x40] sm:$0xff] 0.0
    %28 = vst [vmem:[#allocation2 + $0x48] sm:$0xff] 0.0
    %29 = vst [vmem:[#allocation2 + $0x50] sm:$0xff] 0.0
    %30 = vst [vmem:[#allocation2 + $0x58] sm:$0xff] 0.0
    %31 = vst [vmem:[#allocation2 + $0x60] sm:$0xff] 0.0
    %32 = vst [vmem:[#allocation2 + $0x68] sm:$0xff] 0.0
    %33 = vst [vmem:[#allocation2 + $0x70] sm:$0xff] 0.0
    %34 = vst [vmem:[#allocation2 + $0x78] sm:$0xff] 0.0
  $region17: #{vqvae_forward.17} parent=0 // pred_fallthru
    _
  %v35 = vld [vmem:[#allocation2] sm:$0xff]
  %v36 = vld [vmem:[#allocation2 + $0x8] sm:$0xff]
  %v37 = vld [vmem:[#allocation2 + $0x10] sm:$0xff]
  %v38 = vld [vmem:[#allocation2 + $0x18] sm:$0xff]
  %v39 = vld [vmem:[#allocation2 + $0x20] sm:$0xff]
  %v40 = vld [vmem:[#allocation2 + $0x28] sm:$0xff]
  %v41 = vld [vmem:[#allocation2 + $0x30] sm:$0xff]
  %v42 = vld [vmem:[#allocation2 + $0x38] sm:$0xff]
  %v43 = vld [vmem:[#allocation2 + $0x40] sm:$0xff]
  %v44 = vld [vmem:[#allocation2 + $0x48] sm:$0xff]
  %v45 = vld [vmem:[#allocation2 + $0x50] sm:$0xff]
  %v46 = vld [vmem:[#allocation2 + $0x58] sm:$0xff]
  %v47 = vld [vmem:[#allocation2 + $0x60] sm:$0xff]
  %v48 = vld [vmem:[#allocation2 + $0x68] sm:$0xff]
  %v49 = vld [vmem:[#allocation2 + $0x70] sm:$0xff]
  %v50 = vld [vmem:[#allocation2 + $0x78] sm:$0xff]
  %v51 = vld [vmem:[%s0] sm:$0xff]
  %v52 = vld [vmem:[%s0 + $0x8] sm:$0xff]
  %v53 = vld [vmem:[%s0 + $0x10] sm:$0xff]
  %v54 = vld [vmem:[%s0 + $0x18] sm:$0xff]
  %v55 = vld [vmem:[%s0 + $0x20] sm:$0xff]
  %v56 = vld [vmem:[%s0 + $0x28] sm:$0xff]
  %v57 = vld [vmem:[%s0 + $0x30] sm:$0xff]
  %v58 = vld [vmem:[%s0 + $0x38] sm:$0xff]
  %v59 = vld [vmem:[%s0 + $0x40] sm:$0xff]
  %v60 = vld [vmem:[%s0 + $0x48] sm:$0xff]
  %v61 = vld [vmem:[%s0 + $0x50] sm:$0xff]
  %v62 = vld [vmem:[%s0 + $0x58] sm:$0xff]
  %v63 = vld [vmem:[%s0 + $0x60] sm:$0xff]
  %v64 = vld [vmem:[%s0 + $0x68] sm:$0xff]
  %v65 = vld [vmem:[%s0 + $0x70] sm:$0xff]
  %v66 = vld [vmem:[%s0 + $0x78] sm:$0xff]
  %v67 = vld [vmem:[%s0 + $0x80] sm:$0xff]
  %v68 = vld [vmem:[%s0 + $0x88] sm:$0xff]
  %v69 = vld [vmem:[%s0 + $0x90] sm:$0xff]
  %v70 = vld [vmem:[%s0 + $0x98] sm:$0xff]
  %v71 = vld [vmem:[%s0 + $0xa0] sm:$0xff]
  %v72 = vld [vmem:[%s0 + $0xa8] sm:$0xff]
  %v73 = vld [vmem:[%s0 + $0xb0] sm:$0xff]
  %v74 = vld [vmem:[%s0 + $0xb8] sm:$0xff]
  %v75 = vld [vmem:[%s0 + $0xc0] sm:$0xff]
  %v76 = vld [vmem:[%s0 + $0xc8] sm:$0xff]
  %v77 = vld [vmem:[%s0 + $0xd0] sm:$0xff]
  %v78 = vld [vmem:[%s0 + $0xd8] sm:$0xff]
  %v79 = vld [vmem:[%s0 + $0xe0] sm:$0xff]
  %v80 = vld [vmem:[%s0 + $0xe8] sm:$0xff]
  %v81 = vld [vmem:[%s0 + $0xf0] sm:$0xff]
  %v82 = vld [vmem:[%s0 + $0xf8] sm:$0xff]
  %v83 = vld [vmem:[%s1] sm:$0xf]
  %v84 = vld [vmem:[%s1 + $0x4] sm:$0xf]
  %v85 = vld [vmem:[%s1 + $0x8] sm:$0xf]
  %v86 = vld [vmem:[%s1 + $0xc] sm:$0xf]
  %v87 = vld [vmem:[%s1 + $0x10] sm:$0xf]
  %v88 = vld [vmem:[%s1 + $0x14] sm:$0xf]
  %v89 = vld [vmem:[%s1 + $0x18] sm:$0xf]
  %v90 = vld [vmem:[%s1 + $0x1c] sm:$0xf]
  %v91 = vld [vmem:[%s1 + $0x20] sm:$0xf]
  %v92 = vld [vmem:[%s1 + $0x24] sm:$0xf]
  %v93 = vld [vmem:[%s1 + $0x28] sm:$0xf]
  %v94 = vld [vmem:[%s1 + $0x2c] sm:$0xf]
  %v95 = vld [vmem:[%s1 + $0x30] sm:$0xf]
  %v96 = vld [vmem:[%s1 + $0x34] sm:$0xf]
  %v97 = vld [vmem:[%s1 + $0x38] sm:$0xf]
  %v98 = vld [vmem:[%s1 + $0x3c] sm:$0xf]
  %v99 = vld [vmem:[%s1 + $0x40] sm:$0xf]
  %v100 = vld [vmem:[%s1 + $0x44] sm:$0xf]
  %v101 = vld [vmem:[%s1 + $0x48] sm:$0xf]
  %v102 = vld [vmem:[%s1 + $0x4c] sm:$0xf]
  %v103 = vld [vmem:[%s1 + $0x50] sm:$0xf]
  %v104 = vld [vmem:[%s1 + $0x54] sm:$0xf]
  %v105 = vld [vmem:[%s1 + $0x58] sm:$0xf]
  %v106 = vld [vmem:[%s1 + $0x5c] sm:$0xf]
  %v107 = vld [vmem:[%s1 + $0x60] sm:$0xf]
  %v108 = vld [vmem:[%s1 + $0x64] sm:$0xf]
  %v109 = vld [vmem:[%s1 + $0x68] sm:$0xf]
  %v110 = vld [vmem:[%s1 + $0x6c] sm:$0xf]
  %v111 = vld [vmem:[%s1 + $0x70] sm:$0xf]
  %v112 = vld [vmem:[%s1 + $0x74] sm:$0xf]
  %v113 = vld [vmem:[%s1 + $0x78] sm:$0xf]
  %v114 = vld [vmem:[%s1 + $0x7c] sm:$0xf]
  %v115 = vld [vmem:[%s1 + $0x80] sm:$0xf]
  %v116 = vld [vmem:[%s1 + $0x84] sm:$0xf]
  %v117 = vld [vmem:[%s1 + $0x88] sm:$0xf]
  %v118 = vld [vmem:[%s1 + $0x8c] sm:$0xf]
  %v119 = vld [vmem:[%s1 + $0x90] sm:$0xf]
  %v120 = vld [vmem:[%s1 + $0x94] sm:$0xf]
  %v121 = vld [vmem:[%s1 + $0x98] sm:$0xf]
  %v122 = vld [vmem:[%s1 + $0x9c] sm:$0xf]
  %v123 = vld [vmem:[%s1 + $0xa0] sm:$0xf]
  %v124 = vld [vmem:[%s1 + $0xa4] sm:$0xf]
  %v125 = vld [vmem:[%s1 + $0xa8] sm:$0xf]
  %v126 = vld [vmem:[%s1 + $0xac] sm:$0xf]
  %v127 = vld [vmem:[%s1 + $0xb0] sm:$0xf]
  %v128 = vld [vmem:[%s1 + $0xb4] sm:$0xf]
  %v129 = vld [vmem:[%s1 + $0xb8] sm:$0xf]
  %v130 = vld [vmem:[%s1 + $0xbc] sm:$0xf]
  %v131 = vld [vmem:[%s1 + $0xc0] sm:$0xf]
  %v132 = vld [vmem:[%s1 + $0xc4] sm:$0xf]
  %v133 = vld [vmem:[%s1 + $0xc8] sm:$0xf]
  %v134 = vld [vmem:[%s1 + $0xcc] sm:$0xf]
  %v135 = vld [vmem:[%s1 + $0xd0] sm:$0xf]
  %v136 = vld [vmem:[%s1 + $0xd4] sm:$0xf]
  %v137 = vld [vmem:[%s1 + $0xd8] sm:$0xf]
  %v138 = vld [vmem:[%s1 + $0xdc] sm:$0xf]
  %v139 = vld [vmem:[%s1 + $0xe0] sm:$0xf]
  %v140 = vld [vmem:[%s1 + $0xe4] sm:$0xf]
  %v141 = vld [vmem:[%s1 + $0xe8] sm:$0xf]
  %v142 = vld [vmem:[%s1 + $0xec] sm:$0xf]
  %v143 = vld [vmem:[%s1 + $0xf0] sm:$0xf]
  %v144 = vld [vmem:[%s1 + $0xf4] sm:$0xf]
  %v145 = vld [vmem:[%s1 + $0xf8] sm:$0xf]
  %v146 = vld [vmem:[%s1 + $0xfc] sm:$0xf]
  %v179 = vunpack.c.l.b16 %v51
  %v180 = vunpack.c.h.b16 %v51
  %v181 = vunpack.c.l.b16 %v52
  %v182 = vunpack.c.h.b16 %v52
  %v183 = vunpack.c.l.b16 %v53
  %v184 = vunpack.c.h.b16 %v53
  %v185 = vunpack.c.l.b16 %v54
  %v186 = vunpack.c.h.b16 %v54
  %v187 = vunpack.c.l.b16 %v55
  %v188 = vunpack.c.h.b16 %v55
  %v189 = vunpack.c.l.b16 %v56
  %v190 = vunpack.c.h.b16 %v56
  %v191 = vunpack.c.l.b16 %v57
  %v192 = vunpack.c.h.b16 %v57
  %v193 = vunpack.c.l.b16 %v58
  %v194 = vunpack.c.h.b16 %v58
  %v195 = vunpack.c.l.b16 %v59
  %v196 = vunpack.c.h.b16 %v59
  %v197 = vunpack.c.l.b16 %v60
  %v198 = vunpack.c.h.b16 %v60
  %v199 = vunpack.c.l.b16 %v61
  %v200 = vunpack.c.h.b16 %v61
  %v201 = vunpack.c.l.b16 %v62
  %v202 = vunpack.c.h.b16 %v62
  %v203 = vunpack.c.l.b16 %v63
  %v204 = vunpack.c.h.b16 %v63
  %v205 = vunpack.c.l.b16 %v64
  %v206 = vunpack.c.h.b16 %v64
  %v207 = vunpack.c.l.b16 %v65
  %v208 = vunpack.c.h.b16 %v65
  %v209 = vunpack.c.l.b16 %v66
  %v210 = vunpack.c.h.b16 %v66
  %v211 = vunpack.c.l.b16 %v67
  %v212 = vunpack.c.h.b16 %v67
  %v213 = vunpack.c.l.b16 %v68
  %v214 = vunpack.c.h.b16 %v68
  %v215 = vunpack.c.l.b16 %v69
  %v216 = vunpack.c.h.b16 %v69
  %v217 = vunpack.c.l.b16 %v70
  %v218 = vunpack.c.h.b16 %v70
  %v219 = vunpack.c.l.b16 %v71
  %v220 = vunpack.c.h.b16 %v71
  %v221 = vunpack.c.l.b16 %v72
  %v222 = vunpack.c.h.b16 %v72
  %v223 = vunpack.c.l.b16 %v73
  %v224 = vunpack.c.h.b16 %v73
  %v225 = vunpack.c.l.b16 %v74
  %v226 = vunpack.c.h.b16 %v74
  %v227 = vunpack.c.l.b16 %v75
  %v228 = vunpack.c.h.b16 %v75
  %v229 = vunpack.c.l.b16 %v76
  %v230 = vunpack.c.h.b16 %v76
  %v231 = vunpack.c.l.b16 %v77
  %v232 = vunpack.c.h.b16 %v77
  %v233 = vunpack.c.l.b16 %v78
  %v234 = vunpack.c.h.b16 %v78
  %v235 = vunpack.c.l.b16 %v79
  %v236 = vunpack.c.h.b16 %v79
  %v237 = vunpack.c.l.b16 %v80
  %v238 = vunpack.c.h.b16 %v80
  %v239 = vunpack.c.l.b16 %v81
  %v240 = vunpack.c.h.b16 %v81
  %v241 = vunpack.c.l.b16 %v82
  %v242 = vunpack.c.h.b16 %v82
  %v243 = vpack.c.b16 %v183, %v179
  %v244 = vpack.c.b16 %v184, %v180
  %v245 = vpack.c.b16 %v185, %v181
  %v246 = vpack.c.b16 %v186, %v182
  %v247 = vpack.c.b16 %v191, %v187
  %v248 = vpack.c.b16 %v192, %v188
  %v249 = vpack.c.b16 %v193, %v189
  %v250 = vpack.c.b16 %v194, %v190
  %v251 = vpack.c.b16 %v199, %v195
  %v252 = vpack.c.b16 %v200, %v196
  %v253 = vpack.c.b16 %v201, %v197
  %v254 = vpack.c.b16 %v202, %v198
  %v255 = vpack.c.b16 %v207, %v203
  %v256 = vpack.c.b16 %v208, %v204
  %v257 = vpack.c.b16 %v209, %v205
  %v258 = vpack.c.b16 %v210, %v206
  %v259 = vpack.c.b16 %v215, %v211
  %v260 = vpack.c.b16 %v216, %v212
  %v261 = vpack.c.b16 %v217, %v213
  %v262 = vpack.c.b16 %v218, %v214
  %v263 = vpack.c.b16 %v223, %v219
  %v264 = vpack.c.b16 %v224, %v220
  %v265 = vpack.c.b16 %v225, %v221
  %v266 = vpack.c.b16 %v226, %v222
  %v267 = vpack.c.b16 %v231, %v227
  %v268 = vpack.c.b16 %v232, %v228
  %v269 = vpack.c.b16 %v233, %v229
  %v270 = vpack.c.b16 %v234, %v230
  %v271 = vpack.c.b16 %v239, %v235
  %v272 = vpack.c.b16 %v240, %v236
  %v273 = vpack.c.b16 %v241, %v237
  %v274 = vpack.c.b16 %v242, %v238
  %v371 = vunpack.c.l.b16 %v83
  %v372 = vunpack.c.l.b16 %v84
  %v373 = vunpack.c.l.b16 %v85
  %v374 = vunpack.c.l.b16 %v86
  %v375 = vunpack.c.l.b16 %v87
  %v376 = vunpack.c.l.b16 %v88
  %v377 = vunpack.c.l.b16 %v89
  %v378 = vunpack.c.l.b16 %v90
  %v379 = vunpack.c.l.b16 %v91
  %v380 = vunpack.c.l.b16 %v92
  %v381 = vunpack.c.l.b16 %v93
  %v382 = vunpack.c.l.b16 %v94
  %v383 = vunpack.c.l.b16 %v95
  %v384 = vunpack.c.l.b16 %v96
  %v385 = vunpack.c.l.b16 %v97
  %v386 = vunpack.c.l.b16 %v98
  %v387 = vunpack.c.l.b16 %v99
  %v388 = vunpack.c.l.b16 %v100
  %v389 = vunpack.c.l.b16 %v101
  %v390 = vunpack.c.l.b16 %v102
  %v391 = vunpack.c.l.b16 %v103
  %v392 = vunpack.c.l.b16 %v104
  %v393 = vunpack.c.l.b16 %v105
  %v394 = vunpack.c.l.b16 %v106
  %v395 = vunpack.c.l.b16 %v107
  %v396 = vunpack.c.l.b16 %v108
  %v397 = vunpack.c.l.b16 %v109
  %v398 = vunpack.c.l.b16 %v110
  %v399 = vunpack.c.l.b16 %v111
  %v400 = vunpack.c.l.b16 %v112
  %v401 = vunpack.c.l.b16 %v113
  %v402 = vunpack.c.l.b16 %v114
  %v403 = vunpack.c.l.b16 %v115
  %v404 = vunpack.c.l.b16 %v116
  %v405 = vunpack.c.l.b16 %v117
  %v406 = vunpack.c.l.b16 %v118
  %v407 = vunpack.c.l.b16 %v119
  %v408 = vunpack.c.l.b16 %v120
  %v409 = vunpack.c.l.b16 %v121
  %v410 = vunpack.c.l.b16 %v122
  %v411 = vunpack.c.l.b16 %v123
  %v412 = vunpack.c.l.b16 %v124
  %v413 = vunpack.c.l.b16 %v125
  %v414 = vunpack.c.l.b16 %v126
  %v415 = vunpack.c.l.b16 %v127
  %v416 = vunpack.c.l.b16 %v128
  %v417 = vunpack.c.l.b16 %v129
  %v418 = vunpack.c.l.b16 %v130
  %v419 = vunpack.c.l.b16 %v131
  %v420 = vunpack.c.l.b16 %v132
  %v421 = vunpack.c.l.b16 %v133
  %v422 = vunpack.c.l.b16 %v134
  %v423 = vunpack.c.l.b16 %v135
  %v424 = vunpack.c.l.b16 %v136
  %v425 = vunpack.c.l.b16 %v137
  %v426 = vunpack.c.l.b16 %v138
  %v427 = vunpack.c.l.b16 %v139
  %v428 = vunpack.c.l.b16 %v140
  %v429 = vunpack.c.l.b16 %v141
  %v430 = vunpack.c.l.b16 %v142
  %v431 = vunpack.c.l.b16 %v143
  %v432 = vunpack.c.l.b16 %v144
  %v433 = vunpack.c.l.b16 %v145
  %v434 = vunpack.c.l.b16 %v146
  %v435 = vpack.c.b16 %v372, %v371
  %v436 = vpack.c.b16 %v374, %v373
  %v437 = vpack.c.b16 %v376, %v375
  %v438 = vpack.c.b16 %v378, %v377
  %v439 = vpack.c.b16 %v380, %v379
  %v440 = vpack.c.b16 %v382, %v381
  %v441 = vpack.c.b16 %v384, %v383
  %v442 = vpack.c.b16 %v386, %v385
  %v443 = vpack.c.b16 %v388, %v387
  %v444 = vpack.c.b16 %v390, %v389
  %v445 = vpack.c.b16 %v392, %v391
  %v446 = vpack.c.b16 %v394, %v393
  %v447 = vpack.c.b16 %v396, %v395
  %v448 = vpack.c.b16 %v398, %v397
  %v449 = vpack.c.b16 %v400, %v399
  %v450 = vpack.c.b16 %v402, %v401
  %v451 = vpack.c.b16 %v404, %v403
  %v452 = vpack.c.b16 %v406, %v405
  %v453 = vpack.c.b16 %v408, %v407
  %v454 = vpack.c.b16 %v410, %v409
  %v455 = vpack.c.b16 %v412, %v411
  %v456 = vpack.c.b16 %v414, %v413
  %v457 = vpack.c.b16 %v416, %v415
  %v458 = vpack.c.b16 %v418, %v417
  %v459 = vpack.c.b16 %v420, %v419
  %v460 = vpack.c.b16 %v422, %v421
  %v461 = vpack.c.b16 %v424, %v423
  %v462 = vpack.c.b16 %v426, %v425
  %v463 = vpack.c.b16 %v428, %v427
  %v464 = vpack.c.b16 %v430, %v429
  %v465 = vpack.c.b16 %v432, %v431
  %v466 = vpack.c.b16 %v434, %v433
  %499 = vmatprep.subr.bf16.mxu0 0
  %500 = vmatpush1.bf16.msra.mxu0 %v442
  %501 = vmatprep.subr.bf16.mxu0 0
  %502 = vmatpush1.bf16.msra.mxu0 %v441
  %503 = vmatprep.subr.bf16.mxu0 0
  %504 = vmatpush1.bf16.msra.mxu0 %v440
  %505 = vmatprep.subr.bf16.mxu0 0
  %506 = vmatpush1.bf16.msra.mxu0 %v439
  %507 = vmatprep.subr.bf16.mxu0 0
  %508 = vmatpush1.bf16.msra.mxu0 %v438
  %509 = vmatprep.subr.bf16.mxu0 0
  %510 = vmatpush1.bf16.msra.mxu0 %v437
  %511 = vmatprep.subr.bf16.mxu0 0
  %512 = vmatpush1.bf16.msra.mxu0 %v436
  %513 = vmatprep.subr.bf16.mxu0 0
  %514 = vmatpush1.bf16.msra.mxu0 %v435
  %515 = vmatprep.subr.bf16.mxu0 0
  %516 = vmatpush2.bf16.msra.mxu0 %v450
  %517 = vmatprep.subr.bf16.mxu0 0
  %518 = vmatpush2.bf16.msra.mxu0 %v449
  %519 = vmatprep.subr.bf16.mxu0 0
  %520 = vmatpush2.bf16.msra.mxu0 %v448
  %521 = vmatprep.subr.bf16.mxu0 0
  %522 = vmatpush2.bf16.msra.mxu0 %v447
  %523 = vmatprep.subr.bf16.mxu0 0
  %524 = vmatpush2.bf16.msra.mxu0 %v446
  %525 = vmatprep.subr.bf16.mxu0 0
  %526 = vmatpush2.bf16.msra.mxu0 %v445
  %527 = vmatprep.subr.bf16.mxu0 0
  %528 = vmatpush2.bf16.msra.mxu0 %v444
  %529 = vmatprep.subr.bf16.mxu0 0
  %530 = vmatpush2.bf16.msra.mxu0 %v443
  %531 = vmatprep.mubr.bf16.mxu0 %v244
  %532 = vmatmul.mubr.bf16.gmra.mxu0 %v243
  %v533 = vpop.f32.mrf.mxu0
  %v534 = vadd.f32 0.0, %v533
  %v535 = vpop.f32.mrf.mxu0
  %v536 = vpop.f32.mrf.mxu0
  %v537 = vadd.f32 0.0, %v536
  %v538 = vpop.f32.mrf.mxu0
  %539 = vmatprep.mubr.bf16.mxu0 %v248
  %540 = vmatmul.mubr.bf16.gmra.mxu0 %v247
  %v541 = vpop.f32.mrf.mxu0
  %v542 = vadd.f32 0.0, %v541
  %v543 = vpop.f32.mrf.mxu0
  %v544 = vpop.f32.mrf.mxu0
  %v545 = vadd.f32 0.0, %v544
  %v546 = vpop.f32.mrf.mxu0
  %547 = vmatprep.mubr.bf16.mxu0 %v252
  %548 = vmatmul.mubr.bf16.gmra.mxu0 %v251
  %v549 = vpop.f32.mrf.mxu0
  %v550 = vadd.f32 0.0, %v549
  %v551 = vpop.f32.mrf.mxu0
  %v552 = vpop.f32.mrf.mxu0
  %v553 = vadd.f32 0.0, %v552
  %v554 = vpop.f32.mrf.mxu0
  %555 = vmatprep.mubr.bf16.mxu0 %v256
  %556 = vmatmul.mubr.bf16.gmra.mxu0 %v255
  %v557 = vpop.f32.mrf.mxu0
  %v558 = vadd.f32 0.0, %v557
  %v559 = vpop.f32.mrf.mxu0
  %v560 = vpop.f32.mrf.mxu0
  %v561 = vadd.f32 0.0, %v560
  %v562 = vpop.f32.mrf.mxu0
  %563 = vmatprep.mubr.bf16.mxu0 %v260
  %564 = vmatmul.mubr.bf16.gmra.mxu0 %v259
  %v565 = vpop.f32.mrf.mxu0
  %v566 = vadd.f32 0.0, %v565
  %v567 = vpop.f32.mrf.mxu0
  %v568 = vpop.f32.mrf.mxu0
  %v569 = vadd.f32 0.0, %v568
  %v570 = vpop.f32.mrf.mxu0
  %571 = vmatprep.mubr.bf16.mxu0 %v264
  %572 = vmatmul.mubr.bf16.gmra.mxu0 %v263
  %v573 = vpop.f32.mrf.mxu0
  %v574 = vadd.f32 0.0, %v573
  %v575 = vpop.f32.mrf.mxu0
  %v576 = vpop.f32.mrf.mxu0
  %v577 = vadd.f32 0.0, %v576
  %v578 = vpop.f32.mrf.mxu0
  %579 = vmatprep.mubr.bf16.mxu0 %v268
  %580 = vmatmul.mubr.bf16.gmra.mxu0 %v267
  %v581 = vpop.f32.mrf.mxu0
  %v582 = vadd.f32 0.0, %v581
  %v583 = vpop.f32.mrf.mxu0
  %v584 = vpop.f32.mrf.mxu0
  %v585 = vadd.f32 0.0, %v584
  %v586 = vpop.f32.mrf.mxu0
  %587 = vmatprep.mubr.bf16.mxu0 %v272
  %588 = vmatmul.mubr.bf16.gmra.mxu0 %v271
  %v589 = vpop.f32.mrf.mxu0
  %v590 = vadd.f32 0.0, %v589
  %v591 = vpop.f32.mrf.mxu0
  %v592 = vpop.f32.mrf.mxu0
  %v593 = vadd.f32 0.0, %v592
  %v594 = vpop.f32.mrf.mxu0
  %595 = vdwg.mxu0
  %596 = vmatprep.subr.bf16.mxu0 0
  %597 = vmatpush1.bf16.msra.mxu0 %v458
  %598 = vmatprep.subr.bf16.mxu0 0
  %599 = vmatpush1.bf16.msra.mxu0 %v457
  %600 = vmatprep.subr.bf16.mxu0 0
  %601 = vmatpush1.bf16.msra.mxu0 %v456
  %602 = vmatprep.subr.bf16.mxu0 0
  %603 = vmatpush1.bf16.msra.mxu0 %v455
  %604 = vmatprep.subr.bf16.mxu0 0
  %605 = vmatpush1.bf16.msra.mxu0 %v454
  %606 = vmatprep.subr.bf16.mxu0 0
  %607 = vmatpush1.bf16.msra.mxu0 %v453
  %608 = vmatprep.subr.bf16.mxu0 0
  %609 = vmatpush1.bf16.msra.mxu0 %v452
  %610 = vmatprep.subr.bf16.mxu0 0
  %611 = vmatpush1.bf16.msra.mxu0 %v451
  %612 = vmatprep.subr.bf16.mxu0 0
  %613 = vmatpush2.bf16.msra.mxu0 %v466
  %614 = vmatprep.subr.bf16.mxu0 0
  %615 = vmatpush2.bf16.msra.mxu0 %v465
  %616 = vmatprep.subr.bf16.mxu0 0
  %617 = vmatpush2.bf16.msra.mxu0 %v464
  %618 = vmatprep.subr.bf16.mxu0 0
  %619 = vmatpush2.bf16.msra.mxu0 %v463
  %620 = vmatprep.subr.bf16.mxu0 0
  %621 = vmatpush2.bf16.msra.mxu0 %v462
  %622 = vmatprep.subr.bf16.mxu0 0
  %623 = vmatpush2.bf16.msra.mxu0 %v461
  %624 = vmatprep.subr.bf16.mxu0 0
  %625 = vmatpush2.bf16.msra.mxu0 %v460
  %626 = vmatprep.subr.bf16.mxu0 0
  %627 = vmatpush2.bf16.msra.mxu0 %v459
  %628 = vmatprep.mubr.bf16.mxu0 %v246
  %629 = vmatmul.mubr.bf16.gmra.mxu0 %v245
  %v630 = vpop.f32.mrf.mxu0
  %v631 = vadd.f32 %v534, %v630
  %v632 = vpop.f32.mrf.mxu0
  %v633 = vpop.f32.mrf.mxu0
  %v634 = vadd.f32 %v537, %v633
  %v635 = vpop.f32.mrf.mxu0
  %636 = vmatprep.mubr.bf16.mxu0 %v250
  %637 = vmatmul.mubr.bf16.gmra.mxu0 %v249
  %v638 = vpop.f32.mrf.mxu0
  %v639 = vadd.f32 %v542, %v638
  %v640 = vpop.f32.mrf.mxu0
  %v641 = vpop.f32.mrf.mxu0
  %v642 = vadd.f32 %v545, %v641
  %v643 = vpop.f32.mrf.mxu0
  %644 = vmatprep.mubr.bf16.mxu0 %v254
  %645 = vmatmul.mubr.bf16.gmra.mxu0 %v253
  %v646 = vpop.f32.mrf.mxu0
  %v647 = vadd.f32 %v550, %v646
  %v648 = vpop.f32.mrf.mxu0
  %v649 = vpop.f32.mrf.mxu0
  %v650 = vadd.f32 %v553, %v649
  %v651 = vpop.f32.mrf.mxu0
  %652 = vmatprep.mubr.bf16.mxu0 %v258
  %653 = vmatmul.mubr.bf16.gmra.mxu0 %v257
  %v654 = vpop.f32.mrf.mxu0
  %v655 = vadd.f32 %v558, %v654
  %v656 = vpop.f32.mrf.mxu0
  %v657 = vpop.f32.mrf.mxu0
  %v658 = vadd.f32 %v561, %v657
  %v659 = vpop.f32.mrf.mxu0
  %660 = vmatprep.mubr.bf16.mxu0 %v262
  %661 = vmatmul.mubr.bf16.gmra.mxu0 %v261
  %v662 = vpop.f32.mrf.mxu0
  %v663 = vadd.f32 %v566, %v662
  %v664 = vpop.f32.mrf.mxu0
  %v665 = vpop.f32.mrf.mxu0
  %v666 = vadd.f32 %v569, %v665
  %v667 = vpop.f32.mrf.mxu0
  %668 = vmatprep.mubr.bf16.mxu0 %v266
  %669 = vmatmul.mubr.bf16.gmra.mxu0 %v265
  %v670 = vpop.f32.mrf.mxu0
  %v671 = vadd.f32 %v574, %v670
  %v672 = vpop.f32.mrf.mxu0
  %v673 = vpop.f32.mrf.mxu0
  %v674 = vadd.f32 %v577, %v673
  %v675 = vpop.f32.mrf.mxu0
  %676 = vmatprep.mubr.bf16.mxu0 %v270
  %677 = vmatmul.mubr.bf16.gmra.mxu0 %v269
  %v678 = vpop.f32.mrf.mxu0
  %v679 = vadd.f32 %v582, %v678
  %v680 = vpop.f32.mrf.mxu0
  %v681 = vpop.f32.mrf.mxu0
  %v682 = vadd.f32 %v585, %v681
  %v683 = vpop.f32.mrf.mxu0
  %684 = vmatprep.mubr.bf16.mxu0 %v274
  %685 = vmatmul.mubr.bf16.gmra.mxu0 %v273
  %v686 = vpop.f32.mrf.mxu0
  %v687 = vadd.f32 %v590, %v686
  %v688 = vpop.f32.mrf.mxu0
  %v689 = vpop.f32.mrf.mxu0
  %v690 = vadd.f32 %v593, %v689
  %v691 = vpop.f32.mrf.mxu0
  %692 = vdwg.mxu0
  %v693 = vadd.f32 %v35, %v631
  %v694 = vadd.f32 %v36, %v634
  %v695 = vadd.f32 %v37, %v639
  %v696 = vadd.f32 %v38, %v642
  %v697 = vadd.f32 %v39, %v647
  %v698 = vadd.f32 %v40, %v650
  %v699 = vadd.f32 %v41, %v655
  %v700 = vadd.f32 %v42, %v658
  %v701 = vadd.f32 %v43, %v663
  %v702 = vadd.f32 %v44, %v666
  %v703 = vadd.f32 %v45, %v671
  %v704 = vadd.f32 %v46, %v674
  %v705 = vadd.f32 %v47, %v679
  %v706 = vadd.f32 %v48, %v682
  %v707 = vadd.f32 %v49, %v687
  %v708 = vadd.f32 %v50, %v690
  %709 = vst [vmem:[#allocation2] sm:$0xff] %v693
  %710 = vst [vmem:[#allocation2 + $0x8] sm:$0xff] %v694
  %711 = vst [vmem:[#allocation2 + $0x10] sm:$0xff] %v695
  %712 = vst [vmem:[#allocation2 + $0x18] sm:$0xff] %v696
  %713 = vst [vmem:[#allocation2 + $0x20] sm:$0xff] %v697
  %714 = vst [vmem:[#allocation2 + $0x28] sm:$0xff] %v698
  %715 = vst [vmem:[#allocation2 + $0x30] sm:$0xff] %v699
  %716 = vst [vmem:[#allocation2 + $0x38] sm:$0xff] %v700
  %717 = vst [vmem:[#allocation2 + $0x40] sm:$0xff] %v701
  %718 = vst [vmem:[#allocation2 + $0x48] sm:$0xff] %v702
  %719 = vst [vmem:[#allocation2 + $0x50] sm:$0xff] %v703
  %720 = vst [vmem:[#allocation2 + $0x58] sm:$0xff] %v704
  %721 = vst [vmem:[#allocation2 + $0x60] sm:$0xff] %v705
  %722 = vst [vmem:[#allocation2 + $0x68] sm:$0xff] %v706
  %723 = vst [vmem:[#allocation2 + $0x70] sm:$0xff] %v707
  %724 = vst [vmem:[#allocation2 + $0x78] sm:$0xff] %v708
  // Predicated region
  $region18: #{vqvae_forward.17} parent=0 // pred_check
    %p725 = pneg %p15
  $region19: #{vqvae_forward.17} parent=0 // pred_check_branch
    %727 = sbr.rel (%p725) target = $region21
  $region20: #{vqvae_forward.17} parent=0 // pred_region
    %v728 = vld [vmem:[#allocation2] sm:$0xff]
    %v729 = vld [vmem:[#allocation2 + $0x8] sm:$0xff]
    %v730 = vld [vmem:[#allocation2 + $0x10] sm:$0xff]
    %v731 = vld [vmem:[#allocation2 + $0x18] sm:$0xff]
    %v732 = vld [vmem:[#allocation2 + $0x20] sm:$0xff]
    %v733 = vld [vmem:[#allocation2 + $0x28] sm:$0xff]
    %v734 = vld [vmem:[#allocation2 + $0x30] sm:$0xff]
    %v735 = vld [vmem:[#allocation2 + $0x38] sm:$0xff]
    %v736 = vld [vmem:[#allocation2 + $0x40] sm:$0xff]
    %v737 = vld [vmem:[#allocation2 + $0x48] sm:$0xff]
    %v738 = vld [vmem:[#allocation2 + $0x50] sm:$0xff]
    %v739 = vld [vmem:[#allocation2 + $0x58] sm:$0xff]
    %v740 = vld [vmem:[#allocation2 + $0x60] sm:$0xff]
    %v741 = vld [vmem:[#allocation2 + $0x68] sm:$0xff]
    %v742 = vld [vmem:[#allocation2 + $0x70] sm:$0xff]
    %v743 = vld [vmem:[#allocation2 + $0x78] sm:$0xff]
    %v744 = vld [vmem:[%s2] sm:$0x1]
    %v746 = vlaneseq
    %v747 = vshrl.u32 %v746, 7
    %v748 = vsub.s32 0, %v747
    %v749 = vrot.slane %v744, %v748
    %v751 = vadd.f32 %v728, %v749
    %v752 = vadd.f32 %v729, %v749
    %v753 = vadd.f32 %v730, %v749
    %v754 = vadd.f32 %v731, %v749
    %v755 = vadd.f32 %v732, %v749
    %v756 = vadd.f32 %v733, %v749
    %v757 = vadd.f32 %v734, %v749
    %v758 = vadd.f32 %v735, %v749
    %v759 = vadd.f32 %v736, %v749
    %v760 = vadd.f32 %v737, %v749
    %v761 = vadd.f32 %v738, %v749
    %v762 = vadd.f32 %v739, %v749
    %v763 = vadd.f32 %v740, %v749
    %v764 = vadd.f32 %v741, %v749
    %v765 = vadd.f32 %v742, %v749
    %v766 = vadd.f32 %v743, %v749
    %v767 = vmax.f32 %v751, 0.0
    %v768 = vmax.f32 %v752, 0.0
    %v769 = vmax.f32 %v753, 0.0
    %v770 = vmax.f32 %v754, 0.0
    %v771 = vmax.f32 %v755, 0.0
    %v772 = vmax.f32 %v756, 0.0
    %v773 = vmax.f32 %v757, 0.0
    %v774 = vmax.f32 %v758, 0.0
    %v775 = vmax.f32 %v759, 0.0
    %v776 = vmax.f32 %v760, 0.0
    %v777 = vmax.f32 %v761, 0.0
    %v778 = vmax.f32 %v762, 0.0
    %v779 = vmax.f32 %v763, 0.0
    %v780 = vmax.f32 %v764, 0.0
    %v781 = vmax.f32 %v765, 0.0
    %v782 = vmax.f32 %v766, 0.0
    %v783 = vpack.c.bf16 %v768, %v767
    %v784 = vpack.c.bf16 %v770, %v769
    %v785 = vpack.c.bf16 %v772, %v771
    %v786 = vpack.c.bf16 %v774, %v773
    %v787 = vpack.c.bf16 %v776, %v775
    %v788 = vpack.c.bf16 %v778, %v777
    %v789 = vpack.c.bf16 %v780, %v779
    %v790 = vpack.c.bf16 %v782, %v781
    %v799 = vunpack.c.l.b16 %v783
    %v800 = vunpack.c.h.b16 %v783
    %v801 = vunpack.c.l.b16 %v784
    %v802 = vunpack.c.h.b16 %v784
    %v803 = vunpack.c.l.b16 %v785
    %v804 = vunpack.c.h.b16 %v785
    %v805 = vunpack.c.l.b16 %v786
    %v806 = vunpack.c.h.b16 %v786
    %v807 = vunpack.c.l.b16 %v787
    %v808 = vunpack.c.h.b16 %v787
    %v809 = vunpack.c.l.b16 %v788
    %v810 = vunpack.c.h.b16 %v788
    %v811 = vunpack.c.l.b16 %v789
    %v812 = vunpack.c.h.b16 %v789
    %v813 = vunpack.c.l.b16 %v790
    %v814 = vunpack.c.h.b16 %v790
    %v815 = vpack.c.b16 %v799, %v799
    %v816 = vpack.c.b16 %v800, %v800
    %v817 = vpack.c.b16 %v801, %v801
    %v818 = vpack.c.b16 %v802, %v802
    %v819 = vpack.c.b16 %v803, %v803
    %v820 = vpack.c.b16 %v804, %v804
    %v821 = vpack.c.b16 %v805, %v805
    %v822 = vpack.c.b16 %v806, %v806
    %v823 = vpack.c.b16 %v807, %v807
    %v824 = vpack.c.b16 %v808, %v808
    %v825 = vpack.c.b16 %v809, %v809
    %v826 = vpack.c.b16 %v810, %v810
    %v827 = vpack.c.b16 %v811, %v811
    %v828 = vpack.c.b16 %v812, %v812
    %v829 = vpack.c.b16 %v813, %v813
    %v830 = vpack.c.b16 %v814, %v814
    %847 = vst [vmem:[%s3] sm:$0xf] %v815
    %848 = vst [vmem:[%s3 + $0x4] sm:$0xf] %v816
    %849 = vst [vmem:[%s3 + $0x8] sm:$0xf] %v817
    %850 = vst [vmem:[%s3 + $0xc] sm:$0xf] %v818
    %851 = vst [vmem:[%s3 + $0x10] sm:$0xf] %v819
    %852 = vst [vmem:[%s3 + $0x14] sm:$0xf] %v820
    %853 = vst [vmem:[%s3 + $0x18] sm:$0xf] %v821
    %854 = vst [vmem:[%s3 + $0x1c] sm:$0xf] %v822
    %855 = vst [vmem:[%s3 + $0x20] sm:$0xf] %v823
    %856 = vst [vmem:[%s3 + $0x24] sm:$0xf] %v824
    %857 = vst [vmem:[%s3 + $0x28] sm:$0xf] %v825
    %858 = vst [vmem:[%s3 + $0x2c] sm:$0xf] %v826
    %859 = vst [vmem:[%s3 + $0x30] sm:$0xf] %v827
    %860 = vst [vmem:[%s3 + $0x34] sm:$0xf] %v828
    %861 = vst [vmem:[%s3 + $0x38] sm:$0xf] %v829
    %862 = vst [vmem:[%s3 + $0x3c] sm:$0xf] %v830
  $region21: #{vqvae_forward.17} parent=0 // pred_fallthru
    _
  // Predicated region
  $region22: #{vqvae_forward.17} parent=0 // pred_check
    _
  $region23: #{vqvae_forward.17} parent=0 // pred_check_branch
    %864 = sbr.rel (0) target = $region25
  $region24: #{vqvae_forward.17} parent=0 // pred_region
    _
  $region25: #{vqvae_forward.17} parent=0 // pred_fallthru
    _
  // Predicated region
  $region26: #{vqvae_forward.17} parent=0 // pred_check
    _
  $region27: #{vqvae_forward.17} parent=0 // pred_check_branch
    %866 = sbr.rel (0) target = $region29
  $region28: #{vqvae_forward.17} parent=0 // pred_region
    _
  $region29: #{vqvae_forward.17} parent=0 // pred_fallthru
    _

// kernel: vqvae_forward.18
$region0: #{vqvae_forward.18}
  #allocation0 [shape = 'u32[]', space=smem, size = 0x4, offset = 0x4, fixed_abs, tag = 'smem constant byte address 0x4 - core index']
  #allocation1 [shape = 'u32[144,128]{1,0:T(1,128)}', space=vmem, size = 0x12000, scoped, tag = 'internal scratch']
  #allocation2 [shape = 'f32[128,128]{1,0:T(8,128)}', space=vmem, size = 0x10000, scoped, tag = 'scratch operand']
  %s0 = inlined_call_operand.vmem [shape: bf16[128,432], index: 0, kind: input, shape index: {}]
  %s1 = inlined_call_operand.vmem [shape: bf16[432,128], index: 1, kind: input, shape index: {}]
  %s2 = inlined_call_operand.vmem [shape: f32[1,128], index: 2, kind: input, shape index: {}]
  %s3 = inlined_call_operand.vmem [shape: bf16[128,128], index: 3, kind: output, shape index: {}]
  %s4 = sld [smem:[#allocation0]]
  $region30: #{vqvae_forward.18} parent=0
    _
  %s6 = ssub.s32 1, %s4
  %s7 = scalar_select 0, %s6, %s4
  // Predicated region
  $region2: #{vqvae_forward.18} parent=0 // pred_check
    _
  $region3: #{vqvae_forward.18} parent=0 // pred_check_branch
    %9 = sbr.rel (0) target = $region5
  $region4: #{vqvae_forward.18} parent=0 // pred_region
    _
  $region5: #{vqvae_forward.18} parent=0 // pred_fallthru
    _
  // Predicated region
  $region6: #{vqvae_forward.18} parent=0 // pred_check
    _
  $region7: #{vqvae_forward.18} parent=0 // pred_check_branch
    %11 = sbr.rel (0) target = $region9
  $region8: #{vqvae_forward.18} parent=0 // pred_region
    _
  $region9: #{vqvae_forward.18} parent=0 // pred_fallthru
    _
  // Predicated region
  $region10: #{vqvae_forward.18} parent=0 // pred_check
    _
  $region11: #{vqvae_forward.18} parent=0 // pred_check_branch
    %13 = sbr.rel (0) target = $region13
  $region12: #{vqvae_forward.18} parent=0 // pred_region
    _
  $region13: #{vqvae_forward.18} parent=0 // pred_fallthru
    _
  %p15 = scmp.eq.s32.totalorder 0, 0
  // Predicated region
  $region14: #{vqvae_forward.18} parent=0 // pred_check
    %p16 = pneg %p15
  $region15: #{vqvae_forward.18} parent=0 // pred_check_branch
    %18 = sbr.rel (%p16) target = $region17
  $region16: #{vqvae_forward.18} parent=0 // pred_region
    %19 = vst [vmem:[#allocation2] sm:$0xff] 0.0
    %20 = vst [vmem:[#allocation2 + $0x8] sm:$0xff] 0.0
    %21 = vst [vmem:[#allocation2 + $0x10] sm:$0xff] 0.0
    %22 = vst [vmem:[#allocation2 + $0x18] sm:$0xff] 0.0
    %23 = vst [vmem:[#allocation2 + $0x20] sm:$0xff] 0.0
    %24 = vst [vmem:[#allocation2 + $0x28] sm:$0xff] 0.0
    %25 = vst [vmem:[#allocation2 + $0x30] sm:$0xff] 0.0
    %26 = vst [vmem:[#allocation2 + $0x38] sm:$0xff] 0.0
    %27 = vst [vmem:[#allocation2 + $0x40] sm:$0xff] 0.0
    %28 = vst [vmem:[#allocation2 + $0x48] sm:$0xff] 0.0
    %29 = vst [vmem:[#allocation2 + $0x50] sm:$0xff] 0.0
    %30 = vst [vmem:[#allocation2 + $0x58] sm:$0xff] 0.0
    %31 = vst [vmem:[#allocation2 + $0x60] sm:$0xff] 0.0
    %32 = vst [vmem:[#allocation2 + $0x68] sm:$0xff] 0.0
    %33 = vst [vmem:[#allocation2 + $0x70] sm:$0xff] 0.0
    %34 = vst [vmem:[#allocation2 + $0x78] sm:$0xff] 0.0
  $region17: #{vqvae_forward.18} parent=0 // pred_fallthru
    _
  %v35 = vld [vmem:[#allocation2] sm:$0xff]
  %v36 = vld [vmem:[#allocation2 + $0x8] sm:$0xff]
  %v37 = vld [vmem:[#allocation2 + $0x10] sm:$0xff]
  %v38 = vld [vmem:[#allocation2 + $0x18] sm:$0xff]
  %v39 = vld [vmem:[#allocation2 + $0x20] sm:$0xff]
  %v40 = vld [vmem:[#allocation2 + $0x28] sm:$0xff]
  %v41 = vld [vmem:[#allocation2 + $0x30] sm:$0xff]
  %v42 = vld [vmem:[#allocation2 + $0x38] sm:$0xff]
  %v43 = vld [vmem:[#allocation2 + $0x40] sm:$0xff]
  %v44 = vld [vmem:[#allocation2 + $0x48] sm:$0xff]
  %v45 = vld [vmem:[#allocation2 + $0x50] sm:$0xff]
  %v46 = vld [vmem:[#allocation2 + $0x58] sm:$0xff]
  %v47 = vld [vmem:[#allocation2 + $0x60] sm:$0xff]
  %v48 = vld [vmem:[#allocation2 + $0x68] sm:$0xff]
  %v49 = vld [vmem:[#allocation2 + $0x70] sm:$0xff]
  %v50 = vld [vmem:[#allocation2 + $0x78] sm:$0xff]
  %v51 = vld [vmem:[%s0] sm:$0xff]
  %v52 = vld [vmem:[%s0 + $0x8] sm:$0xff]
  %v53 = vld [vmem:[%s0 + $0x10] sm:$0xff]
  %v54 = vld [vmem:[%s0 + $0x18] sm:$0xff]
  %v55 = vld [vmem:[%s0 + $0x20] sm:$0xff]
  %v56 = vld [vmem:[%s0 + $0x28] sm:$0xff]
  %v57 = vld [vmem:[%s0 + $0x30] sm:$0xff]
  %v58 = vld [vmem:[%s0 + $0x38] sm:$0xff]
  %v59 = vld [vmem:[%s0 + $0x40] sm:$0xff]
  %v60 = vld [vmem:[%s0 + $0x48] sm:$0xff]
  %v61 = vld [vmem:[%s0 + $0x50] sm:$0xff]
  %v62 = vld [vmem:[%s0 + $0x58] sm:$0xff]
  %v63 = vld [vmem:[%s0 + $0x60] sm:$0xff]
  %v64 = vld [vmem:[%s0 + $0x68] sm:$0xff]
  %v65 = vld [vmem:[%s0 + $0x70] sm:$0xff]
  %v66 = vld [vmem:[%s0 + $0x78] sm:$0xff]
  %v67 = vld [vmem:[%s0 + $0x80] sm:$0xff]
  %v68 = vld [vmem:[%s0 + $0x88] sm:$0xff]
  %v69 = vld [vmem:[%s0 + $0x90] sm:$0xff]
  %v70 = vld [vmem:[%s0 + $0x98] sm:$0xff]
  %v71 = vld [vmem:[%s0 + $0xa0] sm:$0xff]
  %v72 = vld [vmem:[%s0 + $0xa8] sm:$0xff]
  %v73 = vld [vmem:[%s0 + $0xb0] sm:$0xff]
  %v74 = vld [vmem:[%s0 + $0xb8] sm:$0xff]
  %v75 = vld [vmem:[%s0 + $0xc0] sm:$0xff]
  %v76 = vld [vmem:[%s0 + $0xc8] sm:$0xff]
  %v77 = vld [vmem:[%s0 + $0xd0] sm:$0xff]
  %v78 = vld [vmem:[%s0 + $0xd8] sm:$0xff]
  %v79 = vld [vmem:[%s0 + $0xe0] sm:$0xff]
  %v80 = vld [vmem:[%s0 + $0xe8] sm:$0xff]
  %v81 = vld [vmem:[%s0 + $0xf0] sm:$0xff]
  %v82 = vld [vmem:[%s0 + $0xf8] sm:$0xff]
  %v83 = vld [vmem:[%s1] sm:$0xf]
  %v84 = vld [vmem:[%s1 + $0x4] sm:$0xf]
  %v85 = vld [vmem:[%s1 + $0x8] sm:$0xf]
  %v86 = vld [vmem:[%s1 + $0xc] sm:$0xf]
  %v87 = vld [vmem:[%s1 + $0x10] sm:$0xf]
  %v88 = vld [vmem:[%s1 + $0x14] sm:$0xf]
  %v89 = vld [vmem:[%s1 + $0x18] sm:$0xf]
  %v90 = vld [vmem:[%s1 + $0x1c] sm:$0xf]
  %v91 = vld [vmem:[%s1 + $0x20] sm:$0xf]
  %v92 = vld [vmem:[%s1 + $0x24] sm:$0xf]
  %v93 = vld [vmem:[%s1 + $0x28] sm:$0xf]
  %v94 = vld [vmem:[%s1 + $0x2c] sm:$0xf]
  %v95 = vld [vmem:[%s1 + $0x30] sm:$0xf]
  %v96 = vld [vmem:[%s1 + $0x34] sm:$0xf]
  %v97 = vld [vmem:[%s1 + $0x38] sm:$0xf]
  %v98 = vld [vmem:[%s1 + $0x3c] sm:$0xf]
  %v99 = vld [vmem:[%s1 + $0x40] sm:$0xf]
  %v100 = vld [vmem:[%s1 + $0x44] sm:$0xf]
  %v101 = vld [vmem:[%s1 + $0x48] sm:$0xf]
  %v102 = vld [vmem:[%s1 + $0x4c] sm:$0xf]
  %v103 = vld [vmem:[%s1 + $0x50] sm:$0xf]
  %v104 = vld [vmem:[%s1 + $0x54] sm:$0xf]
  %v105 = vld [vmem:[%s1 + $0x58] sm:$0xf]
  %v106 = vld [vmem:[%s1 + $0x5c] sm:$0xf]
  %v107 = vld [vmem:[%s1 + $0x60] sm:$0xf]
  %v108 = vld [vmem:[%s1 + $0x64] sm:$0xf]
  %v109 = vld [vmem:[%s1 + $0x68] sm:$0xf]
  %v110 = vld [vmem:[%s1 + $0x6c] sm:$0xf]
  %v111 = vld [vmem:[%s1 + $0x70] sm:$0xf]
  %v112 = vld [vmem:[%s1 + $0x74] sm:$0xf]
  %v113 = vld [vmem:[%s1 + $0x78] sm:$0xf]
  %v114 = vld [vmem:[%s1 + $0x7c] sm:$0xf]
  %v115 = vld [vmem:[%s1 + $0x80] sm:$0xf]
  %v116 = vld [vmem:[%s1 + $0x84] sm:$0xf]
  %v117 = vld [vmem:[%s1 + $0x88] sm:$0xf]
  %v118 = vld [vmem:[%s1 + $0x8c] sm:$0xf]
  %v119 = vld [vmem:[%s1 + $0x90] sm:$0xf]
  %v120 = vld [vmem:[%s1 + $0x94] sm:$0xf]
  %v121 = vld [vmem:[%s1 + $0x98] sm:$0xf]
  %v122 = vld [vmem:[%s1 + $0x9c] sm:$0xf]
  %v123 = vld [vmem:[%s1 + $0xa0] sm:$0xf]
  %v124 = vld [vmem:[%s1 + $0xa4] sm:$0xf]
  %v125 = vld [vmem:[%s1 + $0xa8] sm:$0xf]
  %v126 = vld [vmem:[%s1 + $0xac] sm:$0xf]
  %v127 = vld [vmem:[%s1 + $0xb0] sm:$0xf]
  %v128 = vld [vmem:[%s1 + $0xb4] sm:$0xf]
  %v129 = vld [vmem:[%s1 + $0xb8] sm:$0xf]
  %v130 = vld [vmem:[%s1 + $0xbc] sm:$0xf]
  %v131 = vld [vmem:[%s1 + $0xc0] sm:$0xf]
  %v132 = vld [vmem:[%s1 + $0xc4] sm:$0xf]
  %v133 = vld [vmem:[%s1 + $0xc8] sm:$0xf]
  %v134 = vld [vmem:[%s1 + $0xcc] sm:$0xf]
  %v135 = vld [vmem:[%s1 + $0xd0] sm:$0xf]
  %v136 = vld [vmem:[%s1 + $0xd4] sm:$0xf]
  %v169 = vunpack.c.l.b16 %v51
  %v170 = vunpack.c.h.b16 %v51
  %v171 = vunpack.c.l.b16 %v52
  %v172 = vunpack.c.h.b16 %v52
  %v173 = vunpack.c.l.b16 %v53
  %v174 = vunpack.c.h.b16 %v53
  %v175 = vunpack.c.l.b16 %v54
  %v176 = vunpack.c.h.b16 %v54
  %v177 = vunpack.c.l.b16 %v55
  %v178 = vunpack.c.h.b16 %v55
  %v179 = vunpack.c.l.b16 %v56
  %v180 = vunpack.c.h.b16 %v56
  %v181 = vunpack.c.l.b16 %v57
  %v182 = vunpack.c.h.b16 %v57
  %v183 = vunpack.c.l.b16 %v58
  %v184 = vunpack.c.h.b16 %v58
  %v185 = vunpack.c.l.b16 %v59
  %v186 = vunpack.c.h.b16 %v59
  %v187 = vunpack.c.l.b16 %v60
  %v188 = vunpack.c.h.b16 %v60
  %v189 = vunpack.c.l.b16 %v61
  %v190 = vunpack.c.h.b16 %v61
  %v191 = vunpack.c.l.b16 %v62
  %v192 = vunpack.c.h.b16 %v62
  %v193 = vunpack.c.l.b16 %v63
  %v194 = vunpack.c.h.b16 %v63
  %v195 = vunpack.c.l.b16 %v64
  %v196 = vunpack.c.h.b16 %v64
  %v197 = vunpack.c.l.b16 %v65
  %v198 = vunpack.c.h.b16 %v65
  %v199 = vunpack.c.l.b16 %v66
  %v200 = vunpack.c.h.b16 %v66
  %v201 = vunpack.c.l.b16 %v67
  %v202 = vunpack.c.h.b16 %v67
  %v203 = vunpack.c.l.b16 %v68
  %v204 = vunpack.c.h.b16 %v68
  %v205 = vunpack.c.l.b16 %v69
  %v206 = vunpack.c.h.b16 %v69
  %v207 = vunpack.c.l.b16 %v70
  %v208 = vunpack.c.h.b16 %v70
  %v209 = vunpack.c.l.b16 %v71
  %v210 = vunpack.c.h.b16 %v71
  %v211 = vunpack.c.l.b16 %v72
  %v212 = vunpack.c.h.b16 %v72
  %v213 = vunpack.c.l.b16 %v73
  %v214 = vunpack.c.h.b16 %v73
  %v215 = vunpack.c.l.b16 %v74
  %v216 = vunpack.c.h.b16 %v74
  %v217 = vunpack.c.l.b16 %v75
  %v218 = vunpack.c.h.b16 %v75
  %v219 = vunpack.c.l.b16 %v76
  %v220 = vunpack.c.h.b16 %v76
  %v221 = vunpack.c.l.b16 %v77
  %v222 = vunpack.c.h.b16 %v77
  %v223 = vunpack.c.l.b16 %v78
  %v224 = vunpack.c.h.b16 %v78
  %v225 = vunpack.c.l.b16 %v79
  %v226 = vunpack.c.h.b16 %v79
  %v227 = vunpack.c.l.b16 %v80
  %v228 = vunpack.c.h.b16 %v80
  %v229 = vunpack.c.l.b16 %v81
  %v230 = vunpack.c.h.b16 %v81
  %v231 = vunpack.c.l.b16 %v82
  %v232 = vunpack.c.h.b16 %v82
  %v233 = vpack.c.b16 %v173, %v169
  %v234 = vpack.c.b16 %v174, %v170
  %v235 = vpack.c.b16 %v175, %v171
  %v236 = vpack.c.b16 %v176, %v172
  %v237 = vpack.c.b16 %v181, %v177
  %v238 = vpack.c.b16 %v182, %v178
  %v239 = vpack.c.b16 %v183, %v179
  %v240 = vpack.c.b16 %v184, %v180
  %v241 = vpack.c.b16 %v189, %v185
  %v242 = vpack.c.b16 %v190, %v186
  %v243 = vpack.c.b16 %v191, %v187
  %v244 = vpack.c.b16 %v192, %v188
  %v245 = vpack.c.b16 %v197, %v193
  %v246 = vpack.c.b16 %v198, %v194
  %v247 = vpack.c.b16 %v199, %v195
  %v248 = vpack.c.b16 %v200, %v196
  %v249 = vpack.c.b16 %v205, %v201
  %v250 = vpack.c.b16 %v206, %v202
  %v251 = vpack.c.b16 %v207, %v203
  %v252 = vpack.c.b16 %v208, %v204
  %v253 = vpack.c.b16 %v213, %v209
  %v254 = vpack.c.b16 %v214, %v210
  %v255 = vpack.c.b16 %v215, %v211
  %v256 = vpack.c.b16 %v216, %v212
  %v257 = vpack.c.b16 %v221, %v217
  %v258 = vpack.c.b16 %v222, %v218
  %v259 = vpack.c.b16 %v223, %v219
  %v260 = vpack.c.b16 %v224, %v220
  %v261 = vpack.c.b16 %v229, %v225
  %v262 = vpack.c.b16 %v230, %v226
  %v263 = vpack.c.b16 %v231, %v227
  %v264 = vpack.c.b16 %v232, %v228
  %v343 = vunpack.c.l.b16 %v83
  %v344 = vunpack.c.l.b16 %v84
  %v345 = vunpack.c.l.b16 %v85
  %v346 = vunpack.c.l.b16 %v86
  %v347 = vunpack.c.l.b16 %v87
  %v348 = vunpack.c.l.b16 %v88
  %v349 = vunpack.c.l.b16 %v89
  %v350 = vunpack.c.l.b16 %v90
  %v351 = vunpack.c.l.b16 %v91
  %v352 = vunpack.c.l.b16 %v92
  %v353 = vunpack.c.l.b16 %v93
  %v354 = vunpack.c.l.b16 %v94
  %v355 = vunpack.c.l.b16 %v95
  %v356 = vunpack.c.l.b16 %v96
  %v357 = vunpack.c.l.b16 %v97
  %v358 = vunpack.c.l.b16 %v98
  %v359 = vunpack.c.l.b16 %v99
  %v360 = vunpack.c.l.b16 %v100
  %v361 = vunpack.c.l.b16 %v101
  %v362 = vunpack.c.l.b16 %v102
  %v363 = vunpack.c.l.b16 %v103
  %v364 = vunpack.c.l.b16 %v104
  %v365 = vunpack.c.l.b16 %v105
  %v366 = vunpack.c.l.b16 %v106
  %v367 = vunpack.c.l.b16 %v107
  %v368 = vunpack.c.l.b16 %v108
  %v369 = vunpack.c.l.b16 %v109
  %v370 = vunpack.c.l.b16 %v110
  %v371 = vunpack.c.l.b16 %v111
  %v372 = vunpack.c.l.b16 %v112
  %v373 = vunpack.c.l.b16 %v113
  %v374 = vunpack.c.l.b16 %v114
  %v375 = vunpack.c.l.b16 %v115
  %v376 = vunpack.c.l.b16 %v116
  %v377 = vunpack.c.l.b16 %v117
  %v378 = vunpack.c.l.b16 %v118
  %v379 = vunpack.c.l.b16 %v119
  %v380 = vunpack.c.l.b16 %v120
  %v381 = vunpack.c.l.b16 %v121
  %v382 = vunpack.c.l.b16 %v122
  %v383 = vunpack.c.l.b16 %v123
  %v384 = vunpack.c.l.b16 %v124
  %v385 = vunpack.c.l.b16 %v125
  %v386 = vunpack.c.l.b16 %v126
  %v387 = vunpack.c.l.b16 %v127
  %v388 = vunpack.c.l.b16 %v128
  %v389 = vunpack.c.l.b16 %v129
  %v390 = vunpack.c.l.b16 %v130
  %v391 = vunpack.c.l.b16 %v131
  %v392 = vunpack.c.l.b16 %v132
  %v393 = vunpack.c.l.b16 %v133
  %v394 = vunpack.c.l.b16 %v134
  %v395 = vunpack.c.l.b16 %v135
  %v396 = vunpack.c.l.b16 %v136
  %v397 = vpack.c.b16 %v344, %v343
  %v398 = vpack.c.b16 %v346, %v345
  %v399 = vpack.c.b16 %v348, %v347
  %v400 = vpack.c.b16 %v350, %v349
  %v401 = vpack.c.b16 %v352, %v351
  %v402 = vpack.c.b16 %v354, %v353
  %v403 = vpack.c.b16 %v356, %v355
  %v404 = vpack.c.b16 %v358, %v357
  %v405 = vpack.c.b16 %v360, %v359
  %v406 = vpack.c.b16 %v362, %v361
  %v407 = vpack.c.b16 %v364, %v363
  %v408 = vpack.c.b16 %v366, %v365
  %v409 = vpack.c.b16 %v368, %v367
  %v410 = vpack.c.b16 %v370, %v369
  %v411 = vpack.c.b16 %v372, %v371
  %v412 = vpack.c.b16 %v374, %v373
  %v413 = vpack.c.b16 %v376, %v375
  %v414 = vpack.c.b16 %v378, %v377
  %v415 = vpack.c.b16 %v380, %v379
  %v416 = vpack.c.b16 %v382, %v381
  %v417 = vpack.c.b16 %v384, %v383
  %v418 = vpack.c.b16 %v386, %v385
  %v419 = vpack.c.b16 %v388, %v387
  %v420 = vpack.c.b16 %v390, %v389
  %v421 = vpack.c.b16 %v392, %v391
  %v422 = vpack.c.b16 %v394, %v393
  %v423 = vpack.c.b16 %v396, %v395
  %vm451 = vcmask 392192
  %v453 = vsel %vm451, %v236, 0
  %v456 = vsel %vm451, %v240, 0
  %v459 = vsel %vm451, %v244, 0
  %v462 = vsel %vm451, %v248, 0
  %v465 = vsel %vm451, %v252, 0
  %v468 = vsel %vm451, %v256, 0
  %v471 = vsel %vm451, %v260, 0
  %v474 = vsel %vm451, %v264, 0
  %476 = vmatprep.subr.bf16.mxu0 0
  %477 = vmatpush1.bf16.msra.mxu0 %v404
  %478 = vmatprep.subr.bf16.mxu0 0
  %479 = vmatpush1.bf16.msra.mxu0 %v403
  %480 = vmatprep.subr.bf16.mxu0 0
  %481 = vmatpush1.bf16.msra.mxu0 %v402
  %482 = vmatprep.subr.bf16.mxu0 0
  %483 = vmatpush1.bf16.msra.mxu0 %v401
  %484 = vmatprep.subr.bf16.mxu0 0
  %485 = vmatpush1.bf16.msra.mxu0 %v400
  %486 = vmatprep.subr.bf16.mxu0 0
  %487 = vmatpush1.bf16.msra.mxu0 %v399
  %488 = vmatprep.subr.bf16.mxu0 0
  %489 = vmatpush1.bf16.msra.mxu0 %v398
  %490 = vmatprep.subr.bf16.mxu0 0
  %491 = vmatpush1.bf16.msra.mxu0 %v397
  %492 = vmatprep.subr.bf16.mxu0 0
  %493 = vmatpush2.bf16.msra.mxu0 %v412
  %494 = vmatprep.subr.bf16.mxu0 0
  %495 = vmatpush2.bf16.msra.mxu0 %v411
  %496 = vmatprep.subr.bf16.mxu0 0
  %497 = vmatpush2.bf16.msra.mxu0 %v410
  %498 = vmatprep.subr.bf16.mxu0 0
  %499 = vmatpush2.bf16.msra.mxu0 %v409
  %500 = vmatprep.subr.bf16.mxu0 0
  %501 = vmatpush2.bf16.msra.mxu0 %v408
  %502 = vmatprep.subr.bf16.mxu0 0
  %503 = vmatpush2.bf16.msra.mxu0 %v407
  %504 = vmatprep.subr.bf16.mxu0 0
  %505 = vmatpush2.bf16.msra.mxu0 %v406
  %506 = vmatprep.subr.bf16.mxu0 0
  %507 = vmatpush2.bf16.msra.mxu0 %v405
  %508 = vmatprep.mubr.bf16.mxu0 %v234
  %509 = vmatmul.mubr.bf16.gmra.mxu0 %v233
  %v510 = vpop.f32.mrf.mxu0
  %v511 = vadd.f32 0.0, %v510
  %v512 = vpop.f32.mrf.mxu0
  %v513 = vpop.f32.mrf.mxu0
  %v514 = vadd.f32 0.0, %v513
  %v515 = vpop.f32.mrf.mxu0
  %516 = vmatprep.mubr.bf16.mxu0 %v238
  %517 = vmatmul.mubr.bf16.gmra.mxu0 %v237
  %v518 = vpop.f32.mrf.mxu0
  %v519 = vadd.f32 0.0, %v518
  %v520 = vpop.f32.mrf.mxu0
  %v521 = vpop.f32.mrf.mxu0
  %v522 = vadd.f32 0.0, %v521
  %v523 = vpop.f32.mrf.mxu0
  %524 = vmatprep.mubr.bf16.mxu0 %v242
  %525 = vmatmul.mubr.bf16.gmra.mxu0 %v241
  %v526 = vpop.f32.mrf.mxu0
  %v527 = vadd.f32 0.0, %v526
  %v528 = vpop.f32.mrf.mxu0
  %v529 = vpop.f32.mrf.mxu0
  %v530 = vadd.f32 0.0, %v529
  %v531 = vpop.f32.mrf.mxu0
  %532 = vmatprep.mubr.bf16.mxu0 %v246
  %533 = vmatmul.mubr.bf16.gmra.mxu0 %v245
  %v534 = vpop.f32.mrf.mxu0
  %v535 = vadd.f32 0.0, %v534
  %v536 = vpop.f32.mrf.mxu0
  %v537 = vpop.f32.mrf.mxu0
  %v538 = vadd.f32 0.0, %v537
  %v539 = vpop.f32.mrf.mxu0
  %540 = vmatprep.mubr.bf16.mxu0 %v250
  %541 = vmatmul.mubr.bf16.gmra.mxu0 %v249
  %v542 = vpop.f32.mrf.mxu0
  %v543 = vadd.f32 0.0, %v542
  %v544 = vpop.f32.mrf.mxu0
  %v545 = vpop.f32.mrf.mxu0
  %v546 = vadd.f32 0.0, %v545
  %v547 = vpop.f32.mrf.mxu0
  %548 = vmatprep.mubr.bf16.mxu0 %v254
  %549 = vmatmul.mubr.bf16.gmra.mxu0 %v253
  %v550 = vpop.f32.mrf.mxu0
  %v551 = vadd.f32 0.0, %v550
  %v552 = vpop.f32.mrf.mxu0
  %v553 = vpop.f32.mrf.mxu0
  %v554 = vadd.f32 0.0, %v553
  %v555 = vpop.f32.mrf.mxu0
  %556 = vmatprep.mubr.bf16.mxu0 %v258
  %557 = vmatmul.mubr.bf16.gmra.mxu0 %v257
  %v558 = vpop.f32.mrf.mxu0
  %v559 = vadd.f32 0.0, %v558
  %v560 = vpop.f32.mrf.mxu0
  %v561 = vpop.f32.mrf.mxu0
  %v562 = vadd.f32 0.0, %v561
  %v563 = vpop.f32.mrf.mxu0
  %564 = vmatprep.mubr.bf16.mxu0 %v262
  %565 = vmatmul.mubr.bf16.gmra.mxu0 %v261
  %v566 = vpop.f32.mrf.mxu0
  %v567 = vadd.f32 0.0, %v566
  %v568 = vpop.f32.mrf.mxu0
  %v569 = vpop.f32.mrf.mxu0
  %v570 = vadd.f32 0.0, %v569
  %v571 = vpop.f32.mrf.mxu0
  %572 = vdwg.mxu0
  %573 = vmatprep.subr.bf16.mxu0 0
  %574 = vmatpush1.bf16.msra.mxu0 %v420
  %575 = vmatprep.subr.bf16.mxu0 0
  %576 = vmatpush1.bf16.msra.mxu0 %v419
  %577 = vmatprep.subr.bf16.mxu0 0
  %578 = vmatpush1.bf16.msra.mxu0 %v418
  %579 = vmatprep.subr.bf16.mxu0 0
  %580 = vmatpush1.bf16.msra.mxu0 %v417
  %581 = vmatprep.subr.bf16.mxu0 0
  %582 = vmatpush1.bf16.msra.mxu0 %v416
  %583 = vmatprep.subr.bf16.mxu0 0
  %584 = vmatpush1.bf16.msra.mxu0 %v415
  %585 = vmatprep.subr.bf16.mxu0 0
  %586 = vmatpush1.bf16.msra.mxu0 %v414
  %587 = vmatprep.subr.bf16.mxu0 0
  %588 = vmatpush1.bf16.msra.mxu0 %v413
  %589 = vmatprep.subr.bf16.mxu0 0
  %590 = vmatpush2.bf16.msra.mxu0 0
  %591 = vmatprep.subr.bf16.mxu0 0
  %592 = vmatpush2.bf16.msra.mxu0 0
  %593 = vmatprep.subr.bf16.mxu0 0
  %594 = vmatpush2.bf16.msra.mxu0 0
  %595 = vmatprep.subr.bf16.mxu0 0
  %596 = vmatpush2.bf16.msra.mxu0 0
  %597 = vmatprep.subr.bf16.mxu0 0
  %598 = vmatpush2.bf16.msra.mxu0 0
  %599 = vmatprep.subr.bf16.mxu0 0
  %600 = vmatpush2.bf16.msra.mxu0 %v423
  %601 = vmatprep.subr.bf16.mxu0 0
  %602 = vmatpush2.bf16.msra.mxu0 %v422
  %603 = vmatprep.subr.bf16.mxu0 0
  %604 = vmatpush2.bf16.msra.mxu0 %v421
  %605 = vmatprep.mubr.bf16.mxu0 %v453
  %606 = vmatmul.mubr.bf16.gmra.mxu0 %v235
  %v607 = vpop.f32.mrf.mxu0
  %v608 = vadd.f32 %v511, %v607
  %v609 = vpop.f32.mrf.mxu0
  %v610 = vpop.f32.mrf.mxu0
  %v611 = vadd.f32 %v514, %v610
  %v612 = vpop.f32.mrf.mxu0
  %613 = vmatprep.mubr.bf16.mxu0 %v456
  %614 = vmatmul.mubr.bf16.gmra.mxu0 %v239
  %v615 = vpop.f32.mrf.mxu0
  %v616 = vadd.f32 %v519, %v615
  %v617 = vpop.f32.mrf.mxu0
  %v618 = vpop.f32.mrf.mxu0
  %v619 = vadd.f32 %v522, %v618
  %v620 = vpop.f32.mrf.mxu0
  %621 = vmatprep.mubr.bf16.mxu0 %v459
  %622 = vmatmul.mubr.bf16.gmra.mxu0 %v243
  %v623 = vpop.f32.mrf.mxu0
  %v624 = vadd.f32 %v527, %v623
  %v625 = vpop.f32.mrf.mxu0
  %v626 = vpop.f32.mrf.mxu0
  %v627 = vadd.f32 %v530, %v626
  %v628 = vpop.f32.mrf.mxu0
  %629 = vmatprep.mubr.bf16.mxu0 %v462
  %630 = vmatmul.mubr.bf16.gmra.mxu0 %v247
  %v631 = vpop.f32.mrf.mxu0
  %v632 = vadd.f32 %v535, %v631
  %v633 = vpop.f32.mrf.mxu0
  %v634 = vpop.f32.mrf.mxu0
  %v635 = vadd.f32 %v538, %v634
  %v636 = vpop.f32.mrf.mxu0
  %637 = vmatprep.mubr.bf16.mxu0 %v465
  %638 = vmatmul.mubr.bf16.gmra.mxu0 %v251
  %v639 = vpop.f32.mrf.mxu0
  %v640 = vadd.f32 %v543, %v639
  %v641 = vpop.f32.mrf.mxu0
  %v642 = vpop.f32.mrf.mxu0
  %v643 = vadd.f32 %v546, %v642
  %v644 = vpop.f32.mrf.mxu0
  %645 = vmatprep.mubr.bf16.mxu0 %v468
  %646 = vmatmul.mubr.bf16.gmra.mxu0 %v255
  %v647 = vpop.f32.mrf.mxu0
  %v648 = vadd.f32 %v551, %v647
  %v649 = vpop.f32.mrf.mxu0
  %v650 = vpop.f32.mrf.mxu0
  %v651 = vadd.f32 %v554, %v650
  %v652 = vpop.f32.mrf.mxu0
  %653 = vmatprep.mubr.bf16.mxu0 %v471
  %654 = vmatmul.mubr.bf16.gmra.mxu0 %v259
  %v655 = vpop.f32.mrf.mxu0
  %v656 = vadd.f32 %v559, %v655
  %v657 = vpop.f32.mrf.mxu0
  %v658 = vpop.f32.mrf.mxu0
  %v659 = vadd.f32 %v562, %v658
  %v660 = vpop.f32.mrf.mxu0
  %661 = vmatprep.mubr.bf16.mxu0 %v474
  %662 = vmatmul.mubr.bf16.gmra.mxu0 %v263
  %v663 = vpop.f32.mrf.mxu0
  %v664 = vadd.f32 %v567, %v663
  %v665 = vpop.f32.mrf.mxu0
  %v666 = vpop.f32.mrf.mxu0
  %v667 = vadd.f32 %v570, %v666
  %v668 = vpop.f32.mrf.mxu0
  %669 = vdwg.mxu0
  %v670 = vadd.f32 %v35, %v608
  %v671 = vadd.f32 %v36, %v611
  %v672 = vadd.f32 %v37, %v616
  %v673 = vadd.f32 %v38, %v619
  %v674 = vadd.f32 %v39, %v624
  %v675 = vadd.f32 %v40, %v627
  %v676 = vadd.f32 %v41, %v632
  %v677 = vadd.f32 %v42, %v635
  %v678 = vadd.f32 %v43, %v640
  %v679 = vadd.f32 %v44, %v643
  %v680 = vadd.f32 %v45, %v648
  %v681 = vadd.f32 %v46, %v651
  %v682 = vadd.f32 %v47, %v656
  %v683 = vadd.f32 %v48, %v659
  %v684 = vadd.f32 %v49, %v664
  %v685 = vadd.f32 %v50, %v667
  %686 = vst [vmem:[#allocation2] sm:$0xff] %v670
  %687 = vst [vmem:[#allocation2 + $0x8] sm:$0xff] %v671
  %688 = vst [vmem:[#allocation2 + $0x10] sm:$0xff] %v672
  %689 = vst [vmem:[#allocation2 + $0x18] sm:$0xff] %v673
  %690 = vst [vmem:[#allocation2 + $0x20] sm:$0xff] %v674
  %691 = vst [vmem:[#allocation2 + $0x28] sm:$0xff] %v675
  %692 = vst [vmem:[#allocation2 + $0x30] sm:$0xff] %v676
  %693 = vst [vmem:[#allocation2 + $0x38] sm:$0xff] %v677
  %694 = vst [vmem:[#allocation2 + $0x40] sm:$0xff] %v678
  %695 = vst [vmem:[#allocation2 + $0x48] sm:$0xff] %v679
  %696 = vst [vmem:[#allocation2 + $0x50] sm:$0xff] %v680
  %697 = vst [vmem:[#allocation2 + $0x58] sm:$0xff] %v681
  %698 = vst [vmem:[#allocation2 + $0x60] sm:$0xff] %v682
  %699 = vst [vmem:[#allocation2 + $0x68] sm:$0xff] %v683
  %700 = vst [vmem:[#allocation2 + $0x70] sm:$0xff] %v684
  %701 = vst [vmem:[#allocation2 + $0x78] sm:$0xff] %v685
  // Predicated region
  $region18: #{vqvae_forward.18} parent=0 // pred_check
    %p702 = pneg %p15
  $region19: #{vqvae_forward.18} parent=0 // pred_check_branch
    %704 = sbr.rel (%p702) target = $region21
  $region20: #{vqvae_forward.18} parent=0 // pred_region
    %v705 = vld [vmem:[#allocation2] sm:$0xff]
    %v706 = vld [vmem:[#allocation2 + $0x8] sm:$0xff]
    %v707 = vld [vmem:[#allocation2 + $0x10] sm:$0xff]
    %v708 = vld [vmem:[#allocation2 + $0x18] sm:$0xff]
    %v709 = vld [vmem:[#allocation2 + $0x20] sm:$0xff]
    %v710 = vld [vmem:[#allocation2 + $0x28] sm:$0xff]
    %v711 = vld [vmem:[#allocation2 + $0x30] sm:$0xff]
    %v712 = vld [vmem:[#allocation2 + $0x38] sm:$0xff]
    %v713 = vld [vmem:[#allocation2 + $0x40] sm:$0xff]
    %v714 = vld [vmem:[#allocation2 + $0x48] sm:$0xff]
    %v715 = vld [vmem:[#allocation2 + $0x50] sm:$0xff]
    %v716 = vld [vmem:[#allocation2 + $0x58] sm:$0xff]
    %v717 = vld [vmem:[#allocation2 + $0x60] sm:$0xff]
    %v718 = vld [vmem:[#allocation2 + $0x68] sm:$0xff]
    %v719 = vld [vmem:[#allocation2 + $0x70] sm:$0xff]
    %v720 = vld [vmem:[#allocation2 + $0x78] sm:$0xff]
    %v721 = vld [vmem:[%s2] sm:$0x1]
    %v723 = vlaneseq
    %v724 = vshrl.u32 %v723, 7
    %v725 = vsub.s32 0, %v724
    %v726 = vrot.slane %v721, %v725
    %v728 = vadd.f32 %v705, %v726
    %v729 = vadd.f32 %v706, %v726
    %v730 = vadd.f32 %v707, %v726
    %v731 = vadd.f32 %v708, %v726
    %v732 = vadd.f32 %v709, %v726
    %v733 = vadd.f32 %v710, %v726
    %v734 = vadd.f32 %v711, %v726
    %v735 = vadd.f32 %v712, %v726
    %v736 = vadd.f32 %v713, %v726
    %v737 = vadd.f32 %v714, %v726
    %v738 = vadd.f32 %v715, %v726
    %v739 = vadd.f32 %v716, %v726
    %v740 = vadd.f32 %v717, %v726
    %v741 = vadd.f32 %v718, %v726
    %v742 = vadd.f32 %v719, %v726
    %v743 = vadd.f32 %v720, %v726
    %v744 = vpack.c.bf16 %v729, %v728
    %v745 = vpack.c.bf16 %v731, %v730
    %v746 = vpack.c.bf16 %v733, %v732
    %v747 = vpack.c.bf16 %v735, %v734
    %v748 = vpack.c.bf16 %v737, %v736
    %v749 = vpack.c.bf16 %v739, %v738
    %v750 = vpack.c.bf16 %v741, %v740
    %v751 = vpack.c.bf16 %v743, %v742
    %v760 = vunpack.c.l.b16 %v744
    %v761 = vunpack.c.h.b16 %v744
    %v762 = vunpack.c.l.b16 %v745
    %v763 = vunpack.c.h.b16 %v745
    %v764 = vunpack.c.l.b16 %v746
    %v765 = vunpack.c.h.b16 %v746
    %v766 = vunpack.c.l.b16 %v747
    %v767 = vunpack.c.h.b16 %v747
    %v768 = vunpack.c.l.b16 %v748
    %v769 = vunpack.c.h.b16 %v748
    %v770 = vunpack.c.l.b16 %v749
    %v771 = vunpack.c.h.b16 %v749
    %v772 = vunpack.c.l.b16 %v750
    %v773 = vunpack.c.h.b16 %v750
    %v774 = vunpack.c.l.b16 %v751
    %v775 = vunpack.c.h.b16 %v751
    %v776 = vpack.c.b16 %v760, %v760
    %v777 = vpack.c.b16 %v761, %v761
    %v778 = vpack.c.b16 %v762, %v762
    %v779 = vpack.c.b16 %v763, %v763
    %v780 = vpack.c.b16 %v764, %v764
    %v781 = vpack.c.b16 %v765, %v765
    %v782 = vpack.c.b16 %v766, %v766
    %v783 = vpack.c.b16 %v767, %v767
    %v784 = vpack.c.b16 %v768, %v768
    %v785 = vpack.c.b16 %v769, %v769
    %v786 = vpack.c.b16 %v770, %v770
    %v787 = vpack.c.b16 %v771, %v771
    %v788 = vpack.c.b16 %v772, %v772
    %v789 = vpack.c.b16 %v773, %v773
    %v790 = vpack.c.b16 %v774, %v774
    %v791 = vpack.c.b16 %v775, %v775
    %808 = vst [vmem:[%s3] sm:$0xf] %v776
    %809 = vst [vmem:[%s3 + $0x4] sm:$0xf] %v777
    %810 = vst [vmem:[%s3 + $0x8] sm:$0xf] %v778
    %811 = vst [vmem:[%s3 + $0xc] sm:$0xf] %v779
    %812 = vst [vmem:[%s3 + $0x10] sm:$0xf] %v780
    %813 = vst [vmem:[%s3 + $0x14] sm:$0xf] %v781
    %814 = vst [vmem:[%s3 + $0x18] sm:$0xf] %v782
    %815 = vst [vmem:[%s3 + $0x1c] sm:$0xf] %v783
    %816 = vst [vmem:[%s3 + $0x20] sm:$0xf] %v784
    %817 = vst [vmem:[%s3 + $0x24] sm:$0xf] %v785
    %818 = vst [vmem:[%s3 + $0x28] sm:$0xf] %v786
    %819 = vst [vmem:[%s3 + $0x2c] sm:$0xf] %v787
    %820 = vst [vmem:[%s3 + $0x30] sm:$0xf] %v788
    %821 = vst [vmem:[%s3 + $0x34] sm:$0xf] %v789
    %822 = vst [vmem:[%s3 + $0x38] sm:$0xf] %v790
    %823 = vst [vmem:[%s3 + $0x3c] sm:$0xf] %v791
  $region21: #{vqvae_forward.18} parent=0 // pred_fallthru
    _
  // Predicated region
  $region22: #{vqvae_forward.18} parent=0 // pred_check
    _
  $region23: #{vqvae_forward.18} parent=0 // pred_check_branch
    %825 = sbr.rel (0) target = $region25
  $region24: #{vqvae_forward.18} parent=0 // pred_region
    _
  $region25: #{vqvae_forward.18} parent=0 // pred_fallthru
    _
  // Predicated region
  $region26: #{vqvae_forward.18} parent=0 // pred_check
    _
  $region27: #{vqvae_forward.18} parent=0 // pred_check_branch
    %827 = sbr.rel (0) target = $region29
  $region28: #{vqvae_forward.18} parent=0 // pred_region
    _
  $region29: #{vqvae_forward.18} parent=0 // pred_fallthru
    _

// kernel: vqvae_forward.22
$region0: #{vqvae_forward.22}
  #allocation0 [shape = 'u32[]', space=smem, size = 0x4, offset = 0x4, fixed_abs, tag = 'smem constant byte address 0x4 - core index']
  #allocation1 [shape = 'u32[144,128]{1,0:T(1,128)}', space=vmem, size = 0x12000, scoped, tag = 'internal scratch']
  #allocation2 [shape = 'f32[128,128]{1,0:T(8,128)}', space=vmem, size = 0x10000, scoped, tag = 'scratch operand']
  %s0 = inlined_call_operand.vmem [shape: bf16[128,16], index: 0, kind: input, shape index: {}]
  %s1 = inlined_call_operand.vmem [shape: bf16[16,128], index: 1, kind: input, shape index: {}]
  %s2 = inlined_call_operand.vmem [shape: f32[1,128], index: 2, kind: input, shape index: {}]
  %s3 = inlined_call_operand.vmem [shape: bf16[128,128], index: 3, kind: input, shape index: {}]
  %s4 = inlined_call_operand.vmem [shape: bf16[128,128], index: 4, kind: output, shape index: {}]
  %s5 = sld [smem:[#allocation0]]
  $region34: #{vqvae_forward.22} parent=0
    _
  %s7 = ssub.s32 1, %s5
  %s8 = scalar_select 0, %s7, %s5
  // Predicated region
  $region2: #{vqvae_forward.22} parent=0 // pred_check
    _
  $region3: #{vqvae_forward.22} parent=0 // pred_check_branch
    %10 = sbr.rel (0) target = $region5
  $region4: #{vqvae_forward.22} parent=0 // pred_region
    _
  $region5: #{vqvae_forward.22} parent=0 // pred_fallthru
    _
  // Predicated region
  $region6: #{vqvae_forward.22} parent=0 // pred_check
    _
  $region7: #{vqvae_forward.22} parent=0 // pred_check_branch
    %12 = sbr.rel (0) target = $region9
  $region8: #{vqvae_forward.22} parent=0 // pred_region
    _
  $region9: #{vqvae_forward.22} parent=0 // pred_fallthru
    _
  // Predicated region
  $region10: #{vqvae_forward.22} parent=0 // pred_check
    _
  $region11: #{vqvae_forward.22} parent=0 // pred_check_branch
    %14 = sbr.rel (0) target = $region13
  $region12: #{vqvae_forward.22} parent=0 // pred_region
    _
  $region13: #{vqvae_forward.22} parent=0 // pred_fallthru
    _
  // Predicated region
  $region14: #{vqvae_forward.22} parent=0 // pred_check
    _
  $region15: #{vqvae_forward.22} parent=0 // pred_check_branch
    %16 = sbr.rel (0) target = $region17
  $region16: #{vqvae_forward.22} parent=0 // pred_region
    _
  $region17: #{vqvae_forward.22} parent=0 // pred_fallthru
    _
  %p18 = scmp.eq.s32.totalorder 0, 0
  // Predicated region
  $region18: #{vqvae_forward.22} parent=0 // pred_check
    %p19 = pneg %p18
  $region19: #{vqvae_forward.22} parent=0 // pred_check_branch
    %21 = sbr.rel (%p19) target = $region21
  $region20: #{vqvae_forward.22} parent=0 // pred_region
    %22 = vst [vmem:[#allocation2] sm:$0xff] 0.0
    %23 = vst [vmem:[#allocation2 + $0x8] sm:$0xff] 0.0
    %24 = vst [vmem:[#allocation2 + $0x10] sm:$0xff] 0.0
    %25 = vst [vmem:[#allocation2 + $0x18] sm:$0xff] 0.0
    %26 = vst [vmem:[#allocation2 + $0x20] sm:$0xff] 0.0
    %27 = vst [vmem:[#allocation2 + $0x28] sm:$0xff] 0.0
    %28 = vst [vmem:[#allocation2 + $0x30] sm:$0xff] 0.0
    %29 = vst [vmem:[#allocation2 + $0x38] sm:$0xff] 0.0
    %30 = vst [vmem:[#allocation2 + $0x40] sm:$0xff] 0.0
    %31 = vst [vmem:[#allocation2 + $0x48] sm:$0xff] 0.0
    %32 = vst [vmem:[#allocation2 + $0x50] sm:$0xff] 0.0
    %33 = vst [vmem:[#allocation2 + $0x58] sm:$0xff] 0.0
    %34 = vst [vmem:[#allocation2 + $0x60] sm:$0xff] 0.0
    %35 = vst [vmem:[#allocation2 + $0x68] sm:$0xff] 0.0
    %36 = vst [vmem:[#allocation2 + $0x70] sm:$0xff] 0.0
    %37 = vst [vmem:[#allocation2 + $0x78] sm:$0xff] 0.0
  $region21: #{vqvae_forward.22} parent=0 // pred_fallthru
    _
  %v38 = vld [vmem:[#allocation2] sm:$0xff]
  %v39 = vld [vmem:[#allocation2 + $0x8] sm:$0xff]
  %v40 = vld [vmem:[#allocation2 + $0x10] sm:$0xff]
  %v41 = vld [vmem:[#allocation2 + $0x18] sm:$0xff]
  %v42 = vld [vmem:[#allocation2 + $0x20] sm:$0xff]
  %v43 = vld [vmem:[#allocation2 + $0x28] sm:$0xff]
  %v44 = vld [vmem:[#allocation2 + $0x30] sm:$0xff]
  %v45 = vld [vmem:[#allocation2 + $0x38] sm:$0xff]
  %v46 = vld [vmem:[#allocation2 + $0x40] sm:$0xff]
  %v47 = vld [vmem:[#allocation2 + $0x48] sm:$0xff]
  %v48 = vld [vmem:[#allocation2 + $0x50] sm:$0xff]
  %v49 = vld [vmem:[#allocation2 + $0x58] sm:$0xff]
  %v50 = vld [vmem:[#allocation2 + $0x60] sm:$0xff]
  %v51 = vld [vmem:[#allocation2 + $0x68] sm:$0xff]
  %v52 = vld [vmem:[#allocation2 + $0x70] sm:$0xff]
  %v53 = vld [vmem:[#allocation2 + $0x78] sm:$0xff]
  %v54 = vld [vmem:[%s0] sm:$0xf]
  %v55 = vld [vmem:[%s0 + $0x4] sm:$0xf]
  %v56 = vld [vmem:[%s0 + $0x8] sm:$0xf]
  %v57 = vld [vmem:[%s0 + $0xc] sm:$0xf]
  %v58 = vld [vmem:[%s0 + $0x10] sm:$0xf]
  %v59 = vld [vmem:[%s0 + $0x14] sm:$0xf]
  %v60 = vld [vmem:[%s0 + $0x18] sm:$0xf]
  %v61 = vld [vmem:[%s0 + $0x1c] sm:$0xf]
  %v62 = vld [vmem:[%s0 + $0x20] sm:$0xf]
  %v63 = vld [vmem:[%s0 + $0x24] sm:$0xf]
  %v64 = vld [vmem:[%s0 + $0x28] sm:$0xf]
  %v65 = vld [vmem:[%s0 + $0x2c] sm:$0xf]
  %v66 = vld [vmem:[%s0 + $0x30] sm:$0xf]
  %v67 = vld [vmem:[%s0 + $0x34] sm:$0xf]
  %v68 = vld [vmem:[%s0 + $0x38] sm:$0xf]
  %v69 = vld [vmem:[%s0 + $0x3c] sm:$0xf]
  %v70 = vld [vmem:[%s1] sm:$0xf]
  %v71 = vld [vmem:[%s1 + $0x4] sm:$0xf]
  %v88 = vunpack.c.l.b16 %v54
  %v89 = vunpack.c.l.b16 %v55
  %v90 = vunpack.c.l.b16 %v56
  %v91 = vunpack.c.l.b16 %v57
  %v92 = vunpack.c.l.b16 %v58
  %v93 = vunpack.c.l.b16 %v59
  %v94 = vunpack.c.l.b16 %v60
  %v95 = vunpack.c.l.b16 %v61
  %v96 = vunpack.c.l.b16 %v62
  %v97 = vunpack.c.l.b16 %v63
  %v98 = vunpack.c.l.b16 %v64
  %v99 = vunpack.c.l.b16 %v65
  %v100 = vunpack.c.l.b16 %v66
  %v101 = vunpack.c.l.b16 %v67
  %v102 = vunpack.c.l.b16 %v68
  %v103 = vunpack.c.l.b16 %v69
  %v104 = vpack.c.b16 %v89, %v88
  %v105 = vpack.c.b16 %v91, %v90
  %v106 = vpack.c.b16 %v93, %v92
  %v107 = vpack.c.b16 %v95, %v94
  %v108 = vpack.c.b16 %v97, %v96
  %v109 = vpack.c.b16 %v99, %v98
  %v110 = vpack.c.b16 %v101, %v100
  %v111 = vpack.c.b16 %v103, %v102
  %v114 = vunpack.c.l.b16 %v70
  %v115 = vunpack.c.l.b16 %v71
  %v116 = vpack.c.b16 %v115, %v114
  %vm118 = vcmask 130048
  %v120 = vsel %vm118, %v104, 0
  %v123 = vsel %vm118, %v105, 0
  %v126 = vsel %vm118, %v106, 0
  %v129 = vsel %vm118, %v107, 0
  %v132 = vsel %vm118, %v108, 0
  %v135 = vsel %vm118, %v109, 0
  %v138 = vsel %vm118, %v110, 0
  %v141 = vsel %vm118, %v111, 0
  %143 = vmatprep.subr.bf16.mxu0 0
  %144 = vmatpush1.bf16.msra.mxu0 0
  %145 = vmatprep.subr.bf16.mxu0 0
  %146 = vmatpush1.bf16.msra.mxu0 0
  %147 = vmatprep.subr.bf16.mxu0 0
  %148 = vmatpush1.bf16.msra.mxu0 0
  %149 = vmatprep.subr.bf16.mxu0 0
  %150 = vmatpush1.bf16.msra.mxu0 0
  %151 = vmatprep.subr.bf16.mxu0 0
  %152 = vmatpush1.bf16.msra.mxu0 0
  %153 = vmatprep.subr.bf16.mxu0 0
  %154 = vmatpush1.bf16.msra.mxu0 0
  %155 = vmatprep.subr.bf16.mxu0 0
  %156 = vmatpush1.bf16.msra.mxu0 0
  %157 = vmatprep.subr.bf16.mxu0 0
  %158 = vmatpush1.bf16.msra.mxu0 %v116
  %159 = vmatprep.subr.bf16.mxu0 0
  %160 = vmatpush2.bf16.msra.mxu0 0
  %161 = vmatprep.subr.bf16.mxu0 0
  %162 = vmatpush2.bf16.msra.mxu0 0
  %163 = vmatprep.subr.bf16.mxu0 0
  %164 = vmatpush2.bf16.msra.mxu0 0
  %165 = vmatprep.subr.bf16.mxu0 0
  %166 = vmatpush2.bf16.msra.mxu0 0
  %167 = vmatprep.subr.bf16.mxu0 0
  %168 = vmatpush2.bf16.msra.mxu0 0
  %169 = vmatprep.subr.bf16.mxu0 0
  %170 = vmatpush2.bf16.msra.mxu0 0
  %171 = vmatprep.subr.bf16.mxu0 0
  %172 = vmatpush2.bf16.msra.mxu0 0
  %173 = vmatprep.subr.bf16.mxu0 0
  %174 = vmatpush2.bf16.msra.mxu0 0
  %175 = vmatprep.mubr.bf16.mxu0 0
  %176 = vmatmul.mubr.bf16.gmra.mxu0 %v120
  %v177 = vpop.f32.mrf.mxu0
  %v178 = vadd.f32 0.0, %v177
  %v179 = vpop.f32.mrf.mxu0
  %v180 = vpop.f32.mrf.mxu0
  %v181 = vadd.f32 0.0, %v180
  %v182 = vpop.f32.mrf.mxu0
  %183 = vmatprep.mubr.bf16.mxu0 0
  %184 = vmatmul.mubr.bf16.gmra.mxu0 %v123
  %v185 = vpop.f32.mrf.mxu0
  %v186 = vadd.f32 0.0, %v185
  %v187 = vpop.f32.mrf.mxu0
  %v188 = vpop.f32.mrf.mxu0
  %v189 = vadd.f32 0.0, %v188
  %v190 = vpop.f32.mrf.mxu0
  %191 = vmatprep.mubr.bf16.mxu0 0
  %192 = vmatmul.mubr.bf16.gmra.mxu0 %v126
  %v193 = vpop.f32.mrf.mxu0
  %v194 = vadd.f32 0.0, %v193
  %v195 = vpop.f32.mrf.mxu0
  %v196 = vpop.f32.mrf.mxu0
  %v197 = vadd.f32 0.0, %v196
  %v198 = vpop.f32.mrf.mxu0
  %199 = vmatprep.mubr.bf16.mxu0 0
  %200 = vmatmul.mubr.bf16.gmra.mxu0 %v129
  %v201 = vpop.f32.mrf.mxu0
  %v202 = vadd.f32 0.0, %v201
  %v203 = vpop.f32.mrf.mxu0
  %v204 = vpop.f32.mrf.mxu0
  %v205 = vadd.f32 0.0, %v204
  %v206 = vpop.f32.mrf.mxu0
  %207 = vmatprep.mubr.bf16.mxu0 0
  %208 = vmatmul.mubr.bf16.gmra.mxu0 %v132
  %v209 = vpop.f32.mrf.mxu0
  %v210 = vadd.f32 0.0, %v209
  %v211 = vpop.f32.mrf.mxu0
  %v212 = vpop.f32.mrf.mxu0
  %v213 = vadd.f32 0.0, %v212
  %v214 = vpop.f32.mrf.mxu0
  %215 = vmatprep.mubr.bf16.mxu0 0
  %216 = vmatmul.mubr.bf16.gmra.mxu0 %v135
  %v217 = vpop.f32.mrf.mxu0
  %v218 = vadd.f32 0.0, %v217
  %v219 = vpop.f32.mrf.mxu0
  %v220 = vpop.f32.mrf.mxu0
  %v221 = vadd.f32 0.0, %v220
  %v222 = vpop.f32.mrf.mxu0
  %223 = vmatprep.mubr.bf16.mxu0 0
  %224 = vmatmul.mubr.bf16.gmra.mxu0 %v138
  %v225 = vpop.f32.mrf.mxu0
  %v226 = vadd.f32 0.0, %v225
  %v227 = vpop.f32.mrf.mxu0
  %v228 = vpop.f32.mrf.mxu0
  %v229 = vadd.f32 0.0, %v228
  %v230 = vpop.f32.mrf.mxu0
  %231 = vmatprep.mubr.bf16.mxu0 0
  %232 = vmatmul.mubr.bf16.gmra.mxu0 %v141
  %v233 = vpop.f32.mrf.mxu0
  %v234 = vadd.f32 0.0, %v233
  %v235 = vpop.f32.mrf.mxu0
  %v236 = vpop.f32.mrf.mxu0
  %v237 = vadd.f32 0.0, %v236
  %v238 = vpop.f32.mrf.mxu0
  %239 = vdwg.mxu0
  %v240 = vadd.f32 %v38, %v178
  %v241 = vadd.f32 %v39, %v181
  %v242 = vadd.f32 %v40, %v186
  %v243 = vadd.f32 %v41, %v189
  %v244 = vadd.f32 %v42, %v194
  %v245 = vadd.f32 %v43, %v197
  %v246 = vadd.f32 %v44, %v202
  %v247 = vadd.f32 %v45, %v205
  %v248 = vadd.f32 %v46, %v210
  %v249 = vadd.f32 %v47, %v213
  %v250 = vadd.f32 %v48, %v218
  %v251 = vadd.f32 %v49, %v221
  %v252 = vadd.f32 %v50, %v226
  %v253 = vadd.f32 %v51, %v229
  %v254 = vadd.f32 %v52, %v234
  %v255 = vadd.f32 %v53, %v237
  %256 = vst [vmem:[#allocation2] sm:$0xff] %v240
  %257 = vst [vmem:[#allocation2 + $0x8] sm:$0xff] %v241
  %258 = vst [vmem:[#allocation2 + $0x10] sm:$0xff] %v242
  %259 = vst [vmem:[#allocation2 + $0x18] sm:$0xff] %v243
  %260 = vst [vmem:[#allocation2 + $0x20] sm:$0xff] %v244
  %261 = vst [vmem:[#allocation2 + $0x28] sm:$0xff] %v245
  %262 = vst [vmem:[#allocation2 + $0x30] sm:$0xff] %v246
  %263 = vst [vmem:[#allocation2 + $0x38] sm:$0xff] %v247
  %264 = vst [vmem:[#allocation2 + $0x40] sm:$0xff] %v248
  %265 = vst [vmem:[#allocation2 + $0x48] sm:$0xff] %v249
  %266 = vst [vmem:[#allocation2 + $0x50] sm:$0xff] %v250
  %267 = vst [vmem:[#allocation2 + $0x58] sm:$0xff] %v251
  %268 = vst [vmem:[#allocation2 + $0x60] sm:$0xff] %v252
  %269 = vst [vmem:[#allocation2 + $0x68] sm:$0xff] %v253
  %270 = vst [vmem:[#allocation2 + $0x70] sm:$0xff] %v254
  %271 = vst [vmem:[#allocation2 + $0x78] sm:$0xff] %v255
  // Predicated region
  $region22: #{vqvae_forward.22} parent=0 // pred_check
    %p272 = pneg %p18
  $region23: #{vqvae_forward.22} parent=0 // pred_check_branch
    %274 = sbr.rel (%p272) target = $region25
  $region24: #{vqvae_forward.22} parent=0 // pred_region
    %v275 = vld [vmem:[#allocation2] sm:$0xff]
    %v276 = vld [vmem:[#allocation2 + $0x8] sm:$0xff]
    %v277 = vld [vmem:[#allocation2 + $0x10] sm:$0xff]
    %v278 = vld [vmem:[#allocation2 + $0x18] sm:$0xff]
    %v279 = vld [vmem:[#allocation2 + $0x20] sm:$0xff]
    %v280 = vld [vmem:[#allocation2 + $0x28] sm:$0xff]
    %v281 = vld [vmem:[#allocation2 + $0x30] sm:$0xff]
    %v282 = vld [vmem:[#allocation2 + $0x38] sm:$0xff]
    %v283 = vld [vmem:[#allocation2 + $0x40] sm:$0xff]
    %v284 = vld [vmem:[#allocation2 + $0x48] sm:$0xff]
    %v285 = vld [vmem:[#allocation2 + $0x50] sm:$0xff]
    %v286 = vld [vmem:[#allocation2 + $0x58] sm:$0xff]
    %v287 = vld [vmem:[#allocation2 + $0x60] sm:$0xff]
    %v288 = vld [vmem:[#allocation2 + $0x68] sm:$0xff]
    %v289 = vld [vmem:[#allocation2 + $0x70] sm:$0xff]
    %v290 = vld [vmem:[#allocation2 + $0x78] sm:$0xff]
    %v291 = vld [vmem:[%s2] sm:$0x1]
    %v293 = vlaneseq
    %v294 = vshrl.u32 %v293, 7
    %v295 = vsub.s32 0, %v294
    %v296 = vrot.slane %v291, %v295
    %v298 = vadd.f32 %v275, %v296
    %v299 = vadd.f32 %v276, %v296
    %v300 = vadd.f32 %v277, %v296
    %v301 = vadd.f32 %v278, %v296
    %v302 = vadd.f32 %v279, %v296
    %v303 = vadd.f32 %v280, %v296
    %v304 = vadd.f32 %v281, %v296
    %v305 = vadd.f32 %v282, %v296
    %v306 = vadd.f32 %v283, %v296
    %v307 = vadd.f32 %v284, %v296
    %v308 = vadd.f32 %v285, %v296
    %v309 = vadd.f32 %v286, %v296
    %v310 = vadd.f32 %v287, %v296
    %v311 = vadd.f32 %v288, %v296
    %v312 = vadd.f32 %v289, %v296
    %v313 = vadd.f32 %v290, %v296
    %v314 = vld [vmem:[%s3] sm:$0xf]
    %v315 = vld [vmem:[%s3 + $0x4] sm:$0xf]
    %v316 = vld [vmem:[%s3 + $0x8] sm:$0xf]
    %v317 = vld [vmem:[%s3 + $0xc] sm:$0xf]
    %v318 = vld [vmem:[%s3 + $0x10] sm:$0xf]
    %v319 = vld [vmem:[%s3 + $0x14] sm:$0xf]
    %v320 = vld [vmem:[%s3 + $0x18] sm:$0xf]
    %v321 = vld [vmem:[%s3 + $0x1c] sm:$0xf]
    %v322 = vld [vmem:[%s3 + $0x20] sm:$0xf]
    %v323 = vld [vmem:[%s3 + $0x24] sm:$0xf]
    %v324 = vld [vmem:[%s3 + $0x28] sm:$0xf]
    %v325 = vld [vmem:[%s3 + $0x2c] sm:$0xf]
    %v326 = vld [vmem:[%s3 + $0x30] sm:$0xf]
    %v327 = vld [vmem:[%s3 + $0x34] sm:$0xf]
    %v328 = vld [vmem:[%s3 + $0x38] sm:$0xf]
    %v329 = vld [vmem:[%s3 + $0x3c] sm:$0xf]
    %v330 = vunpack.c.l.bf16 %v314
    %v331 = vunpack.c.l.bf16 %v315
    %v332 = vunpack.c.l.bf16 %v316
    %v333 = vunpack.c.l.bf16 %v317
    %v334 = vunpack.c.l.bf16 %v318
    %v335 = vunpack.c.l.bf16 %v319
    %v336 = vunpack.c.l.bf16 %v320
    %v337 = vunpack.c.l.bf16 %v321
    %v338 = vunpack.c.l.bf16 %v322
    %v339 = vunpack.c.l.bf16 %v323
    %v340 = vunpack.c.l.bf16 %v324
    %v341 = vunpack.c.l.bf16 %v325
    %v342 = vunpack.c.l.bf16 %v326
    %v343 = vunpack.c.l.bf16 %v327
    %v344 = vunpack.c.l.bf16 %v328
    %v345 = vunpack.c.l.bf16 %v329
    %v346 = vadd.f32 %v298, %v330
    %v347 = vadd.f32 %v299, %v331
    %v348 = vadd.f32 %v300, %v332
    %v349 = vadd.f32 %v301, %v333
    %v350 = vadd.f32 %v302, %v334
    %v351 = vadd.f32 %v303, %v335
    %v352 = vadd.f32 %v304, %v336
    %v353 = vadd.f32 %v305, %v337
    %v354 = vadd.f32 %v306, %v338
    %v355 = vadd.f32 %v307, %v339
    %v356 = vadd.f32 %v308, %v340
    %v357 = vadd.f32 %v309, %v341
    %v358 = vadd.f32 %v310, %v342
    %v359 = vadd.f32 %v311, %v343
    %v360 = vadd.f32 %v312, %v344
    %v361 = vadd.f32 %v313, %v345
    %v362 = vmax.f32 %v346, 0.0
    %v363 = vmax.f32 %v347, 0.0
    %v364 = vmax.f32 %v348, 0.0
    %v365 = vmax.f32 %v349, 0.0
    %v366 = vmax.f32 %v350, 0.0
    %v367 = vmax.f32 %v351, 0.0
    %v368 = vmax.f32 %v352, 0.0
    %v369 = vmax.f32 %v353, 0.0
    %v370 = vmax.f32 %v354, 0.0
    %v371 = vmax.f32 %v355, 0.0
    %v372 = vmax.f32 %v356, 0.0
    %v373 = vmax.f32 %v357, 0.0
    %v374 = vmax.f32 %v358, 0.0
    %v375 = vmax.f32 %v359, 0.0
    %v376 = vmax.f32 %v360, 0.0
    %v377 = vmax.f32 %v361, 0.0
    %v378 = vpack.c.bf16 %v363, %v362
    %v379 = vpack.c.bf16 %v365, %v364
    %v380 = vpack.c.bf16 %v367, %v366
    %v381 = vpack.c.bf16 %v369, %v368
    %v382 = vpack.c.bf16 %v371, %v370
    %v383 = vpack.c.bf16 %v373, %v372
    %v384 = vpack.c.bf16 %v375, %v374
    %v385 = vpack.c.bf16 %v377, %v376
    %v394 = vunpack.c.l.b16 %v378
    %v395 = vunpack.c.h.b16 %v378
    %v396 = vunpack.c.l.b16 %v379
    %v397 = vunpack.c.h.b16 %v379
    %v398 = vunpack.c.l.b16 %v380
    %v399 = vunpack.c.h.b16 %v380
    %v400 = vunpack.c.l.b16 %v381
    %v401 = vunpack.c.h.b16 %v381
    %v402 = vunpack.c.l.b16 %v382
    %v403 = vunpack.c.h.b16 %v382
    %v404 = vunpack.c.l.b16 %v383
    %v405 = vunpack.c.h.b16 %v383
    %v406 = vunpack.c.l.b16 %v384
    %v407 = vunpack.c.h.b16 %v384
    %v408 = vunpack.c.l.b16 %v385
    %v409 = vunpack.c.h.b16 %v385
    %v410 = vpack.c.b16 %v394, %v394
    %v411 = vpack.c.b16 %v395, %v395
    %v412 = vpack.c.b16 %v396, %v396
    %v413 = vpack.c.b16 %v397, %v397
    %v414 = vpack.c.b16 %v398, %v398
    %v415 = vpack.c.b16 %v399, %v399
    %v416 = vpack.c.b16 %v400, %v400
    %v417 = vpack.c.b16 %v401, %v401
    %v418 = vpack.c.b16 %v402, %v402
    %v419 = vpack.c.b16 %v403, %v403
    %v420 = vpack.c.b16 %v404, %v404
    %v421 = vpack.c.b16 %v405, %v405
    %v422 = vpack.c.b16 %v406, %v406
    %v423 = vpack.c.b16 %v407, %v407
    %v424 = vpack.c.b16 %v408, %v408
    %v425 = vpack.c.b16 %v409, %v409
    %442 = vst [vmem:[%s4] sm:$0xf] %v410
    %443 = vst [vmem:[%s4 + $0x4] sm:$0xf] %v411
    %444 = vst [vmem:[%s4 + $0x8] sm:$0xf] %v412
    %445 = vst [vmem:[%s4 + $0xc] sm:$0xf] %v413
    %446 = vst [vmem:[%s4 + $0x10] sm:$0xf] %v414
    %447 = vst [vmem:[%s4 + $0x14] sm:$0xf] %v415
    %448 = vst [vmem:[%s4 + $0x18] sm:$0xf] %v416
    %449 = vst [vmem:[%s4 + $0x1c] sm:$0xf] %v417
    %450 = vst [vmem:[%s4 + $0x20] sm:$0xf] %v418
    %451 = vst [vmem:[%s4 + $0x24] sm:$0xf] %v419
    %452 = vst [vmem:[%s4 + $0x28] sm:$0xf] %v420
    %453 = vst [vmem:[%s4 + $0x2c] sm:$0xf] %v421
    %454 = vst [vmem:[%s4 + $0x30] sm:$0xf] %v422
    %455 = vst [vmem:[%s4 + $0x34] sm:$0xf] %v423
    %456 = vst [vmem:[%s4 + $0x38] sm:$0xf] %v424
    %457 = vst [vmem:[%s4 + $0x3c] sm:$0xf] %v425
  $region25: #{vqvae_forward.22} parent=0 // pred_fallthru
    _
  // Predicated region
  $region26: #{vqvae_forward.22} parent=0 // pred_check
    _
  $region27: #{vqvae_forward.22} parent=0 // pred_check_branch
    %459 = sbr.rel (0) target = $region29
  $region28: #{vqvae_forward.22} parent=0 // pred_region
    _
  $region29: #{vqvae_forward.22} parent=0 // pred_fallthru
    _
  // Predicated region
  $region30: #{vqvae_forward.22} parent=0 // pred_check
    _
  $region31: #{vqvae_forward.22} parent=0 // pred_check_branch
    %461 = sbr.rel (0) target = $region33
  $region32: #{vqvae_forward.22} parent=0 // pred_region
    _
  $region33: #{vqvae_forward.22} parent=0 // pred_fallthru
    _

// kernel: vqvae_forward.19
$region0: #{vqvae_forward.19}
  #allocation0 [shape = 'u32[]', space=smem, size = 0x4, offset = 0x4, fixed_abs, tag = 'smem constant byte address 0x4 - core index']
  #allocation1 [shape = 'u32[144,128]{1,0:T(1,128)}', space=vmem, size = 0x12000, scoped, tag = 'internal scratch']
  #allocation2 [shape = 'f32[128,128]{1,0:T(8,128)}', space=vmem, size = 0x10000, scoped, tag = 'scratch operand']
  %s0 = inlined_call_operand.vmem [shape: bf16[128,432], index: 0, kind: input, shape index: {}]
  %s1 = inlined_call_operand.vmem [shape: bf16[432,128], index: 1, kind: input, shape index: {}]
  %s2 = inlined_call_operand.vmem [shape: f32[1,128], index: 2, kind: input, shape index: {}]
  %s3 = inlined_call_operand.vmem [shape: bf16[128,128], index: 3, kind: output, shape index: {}]
  %s4 = sld [smem:[#allocation0]]
  $region30: #{vqvae_forward.19} parent=0
    _
  %s6 = ssub.s32 1, %s4
  %s7 = scalar_select 0, %s6, %s4
  // Predicated region
  $region2: #{vqvae_forward.19} parent=0 // pred_check
    _
  $region3: #{vqvae_forward.19} parent=0 // pred_check_branch
    %9 = sbr.rel (0) target = $region5
  $region4: #{vqvae_forward.19} parent=0 // pred_region
    _
  $region5: #{vqvae_forward.19} parent=0 // pred_fallthru
    _
  // Predicated region
  $region6: #{vqvae_forward.19} parent=0 // pred_check
    _
  $region7: #{vqvae_forward.19} parent=0 // pred_check_branch
    %11 = sbr.rel (0) target = $region9
  $region8: #{vqvae_forward.19} parent=0 // pred_region
    _
  $region9: #{vqvae_forward.19} parent=0 // pred_fallthru
    _
  // Predicated region
  $region10: #{vqvae_forward.19} parent=0 // pred_check
    _
  $region11: #{vqvae_forward.19} parent=0 // pred_check_branch
    %13 = sbr.rel (0) target = $region13
  $region12: #{vqvae_forward.19} parent=0 // pred_region
    _
  $region13: #{vqvae_forward.19} parent=0 // pred_fallthru
    _
  %p15 = scmp.eq.s32.totalorder 0, 0
  // Predicated region
  $region14: #{vqvae_forward.19} parent=0 // pred_check
    %p16 = pneg %p15
  $region15: #{vqvae_forward.19} parent=0 // pred_check_branch
    %18 = sbr.rel (%p16) target = $region17
  $region16: #{vqvae_forward.19} parent=0 // pred_region
    %19 = vst [vmem:[#allocation2] sm:$0xff] 0.0
    %20 = vst [vmem:[#allocation2 + $0x8] sm:$0xff] 0.0
    %21 = vst [vmem:[#allocation2 + $0x10] sm:$0xff] 0.0
    %22 = vst [vmem:[#allocation2 + $0x18] sm:$0xff] 0.0
    %23 = vst [vmem:[#allocation2 + $0x20] sm:$0xff] 0.0
    %24 = vst [vmem:[#allocation2 + $0x28] sm:$0xff] 0.0
    %25 = vst [vmem:[#allocation2 + $0x30] sm:$0xff] 0.0
    %26 = vst [vmem:[#allocation2 + $0x38] sm:$0xff] 0.0
    %27 = vst [vmem:[#allocation2 + $0x40] sm:$0xff] 0.0
    %28 = vst [vmem:[#allocation2 + $0x48] sm:$0xff] 0.0
    %29 = vst [vmem:[#allocation2 + $0x50] sm:$0xff] 0.0
    %30 = vst [vmem:[#allocation2 + $0x58] sm:$0xff] 0.0
    %31 = vst [vmem:[#allocation2 + $0x60] sm:$0xff] 0.0
    %32 = vst [vmem:[#allocation2 + $0x68] sm:$0xff] 0.0
    %33 = vst [vmem:[#allocation2 + $0x70] sm:$0xff] 0.0
    %34 = vst [vmem:[#allocation2 + $0x78] sm:$0xff] 0.0
  $region17: #{vqvae_forward.19} parent=0 // pred_fallthru
    _
  %v35 = vld [vmem:[#allocation2] sm:$0xff]
  %v36 = vld [vmem:[#allocation2 + $0x8] sm:$0xff]
  %v37 = vld [vmem:[#allocation2 + $0x10] sm:$0xff]
  %v38 = vld [vmem:[#allocation2 + $0x18] sm:$0xff]
  %v39 = vld [vmem:[#allocation2 + $0x20] sm:$0xff]
  %v40 = vld [vmem:[#allocation2 + $0x28] sm:$0xff]
  %v41 = vld [vmem:[#allocation2 + $0x30] sm:$0xff]
  %v42 = vld [vmem:[#allocation2 + $0x38] sm:$0xff]
  %v43 = vld [vmem:[#allocation2 + $0x40] sm:$0xff]
  %v44 = vld [vmem:[#allocation2 + $0x48] sm:$0xff]
  %v45 = vld [vmem:[#allocation2 + $0x50] sm:$0xff]
  %v46 = vld [vmem:[#allocation2 + $0x58] sm:$0xff]
  %v47 = vld [vmem:[#allocation2 + $0x60] sm:$0xff]
  %v48 = vld [vmem:[#allocation2 + $0x68] sm:$0xff]
  %v49 = vld [vmem:[#allocation2 + $0x70] sm:$0xff]
  %v50 = vld [vmem:[#allocation2 + $0x78] sm:$0xff]
  %v51 = vld [vmem:[%s0] sm:$0xff]
  %v52 = vld [vmem:[%s0 + $0x8] sm:$0xff]
  %v53 = vld [vmem:[%s0 + $0x10] sm:$0xff]
  %v54 = vld [vmem:[%s0 + $0x18] sm:$0xff]
  %v55 = vld [vmem:[%s0 + $0x20] sm:$0xff]
  %v56 = vld [vmem:[%s0 + $0x28] sm:$0xff]
  %v57 = vld [vmem:[%s0 + $0x30] sm:$0xff]
  %v58 = vld [vmem:[%s0 + $0x38] sm:$0xff]
  %v59 = vld [vmem:[%s0 + $0x40] sm:$0xff]
  %v60 = vld [vmem:[%s0 + $0x48] sm:$0xff]
  %v61 = vld [vmem:[%s0 + $0x50] sm:$0xff]
  %v62 = vld [vmem:[%s0 + $0x58] sm:$0xff]
  %v63 = vld [vmem:[%s0 + $0x60] sm:$0xff]
  %v64 = vld [vmem:[%s0 + $0x68] sm:$0xff]
  %v65 = vld [vmem:[%s0 + $0x70] sm:$0xff]
  %v66 = vld [vmem:[%s0 + $0x78] sm:$0xff]
  %v67 = vld [vmem:[%s0 + $0x80] sm:$0xff]
  %v68 = vld [vmem:[%s0 + $0x88] sm:$0xff]
  %v69 = vld [vmem:[%s0 + $0x90] sm:$0xff]
  %v70 = vld [vmem:[%s0 + $0x98] sm:$0xff]
  %v71 = vld [vmem:[%s0 + $0xa0] sm:$0xff]
  %v72 = vld [vmem:[%s0 + $0xa8] sm:$0xff]
  %v73 = vld [vmem:[%s0 + $0xb0] sm:$0xff]
  %v74 = vld [vmem:[%s0 + $0xb8] sm:$0xff]
  %v75 = vld [vmem:[%s0 + $0xc0] sm:$0xff]
  %v76 = vld [vmem:[%s0 + $0xc8] sm:$0xff]
  %v77 = vld [vmem:[%s0 + $0xd0] sm:$0xff]
  %v78 = vld [vmem:[%s0 + $0xd8] sm:$0xff]
  %v79 = vld [vmem:[%s0 + $0xe0] sm:$0xff]
  %v80 = vld [vmem:[%s0 + $0xe8] sm:$0xff]
  %v81 = vld [vmem:[%s0 + $0xf0] sm:$0xff]
  %v82 = vld [vmem:[%s0 + $0xf8] sm:$0xff]
  %v83 = vld [vmem:[%s1] sm:$0xf]
  %v84 = vld [vmem:[%s1 + $0x4] sm:$0xf]
  %v85 = vld [vmem:[%s1 + $0x8] sm:$0xf]
  %v86 = vld [vmem:[%s1 + $0xc] sm:$0xf]
  %v87 = vld [vmem:[%s1 + $0x10] sm:$0xf]
  %v88 = vld [vmem:[%s1 + $0x14] sm:$0xf]
  %v89 = vld [vmem:[%s1 + $0x18] sm:$0xf]
  %v90 = vld [vmem:[%s1 + $0x1c] sm:$0xf]
  %v91 = vld [vmem:[%s1 + $0x20] sm:$0xf]
  %v92 = vld [vmem:[%s1 + $0x24] sm:$0xf]
  %v93 = vld [vmem:[%s1 + $0x28] sm:$0xf]
  %v94 = vld [vmem:[%s1 + $0x2c] sm:$0xf]
  %v95 = vld [vmem:[%s1 + $0x30] sm:$0xf]
  %v96 = vld [vmem:[%s1 + $0x34] sm:$0xf]
  %v97 = vld [vmem:[%s1 + $0x38] sm:$0xf]
  %v98 = vld [vmem:[%s1 + $0x3c] sm:$0xf]
  %v99 = vld [vmem:[%s1 + $0x40] sm:$0xf]
  %v100 = vld [vmem:[%s1 + $0x44] sm:$0xf]
  %v101 = vld [vmem:[%s1 + $0x48] sm:$0xf]
  %v102 = vld [vmem:[%s1 + $0x4c] sm:$0xf]
  %v103 = vld [vmem:[%s1 + $0x50] sm:$0xf]
  %v104 = vld [vmem:[%s1 + $0x54] sm:$0xf]
  %v105 = vld [vmem:[%s1 + $0x58] sm:$0xf]
  %v106 = vld [vmem:[%s1 + $0x5c] sm:$0xf]
  %v107 = vld [vmem:[%s1 + $0x60] sm:$0xf]
  %v108 = vld [vmem:[%s1 + $0x64] sm:$0xf]
  %v109 = vld [vmem:[%s1 + $0x68] sm:$0xf]
  %v110 = vld [vmem:[%s1 + $0x6c] sm:$0xf]
  %v111 = vld [vmem:[%s1 + $0x70] sm:$0xf]
  %v112 = vld [vmem:[%s1 + $0x74] sm:$0xf]
  %v113 = vld [vmem:[%s1 + $0x78] sm:$0xf]
  %v114 = vld [vmem:[%s1 + $0x7c] sm:$0xf]
  %v115 = vld [vmem:[%s1 + $0x80] sm:$0xf]
  %v116 = vld [vmem:[%s1 + $0x84] sm:$0xf]
  %v117 = vld [vmem:[%s1 + $0x88] sm:$0xf]
  %v118 = vld [vmem:[%s1 + $0x8c] sm:$0xf]
  %v119 = vld [vmem:[%s1 + $0x90] sm:$0xf]
  %v120 = vld [vmem:[%s1 + $0x94] sm:$0xf]
  %v121 = vld [vmem:[%s1 + $0x98] sm:$0xf]
  %v122 = vld [vmem:[%s1 + $0x9c] sm:$0xf]
  %v123 = vld [vmem:[%s1 + $0xa0] sm:$0xf]
  %v124 = vld [vmem:[%s1 + $0xa4] sm:$0xf]
  %v125 = vld [vmem:[%s1 + $0xa8] sm:$0xf]
  %v126 = vld [vmem:[%s1 + $0xac] sm:$0xf]
  %v127 = vld [vmem:[%s1 + $0xb0] sm:$0xf]
  %v128 = vld [vmem:[%s1 + $0xb4] sm:$0xf]
  %v129 = vld [vmem:[%s1 + $0xb8] sm:$0xf]
  %v130 = vld [vmem:[%s1 + $0xbc] sm:$0xf]
  %v131 = vld [vmem:[%s1 + $0xc0] sm:$0xf]
  %v132 = vld [vmem:[%s1 + $0xc4] sm:$0xf]
  %v133 = vld [vmem:[%s1 + $0xc8] sm:$0xf]
  %v134 = vld [vmem:[%s1 + $0xcc] sm:$0xf]
  %v135 = vld [vmem:[%s1 + $0xd0] sm:$0xf]
  %v136 = vld [vmem:[%s1 + $0xd4] sm:$0xf]
  %v169 = vunpack.c.l.b16 %v51
  %v170 = vunpack.c.h.b16 %v51
  %v171 = vunpack.c.l.b16 %v52
  %v172 = vunpack.c.h.b16 %v52
  %v173 = vunpack.c.l.b16 %v53
  %v174 = vunpack.c.h.b16 %v53
  %v175 = vunpack.c.l.b16 %v54
  %v176 = vunpack.c.h.b16 %v54
  %v177 = vunpack.c.l.b16 %v55
  %v178 = vunpack.c.h.b16 %v55
  %v179 = vunpack.c.l.b16 %v56
  %v180 = vunpack.c.h.b16 %v56
  %v181 = vunpack.c.l.b16 %v57
  %v182 = vunpack.c.h.b16 %v57
  %v183 = vunpack.c.l.b16 %v58
  %v184 = vunpack.c.h.b16 %v58
  %v185 = vunpack.c.l.b16 %v59
  %v186 = vunpack.c.h.b16 %v59
  %v187 = vunpack.c.l.b16 %v60
  %v188 = vunpack.c.h.b16 %v60
  %v189 = vunpack.c.l.b16 %v61
  %v190 = vunpack.c.h.b16 %v61
  %v191 = vunpack.c.l.b16 %v62
  %v192 = vunpack.c.h.b16 %v62
  %v193 = vunpack.c.l.b16 %v63
  %v194 = vunpack.c.h.b16 %v63
  %v195 = vunpack.c.l.b16 %v64
  %v196 = vunpack.c.h.b16 %v64
  %v197 = vunpack.c.l.b16 %v65
  %v198 = vunpack.c.h.b16 %v65
  %v199 = vunpack.c.l.b16 %v66
  %v200 = vunpack.c.h.b16 %v66
  %v201 = vunpack.c.l.b16 %v67
  %v202 = vunpack.c.h.b16 %v67
  %v203 = vunpack.c.l.b16 %v68
  %v204 = vunpack.c.h.b16 %v68
  %v205 = vunpack.c.l.b16 %v69
  %v206 = vunpack.c.h.b16 %v69
  %v207 = vunpack.c.l.b16 %v70
  %v208 = vunpack.c.h.b16 %v70
  %v209 = vunpack.c.l.b16 %v71
  %v210 = vunpack.c.h.b16 %v71
  %v211 = vunpack.c.l.b16 %v72
  %v212 = vunpack.c.h.b16 %v72
  %v213 = vunpack.c.l.b16 %v73
  %v214 = vunpack.c.h.b16 %v73
  %v215 = vunpack.c.l.b16 %v74
  %v216 = vunpack.c.h.b16 %v74
  %v217 = vunpack.c.l.b16 %v75
  %v218 = vunpack.c.h.b16 %v75
  %v219 = vunpack.c.l.b16 %v76
  %v220 = vunpack.c.h.b16 %v76
  %v221 = vunpack.c.l.b16 %v77
  %v222 = vunpack.c.h.b16 %v77
  %v223 = vunpack.c.l.b16 %v78
  %v224 = vunpack.c.h.b16 %v78
  %v225 = vunpack.c.l.b16 %v79
  %v226 = vunpack.c.h.b16 %v79
  %v227 = vunpack.c.l.b16 %v80
  %v228 = vunpack.c.h.b16 %v80
  %v229 = vunpack.c.l.b16 %v81
  %v230 = vunpack.c.h.b16 %v81
  %v231 = vunpack.c.l.b16 %v82
  %v232 = vunpack.c.h.b16 %v82
  %v233 = vpack.c.b16 %v173, %v169
  %v234 = vpack.c.b16 %v174, %v170
  %v235 = vpack.c.b16 %v175, %v171
  %v236 = vpack.c.b16 %v176, %v172
  %v237 = vpack.c.b16 %v181, %v177
  %v238 = vpack.c.b16 %v182, %v178
  %v239 = vpack.c.b16 %v183, %v179
  %v240 = vpack.c.b16 %v184, %v180
  %v241 = vpack.c.b16 %v189, %v185
  %v242 = vpack.c.b16 %v190, %v186
  %v243 = vpack.c.b16 %v191, %v187
  %v244 = vpack.c.b16 %v192, %v188
  %v245 = vpack.c.b16 %v197, %v193
  %v246 = vpack.c.b16 %v198, %v194
  %v247 = vpack.c.b16 %v199, %v195
  %v248 = vpack.c.b16 %v200, %v196
  %v249 = vpack.c.b16 %v205, %v201
  %v250 = vpack.c.b16 %v206, %v202
  %v251 = vpack.c.b16 %v207, %v203
  %v252 = vpack.c.b16 %v208, %v204
  %v253 = vpack.c.b16 %v213, %v209
  %v254 = vpack.c.b16 %v214, %v210
  %v255 = vpack.c.b16 %v215, %v211
  %v256 = vpack.c.b16 %v216, %v212
  %v257 = vpack.c.b16 %v221, %v217
  %v258 = vpack.c.b16 %v222, %v218
  %v259 = vpack.c.b16 %v223, %v219
  %v260 = vpack.c.b16 %v224, %v220
  %v261 = vpack.c.b16 %v229, %v225
  %v262 = vpack.c.b16 %v230, %v226
  %v263 = vpack.c.b16 %v231, %v227
  %v264 = vpack.c.b16 %v232, %v228
  %v343 = vunpack.c.l.b16 %v83
  %v344 = vunpack.c.l.b16 %v84
  %v345 = vunpack.c.l.b16 %v85
  %v346 = vunpack.c.l.b16 %v86
  %v347 = vunpack.c.l.b16 %v87
  %v348 = vunpack.c.l.b16 %v88
  %v349 = vunpack.c.l.b16 %v89
  %v350 = vunpack.c.l.b16 %v90
  %v351 = vunpack.c.l.b16 %v91
  %v352 = vunpack.c.l.b16 %v92
  %v353 = vunpack.c.l.b16 %v93
  %v354 = vunpack.c.l.b16 %v94
  %v355 = vunpack.c.l.b16 %v95
  %v356 = vunpack.c.l.b16 %v96
  %v357 = vunpack.c.l.b16 %v97
  %v358 = vunpack.c.l.b16 %v98
  %v359 = vunpack.c.l.b16 %v99
  %v360 = vunpack.c.l.b16 %v100
  %v361 = vunpack.c.l.b16 %v101
  %v362 = vunpack.c.l.b16 %v102
  %v363 = vunpack.c.l.b16 %v103
  %v364 = vunpack.c.l.b16 %v104
  %v365 = vunpack.c.l.b16 %v105
  %v366 = vunpack.c.l.b16 %v106
  %v367 = vunpack.c.l.b16 %v107
  %v368 = vunpack.c.l.b16 %v108
  %v369 = vunpack.c.l.b16 %v109
  %v370 = vunpack.c.l.b16 %v110
  %v371 = vunpack.c.l.b16 %v111
  %v372 = vunpack.c.l.b16 %v112
  %v373 = vunpack.c.l.b16 %v113
  %v374 = vunpack.c.l.b16 %v114
  %v375 = vunpack.c.l.b16 %v115
  %v376 = vunpack.c.l.b16 %v116
  %v377 = vunpack.c.l.b16 %v117
  %v378 = vunpack.c.l.b16 %v118
  %v379 = vunpack.c.l.b16 %v119
  %v380 = vunpack.c.l.b16 %v120
  %v381 = vunpack.c.l.b16 %v121
  %v382 = vunpack.c.l.b16 %v122
  %v383 = vunpack.c.l.b16 %v123
  %v384 = vunpack.c.l.b16 %v124
  %v385 = vunpack.c.l.b16 %v125
  %v386 = vunpack.c.l.b16 %v126
  %v387 = vunpack.c.l.b16 %v127
  %v388 = vunpack.c.l.b16 %v128
  %v389 = vunpack.c.l.b16 %v129
  %v390 = vunpack.c.l.b16 %v130
  %v391 = vunpack.c.l.b16 %v131
  %v392 = vunpack.c.l.b16 %v132
  %v393 = vunpack.c.l.b16 %v133
  %v394 = vunpack.c.l.b16 %v134
  %v395 = vunpack.c.l.b16 %v135
  %v396 = vunpack.c.l.b16 %v136
  %v397 = vpack.c.b16 %v344, %v343
  %v398 = vpack.c.b16 %v346, %v345
  %v399 = vpack.c.b16 %v348, %v347
  %v400 = vpack.c.b16 %v350, %v349
  %v401 = vpack.c.b16 %v352, %v351
  %v402 = vpack.c.b16 %v354, %v353
  %v403 = vpack.c.b16 %v356, %v355
  %v404 = vpack.c.b16 %v358, %v357
  %v405 = vpack.c.b16 %v360, %v359
  %v406 = vpack.c.b16 %v362, %v361
  %v407 = vpack.c.b16 %v364, %v363
  %v408 = vpack.c.b16 %v366, %v365
  %v409 = vpack.c.b16 %v368, %v367
  %v410 = vpack.c.b16 %v370, %v369
  %v411 = vpack.c.b16 %v372, %v371
  %v412 = vpack.c.b16 %v374, %v373
  %v413 = vpack.c.b16 %v376, %v375
  %v414 = vpack.c.b16 %v378, %v377
  %v415 = vpack.c.b16 %v380, %v379
  %v416 = vpack.c.b16 %v382, %v381
  %v417 = vpack.c.b16 %v384, %v383
  %v418 = vpack.c.b16 %v386, %v385
  %v419 = vpack.c.b16 %v388, %v387
  %v420 = vpack.c.b16 %v390, %v389
  %v421 = vpack.c.b16 %v392, %v391
  %v422 = vpack.c.b16 %v394, %v393
  %v423 = vpack.c.b16 %v396, %v395
  %vm451 = vcmask 392192
  %v453 = vsel %vm451, %v236, 0
  %v456 = vsel %vm451, %v240, 0
  %v459 = vsel %vm451, %v244, 0
  %v462 = vsel %vm451, %v248, 0
  %v465 = vsel %vm451, %v252, 0
  %v468 = vsel %vm451, %v256, 0
  %v471 = vsel %vm451, %v260, 0
  %v474 = vsel %vm451, %v264, 0
  %476 = vmatprep.subr.bf16.mxu0 0
  %477 = vmatpush1.bf16.msra.mxu0 %v404
  %478 = vmatprep.subr.bf16.mxu0 0
  %479 = vmatpush1.bf16.msra.mxu0 %v403
  %480 = vmatprep.subr.bf16.mxu0 0
  %481 = vmatpush1.bf16.msra.mxu0 %v402
  %482 = vmatprep.subr.bf16.mxu0 0
  %483 = vmatpush1.bf16.msra.mxu0 %v401
  %484 = vmatprep.subr.bf16.mxu0 0
  %485 = vmatpush1.bf16.msra.mxu0 %v400
  %486 = vmatprep.subr.bf16.mxu0 0
  %487 = vmatpush1.bf16.msra.mxu0 %v399
  %488 = vmatprep.subr.bf16.mxu0 0
  %489 = vmatpush1.bf16.msra.mxu0 %v398
  %490 = vmatprep.subr.bf16.mxu0 0
  %491 = vmatpush1.bf16.msra.mxu0 %v397
  %492 = vmatprep.subr.bf16.mxu0 0
  %493 = vmatpush2.bf16.msra.mxu0 %v412
  %494 = vmatprep.subr.bf16.mxu0 0
  %495 = vmatpush2.bf16.msra.mxu0 %v411
  %496 = vmatprep.subr.bf16.mxu0 0
  %497 = vmatpush2.bf16.msra.mxu0 %v410
  %498 = vmatprep.subr.bf16.mxu0 0
  %499 = vmatpush2.bf16.msra.mxu0 %v409
  %500 = vmatprep.subr.bf16.mxu0 0
  %501 = vmatpush2.bf16.msra.mxu0 %v408
  %502 = vmatprep.subr.bf16.mxu0 0
  %503 = vmatpush2.bf16.msra.mxu0 %v407
  %504 = vmatprep.subr.bf16.mxu0 0
  %505 = vmatpush2.bf16.msra.mxu0 %v406
  %506 = vmatprep.subr.bf16.mxu0 0
  %507 = vmatpush2.bf16.msra.mxu0 %v405
  %508 = vmatprep.mubr.bf16.mxu0 %v234
  %509 = vmatmul.mubr.bf16.gmra.mxu0 %v233
  %v510 = vpop.f32.mrf.mxu0
  %v511 = vadd.f32 0.0, %v510
  %v512 = vpop.f32.mrf.mxu0
  %v513 = vpop.f32.mrf.mxu0
  %v514 = vadd.f32 0.0, %v513
  %v515 = vpop.f32.mrf.mxu0
  %516 = vmatprep.mubr.bf16.mxu0 %v238
  %517 = vmatmul.mubr.bf16.gmra.mxu0 %v237
  %v518 = vpop.f32.mrf.mxu0
  %v519 = vadd.f32 0.0, %v518
  %v520 = vpop.f32.mrf.mxu0
  %v521 = vpop.f32.mrf.mxu0
  %v522 = vadd.f32 0.0, %v521
  %v523 = vpop.f32.mrf.mxu0
  %524 = vmatprep.mubr.bf16.mxu0 %v242
  %525 = vmatmul.mubr.bf16.gmra.mxu0 %v241
  %v526 = vpop.f32.mrf.mxu0
  %v527 = vadd.f32 0.0, %v526
  %v528 = vpop.f32.mrf.mxu0
  %v529 = vpop.f32.mrf.mxu0
  %v530 = vadd.f32 0.0, %v529
  %v531 = vpop.f32.mrf.mxu0
  %532 = vmatprep.mubr.bf16.mxu0 %v246
  %533 = vmatmul.mubr.bf16.gmra.mxu0 %v245
  %v534 = vpop.f32.mrf.mxu0
  %v535 = vadd.f32 0.0, %v534
  %v536 = vpop.f32.mrf.mxu0
  %v537 = vpop.f32.mrf.mxu0
  %v538 = vadd.f32 0.0, %v537
  %v539 = vpop.f32.mrf.mxu0
  %540 = vmatprep.mubr.bf16.mxu0 %v250
  %541 = vmatmul.mubr.bf16.gmra.mxu0 %v249
  %v542 = vpop.f32.mrf.mxu0
  %v543 = vadd.f32 0.0, %v542
  %v544 = vpop.f32.mrf.mxu0
  %v545 = vpop.f32.mrf.mxu0
  %v546 = vadd.f32 0.0, %v545
  %v547 = vpop.f32.mrf.mxu0
  %548 = vmatprep.mubr.bf16.mxu0 %v254
  %549 = vmatmul.mubr.bf16.gmra.mxu0 %v253
  %v550 = vpop.f32.mrf.mxu0
  %v551 = vadd.f32 0.0, %v550
  %v552 = vpop.f32.mrf.mxu0
  %v553 = vpop.f32.mrf.mxu0
  %v554 = vadd.f32 0.0, %v553
  %v555 = vpop.f32.mrf.mxu0
  %556 = vmatprep.mubr.bf16.mxu0 %v258
  %557 = vmatmul.mubr.bf16.gmra.mxu0 %v257
  %v558 = vpop.f32.mrf.mxu0
  %v559 = vadd.f32 0.0, %v558
  %v560 = vpop.f32.mrf.mxu0
  %v561 = vpop.f32.mrf.mxu0
  %v562 = vadd.f32 0.0, %v561
  %v563 = vpop.f32.mrf.mxu0
  %564 = vmatprep.mubr.bf16.mxu0 %v262
  %565 = vmatmul.mubr.bf16.gmra.mxu0 %v261
  %v566 = vpop.f32.mrf.mxu0
  %v567 = vadd.f32 0.0, %v566
  %v568 = vpop.f32.mrf.mxu0
  %v569 = vpop.f32.mrf.mxu0
  %v570 = vadd.f32 0.0, %v569
  %v571 = vpop.f32.mrf.mxu0
  %572 = vdwg.mxu0
  %573 = vmatprep.subr.bf16.mxu0 0
  %574 = vmatpush1.bf16.msra.mxu0 %v420
  %575 = vmatprep.subr.bf16.mxu0 0
  %576 = vmatpush1.bf16.msra.mxu0 %v419
  %577 = vmatprep.subr.bf16.mxu0 0
  %578 = vmatpush1.bf16.msra.mxu0 %v418
  %579 = vmatprep.subr.bf16.mxu0 0
  %580 = vmatpush1.bf16.msra.mxu0 %v417
  %581 = vmatprep.subr.bf16.mxu0 0
  %582 = vmatpush1.bf16.msra.mxu0 %v416
  %583 = vmatprep.subr.bf16.mxu0 0
  %584 = vmatpush1.bf16.msra.mxu0 %v415
  %585 = vmatprep.subr.bf16.mxu0 0
  %586 = vmatpush1.bf16.msra.mxu0 %v414
  %587 = vmatprep.subr.bf16.mxu0 0
  %588 = vmatpush1.bf16.msra.mxu0 %v413
  %589 = vmatprep.subr.bf16.mxu0 0
  %590 = vmatpush2.bf16.msra.mxu0 0
  %591 = vmatprep.subr.bf16.mxu0 0
  %592 = vmatpush2.bf16.msra.mxu0 0
  %593 = vmatprep.subr.bf16.mxu0 0
  %594 = vmatpush2.bf16.msra.mxu0 0
  %595 = vmatprep.subr.bf16.mxu0 0
  %596 = vmatpush2.bf16.msra.mxu0 0
  %597 = vmatprep.subr.bf16.mxu0 0
  %598 = vmatpush2.bf16.msra.mxu0 0
  %599 = vmatprep.subr.bf16.mxu0 0
  %600 = vmatpush2.bf16.msra.mxu0 %v423
  %601 = vmatprep.subr.bf16.mxu0 0
  %602 = vmatpush2.bf16.msra.mxu0 %v422
  %603 = vmatprep.subr.bf16.mxu0 0
  %604 = vmatpush2.bf16.msra.mxu0 %v421
  %605 = vmatprep.mubr.bf16.mxu0 %v453
  %606 = vmatmul.mubr.bf16.gmra.mxu0 %v235
  %v607 = vpop.f32.mrf.mxu0
  %v608 = vadd.f32 %v511, %v607
  %v609 = vpop.f32.mrf.mxu0
  %v610 = vpop.f32.mrf.mxu0
  %v611 = vadd.f32 %v514, %v610
  %v612 = vpop.f32.mrf.mxu0
  %613 = vmatprep.mubr.bf16.mxu0 %v456
  %614 = vmatmul.mubr.bf16.gmra.mxu0 %v239
  %v615 = vpop.f32.mrf.mxu0
  %v616 = vadd.f32 %v519, %v615
  %v617 = vpop.f32.mrf.mxu0
  %v618 = vpop.f32.mrf.mxu0
  %v619 = vadd.f32 %v522, %v618
  %v620 = vpop.f32.mrf.mxu0
  %621 = vmatprep.mubr.bf16.mxu0 %v459
  %622 = vmatmul.mubr.bf16.gmra.mxu0 %v243
  %v623 = vpop.f32.mrf.mxu0
  %v624 = vadd.f32 %v527, %v623
  %v625 = vpop.f32.mrf.mxu0
  %v626 = vpop.f32.mrf.mxu0
  %v627 = vadd.f32 %v530, %v626
  %v628 = vpop.f32.mrf.mxu0
  %629 = vmatprep.mubr.bf16.mxu0 %v462
  %630 = vmatmul.mubr.bf16.gmra.mxu0 %v247
  %v631 = vpop.f32.mrf.mxu0
  %v632 = vadd.f32 %v535, %v631
  %v633 = vpop.f32.mrf.mxu0
  %v634 = vpop.f32.mrf.mxu0
  %v635 = vadd.f32 %v538, %v634
  %v636 = vpop.f32.mrf.mxu0
  %637 = vmatprep.mubr.bf16.mxu0 %v465
  %638 = vmatmul.mubr.bf16.gmra.mxu0 %v251
  %v639 = vpop.f32.mrf.mxu0
  %v640 = vadd.f32 %v543, %v639
  %v641 = vpop.f32.mrf.mxu0
  %v642 = vpop.f32.mrf.mxu0
  %v643 = vadd.f32 %v546, %v642
  %v644 = vpop.f32.mrf.mxu0
  %645 = vmatprep.mubr.bf16.mxu0 %v468
  %646 = vmatmul.mubr.bf16.gmra.mxu0 %v255
  %v647 = vpop.f32.mrf.mxu0
  %v648 = vadd.f32 %v551, %v647
  %v649 = vpop.f32.mrf.mxu0
  %v650 = vpop.f32.mrf.mxu0
  %v651 = vadd.f32 %v554, %v650
  %v652 = vpop.f32.mrf.mxu0
  %653 = vmatprep.mubr.bf16.mxu0 %v471
  %654 = vmatmul.mubr.bf16.gmra.mxu0 %v259
  %v655 = vpop.f32.mrf.mxu0
  %v656 = vadd.f32 %v559, %v655
  %v657 = vpop.f32.mrf.mxu0
  %v658 = vpop.f32.mrf.mxu0
  %v659 = vadd.f32 %v562, %v658
  %v660 = vpop.f32.mrf.mxu0
  %661 = vmatprep.mubr.bf16.mxu0 %v474
  %662 = vmatmul.mubr.bf16.gmra.mxu0 %v263
  %v663 = vpop.f32.mrf.mxu0
  %v664 = vadd.f32 %v567, %v663
  %v665 = vpop.f32.mrf.mxu0
  %v666 = vpop.f32.mrf.mxu0
  %v667 = vadd.f32 %v570, %v666
  %v668 = vpop.f32.mrf.mxu0
  %669 = vdwg.mxu0
  %v670 = vadd.f32 %v35, %v608
  %v671 = vadd.f32 %v36, %v611
  %v672 = vadd.f32 %v37, %v616
  %v673 = vadd.f32 %v38, %v619
  %v674 = vadd.f32 %v39, %v624
  %v675 = vadd.f32 %v40, %v627
  %v676 = vadd.f32 %v41, %v632
  %v677 = vadd.f32 %v42, %v635
  %v678 = vadd.f32 %v43, %v640
  %v679 = vadd.f32 %v44, %v643
  %v680 = vadd.f32 %v45, %v648
  %v681 = vadd.f32 %v46, %v651
  %v682 = vadd.f32 %v47, %v656
  %v683 = vadd.f32 %v48, %v659
  %v684 = vadd.f32 %v49, %v664
  %v685 = vadd.f32 %v50, %v667
  %686 = vst [vmem:[#allocation2] sm:$0xff] %v670
  %687 = vst [vmem:[#allocation2 + $0x8] sm:$0xff] %v671
  %688 = vst [vmem:[#allocation2 + $0x10] sm:$0xff] %v672
  %689 = vst [vmem:[#allocation2 + $0x18] sm:$0xff] %v673
  %690 = vst [vmem:[#allocation2 + $0x20] sm:$0xff] %v674
  %691 = vst [vmem:[#allocation2 + $0x28] sm:$0xff] %v675
  %692 = vst [vmem:[#allocation2 + $0x30] sm:$0xff] %v676
  %693 = vst [vmem:[#allocation2 + $0x38] sm:$0xff] %v677
  %694 = vst [vmem:[#allocation2 + $0x40] sm:$0xff] %v678
  %695 = vst [vmem:[#allocation2 + $0x48] sm:$0xff] %v679
  %696 = vst [vmem:[#allocation2 + $0x50] sm:$0xff] %v680
  %697 = vst [vmem:[#allocation2 + $0x58] sm:$0xff] %v681
  %698 = vst [vmem:[#allocation2 + $0x60] sm:$0xff] %v682
  %699 = vst [vmem:[#allocation2 + $0x68] sm:$0xff] %v683
  %700 = vst [vmem:[#allocation2 + $0x70] sm:$0xff] %v684
  %701 = vst [vmem:[#allocation2 + $0x78] sm:$0xff] %v685
  // Predicated region
  $region18: #{vqvae_forward.19} parent=0 // pred_check
    %p702 = pneg %p15
  $region19: #{vqvae_forward.19} parent=0 // pred_check_branch
    %704 = sbr.rel (%p702) target = $region21
  $region20: #{vqvae_forward.19} parent=0 // pred_region
    %v705 = vld [vmem:[#allocation2] sm:$0xff]
    %v706 = vld [vmem:[#allocation2 + $0x8] sm:$0xff]
    %v707 = vld [vmem:[#allocation2 + $0x10] sm:$0xff]
    %v708 = vld [vmem:[#allocation2 + $0x18] sm:$0xff]
    %v709 = vld [vmem:[#allocation2 + $0x20] sm:$0xff]
    %v710 = vld [vmem:[#allocation2 + $0x28] sm:$0xff]
    %v711 = vld [vmem:[#allocation2 + $0x30] sm:$0xff]
    %v712 = vld [vmem:[#allocation2 + $0x38] sm:$0xff]
    %v713 = vld [vmem:[#allocation2 + $0x40] sm:$0xff]
    %v714 = vld [vmem:[#allocation2 + $0x48] sm:$0xff]
    %v715 = vld [vmem:[#allocation2 + $0x50] sm:$0xff]
    %v716 = vld [vmem:[#allocation2 + $0x58] sm:$0xff]
    %v717 = vld [vmem:[#allocation2 + $0x60] sm:$0xff]
    %v718 = vld [vmem:[#allocation2 + $0x68] sm:$0xff]
    %v719 = vld [vmem:[#allocation2 + $0x70] sm:$0xff]
    %v720 = vld [vmem:[#allocation2 + $0x78] sm:$0xff]
    %v721 = vld [vmem:[%s2] sm:$0x1]
    %v723 = vlaneseq
    %v724 = vshrl.u32 %v723, 7
    %v725 = vsub.s32 0, %v724
    %v726 = vrot.slane %v721, %v725
    %v728 = vadd.f32 %v705, %v726
    %v729 = vadd.f32 %v706, %v726
    %v730 = vadd.f32 %v707, %v726
    %v731 = vadd.f32 %v708, %v726
    %v732 = vadd.f32 %v709, %v726
    %v733 = vadd.f32 %v710, %v726
    %v734 = vadd.f32 %v711, %v726
    %v735 = vadd.f32 %v712, %v726
    %v736 = vadd.f32 %v713, %v726
    %v737 = vadd.f32 %v714, %v726
    %v738 = vadd.f32 %v715, %v726
    %v739 = vadd.f32 %v716, %v726
    %v740 = vadd.f32 %v717, %v726
    %v741 = vadd.f32 %v718, %v726
    %v742 = vadd.f32 %v719, %v726
    %v743 = vadd.f32 %v720, %v726
    %v744 = vmax.f32 %v728, 0.0
    %v745 = vmax.f32 %v729, 0.0
    %v746 = vmax.f32 %v730, 0.0
    %v747 = vmax.f32 %v731, 0.0
    %v748 = vmax.f32 %v732, 0.0
    %v749 = vmax.f32 %v733, 0.0
    %v750 = vmax.f32 %v734, 0.0
    %v751 = vmax.f32 %v735, 0.0
    %v752 = vmax.f32 %v736, 0.0
    %v753 = vmax.f32 %v737, 0.0
    %v754 = vmax.f32 %v738, 0.0
    %v755 = vmax.f32 %v739, 0.0
    %v756 = vmax.f32 %v740, 0.0
    %v757 = vmax.f32 %v741, 0.0
    %v758 = vmax.f32 %v742, 0.0
    %v759 = vmax.f32 %v743, 0.0
    %v760 = vpack.c.bf16 %v745, %v744
    %v761 = vpack.c.bf16 %v747, %v746
    %v762 = vpack.c.bf16 %v749, %v748
    %v763 = vpack.c.bf16 %v751, %v750
    %v764 = vpack.c.bf16 %v753, %v752
    %v765 = vpack.c.bf16 %v755, %v754
    %v766 = vpack.c.bf16 %v757, %v756
    %v767 = vpack.c.bf16 %v759, %v758
    %v776 = vunpack.c.l.b16 %v760
    %v777 = vunpack.c.h.b16 %v760
    %v778 = vunpack.c.l.b16 %v761
    %v779 = vunpack.c.h.b16 %v761
    %v780 = vunpack.c.l.b16 %v762
    %v781 = vunpack.c.h.b16 %v762
    %v782 = vunpack.c.l.b16 %v763
    %v783 = vunpack.c.h.b16 %v763
    %v784 = vunpack.c.l.b16 %v764
    %v785 = vunpack.c.h.b16 %v764
    %v786 = vunpack.c.l.b16 %v765
    %v787 = vunpack.c.h.b16 %v765
    %v788 = vunpack.c.l.b16 %v766
    %v789 = vunpack.c.h.b16 %v766
    %v790 = vunpack.c.l.b16 %v767
    %v791 = vunpack.c.h.b16 %v767
    %v792 = vpack.c.b16 %v776, %v776
    %v793 = vpack.c.b16 %v777, %v777
    %v794 = vpack.c.b16 %v778, %v778
    %v795 = vpack.c.b16 %v779, %v779
    %v796 = vpack.c.b16 %v780, %v780
    %v797 = vpack.c.b16 %v781, %v781
    %v798 = vpack.c.b16 %v782, %v782
    %v799 = vpack.c.b16 %v783, %v783
    %v800 = vpack.c.b16 %v784, %v784
    %v801 = vpack.c.b16 %v785, %v785
    %v802 = vpack.c.b16 %v786, %v786
    %v803 = vpack.c.b16 %v787, %v787
    %v804 = vpack.c.b16 %v788, %v788
    %v805 = vpack.c.b16 %v789, %v789
    %v806 = vpack.c.b16 %v790, %v790
    %v807 = vpack.c.b16 %v791, %v791
    %824 = vst [vmem:[%s3] sm:$0xf] %v792
    %825 = vst [vmem:[%s3 + $0x4] sm:$0xf] %v793
    %826 = vst [vmem:[%s3 + $0x8] sm:$0xf] %v794
    %827 = vst [vmem:[%s3 + $0xc] sm:$0xf] %v795
    %828 = vst [vmem:[%s3 + $0x10] sm:$0xf] %v796
    %829 = vst [vmem:[%s3 + $0x14] sm:$0xf] %v797
    %830 = vst [vmem:[%s3 + $0x18] sm:$0xf] %v798
    %831 = vst [vmem:[%s3 + $0x1c] sm:$0xf] %v799
    %832 = vst [vmem:[%s3 + $0x20] sm:$0xf] %v800
    %833 = vst [vmem:[%s3 + $0x24] sm:$0xf] %v801
    %834 = vst [vmem:[%s3 + $0x28] sm:$0xf] %v802
    %835 = vst [vmem:[%s3 + $0x2c] sm:$0xf] %v803
    %836 = vst [vmem:[%s3 + $0x30] sm:$0xf] %v804
    %837 = vst [vmem:[%s3 + $0x34] sm:$0xf] %v805
    %838 = vst [vmem:[%s3 + $0x38] sm:$0xf] %v806
    %839 = vst [vmem:[%s3 + $0x3c] sm:$0xf] %v807
  $region21: #{vqvae_forward.19} parent=0 // pred_fallthru
    _
  // Predicated region
  $region22: #{vqvae_forward.19} parent=0 // pred_check
    _
  $region23: #{vqvae_forward.19} parent=0 // pred_check_branch
    %841 = sbr.rel (0) target = $region25
  $region24: #{vqvae_forward.19} parent=0 // pred_region
    _
  $region25: #{vqvae_forward.19} parent=0 // pred_fallthru
    _
  // Predicated region
  $region26: #{vqvae_forward.19} parent=0 // pred_check
    _
  $region27: #{vqvae_forward.19} parent=0 // pred_check_branch
    %843 = sbr.rel (0) target = $region29
  $region28: #{vqvae_forward.19} parent=0 // pred_region
    _
  $region29: #{vqvae_forward.19} parent=0 // pred_fallthru
    _

// kernel: vqvae_forward.20
$region0: #{vqvae_forward.20}
  #allocation0 [shape = 'u32[]', space=smem, size = 0x4, offset = 0x4, fixed_abs, tag = 'smem constant byte address 0x4 - core index']
  #allocation1 [shape = 'u32[144,128]{1,0:T(1,128)}', space=vmem, size = 0x12000, scoped, tag = 'internal scratch']
  #allocation2 [shape = 'f32[128,128]{1,0:T(8,128)}', space=vmem, size = 0x10000, scoped, tag = 'scratch operand']
  %s0 = inlined_call_operand.vmem [shape: bf16[128,16], index: 0, kind: input, shape index: {}]
  %s1 = inlined_call_operand.vmem [shape: bf16[16,128], index: 1, kind: input, shape index: {}]
  %s2 = inlined_call_operand.vmem [shape: f32[1,128], index: 2, kind: input, shape index: {}]
  %s3 = inlined_call_operand.vmem [shape: bf16[128,128], index: 3, kind: input, shape index: {}]
  %s4 = inlined_call_operand.vmem [shape: bf16[128,128], index: 4, kind: output, shape index: {}]
  %s5 = sld [smem:[#allocation0]]
  $region34: #{vqvae_forward.20} parent=0
    _
  %s7 = ssub.s32 1, %s5
  %s8 = scalar_select 0, %s7, %s5
  // Predicated region
  $region2: #{vqvae_forward.20} parent=0 // pred_check
    _
  $region3: #{vqvae_forward.20} parent=0 // pred_check_branch
    %10 = sbr.rel (0) target = $region5
  $region4: #{vqvae_forward.20} parent=0 // pred_region
    _
  $region5: #{vqvae_forward.20} parent=0 // pred_fallthru
    _
  // Predicated region
  $region6: #{vqvae_forward.20} parent=0 // pred_check
    _
  $region7: #{vqvae_forward.20} parent=0 // pred_check_branch
    %12 = sbr.rel (0) target = $region9
  $region8: #{vqvae_forward.20} parent=0 // pred_region
    _
  $region9: #{vqvae_forward.20} parent=0 // pred_fallthru
    _
  // Predicated region
  $region10: #{vqvae_forward.20} parent=0 // pred_check
    _
  $region11: #{vqvae_forward.20} parent=0 // pred_check_branch
    %14 = sbr.rel (0) target = $region13
  $region12: #{vqvae_forward.20} parent=0 // pred_region
    _
  $region13: #{vqvae_forward.20} parent=0 // pred_fallthru
    _
  // Predicated region
  $region14: #{vqvae_forward.20} parent=0 // pred_check
    _
  $region15: #{vqvae_forward.20} parent=0 // pred_check_branch
    %16 = sbr.rel (0) target = $region17
  $region16: #{vqvae_forward.20} parent=0 // pred_region
    _
  $region17: #{vqvae_forward.20} parent=0 // pred_fallthru
    _
  %p18 = scmp.eq.s32.totalorder 0, 0
  // Predicated region
  $region18: #{vqvae_forward.20} parent=0 // pred_check
    %p19 = pneg %p18
  $region19: #{vqvae_forward.20} parent=0 // pred_check_branch
    %21 = sbr.rel (%p19) target = $region21
  $region20: #{vqvae_forward.20} parent=0 // pred_region
    %22 = vst [vmem:[#allocation2] sm:$0xff] 0.0
    %23 = vst [vmem:[#allocation2 + $0x8] sm:$0xff] 0.0
    %24 = vst [vmem:[#allocation2 + $0x10] sm:$0xff] 0.0
    %25 = vst [vmem:[#allocation2 + $0x18] sm:$0xff] 0.0
    %26 = vst [vmem:[#allocation2 + $0x20] sm:$0xff] 0.0
    %27 = vst [vmem:[#allocation2 + $0x28] sm:$0xff] 0.0
    %28 = vst [vmem:[#allocation2 + $0x30] sm:$0xff] 0.0
    %29 = vst [vmem:[#allocation2 + $0x38] sm:$0xff] 0.0
    %30 = vst [vmem:[#allocation2 + $0x40] sm:$0xff] 0.0
    %31 = vst [vmem:[#allocation2 + $0x48] sm:$0xff] 0.0
    %32 = vst [vmem:[#allocation2 + $0x50] sm:$0xff] 0.0
    %33 = vst [vmem:[#allocation2 + $0x58] sm:$0xff] 0.0
    %34 = vst [vmem:[#allocation2 + $0x60] sm:$0xff] 0.0
    %35 = vst [vmem:[#allocation2 + $0x68] sm:$0xff] 0.0
    %36 = vst [vmem:[#allocation2 + $0x70] sm:$0xff] 0.0
    %37 = vst [vmem:[#allocation2 + $0x78] sm:$0xff] 0.0
  $region21: #{vqvae_forward.20} parent=0 // pred_fallthru
    _
  %v38 = vld [vmem:[#allocation2] sm:$0xff]
  %v39 = vld [vmem:[#allocation2 + $0x8] sm:$0xff]
  %v40 = vld [vmem:[#allocation2 + $0x10] sm:$0xff]
  %v41 = vld [vmem:[#allocation2 + $0x18] sm:$0xff]
  %v42 = vld [vmem:[#allocation2 + $0x20] sm:$0xff]
  %v43 = vld [vmem:[#allocation2 + $0x28] sm:$0xff]
  %v44 = vld [vmem:[#allocation2 + $0x30] sm:$0xff]
  %v45 = vld [vmem:[#allocation2 + $0x38] sm:$0xff]
  %v46 = vld [vmem:[#allocation2 + $0x40] sm:$0xff]
  %v47 = vld [vmem:[#allocation2 + $0x48] sm:$0xff]
  %v48 = vld [vmem:[#allocation2 + $0x50] sm:$0xff]
  %v49 = vld [vmem:[#allocation2 + $0x58] sm:$0xff]
  %v50 = vld [vmem:[#allocation2 + $0x60] sm:$0xff]
  %v51 = vld [vmem:[#allocation2 + $0x68] sm:$0xff]
  %v52 = vld [vmem:[#allocation2 + $0x70] sm:$0xff]
  %v53 = vld [vmem:[#allocation2 + $0x78] sm:$0xff]
  %v54 = vld [vmem:[%s0] sm:$0xf]
  %v55 = vld [vmem:[%s0 + $0x4] sm:$0xf]
  %v56 = vld [vmem:[%s0 + $0x8] sm:$0xf]
  %v57 = vld [vmem:[%s0 + $0xc] sm:$0xf]
  %v58 = vld [vmem:[%s0 + $0x10] sm:$0xf]
  %v59 = vld [vmem:[%s0 + $0x14] sm:$0xf]
  %v60 = vld [vmem:[%s0 + $0x18] sm:$0xf]
  %v61 = vld [vmem:[%s0 + $0x1c] sm:$0xf]
  %v62 = vld [vmem:[%s0 + $0x20] sm:$0xf]
  %v63 = vld [vmem:[%s0 + $0x24] sm:$0xf]
  %v64 = vld [vmem:[%s0 + $0x28] sm:$0xf]
  %v65 = vld [vmem:[%s0 + $0x2c] sm:$0xf]
  %v66 = vld [vmem:[%s0 + $0x30] sm:$0xf]
  %v67 = vld [vmem:[%s0 + $0x34] sm:$0xf]
  %v68 = vld [vmem:[%s0 + $0x38] sm:$0xf]
  %v69 = vld [vmem:[%s0 + $0x3c] sm:$0xf]
  %v70 = vld [vmem:[%s1] sm:$0xf]
  %v71 = vld [vmem:[%s1 + $0x4] sm:$0xf]
  %v88 = vunpack.c.l.b16 %v54
  %v89 = vunpack.c.l.b16 %v55
  %v90 = vunpack.c.l.b16 %v56
  %v91 = vunpack.c.l.b16 %v57
  %v92 = vunpack.c.l.b16 %v58
  %v93 = vunpack.c.l.b16 %v59
  %v94 = vunpack.c.l.b16 %v60
  %v95 = vunpack.c.l.b16 %v61
  %v96 = vunpack.c.l.b16 %v62
  %v97 = vunpack.c.l.b16 %v63
  %v98 = vunpack.c.l.b16 %v64
  %v99 = vunpack.c.l.b16 %v65
  %v100 = vunpack.c.l.b16 %v66
  %v101 = vunpack.c.l.b16 %v67
  %v102 = vunpack.c.l.b16 %v68
  %v103 = vunpack.c.l.b16 %v69
  %v104 = vpack.c.b16 %v89, %v88
  %v105 = vpack.c.b16 %v91, %v90
  %v106 = vpack.c.b16 %v93, %v92
  %v107 = vpack.c.b16 %v95, %v94
  %v108 = vpack.c.b16 %v97, %v96
  %v109 = vpack.c.b16 %v99, %v98
  %v110 = vpack.c.b16 %v101, %v100
  %v111 = vpack.c.b16 %v103, %v102
  %v114 = vunpack.c.l.b16 %v70
  %v115 = vunpack.c.l.b16 %v71
  %v116 = vpack.c.b16 %v115, %v114
  %vm118 = vcmask 130048
  %v120 = vsel %vm118, %v104, 0
  %v123 = vsel %vm118, %v105, 0
  %v126 = vsel %vm118, %v106, 0
  %v129 = vsel %vm118, %v107, 0
  %v132 = vsel %vm118, %v108, 0
  %v135 = vsel %vm118, %v109, 0
  %v138 = vsel %vm118, %v110, 0
  %v141 = vsel %vm118, %v111, 0
  %143 = vmatprep.subr.bf16.mxu0 0
  %144 = vmatpush1.bf16.msra.mxu0 0
  %145 = vmatprep.subr.bf16.mxu0 0
  %146 = vmatpush1.bf16.msra.mxu0 0
  %147 = vmatprep.subr.bf16.mxu0 0
  %148 = vmatpush1.bf16.msra.mxu0 0
  %149 = vmatprep.subr.bf16.mxu0 0
  %150 = vmatpush1.bf16.msra.mxu0 0
  %151 = vmatprep.subr.bf16.mxu0 0
  %152 = vmatpush1.bf16.msra.mxu0 0
  %153 = vmatprep.subr.bf16.mxu0 0
  %154 = vmatpush1.bf16.msra.mxu0 0
  %155 = vmatprep.subr.bf16.mxu0 0
  %156 = vmatpush1.bf16.msra.mxu0 0
  %157 = vmatprep.subr.bf16.mxu0 0
  %158 = vmatpush1.bf16.msra.mxu0 %v116
  %159 = vmatprep.subr.bf16.mxu0 0
  %160 = vmatpush2.bf16.msra.mxu0 0
  %161 = vmatprep.subr.bf16.mxu0 0
  %162 = vmatpush2.bf16.msra.mxu0 0
  %163 = vmatprep.subr.bf16.mxu0 0
  %164 = vmatpush2.bf16.msra.mxu0 0
  %165 = vmatprep.subr.bf16.mxu0 0
  %166 = vmatpush2.bf16.msra.mxu0 0
  %167 = vmatprep.subr.bf16.mxu0 0
  %168 = vmatpush2.bf16.msra.mxu0 0
  %169 = vmatprep.subr.bf16.mxu0 0
  %170 = vmatpush2.bf16.msra.mxu0 0
  %171 = vmatprep.subr.bf16.mxu0 0
  %172 = vmatpush2.bf16.msra.mxu0 0
  %173 = vmatprep.subr.bf16.mxu0 0
  %174 = vmatpush2.bf16.msra.mxu0 0
  %175 = vmatprep.mubr.bf16.mxu0 0
  %176 = vmatmul.mubr.bf16.gmra.mxu0 %v120
  %v177 = vpop.f32.mrf.mxu0
  %v178 = vadd.f32 0.0, %v177
  %v179 = vpop.f32.mrf.mxu0
  %v180 = vpop.f32.mrf.mxu0
  %v181 = vadd.f32 0.0, %v180
  %v182 = vpop.f32.mrf.mxu0
  %183 = vmatprep.mubr.bf16.mxu0 0
  %184 = vmatmul.mubr.bf16.gmra.mxu0 %v123
  %v185 = vpop.f32.mrf.mxu0
  %v186 = vadd.f32 0.0, %v185
  %v187 = vpop.f32.mrf.mxu0
  %v188 = vpop.f32.mrf.mxu0
  %v189 = vadd.f32 0.0, %v188
  %v190 = vpop.f32.mrf.mxu0
  %191 = vmatprep.mubr.bf16.mxu0 0
  %192 = vmatmul.mubr.bf16.gmra.mxu0 %v126
  %v193 = vpop.f32.mrf.mxu0
  %v194 = vadd.f32 0.0, %v193
  %v195 = vpop.f32.mrf.mxu0
  %v196 = vpop.f32.mrf.mxu0
  %v197 = vadd.f32 0.0, %v196
  %v198 = vpop.f32.mrf.mxu0
  %199 = vmatprep.mubr.bf16.mxu0 0
  %200 = vmatmul.mubr.bf16.gmra.mxu0 %v129
  %v201 = vpop.f32.mrf.mxu0
  %v202 = vadd.f32 0.0, %v201
  %v203 = vpop.f32.mrf.mxu0
  %v204 = vpop.f32.mrf.mxu0
  %v205 = vadd.f32 0.0, %v204
  %v206 = vpop.f32.mrf.mxu0
  %207 = vmatprep.mubr.bf16.mxu0 0
  %208 = vmatmul.mubr.bf16.gmra.mxu0 %v132
  %v209 = vpop.f32.mrf.mxu0
  %v210 = vadd.f32 0.0, %v209
  %v211 = vpop.f32.mrf.mxu0
  %v212 = vpop.f32.mrf.mxu0
  %v213 = vadd.f32 0.0, %v212
  %v214 = vpop.f32.mrf.mxu0
  %215 = vmatprep.mubr.bf16.mxu0 0
  %216 = vmatmul.mubr.bf16.gmra.mxu0 %v135
  %v217 = vpop.f32.mrf.mxu0
  %v218 = vadd.f32 0.0, %v217
  %v219 = vpop.f32.mrf.mxu0
  %v220 = vpop.f32.mrf.mxu0
  %v221 = vadd.f32 0.0, %v220
  %v222 = vpop.f32.mrf.mxu0
  %223 = vmatprep.mubr.bf16.mxu0 0
  %224 = vmatmul.mubr.bf16.gmra.mxu0 %v138
  %v225 = vpop.f32.mrf.mxu0
  %v226 = vadd.f32 0.0, %v225
  %v227 = vpop.f32.mrf.mxu0
  %v228 = vpop.f32.mrf.mxu0
  %v229 = vadd.f32 0.0, %v228
  %v230 = vpop.f32.mrf.mxu0
  %231 = vmatprep.mubr.bf16.mxu0 0
  %232 = vmatmul.mubr.bf16.gmra.mxu0 %v141
  %v233 = vpop.f32.mrf.mxu0
  %v234 = vadd.f32 0.0, %v233
  %v235 = vpop.f32.mrf.mxu0
  %v236 = vpop.f32.mrf.mxu0
  %v237 = vadd.f32 0.0, %v236
  %v238 = vpop.f32.mrf.mxu0
  %239 = vdwg.mxu0
  %v240 = vadd.f32 %v38, %v178
  %v241 = vadd.f32 %v39, %v181
  %v242 = vadd.f32 %v40, %v186
  %v243 = vadd.f32 %v41, %v189
  %v244 = vadd.f32 %v42, %v194
  %v245 = vadd.f32 %v43, %v197
  %v246 = vadd.f32 %v44, %v202
  %v247 = vadd.f32 %v45, %v205
  %v248 = vadd.f32 %v46, %v210
  %v249 = vadd.f32 %v47, %v213
  %v250 = vadd.f32 %v48, %v218
  %v251 = vadd.f32 %v49, %v221
  %v252 = vadd.f32 %v50, %v226
  %v253 = vadd.f32 %v51, %v229
  %v254 = vadd.f32 %v52, %v234
  %v255 = vadd.f32 %v53, %v237
  %256 = vst [vmem:[#allocation2] sm:$0xff] %v240
  %257 = vst [vmem:[#allocation2 + $0x8] sm:$0xff] %v241
  %258 = vst [vmem:[#allocation2 + $0x10] sm:$0xff] %v242
  %259 = vst [vmem:[#allocation2 + $0x18] sm:$0xff] %v243
  %260 = vst [vmem:[#allocation2 + $0x20] sm:$0xff] %v244
  %261 = vst [vmem:[#allocation2 + $0x28] sm:$0xff] %v245
  %262 = vst [vmem:[#allocation2 + $0x30] sm:$0xff] %v246
  %263 = vst [vmem:[#allocation2 + $0x38] sm:$0xff] %v247
  %264 = vst [vmem:[#allocation2 + $0x40] sm:$0xff] %v248
  %265 = vst [vmem:[#allocation2 + $0x48] sm:$0xff] %v249
  %266 = vst [vmem:[#allocation2 + $0x50] sm:$0xff] %v250
  %267 = vst [vmem:[#allocation2 + $0x58] sm:$0xff] %v251
  %268 = vst [vmem:[#allocation2 + $0x60] sm:$0xff] %v252
  %269 = vst [vmem:[#allocation2 + $0x68] sm:$0xff] %v253
  %270 = vst [vmem:[#allocation2 + $0x70] sm:$0xff] %v254
  %271 = vst [vmem:[#allocation2 + $0x78] sm:$0xff] %v255
  // Predicated region
  $region22: #{vqvae_forward.20} parent=0 // pred_check
    %p272 = pneg %p18
  $region23: #{vqvae_forward.20} parent=0 // pred_check_branch
    %274 = sbr.rel (%p272) target = $region25
  $region24: #{vqvae_forward.20} parent=0 // pred_region
    %v275 = vld [vmem:[#allocation2] sm:$0xff]
    %v276 = vld [vmem:[#allocation2 + $0x8] sm:$0xff]
    %v277 = vld [vmem:[#allocation2 + $0x10] sm:$0xff]
    %v278 = vld [vmem:[#allocation2 + $0x18] sm:$0xff]
    %v279 = vld [vmem:[#allocation2 + $0x20] sm:$0xff]
    %v280 = vld [vmem:[#allocation2 + $0x28] sm:$0xff]
    %v281 = vld [vmem:[#allocation2 + $0x30] sm:$0xff]
    %v282 = vld [vmem:[#allocation2 + $0x38] sm:$0xff]
    %v283 = vld [vmem:[#allocation2 + $0x40] sm:$0xff]
    %v284 = vld [vmem:[#allocation2 + $0x48] sm:$0xff]
    %v285 = vld [vmem:[#allocation2 + $0x50] sm:$0xff]
    %v286 = vld [vmem:[#allocation2 + $0x58] sm:$0xff]
    %v287 = vld [vmem:[#allocation2 + $0x60] sm:$0xff]
    %v288 = vld [vmem:[#allocation2 + $0x68] sm:$0xff]
    %v289 = vld [vmem:[#allocation2 + $0x70] sm:$0xff]
    %v290 = vld [vmem:[#allocation2 + $0x78] sm:$0xff]
    %v291 = vld [vmem:[%s2] sm:$0x1]
    %v293 = vlaneseq
    %v294 = vshrl.u32 %v293, 7
    %v295 = vsub.s32 0, %v294
    %v296 = vrot.slane %v291, %v295
    %v298 = vadd.f32 %v275, %v296
    %v299 = vadd.f32 %v276, %v296
    %v300 = vadd.f32 %v277, %v296
    %v301 = vadd.f32 %v278, %v296
    %v302 = vadd.f32 %v279, %v296
    %v303 = vadd.f32 %v280, %v296
    %v304 = vadd.f32 %v281, %v296
    %v305 = vadd.f32 %v282, %v296
    %v306 = vadd.f32 %v283, %v296
    %v307 = vadd.f32 %v284, %v296
    %v308 = vadd.f32 %v285, %v296
    %v309 = vadd.f32 %v286, %v296
    %v310 = vadd.f32 %v287, %v296
    %v311 = vadd.f32 %v288, %v296
    %v312 = vadd.f32 %v289, %v296
    %v313 = vadd.f32 %v290, %v296
    %v314 = vld [vmem:[%s3] sm:$0xf]
    %v315 = vld [vmem:[%s3 + $0x4] sm:$0xf]
    %v316 = vld [vmem:[%s3 + $0x8] sm:$0xf]
    %v317 = vld [vmem:[%s3 + $0xc] sm:$0xf]
    %v318 = vld [vmem:[%s3 + $0x10] sm:$0xf]
    %v319 = vld [vmem:[%s3 + $0x14] sm:$0xf]
    %v320 = vld [vmem:[%s3 + $0x18] sm:$0xf]
    %v321 = vld [vmem:[%s3 + $0x1c] sm:$0xf]
    %v322 = vld [vmem:[%s3 + $0x20] sm:$0xf]
    %v323 = vld [vmem:[%s3 + $0x24] sm:$0xf]
    %v324 = vld [vmem:[%s3 + $0x28] sm:$0xf]
    %v325 = vld [vmem:[%s3 + $0x2c] sm:$0xf]
    %v326 = vld [vmem:[%s3 + $0x30] sm:$0xf]
    %v327 = vld [vmem:[%s3 + $0x34] sm:$0xf]
    %v328 = vld [vmem:[%s3 + $0x38] sm:$0xf]
    %v329 = vld [vmem:[%s3 + $0x3c] sm:$0xf]
    %v330 = vunpack.c.l.bf16 %v314
    %v331 = vunpack.c.l.bf16 %v315
    %v332 = vunpack.c.l.bf16 %v316
    %v333 = vunpack.c.l.bf16 %v317
    %v334 = vunpack.c.l.bf16 %v318
    %v335 = vunpack.c.l.bf16 %v319
    %v336 = vunpack.c.l.bf16 %v320
    %v337 = vunpack.c.l.bf16 %v321
    %v338 = vunpack.c.l.bf16 %v322
    %v339 = vunpack.c.l.bf16 %v323
    %v340 = vunpack.c.l.bf16 %v324
    %v341 = vunpack.c.l.bf16 %v325
    %v342 = vunpack.c.l.bf16 %v326
    %v343 = vunpack.c.l.bf16 %v327
    %v344 = vunpack.c.l.bf16 %v328
    %v345 = vunpack.c.l.bf16 %v329
    %v346 = vadd.f32 %v298, %v330
    %v347 = vadd.f32 %v299, %v331
    %v348 = vadd.f32 %v300, %v332
    %v349 = vadd.f32 %v301, %v333
    %v350 = vadd.f32 %v302, %v334
    %v351 = vadd.f32 %v303, %v335
    %v352 = vadd.f32 %v304, %v336
    %v353 = vadd.f32 %v305, %v337
    %v354 = vadd.f32 %v306, %v338
    %v355 = vadd.f32 %v307, %v339
    %v356 = vadd.f32 %v308, %v340
    %v357 = vadd.f32 %v309, %v341
    %v358 = vadd.f32 %v310, %v342
    %v359 = vadd.f32 %v311, %v343
    %v360 = vadd.f32 %v312, %v344
    %v361 = vadd.f32 %v313, %v345
    %v362 = vpack.c.bf16 %v347, %v346
    %v363 = vpack.c.bf16 %v349, %v348
    %v364 = vpack.c.bf16 %v351, %v350
    %v365 = vpack.c.bf16 %v353, %v352
    %v366 = vpack.c.bf16 %v355, %v354
    %v367 = vpack.c.bf16 %v357, %v356
    %v368 = vpack.c.bf16 %v359, %v358
    %v369 = vpack.c.bf16 %v361, %v360
    %v378 = vunpack.c.l.b16 %v362
    %v379 = vunpack.c.h.b16 %v362
    %v380 = vunpack.c.l.b16 %v363
    %v381 = vunpack.c.h.b16 %v363
    %v382 = vunpack.c.l.b16 %v364
    %v383 = vunpack.c.h.b16 %v364
    %v384 = vunpack.c.l.b16 %v365
    %v385 = vunpack.c.h.b16 %v365
    %v386 = vunpack.c.l.b16 %v366
    %v387 = vunpack.c.h.b16 %v366
    %v388 = vunpack.c.l.b16 %v367
    %v389 = vunpack.c.h.b16 %v367
    %v390 = vunpack.c.l.b16 %v368
    %v391 = vunpack.c.h.b16 %v368
    %v392 = vunpack.c.l.b16 %v369
    %v393 = vunpack.c.h.b16 %v369
    %v394 = vpack.c.b16 %v378, %v378
    %v395 = vpack.c.b16 %v379, %v379
    %v396 = vpack.c.b16 %v380, %v380
    %v397 = vpack.c.b16 %v381, %v381
    %v398 = vpack.c.b16 %v382, %v382
    %v399 = vpack.c.b16 %v383, %v383
    %v400 = vpack.c.b16 %v384, %v384
    %v401 = vpack.c.b16 %v385, %v385
    %v402 = vpack.c.b16 %v386, %v386
    %v403 = vpack.c.b16 %v387, %v387
    %v404 = vpack.c.b16 %v388, %v388
    %v405 = vpack.c.b16 %v389, %v389
    %v406 = vpack.c.b16 %v390, %v390
    %v407 = vpack.c.b16 %v391, %v391
    %v408 = vpack.c.b16 %v392, %v392
    %v409 = vpack.c.b16 %v393, %v393
    %426 = vst [vmem:[%s4] sm:$0xf] %v394
    %427 = vst [vmem:[%s4 + $0x4] sm:$0xf] %v395
    %428 = vst [vmem:[%s4 + $0x8] sm:$0xf] %v396
    %429 = vst [vmem:[%s4 + $0xc] sm:$0xf] %v397
    %430 = vst [vmem:[%s4 + $0x10] sm:$0xf] %v398
    %431 = vst [vmem:[%s4 + $0x14] sm:$0xf] %v399
    %432 = vst [vmem:[%s4 + $0x18] sm:$0xf] %v400
    %433 = vst [vmem:[%s4 + $0x1c] sm:$0xf] %v401
    %434 = vst [vmem:[%s4 + $0x20] sm:$0xf] %v402
    %435 = vst [vmem:[%s4 + $0x24] sm:$0xf] %v403
    %436 = vst [vmem:[%s4 + $0x28] sm:$0xf] %v404
    %437 = vst [vmem:[%s4 + $0x2c] sm:$0xf] %v405
    %438 = vst [vmem:[%s4 + $0x30] sm:$0xf] %v406
    %439 = vst [vmem:[%s4 + $0x34] sm:$0xf] %v407
    %440 = vst [vmem:[%s4 + $0x38] sm:$0xf] %v408
    %441 = vst [vmem:[%s4 + $0x3c] sm:$0xf] %v409
  $region25: #{vqvae_forward.20} parent=0 // pred_fallthru
    _
  // Predicated region
  $region26: #{vqvae_forward.20} parent=0 // pred_check
    _
  $region27: #{vqvae_forward.20} parent=0 // pred_check_branch
    %443 = sbr.rel (0) target = $region29
  $region28: #{vqvae_forward.20} parent=0 // pred_region
    _
  $region29: #{vqvae_forward.20} parent=0 // pred_fallthru
    _
  // Predicated region
  $region30: #{vqvae_forward.20} parent=0 // pred_check
    _
  $region31: #{vqvae_forward.20} parent=0 // pred_check_branch
    %445 = sbr.rel (0) target = $region33
  $region32: #{vqvae_forward.20} parent=0 // pred_region
    _
  $region33: #{vqvae_forward.20} parent=0 // pred_fallthru
    _

// kernel: vqvae_forward.23
$region0: #{vqvae_forward.23}
  #allocation0 [shape = 'u32[]', space=smem, size = 0x4, offset = 0x4, fixed_abs, tag = 'smem constant byte address 0x4 - core index']
  #allocation1 [shape = 'u32[144,128]{1,0:T(1,128)}', space=vmem, size = 0x12000, scoped, tag = 'internal scratch']
  #allocation2 [shape = 'f32[128,128]{1,0:T(8,128)}', space=vmem, size = 0x10000, scoped, tag = 'scratch operand']
  %s0 = inlined_call_operand.vmem [shape: bf16[128,16], index: 0, kind: input, shape index: {}]
  %s1 = inlined_call_operand.vmem [shape: bf16[16,128], index: 1, kind: input, shape index: {}]
  %s2 = inlined_call_operand.vmem [shape: f32[1,128], index: 2, kind: input, shape index: {}]
  %s3 = inlined_call_operand.vmem [shape: bf16[128,128], index: 3, kind: output, shape index: {}]
  %s4 = sld [smem:[#allocation0]]
  $region30: #{vqvae_forward.23} parent=0
    _
  %s6 = ssub.s32 1, %s4
  %s7 = scalar_select 0, %s6, %s4
  // Predicated region
  $region2: #{vqvae_forward.23} parent=0 // pred_check
    _
  $region3: #{vqvae_forward.23} parent=0 // pred_check_branch
    %9 = sbr.rel (0) target = $region5
  $region4: #{vqvae_forward.23} parent=0 // pred_region
    _
  $region5: #{vqvae_forward.23} parent=0 // pred_fallthru
    _
  // Predicated region
  $region6: #{vqvae_forward.23} parent=0 // pred_check
    _
  $region7: #{vqvae_forward.23} parent=0 // pred_check_branch
    %11 = sbr.rel (0) target = $region9
  $region8: #{vqvae_forward.23} parent=0 // pred_region
    _
  $region9: #{vqvae_forward.23} parent=0 // pred_fallthru
    _
  // Predicated region
  $region10: #{vqvae_forward.23} parent=0 // pred_check
    _
  $region11: #{vqvae_forward.23} parent=0 // pred_check_branch
    %13 = sbr.rel (0) target = $region13
  $region12: #{vqvae_forward.23} parent=0 // pred_region
    _
  $region13: #{vqvae_forward.23} parent=0 // pred_fallthru
    _
  %p15 = scmp.eq.s32.totalorder 0, 0
  // Predicated region
  $region14: #{vqvae_forward.23} parent=0 // pred_check
    %p16 = pneg %p15
  $region15: #{vqvae_forward.23} parent=0 // pred_check_branch
    %18 = sbr.rel (%p16) target = $region17
  $region16: #{vqvae_forward.23} parent=0 // pred_region
    %19 = vst [vmem:[#allocation2] sm:$0xff] 0.0
    %20 = vst [vmem:[#allocation2 + $0x8] sm:$0xff] 0.0
    %21 = vst [vmem:[#allocation2 + $0x10] sm:$0xff] 0.0
    %22 = vst [vmem:[#allocation2 + $0x18] sm:$0xff] 0.0
    %23 = vst [vmem:[#allocation2 + $0x20] sm:$0xff] 0.0
    %24 = vst [vmem:[#allocation2 + $0x28] sm:$0xff] 0.0
    %25 = vst [vmem:[#allocation2 + $0x30] sm:$0xff] 0.0
    %26 = vst [vmem:[#allocation2 + $0x38] sm:$0xff] 0.0
    %27 = vst [vmem:[#allocation2 + $0x40] sm:$0xff] 0.0
    %28 = vst [vmem:[#allocation2 + $0x48] sm:$0xff] 0.0
    %29 = vst [vmem:[#allocation2 + $0x50] sm:$0xff] 0.0
    %30 = vst [vmem:[#allocation2 + $0x58] sm:$0xff] 0.0
    %31 = vst [vmem:[#allocation2 + $0x60] sm:$0xff] 0.0
    %32 = vst [vmem:[#allocation2 + $0x68] sm:$0xff] 0.0
    %33 = vst [vmem:[#allocation2 + $0x70] sm:$0xff] 0.0
    %34 = vst [vmem:[#allocation2 + $0x78] sm:$0xff] 0.0
  $region17: #{vqvae_forward.23} parent=0 // pred_fallthru
    _
  %v35 = vld [vmem:[#allocation2] sm:$0xff]
  %v36 = vld [vmem:[#allocation2 + $0x8] sm:$0xff]
  %v37 = vld [vmem:[#allocation2 + $0x10] sm:$0xff]
  %v38 = vld [vmem:[#allocation2 + $0x18] sm:$0xff]
  %v39 = vld [vmem:[#allocation2 + $0x20] sm:$0xff]
  %v40 = vld [vmem:[#allocation2 + $0x28] sm:$0xff]
  %v41 = vld [vmem:[#allocation2 + $0x30] sm:$0xff]
  %v42 = vld [vmem:[#allocation2 + $0x38] sm:$0xff]
  %v43 = vld [vmem:[#allocation2 + $0x40] sm:$0xff]
  %v44 = vld [vmem:[#allocation2 + $0x48] sm:$0xff]
  %v45 = vld [vmem:[#allocation2 + $0x50] sm:$0xff]
  %v46 = vld [vmem:[#allocation2 + $0x58] sm:$0xff]
  %v47 = vld [vmem:[#allocation2 + $0x60] sm:$0xff]
  %v48 = vld [vmem:[#allocation2 + $0x68] sm:$0xff]
  %v49 = vld [vmem:[#allocation2 + $0x70] sm:$0xff]
  %v50 = vld [vmem:[#allocation2 + $0x78] sm:$0xff]
  %v51 = vld [vmem:[%s0] sm:$0xf]
  %v52 = vld [vmem:[%s0 + $0x4] sm:$0xf]
  %v53 = vld [vmem:[%s0 + $0x8] sm:$0xf]
  %v54 = vld [vmem:[%s0 + $0xc] sm:$0xf]
  %v55 = vld [vmem:[%s0 + $0x10] sm:$0xf]
  %v56 = vld [vmem:[%s0 + $0x14] sm:$0xf]
  %v57 = vld [vmem:[%s0 + $0x18] sm:$0xf]
  %v58 = vld [vmem:[%s0 + $0x1c] sm:$0xf]
  %v59 = vld [vmem:[%s0 + $0x20] sm:$0xf]
  %v60 = vld [vmem:[%s0 + $0x24] sm:$0xf]
  %v61 = vld [vmem:[%s0 + $0x28] sm:$0xf]
  %v62 = vld [vmem:[%s0 + $0x2c] sm:$0xf]
  %v63 = vld [vmem:[%s0 + $0x30] sm:$0xf]
  %v64 = vld [vmem:[%s0 + $0x34] sm:$0xf]
  %v65 = vld [vmem:[%s0 + $0x38] sm:$0xf]
  %v66 = vld [vmem:[%s0 + $0x3c] sm:$0xf]
  %v67 = vld [vmem:[%s1] sm:$0xf]
  %v68 = vld [vmem:[%s1 + $0x4] sm:$0xf]
  %v85 = vunpack.c.l.b16 %v51
  %v86 = vunpack.c.l.b16 %v52
  %v87 = vunpack.c.l.b16 %v53
  %v88 = vunpack.c.l.b16 %v54
  %v89 = vunpack.c.l.b16 %v55
  %v90 = vunpack.c.l.b16 %v56
  %v91 = vunpack.c.l.b16 %v57
  %v92 = vunpack.c.l.b16 %v58
  %v93 = vunpack.c.l.b16 %v59
  %v94 = vunpack.c.l.b16 %v60
  %v95 = vunpack.c.l.b16 %v61
  %v96 = vunpack.c.l.b16 %v62
  %v97 = vunpack.c.l.b16 %v63
  %v98 = vunpack.c.l.b16 %v64
  %v99 = vunpack.c.l.b16 %v65
  %v100 = vunpack.c.l.b16 %v66
  %v101 = vpack.c.b16 %v86, %v85
  %v102 = vpack.c.b16 %v88, %v87
  %v103 = vpack.c.b16 %v90, %v89
  %v104 = vpack.c.b16 %v92, %v91
  %v105 = vpack.c.b16 %v94, %v93
  %v106 = vpack.c.b16 %v96, %v95
  %v107 = vpack.c.b16 %v98, %v97
  %v108 = vpack.c.b16 %v100, %v99
  %v111 = vunpack.c.l.b16 %v67
  %v112 = vunpack.c.l.b16 %v68
  %v113 = vpack.c.b16 %v112, %v111
  %vm115 = vcmask 130048
  %v117 = vsel %vm115, %v101, 0
  %v120 = vsel %vm115, %v102, 0
  %v123 = vsel %vm115, %v103, 0
  %v126 = vsel %vm115, %v104, 0
  %v129 = vsel %vm115, %v105, 0
  %v132 = vsel %vm115, %v106, 0
  %v135 = vsel %vm115, %v107, 0
  %v138 = vsel %vm115, %v108, 0
  %140 = vmatprep.subr.bf16.mxu0 0
  %141 = vmatpush1.bf16.msra.mxu0 0
  %142 = vmatprep.subr.bf16.mxu0 0
  %143 = vmatpush1.bf16.msra.mxu0 0
  %144 = vmatprep.subr.bf16.mxu0 0
  %145 = vmatpush1.bf16.msra.mxu0 0
  %146 = vmatprep.subr.bf16.mxu0 0
  %147 = vmatpush1.bf16.msra.mxu0 0
  %148 = vmatprep.subr.bf16.mxu0 0
  %149 = vmatpush1.bf16.msra.mxu0 0
  %150 = vmatprep.subr.bf16.mxu0 0
  %151 = vmatpush1.bf16.msra.mxu0 0
  %152 = vmatprep.subr.bf16.mxu0 0
  %153 = vmatpush1.bf16.msra.mxu0 0
  %154 = vmatprep.subr.bf16.mxu0 0
  %155 = vmatpush1.bf16.msra.mxu0 %v113
  %156 = vmatprep.subr.bf16.mxu0 0
  %157 = vmatpush2.bf16.msra.mxu0 0
  %158 = vmatprep.subr.bf16.mxu0 0
  %159 = vmatpush2.bf16.msra.mxu0 0
  %160 = vmatprep.subr.bf16.mxu0 0
  %161 = vmatpush2.bf16.msra.mxu0 0
  %162 = vmatprep.subr.bf16.mxu0 0
  %163 = vmatpush2.bf16.msra.mxu0 0
  %164 = vmatprep.subr.bf16.mxu0 0
  %165 = vmatpush2.bf16.msra.mxu0 0
  %166 = vmatprep.subr.bf16.mxu0 0
  %167 = vmatpush2.bf16.msra.mxu0 0
  %168 = vmatprep.subr.bf16.mxu0 0
  %169 = vmatpush2.bf16.msra.mxu0 0
  %170 = vmatprep.subr.bf16.mxu0 0
  %171 = vmatpush2.bf16.msra.mxu0 0
  %172 = vmatprep.mubr.bf16.mxu0 0
  %173 = vmatmul.mubr.bf16.gmra.mxu0 %v117
  %v174 = vpop.f32.mrf.mxu0
  %v175 = vadd.f32 0.0, %v174
  %v176 = vpop.f32.mrf.mxu0
  %v177 = vpop.f32.mrf.mxu0
  %v178 = vadd.f32 0.0, %v177
  %v179 = vpop.f32.mrf.mxu0
  %180 = vmatprep.mubr.bf16.mxu0 0
  %181 = vmatmul.mubr.bf16.gmra.mxu0 %v120
  %v182 = vpop.f32.mrf.mxu0
  %v183 = vadd.f32 0.0, %v182
  %v184 = vpop.f32.mrf.mxu0
  %v185 = vpop.f32.mrf.mxu0
  %v186 = vadd.f32 0.0, %v185
  %v187 = vpop.f32.mrf.mxu0
  %188 = vmatprep.mubr.bf16.mxu0 0
  %189 = vmatmul.mubr.bf16.gmra.mxu0 %v123
  %v190 = vpop.f32.mrf.mxu0
  %v191 = vadd.f32 0.0, %v190
  %v192 = vpop.f32.mrf.mxu0
  %v193 = vpop.f32.mrf.mxu0
  %v194 = vadd.f32 0.0, %v193
  %v195 = vpop.f32.mrf.mxu0
  %196 = vmatprep.mubr.bf16.mxu0 0
  %197 = vmatmul.mubr.bf16.gmra.mxu0 %v126
  %v198 = vpop.f32.mrf.mxu0
  %v199 = vadd.f32 0.0, %v198
  %v200 = vpop.f32.mrf.mxu0
  %v201 = vpop.f32.mrf.mxu0
  %v202 = vadd.f32 0.0, %v201
  %v203 = vpop.f32.mrf.mxu0
  %204 = vmatprep.mubr.bf16.mxu0 0
  %205 = vmatmul.mubr.bf16.gmra.mxu0 %v129
  %v206 = vpop.f32.mrf.mxu0
  %v207 = vadd.f32 0.0, %v206
  %v208 = vpop.f32.mrf.mxu0
  %v209 = vpop.f32.mrf.mxu0
  %v210 = vadd.f32 0.0, %v209
  %v211 = vpop.f32.mrf.mxu0
  %212 = vmatprep.mubr.bf16.mxu0 0
  %213 = vmatmul.mubr.bf16.gmra.mxu0 %v132
  %v214 = vpop.f32.mrf.mxu0
  %v215 = vadd.f32 0.0, %v214
  %v216 = vpop.f32.mrf.mxu0
  %v217 = vpop.f32.mrf.mxu0
  %v218 = vadd.f32 0.0, %v217
  %v219 = vpop.f32.mrf.mxu0
  %220 = vmatprep.mubr.bf16.mxu0 0
  %221 = vmatmul.mubr.bf16.gmra.mxu0 %v135
  %v222 = vpop.f32.mrf.mxu0
  %v223 = vadd.f32 0.0, %v222
  %v224 = vpop.f32.mrf.mxu0
  %v225 = vpop.f32.mrf.mxu0
  %v226 = vadd.f32 0.0, %v225
  %v227 = vpop.f32.mrf.mxu0
  %228 = vmatprep.mubr.bf16.mxu0 0
  %229 = vmatmul.mubr.bf16.gmra.mxu0 %v138
  %v230 = vpop.f32.mrf.mxu0
  %v231 = vadd.f32 0.0, %v230
  %v232 = vpop.f32.mrf.mxu0
  %v233 = vpop.f32.mrf.mxu0
  %v234 = vadd.f32 0.0, %v233
  %v235 = vpop.f32.mrf.mxu0
  %236 = vdwg.mxu0
  %v237 = vadd.f32 %v35, %v175
  %v238 = vadd.f32 %v36, %v178
  %v239 = vadd.f32 %v37, %v183
  %v240 = vadd.f32 %v38, %v186
  %v241 = vadd.f32 %v39, %v191
  %v242 = vadd.f32 %v40, %v194
  %v243 = vadd.f32 %v41, %v199
  %v244 = vadd.f32 %v42, %v202
  %v245 = vadd.f32 %v43, %v207
  %v246 = vadd.f32 %v44, %v210
  %v247 = vadd.f32 %v45, %v215
  %v248 = vadd.f32 %v46, %v218
  %v249 = vadd.f32 %v47, %v223
  %v250 = vadd.f32 %v48, %v226
  %v251 = vadd.f32 %v49, %v231
  %v252 = vadd.f32 %v50, %v234
  %253 = vst [vmem:[#allocation2] sm:$0xff] %v237
  %254 = vst [vmem:[#allocation2 + $0x8] sm:$0xff] %v238
  %255 = vst [vmem:[#allocation2 + $0x10] sm:$0xff] %v239
  %256 = vst [vmem:[#allocation2 + $0x18] sm:$0xff] %v240
  %257 = vst [vmem:[#allocation2 + $0x20] sm:$0xff] %v241
  %258 = vst [vmem:[#allocation2 + $0x28] sm:$0xff] %v242
  %259 = vst [vmem:[#allocation2 + $0x30] sm:$0xff] %v243
  %260 = vst [vmem:[#allocation2 + $0x38] sm:$0xff] %v244
  %261 = vst [vmem:[#allocation2 + $0x40] sm:$0xff] %v245
  %262 = vst [vmem:[#allocation2 + $0x48] sm:$0xff] %v246
  %263 = vst [vmem:[#allocation2 + $0x50] sm:$0xff] %v247
  %264 = vst [vmem:[#allocation2 + $0x58] sm:$0xff] %v248
  %265 = vst [vmem:[#allocation2 + $0x60] sm:$0xff] %v249
  %266 = vst [vmem:[#allocation2 + $0x68] sm:$0xff] %v250
  %267 = vst [vmem:[#allocation2 + $0x70] sm:$0xff] %v251
  %268 = vst [vmem:[#allocation2 + $0x78] sm:$0xff] %v252
  // Predicated region
  $region18: #{vqvae_forward.23} parent=0 // pred_check
    %p269 = pneg %p15
  $region19: #{vqvae_forward.23} parent=0 // pred_check_branch
    %271 = sbr.rel (%p269) target = $region21
  $region20: #{vqvae_forward.23} parent=0 // pred_region
    %v272 = vld [vmem:[#allocation2] sm:$0xff]
    %v273 = vld [vmem:[#allocation2 + $0x8] sm:$0xff]
    %v274 = vld [vmem:[#allocation2 + $0x10] sm:$0xff]
    %v275 = vld [vmem:[#allocation2 + $0x18] sm:$0xff]
    %v276 = vld [vmem:[#allocation2 + $0x20] sm:$0xff]
    %v277 = vld [vmem:[#allocation2 + $0x28] sm:$0xff]
    %v278 = vld [vmem:[#allocation2 + $0x30] sm:$0xff]
    %v279 = vld [vmem:[#allocation2 + $0x38] sm:$0xff]
    %v280 = vld [vmem:[#allocation2 + $0x40] sm:$0xff]
    %v281 = vld [vmem:[#allocation2 + $0x48] sm:$0xff]
    %v282 = vld [vmem:[#allocation2 + $0x50] sm:$0xff]
    %v283 = vld [vmem:[#allocation2 + $0x58] sm:$0xff]
    %v284 = vld [vmem:[#allocation2 + $0x60] sm:$0xff]
    %v285 = vld [vmem:[#allocation2 + $0x68] sm:$0xff]
    %v286 = vld [vmem:[#allocation2 + $0x70] sm:$0xff]
    %v287 = vld [vmem:[#allocation2 + $0x78] sm:$0xff]
    %v288 = vld [vmem:[%s2] sm:$0x1]
    %v290 = vlaneseq
    %v291 = vshrl.u32 %v290, 7
    %v292 = vsub.s32 0, %v291
    %v293 = vrot.slane %v288, %v292
    %v295 = vadd.f32 %v272, %v293
    %v296 = vadd.f32 %v273, %v293
    %v297 = vadd.f32 %v274, %v293
    %v298 = vadd.f32 %v275, %v293
    %v299 = vadd.f32 %v276, %v293
    %v300 = vadd.f32 %v277, %v293
    %v301 = vadd.f32 %v278, %v293
    %v302 = vadd.f32 %v279, %v293
    %v303 = vadd.f32 %v280, %v293
    %v304 = vadd.f32 %v281, %v293
    %v305 = vadd.f32 %v282, %v293
    %v306 = vadd.f32 %v283, %v293
    %v307 = vadd.f32 %v284, %v293
    %v308 = vadd.f32 %v285, %v293
    %v309 = vadd.f32 %v286, %v293
    %v310 = vadd.f32 %v287, %v293
    %v311 = vpack.c.bf16 %v296, %v295
    %v312 = vpack.c.bf16 %v298, %v297
    %v313 = vpack.c.bf16 %v300, %v299
    %v314 = vpack.c.bf16 %v302, %v301
    %v315 = vpack.c.bf16 %v304, %v303
    %v316 = vpack.c.bf16 %v306, %v305
    %v317 = vpack.c.bf16 %v308, %v307
    %v318 = vpack.c.bf16 %v310, %v309
    %v327 = vunpack.c.l.b16 %v311
    %v328 = vunpack.c.h.b16 %v311
    %v329 = vunpack.c.l.b16 %v312
    %v330 = vunpack.c.h.b16 %v312
    %v331 = vunpack.c.l.b16 %v313
    %v332 = vunpack.c.h.b16 %v313
    %v333 = vunpack.c.l.b16 %v314
    %v334 = vunpack.c.h.b16 %v314
    %v335 = vunpack.c.l.b16 %v315
    %v336 = vunpack.c.h.b16 %v315
    %v337 = vunpack.c.l.b16 %v316
    %v338 = vunpack.c.h.b16 %v316
    %v339 = vunpack.c.l.b16 %v317
    %v340 = vunpack.c.h.b16 %v317
    %v341 = vunpack.c.l.b16 %v318
    %v342 = vunpack.c.h.b16 %v318
    %v343 = vpack.c.b16 %v327, %v327
    %v344 = vpack.c.b16 %v328, %v328
    %v345 = vpack.c.b16 %v329, %v329
    %v346 = vpack.c.b16 %v330, %v330
    %v347 = vpack.c.b16 %v331, %v331
    %v348 = vpack.c.b16 %v332, %v332
    %v349 = vpack.c.b16 %v333, %v333
    %v350 = vpack.c.b16 %v334, %v334
    %v351 = vpack.c.b16 %v335, %v335
    %v352 = vpack.c.b16 %v336, %v336
    %v353 = vpack.c.b16 %v337, %v337
    %v354 = vpack.c.b16 %v338, %v338
    %v355 = vpack.c.b16 %v339, %v339
    %v356 = vpack.c.b16 %v340, %v340
    %v357 = vpack.c.b16 %v341, %v341
    %v358 = vpack.c.b16 %v342, %v342
    %375 = vst [vmem:[%s3] sm:$0xf] %v343
    %376 = vst [vmem:[%s3 + $0x4] sm:$0xf] %v344
    %377 = vst [vmem:[%s3 + $0x8] sm:$0xf] %v345
    %378 = vst [vmem:[%s3 + $0xc] sm:$0xf] %v346
    %379 = vst [vmem:[%s3 + $0x10] sm:$0xf] %v347
    %380 = vst [vmem:[%s3 + $0x14] sm:$0xf] %v348
    %381 = vst [vmem:[%s3 + $0x18] sm:$0xf] %v349
    %382 = vst [vmem:[%s3 + $0x1c] sm:$0xf] %v350
    %383 = vst [vmem:[%s3 + $0x20] sm:$0xf] %v351
    %384 = vst [vmem:[%s3 + $0x24] sm:$0xf] %v352
    %385 = vst [vmem:[%s3 + $0x28] sm:$0xf] %v353
    %386 = vst [vmem:[%s3 + $0x2c] sm:$0xf] %v354
    %387 = vst [vmem:[%s3 + $0x30] sm:$0xf] %v355
    %388 = vst [vmem:[%s3 + $0x34] sm:$0xf] %v356
    %389 = vst [vmem:[%s3 + $0x38] sm:$0xf] %v357
    %390 = vst [vmem:[%s3 + $0x3c] sm:$0xf] %v358
  $region21: #{vqvae_forward.23} parent=0 // pred_fallthru
    _
  // Predicated region
  $region22: #{vqvae_forward.23} parent=0 // pred_check
    _
  $region23: #{vqvae_forward.23} parent=0 // pred_check_branch
    %392 = sbr.rel (0) target = $region25
  $region24: #{vqvae_forward.23} parent=0 // pred_region
    _
  $region25: #{vqvae_forward.23} parent=0 // pred_fallthru
    _
  // Predicated region
  $region26: #{vqvae_forward.23} parent=0 // pred_check
    _
  $region27: #{vqvae_forward.23} parent=0 // pred_check_branch
    %394 = sbr.rel (0) target = $region29
  $region28: #{vqvae_forward.23} parent=0 // pred_region
    _
  $region29: #{vqvae_forward.23} parent=0 // pred_fallthru
    _

// kernel: vqvae_forward.24
$region0: #{vqvae_forward.24}
  #allocation0 [shape = 'u32[]', space=smem, size = 0x4, offset = 0x4, fixed_abs, tag = 'smem constant byte address 0x4 - core index']
  #allocation1 [shape = 'u32[144,128]{1,0:T(1,128)}', space=vmem, size = 0x12000, scoped, tag = 'internal scratch']
  %s0 = inlined_call_operand.vmem [shape: bf16[512,128], index: 0, kind: input, shape index: {}]
  %s1 = inlined_call_operand.vmem [shape: f32[128,128], index: 1, kind: input, shape index: {}]
  %s2 = inlined_call_operand.vmem [shape: f32[1,128], index: 2, kind: input, shape index: {}]
  %s3 = inlined_call_operand.vmem [shape: bf16[512,128], index: 3, kind: output, shape index: {0}]
  %s4 = inlined_call_operand.vmem [shape: f32[1,1,128], index: 4, kind: output, shape index: {1}]
  %s5 = inlined_call_operand.vmem [shape: f32[1,1,128], index: 5, kind: output, shape index: {2}]
  %6 = xla_tuple %s3, %s4, %s5
  %s7 = sld [smem:[#allocation0]]
  $region38: #{vqvae_forward.24} parent=0
    _
  %s9 = ssub.s32 1, %s7
  %s10 = scalar_select 0, %s9, %s7
  // Predicated region
  $region2: #{vqvae_forward.24} parent=0 // pred_check
    _
  $region3: #{vqvae_forward.24} parent=0 // pred_check_branch
    %12 = sbr.rel (0) target = $region5
  $region4: #{vqvae_forward.24} parent=0 // pred_region
    _
  $region5: #{vqvae_forward.24} parent=0 // pred_fallthru
    _
  // Predicated region
  $region6: #{vqvae_forward.24} parent=0 // pred_check
    _
  $region7: #{vqvae_forward.24} parent=0 // pred_check_branch
    %14 = sbr.rel (0) target = $region9
  $region8: #{vqvae_forward.24} parent=0 // pred_region
    _
  $region9: #{vqvae_forward.24} parent=0 // pred_fallthru
    _
  // Predicated region
  $region10: #{vqvae_forward.24} parent=0 // pred_check
    _
  $region11: #{vqvae_forward.24} parent=0 // pred_check_branch
    %16 = sbr.rel (0) target = $region13
  $region12: #{vqvae_forward.24} parent=0 // pred_region
    _
  $region13: #{vqvae_forward.24} parent=0 // pred_fallthru
    _
  %v18 = vld [vmem:[%s0] sm:$0xf]
  %v19 = vld [vmem:[%s0 + $0x4] sm:$0xf]
  %v20 = vld [vmem:[%s0 + $0x8] sm:$0xf]
  %v21 = vld [vmem:[%s0 + $0xc] sm:$0xf]
  %v22 = vld [vmem:[%s0 + $0x10] sm:$0xf]
  %v23 = vld [vmem:[%s0 + $0x14] sm:$0xf]
  %v24 = vld [vmem:[%s0 + $0x18] sm:$0xf]
  %v25 = vld [vmem:[%s0 + $0x1c] sm:$0xf]
  %v26 = vld [vmem:[%s0 + $0x20] sm:$0xf]
  %v27 = vld [vmem:[%s0 + $0x24] sm:$0xf]
  %v28 = vld [vmem:[%s0 + $0x28] sm:$0xf]
  %v29 = vld [vmem:[%s0 + $0x2c] sm:$0xf]
  %v30 = vld [vmem:[%s0 + $0x30] sm:$0xf]
  %v31 = vld [vmem:[%s0 + $0x34] sm:$0xf]
  %v32 = vld [vmem:[%s0 + $0x38] sm:$0xf]
  %v33 = vld [vmem:[%s0 + $0x3c] sm:$0xf]
  %v34 = vld [vmem:[%s0 + $0x40] sm:$0xf]
  %v35 = vld [vmem:[%s0 + $0x44] sm:$0xf]
  %v36 = vld [vmem:[%s0 + $0x48] sm:$0xf]
  %v37 = vld [vmem:[%s0 + $0x4c] sm:$0xf]
  %v38 = vld [vmem:[%s0 + $0x50] sm:$0xf]
  %v39 = vld [vmem:[%s0 + $0x54] sm:$0xf]
  %v40 = vld [vmem:[%s0 + $0x58] sm:$0xf]
  %v41 = vld [vmem:[%s0 + $0x5c] sm:$0xf]
  %v42 = vld [vmem:[%s0 + $0x60] sm:$0xf]
  %v43 = vld [vmem:[%s0 + $0x64] sm:$0xf]
  %v44 = vld [vmem:[%s0 + $0x68] sm:$0xf]
  %v45 = vld [vmem:[%s0 + $0x6c] sm:$0xf]
  %v46 = vld [vmem:[%s0 + $0x70] sm:$0xf]
  %v47 = vld [vmem:[%s0 + $0x74] sm:$0xf]
  %v48 = vld [vmem:[%s0 + $0x78] sm:$0xf]
  %v49 = vld [vmem:[%s0 + $0x7c] sm:$0xf]
  %v50 = vld [vmem:[%s0 + $0x80] sm:$0xf]
  %v51 = vld [vmem:[%s0 + $0x84] sm:$0xf]
  %v52 = vld [vmem:[%s0 + $0x88] sm:$0xf]
  %v53 = vld [vmem:[%s0 + $0x8c] sm:$0xf]
  %v54 = vld [vmem:[%s0 + $0x90] sm:$0xf]
  %v55 = vld [vmem:[%s0 + $0x94] sm:$0xf]
  %v56 = vld [vmem:[%s0 + $0x98] sm:$0xf]
  %v57 = vld [vmem:[%s0 + $0x9c] sm:$0xf]
  %v58 = vld [vmem:[%s0 + $0xa0] sm:$0xf]
  %v59 = vld [vmem:[%s0 + $0xa4] sm:$0xf]
  %v60 = vld [vmem:[%s0 + $0xa8] sm:$0xf]
  %v61 = vld [vmem:[%s0 + $0xac] sm:$0xf]
  %v62 = vld [vmem:[%s0 + $0xb0] sm:$0xf]
  %v63 = vld [vmem:[%s0 + $0xb4] sm:$0xf]
  %v64 = vld [vmem:[%s0 + $0xb8] sm:$0xf]
  %v65 = vld [vmem:[%s0 + $0xbc] sm:$0xf]
  %v66 = vld [vmem:[%s0 + $0xc0] sm:$0xf]
  %v67 = vld [vmem:[%s0 + $0xc4] sm:$0xf]
  %v68 = vld [vmem:[%s0 + $0xc8] sm:$0xf]
  %v69 = vld [vmem:[%s0 + $0xcc] sm:$0xf]
  %v70 = vld [vmem:[%s0 + $0xd0] sm:$0xf]
  %v71 = vld [vmem:[%s0 + $0xd4] sm:$0xf]
  %v72 = vld [vmem:[%s0 + $0xd8] sm:$0xf]
  %v73 = vld [vmem:[%s0 + $0xdc] sm:$0xf]
  %v74 = vld [vmem:[%s0 + $0xe0] sm:$0xf]
  %v75 = vld [vmem:[%s0 + $0xe4] sm:$0xf]
  %v76 = vld [vmem:[%s0 + $0xe8] sm:$0xf]
  %v77 = vld [vmem:[%s0 + $0xec] sm:$0xf]
  %v78 = vld [vmem:[%s0 + $0xf0] sm:$0xf]
  %v79 = vld [vmem:[%s0 + $0xf4] sm:$0xf]
  %v80 = vld [vmem:[%s0 + $0xf8] sm:$0xf]
  %v81 = vld [vmem:[%s0 + $0xfc] sm:$0xf]
  %v82 = vld [vmem:[%s1] sm:$0xff]
  %v83 = vld [vmem:[%s1 + $0x8] sm:$0xff]
  %v84 = vld [vmem:[%s1 + $0x10] sm:$0xff]
  %v85 = vld [vmem:[%s1 + $0x18] sm:$0xff]
  %v86 = vld [vmem:[%s1 + $0x20] sm:$0xff]
  %v87 = vld [vmem:[%s1 + $0x28] sm:$0xff]
  %v88 = vld [vmem:[%s1 + $0x30] sm:$0xff]
  %v89 = vld [vmem:[%s1 + $0x38] sm:$0xff]
  %v90 = vld [vmem:[%s1 + $0x40] sm:$0xff]
  %v91 = vld [vmem:[%s1 + $0x48] sm:$0xff]
  %v92 = vld [vmem:[%s1 + $0x50] sm:$0xff]
  %v93 = vld [vmem:[%s1 + $0x58] sm:$0xff]
  %v94 = vld [vmem:[%s1 + $0x60] sm:$0xff]
  %v95 = vld [vmem:[%s1 + $0x68] sm:$0xff]
  %v96 = vld [vmem:[%s1 + $0x70] sm:$0xff]
  %v97 = vld [vmem:[%s1 + $0x78] sm:$0xff]
  %v98 = vpack.c.bf16 %v83, %v82
  %v99 = vpack.c.bf16 %v85, %v84
  %v100 = vpack.c.bf16 %v87, %v86
  %v101 = vpack.c.bf16 %v89, %v88
  %v102 = vpack.c.bf16 %v91, %v90
  %v103 = vpack.c.bf16 %v93, %v92
  %v104 = vpack.c.bf16 %v95, %v94
  %v105 = vpack.c.bf16 %v97, %v96
  %v170 = vunpack.c.l.b16 %v18
  %v171 = vunpack.c.l.b16 %v19
  %v172 = vunpack.c.l.b16 %v20
  %v173 = vunpack.c.l.b16 %v21
  %v174 = vunpack.c.l.b16 %v22
  %v175 = vunpack.c.l.b16 %v23
  %v176 = vunpack.c.l.b16 %v24
  %v177 = vunpack.c.l.b16 %v25
  %v178 = vunpack.c.l.b16 %v26
  %v179 = vunpack.c.l.b16 %v27
  %v180 = vunpack.c.l.b16 %v28
  %v181 = vunpack.c.l.b16 %v29
  %v182 = vunpack.c.l.b16 %v30
  %v183 = vunpack.c.l.b16 %v31
  %v184 = vunpack.c.l.b16 %v32
  %v185 = vunpack.c.l.b16 %v33
  %v186 = vunpack.c.l.b16 %v34
  %v187 = vunpack.c.l.b16 %v35
  %v188 = vunpack.c.l.b16 %v36
  %v189 = vunpack.c.l.b16 %v37
  %v190 = vunpack.c.l.b16 %v38
  %v191 = vunpack.c.l.b16 %v39
  %v192 = vunpack.c.l.b16 %v40
  %v193 = vunpack.c.l.b16 %v41
  %v194 = vunpack.c.l.b16 %v42
  %v195 = vunpack.c.l.b16 %v43
  %v196 = vunpack.c.l.b16 %v44
  %v197 = vunpack.c.l.b16 %v45
  %v198 = vunpack.c.l.b16 %v46
  %v199 = vunpack.c.l.b16 %v47
  %v200 = vunpack.c.l.b16 %v48
  %v201 = vunpack.c.l.b16 %v49
  %v202 = vunpack.c.l.b16 %v50
  %v203 = vunpack.c.l.b16 %v51
  %v204 = vunpack.c.l.b16 %v52
  %v205 = vunpack.c.l.b16 %v53
  %v206 = vunpack.c.l.b16 %v54
  %v207 = vunpack.c.l.b16 %v55
  %v208 = vunpack.c.l.b16 %v56
  %v209 = vunpack.c.l.b16 %v57
  %v210 = vunpack.c.l.b16 %v58
  %v211 = vunpack.c.l.b16 %v59
  %v212 = vunpack.c.l.b16 %v60
  %v213 = vunpack.c.l.b16 %v61
  %v214 = vunpack.c.l.b16 %v62
  %v215 = vunpack.c.l.b16 %v63
  %v216 = vunpack.c.l.b16 %v64
  %v217 = vunpack.c.l.b16 %v65
  %v218 = vunpack.c.l.b16 %v66
  %v219 = vunpack.c.l.b16 %v67
  %v220 = vunpack.c.l.b16 %v68
  %v221 = vunpack.c.l.b16 %v69
  %v222 = vunpack.c.l.b16 %v70
  %v223 = vunpack.c.l.b16 %v71
  %v224 = vunpack.c.l.b16 %v72
  %v225 = vunpack.c.l.b16 %v73
  %v226 = vunpack.c.l.b16 %v74
  %v227 = vunpack.c.l.b16 %v75
  %v228 = vunpack.c.l.b16 %v76
  %v229 = vunpack.c.l.b16 %v77
  %v230 = vunpack.c.l.b16 %v78
  %v231 = vunpack.c.l.b16 %v79
  %v232 = vunpack.c.l.b16 %v80
  %v233 = vunpack.c.l.b16 %v81
  %v234 = vpack.c.b16 %v171, %v170
  %v235 = vpack.c.b16 %v173, %v172
  %v236 = vpack.c.b16 %v175, %v174
  %v237 = vpack.c.b16 %v177, %v176
  %v238 = vpack.c.b16 %v179, %v178
  %v239 = vpack.c.b16 %v181, %v180
  %v240 = vpack.c.b16 %v183, %v182
  %v241 = vpack.c.b16 %v185, %v184
  %v242 = vpack.c.b16 %v187, %v186
  %v243 = vpack.c.b16 %v189, %v188
  %v244 = vpack.c.b16 %v191, %v190
  %v245 = vpack.c.b16 %v193, %v192
  %v246 = vpack.c.b16 %v195, %v194
  %v247 = vpack.c.b16 %v197, %v196
  %v248 = vpack.c.b16 %v199, %v198
  %v249 = vpack.c.b16 %v201, %v200
  %v250 = vpack.c.b16 %v203, %v202
  %v251 = vpack.c.b16 %v205, %v204
  %v252 = vpack.c.b16 %v207, %v206
  %v253 = vpack.c.b16 %v209, %v208
  %v254 = vpack.c.b16 %v211, %v210
  %v255 = vpack.c.b16 %v213, %v212
  %v256 = vpack.c.b16 %v215, %v214
  %v257 = vpack.c.b16 %v217, %v216
  %v258 = vpack.c.b16 %v219, %v218
  %v259 = vpack.c.b16 %v221, %v220
  %v260 = vpack.c.b16 %v223, %v222
  %v261 = vpack.c.b16 %v225, %v224
  %v262 = vpack.c.b16 %v227, %v226
  %v263 = vpack.c.b16 %v229, %v228
  %v264 = vpack.c.b16 %v231, %v230
  %v265 = vpack.c.b16 %v233, %v232
  %298 = vmatprep.subr.bf16.mxu0 0
  %299 = vmatpush1.bf16.xpose.msra.mxu0 %v105
  %300 = vmatprep.subr.bf16.mxu0 0
  %301 = vmatpush1.bf16.xpose.msra.mxu0 %v104
  %302 = vmatprep.subr.bf16.mxu0 0
  %303 = vmatpush1.bf16.xpose.msra.mxu0 %v103
  %304 = vmatprep.subr.bf16.mxu0 0
  %305 = vmatpush1.bf16.xpose.msra.mxu0 %v102
  %306 = vmatprep.subr.bf16.mxu0 0
  %307 = vmatpush1.bf16.xpose.msra.mxu0 %v101
  %308 = vmatprep.subr.bf16.mxu0 0
  %309 = vmatpush1.bf16.xpose.msra.mxu0 %v100
  %310 = vmatprep.subr.bf16.mxu0 0
  %311 = vmatpush1.bf16.xpose.msra.mxu0 %v99
  %312 = vmatprep.subr.bf16.mxu0 0
  %313 = vmatpush1.bf16.xpose.msra.mxu0 %v98
  %314 = vmatprep.subr.bf16.mxu0 0
  %315 = vmatpush2.bf16.xpose.msra.mxu0 0
  %316 = vmatprep.subr.bf16.mxu0 0
  %317 = vmatpush2.bf16.xpose.msra.mxu0 0
  %318 = vmatprep.subr.bf16.mxu0 0
  %319 = vmatpush2.bf16.xpose.msra.mxu0 0
  %320 = vmatprep.subr.bf16.mxu0 0
  %321 = vmatpush2.bf16.xpose.msra.mxu0 0
  %322 = vmatprep.subr.bf16.mxu0 0
  %323 = vmatpush2.bf16.xpose.msra.mxu0 0
  %324 = vmatprep.subr.bf16.mxu0 0
  %325 = vmatpush2.bf16.xpose.msra.mxu0 0
  %326 = vmatprep.subr.bf16.mxu0 0
  %327 = vmatpush2.bf16.xpose.msra.mxu0 0
  %328 = vmatprep.subr.bf16.mxu0 0
  %329 = vmatpush2.bf16.xpose.msra.mxu0 0
  %330 = vmatprep.mubr.bf16.mxu0 0
  %331 = vmatmul.mubr.bf16.gmra.mxu0 %v234
  %v332 = vpop.f32.mrf.mxu0
  %v333 = vadd.f32 0.0, %v332
  %v334 = vpop.f32.mrf.mxu0
  %v335 = vpop.f32.mrf.mxu0
  %v336 = vadd.f32 0.0, %v335
  %v337 = vpop.f32.mrf.mxu0
  %338 = vmatprep.mubr.bf16.mxu0 0
  %339 = vmatmul.mubr.bf16.gmra.mxu0 %v235
  %v340 = vpop.f32.mrf.mxu0
  %v341 = vadd.f32 0.0, %v340
  %v342 = vpop.f32.mrf.mxu0
  %v343 = vpop.f32.mrf.mxu0
  %v344 = vadd.f32 0.0, %v343
  %v345 = vpop.f32.mrf.mxu0
  %346 = vmatprep.mubr.bf16.mxu0 0
  %347 = vmatmul.mubr.bf16.gmra.mxu0 %v236
  %v348 = vpop.f32.mrf.mxu0
  %v349 = vadd.f32 0.0, %v348
  %v350 = vpop.f32.mrf.mxu0
  %v351 = vpop.f32.mrf.mxu0
  %v352 = vadd.f32 0.0, %v351
  %v353 = vpop.f32.mrf.mxu0
  %354 = vmatprep.mubr.bf16.mxu0 0
  %355 = vmatmul.mubr.bf16.gmra.mxu0 %v237
  %v356 = vpop.f32.mrf.mxu0
  %v357 = vadd.f32 0.0, %v356
  %v358 = vpop.f32.mrf.mxu0
  %v359 = vpop.f32.mrf.mxu0
  %v360 = vadd.f32 0.0, %v359
  %v361 = vpop.f32.mrf.mxu0
  %362 = vmatprep.mubr.bf16.mxu0 0
  %363 = vmatmul.mubr.bf16.gmra.mxu0 %v238
  %v364 = vpop.f32.mrf.mxu0
  %v365 = vadd.f32 0.0, %v364
  %v366 = vpop.f32.mrf.mxu0
  %v367 = vpop.f32.mrf.mxu0
  %v368 = vadd.f32 0.0, %v367
  %v369 = vpop.f32.mrf.mxu0
  %370 = vmatprep.mubr.bf16.mxu0 0
  %371 = vmatmul.mubr.bf16.gmra.mxu0 %v239
  %v372 = vpop.f32.mrf.mxu0
  %v373 = vadd.f32 0.0, %v372
  %v374 = vpop.f32.mrf.mxu0
  %v375 = vpop.f32.mrf.mxu0
  %v376 = vadd.f32 0.0, %v375
  %v377 = vpop.f32.mrf.mxu0
  %378 = vmatprep.mubr.bf16.mxu0 0
  %379 = vmatmul.mubr.bf16.gmra.mxu0 %v240
  %v380 = vpop.f32.mrf.mxu0
  %v381 = vadd.f32 0.0, %v380
  %v382 = vpop.f32.mrf.mxu0
  %v383 = vpop.f32.mrf.mxu0
  %v384 = vadd.f32 0.0, %v383
  %v385 = vpop.f32.mrf.mxu0
  %386 = vmatprep.mubr.bf16.mxu0 0
  %387 = vmatmul.mubr.bf16.gmra.mxu0 %v241
  %v388 = vpop.f32.mrf.mxu0
  %v389 = vadd.f32 0.0, %v388
  %v390 = vpop.f32.mrf.mxu0
  %v391 = vpop.f32.mrf.mxu0
  %v392 = vadd.f32 0.0, %v391
  %v393 = vpop.f32.mrf.mxu0
  %394 = vmatprep.mubr.bf16.mxu0 0
  %395 = vmatmul.mubr.bf16.gmra.mxu0 %v242
  %v396 = vpop.f32.mrf.mxu0
  %v397 = vadd.f32 0.0, %v396
  %v398 = vpop.f32.mrf.mxu0
  %v399 = vpop.f32.mrf.mxu0
  %v400 = vadd.f32 0.0, %v399
  %v401 = vpop.f32.mrf.mxu0
  %402 = vmatprep.mubr.bf16.mxu0 0
  %403 = vmatmul.mubr.bf16.gmra.mxu0 %v243
  %v404 = vpop.f32.mrf.mxu0
  %v405 = vadd.f32 0.0, %v404
  %v406 = vpop.f32.mrf.mxu0
  %v407 = vpop.f32.mrf.mxu0
  %v408 = vadd.f32 0.0, %v407
  %v409 = vpop.f32.mrf.mxu0
  %410 = vmatprep.mubr.bf16.mxu0 0
  %411 = vmatmul.mubr.bf16.gmra.mxu0 %v244
  %v412 = vpop.f32.mrf.mxu0
  %v413 = vadd.f32 0.0, %v412
  %v414 = vpop.f32.mrf.mxu0
  %v415 = vpop.f32.mrf.mxu0
  %v416 = vadd.f32 0.0, %v415
  %v417 = vpop.f32.mrf.mxu0
  %418 = vmatprep.mubr.bf16.mxu0 0
  %419 = vmatmul.mubr.bf16.gmra.mxu0 %v245
  %v420 = vpop.f32.mrf.mxu0
  %v421 = vadd.f32 0.0, %v420
  %v422 = vpop.f32.mrf.mxu0
  %v423 = vpop.f32.mrf.mxu0
  %v424 = vadd.f32 0.0, %v423
  %v425 = vpop.f32.mrf.mxu0
  %426 = vmatprep.mubr.bf16.mxu0 0
  %427 = vmatmul.mubr.bf16.gmra.mxu0 %v246
  %v428 = vpop.f32.mrf.mxu0
  %v429 = vadd.f32 0.0, %v428
  %v430 = vpop.f32.mrf.mxu0
  %v431 = vpop.f32.mrf.mxu0
  %v432 = vadd.f32 0.0, %v431
  %v433 = vpop.f32.mrf.mxu0
  %434 = vmatprep.mubr.bf16.mxu0 0
  %435 = vmatmul.mubr.bf16.gmra.mxu0 %v247
  %v436 = vpop.f32.mrf.mxu0
  %v437 = vadd.f32 0.0, %v436
  %v438 = vpop.f32.mrf.mxu0
  %v439 = vpop.f32.mrf.mxu0
  %v440 = vadd.f32 0.0, %v439
  %v441 = vpop.f32.mrf.mxu0
  %442 = vmatprep.mubr.bf16.mxu0 0
  %443 = vmatmul.mubr.bf16.gmra.mxu0 %v248
  %v444 = vpop.f32.mrf.mxu0
  %v445 = vadd.f32 0.0, %v444
  %v446 = vpop.f32.mrf.mxu0
  %v447 = vpop.f32.mrf.mxu0
  %v448 = vadd.f32 0.0, %v447
  %v449 = vpop.f32.mrf.mxu0
  %450 = vmatprep.mubr.bf16.mxu0 0
  %451 = vmatmul.mubr.bf16.gmra.mxu0 %v249
  %v452 = vpop.f32.mrf.mxu0
  %v453 = vadd.f32 0.0, %v452
  %v454 = vpop.f32.mrf.mxu0
  %v455 = vpop.f32.mrf.mxu0
  %v456 = vadd.f32 0.0, %v455
  %v457 = vpop.f32.mrf.mxu0
  %458 = vmatprep.mubr.bf16.mxu0 0
  %459 = vmatmul.mubr.bf16.gmra.mxu0 %v250
  %v460 = vpop.f32.mrf.mxu0
  %v461 = vadd.f32 0.0, %v460
  %v462 = vpop.f32.mrf.mxu0
  %v463 = vpop.f32.mrf.mxu0
  %v464 = vadd.f32 0.0, %v463
  %v465 = vpop.f32.mrf.mxu0
  %466 = vmatprep.mubr.bf16.mxu0 0
  %467 = vmatmul.mubr.bf16.gmra.mxu0 %v251
  %v468 = vpop.f32.mrf.mxu0
  %v469 = vadd.f32 0.0, %v468
  %v470 = vpop.f32.mrf.mxu0
  %v471 = vpop.f32.mrf.mxu0
  %v472 = vadd.f32 0.0, %v471
  %v473 = vpop.f32.mrf.mxu0
  %474 = vmatprep.mubr.bf16.mxu0 0
  %475 = vmatmul.mubr.bf16.gmra.mxu0 %v252
  %v476 = vpop.f32.mrf.mxu0
  %v477 = vadd.f32 0.0, %v476
  %v478 = vpop.f32.mrf.mxu0
  %v479 = vpop.f32.mrf.mxu0
  %v480 = vadd.f32 0.0, %v479
  %v481 = vpop.f32.mrf.mxu0
  %482 = vmatprep.mubr.bf16.mxu0 0
  %483 = vmatmul.mubr.bf16.gmra.mxu0 %v253
  %v484 = vpop.f32.mrf.mxu0
  %v485 = vadd.f32 0.0, %v484
  %v486 = vpop.f32.mrf.mxu0
  %v487 = vpop.f32.mrf.mxu0
  %v488 = vadd.f32 0.0, %v487
  %v489 = vpop.f32.mrf.mxu0
  %490 = vmatprep.mubr.bf16.mxu0 0
  %491 = vmatmul.mubr.bf16.gmra.mxu0 %v254
  %v492 = vpop.f32.mrf.mxu0
  %v493 = vadd.f32 0.0, %v492
  %v494 = vpop.f32.mrf.mxu0
  %v495 = vpop.f32.mrf.mxu0
  %v496 = vadd.f32 0.0, %v495
  %v497 = vpop.f32.mrf.mxu0
  %498 = vmatprep.mubr.bf16.mxu0 0
  %499 = vmatmul.mubr.bf16.gmra.mxu0 %v255
  %v500 = vpop.f32.mrf.mxu0
  %v501 = vadd.f32 0.0, %v500
  %v502 = vpop.f32.mrf.mxu0
  %v503 = vpop.f32.mrf.mxu0
  %v504 = vadd.f32 0.0, %v503
  %v505 = vpop.f32.mrf.mxu0
  %506 = vmatprep.mubr.bf16.mxu0 0
  %507 = vmatmul.mubr.bf16.gmra.mxu0 %v256
  %v508 = vpop.f32.mrf.mxu0
  %v509 = vadd.f32 0.0, %v508
  %v510 = vpop.f32.mrf.mxu0
  %v511 = vpop.f32.mrf.mxu0
  %v512 = vadd.f32 0.0, %v511
  %v513 = vpop.f32.mrf.mxu0
  %514 = vmatprep.mubr.bf16.mxu0 0
  %515 = vmatmul.mubr.bf16.gmra.mxu0 %v257
  %v516 = vpop.f32.mrf.mxu0
  %v517 = vadd.f32 0.0, %v516
  %v518 = vpop.f32.mrf.mxu0
  %v519 = vpop.f32.mrf.mxu0
  %v520 = vadd.f32 0.0, %v519
  %v521 = vpop.f32.mrf.mxu0
  %522 = vmatprep.mubr.bf16.mxu0 0
  %523 = vmatmul.mubr.bf16.gmra.mxu0 %v258
  %v524 = vpop.f32.mrf.mxu0
  %v525 = vadd.f32 0.0, %v524
  %v526 = vpop.f32.mrf.mxu0
  %v527 = vpop.f32.mrf.mxu0
  %v528 = vadd.f32 0.0, %v527
  %v529 = vpop.f32.mrf.mxu0
  %530 = vmatprep.mubr.bf16.mxu0 0
  %531 = vmatmul.mubr.bf16.gmra.mxu0 %v259
  %v532 = vpop.f32.mrf.mxu0
  %v533 = vadd.f32 0.0, %v532
  %v534 = vpop.f32.mrf.mxu0
  %v535 = vpop.f32.mrf.mxu0
  %v536 = vadd.f32 0.0, %v535
  %v537 = vpop.f32.mrf.mxu0
  %538 = vmatprep.mubr.bf16.mxu0 0
  %539 = vmatmul.mubr.bf16.gmra.mxu0 %v260
  %v540 = vpop.f32.mrf.mxu0
  %v541 = vadd.f32 0.0, %v540
  %v542 = vpop.f32.mrf.mxu0
  %v543 = vpop.f32.mrf.mxu0
  %v544 = vadd.f32 0.0, %v543
  %v545 = vpop.f32.mrf.mxu0
  %546 = vmatprep.mubr.bf16.mxu0 0
  %547 = vmatmul.mubr.bf16.gmra.mxu0 %v261
  %v548 = vpop.f32.mrf.mxu0
  %v549 = vadd.f32 0.0, %v548
  %v550 = vpop.f32.mrf.mxu0
  %v551 = vpop.f32.mrf.mxu0
  %v552 = vadd.f32 0.0, %v551
  %v553 = vpop.f32.mrf.mxu0
  %554 = vmatprep.mubr.bf16.mxu0 0
  %555 = vmatmul.mubr.bf16.gmra.mxu0 %v262
  %v556 = vpop.f32.mrf.mxu0
  %v557 = vadd.f32 0.0, %v556
  %v558 = vpop.f32.mrf.mxu0
  %v559 = vpop.f32.mrf.mxu0
  %v560 = vadd.f32 0.0, %v559
  %v561 = vpop.f32.mrf.mxu0
  %562 = vmatprep.mubr.bf16.mxu0 0
  %563 = vmatmul.mubr.bf16.gmra.mxu0 %v263
  %v564 = vpop.f32.mrf.mxu0
  %v565 = vadd.f32 0.0, %v564
  %v566 = vpop.f32.mrf.mxu0
  %v567 = vpop.f32.mrf.mxu0
  %v568 = vadd.f32 0.0, %v567
  %v569 = vpop.f32.mrf.mxu0
  %570 = vmatprep.mubr.bf16.mxu0 0
  %571 = vmatmul.mubr.bf16.gmra.mxu0 %v264
  %v572 = vpop.f32.mrf.mxu0
  %v573 = vadd.f32 0.0, %v572
  %v574 = vpop.f32.mrf.mxu0
  %v575 = vpop.f32.mrf.mxu0
  %v576 = vadd.f32 0.0, %v575
  %v577 = vpop.f32.mrf.mxu0
  %578 = vmatprep.mubr.bf16.mxu0 0
  %579 = vmatmul.mubr.bf16.gmra.mxu0 %v265
  %v580 = vpop.f32.mrf.mxu0
  %v581 = vadd.f32 0.0, %v580
  %v582 = vpop.f32.mrf.mxu0
  %v583 = vpop.f32.mrf.mxu0
  %v584 = vadd.f32 0.0, %v583
  %v585 = vpop.f32.mrf.mxu0
  %586 = vdwg.mxu0
  %v587 = vld [vmem:[%s2] sm:$0x1]
  %v588 = vmul.f32 %v333, 2.0
  %v589 = vmul.f32 %v336, 2.0
  %v590 = vmul.f32 %v341, 2.0
  %v591 = vmul.f32 %v344, 2.0
  %v592 = vmul.f32 %v349, 2.0
  %v593 = vmul.f32 %v352, 2.0
  %v594 = vmul.f32 %v357, 2.0
  %v595 = vmul.f32 %v360, 2.0
  %v596 = vmul.f32 %v365, 2.0
  %v597 = vmul.f32 %v368, 2.0
  %v598 = vmul.f32 %v373, 2.0
  %v599 = vmul.f32 %v376, 2.0
  %v600 = vmul.f32 %v381, 2.0
  %v601 = vmul.f32 %v384, 2.0
  %v602 = vmul.f32 %v389, 2.0
  %v603 = vmul.f32 %v392, 2.0
  %v604 = vmul.f32 %v397, 2.0
  %v605 = vmul.f32 %v400, 2.0
  %v606 = vmul.f32 %v405, 2.0
  %v607 = vmul.f32 %v408, 2.0
  %v608 = vmul.f32 %v413, 2.0
  %v609 = vmul.f32 %v416, 2.0
  %v610 = vmul.f32 %v421, 2.0
  %v611 = vmul.f32 %v424, 2.0
  %v612 = vmul.f32 %v429, 2.0
  %v613 = vmul.f32 %v432, 2.0
  %v614 = vmul.f32 %v437, 2.0
  %v615 = vmul.f32 %v440, 2.0
  %v616 = vmul.f32 %v445, 2.0
  %v617 = vmul.f32 %v448, 2.0
  %v618 = vmul.f32 %v453, 2.0
  %v619 = vmul.f32 %v456, 2.0
  %v620 = vmul.f32 %v461, 2.0
  %v621 = vmul.f32 %v464, 2.0
  %v622 = vmul.f32 %v469, 2.0
  %v623 = vmul.f32 %v472, 2.0
  %v624 = vmul.f32 %v477, 2.0
  %v625 = vmul.f32 %v480, 2.0
  %v626 = vmul.f32 %v485, 2.0
  %v627 = vmul.f32 %v488, 2.0
  %v628 = vmul.f32 %v493, 2.0
  %v629 = vmul.f32 %v496, 2.0
  %v630 = vmul.f32 %v501, 2.0
  %v631 = vmul.f32 %v504, 2.0
  %v632 = vmul.f32 %v509, 2.0
  %v633 = vmul.f32 %v512, 2.0
  %v634 = vmul.f32 %v517, 2.0
  %v635 = vmul.f32 %v520, 2.0
  %v636 = vmul.f32 %v525, 2.0
  %v637 = vmul.f32 %v528, 2.0
  %v638 = vmul.f32 %v533, 2.0
  %v639 = vmul.f32 %v536, 2.0
  %v640 = vmul.f32 %v541, 2.0
  %v641 = vmul.f32 %v544, 2.0
  %v642 = vmul.f32 %v549, 2.0
  %v643 = vmul.f32 %v552, 2.0
  %v644 = vmul.f32 %v557, 2.0
  %v645 = vmul.f32 %v560, 2.0
  %v646 = vmul.f32 %v565, 2.0
  %v647 = vmul.f32 %v568, 2.0
  %v648 = vmul.f32 %v573, 2.0
  %v649 = vmul.f32 %v576, 2.0
  %v650 = vmul.f32 %v581, 2.0
  %v651 = vmul.f32 %v584, 2.0
  %v653 = vlaneseq
  %v654 = vshrl.u32 %v653, 7
  %v655 = vsub.s32 0, %v654
  %v656 = vrot.slane %v587, %v655
  %v658 = vsub.f32 %v656, %v588
  %v659 = vsub.f32 %v656, %v589
  %v660 = vsub.f32 %v656, %v590
  %v661 = vsub.f32 %v656, %v591
  %v662 = vsub.f32 %v656, %v592
  %v663 = vsub.f32 %v656, %v593
  %v664 = vsub.f32 %v656, %v594
  %v665 = vsub.f32 %v656, %v595
  %v666 = vsub.f32 %v656, %v596
  %v667 = vsub.f32 %v656, %v597
  %v668 = vsub.f32 %v656, %v598
  %v669 = vsub.f32 %v656, %v599
  %v670 = vsub.f32 %v656, %v600
  %v671 = vsub.f32 %v656, %v601
  %v672 = vsub.f32 %v656, %v602
  %v673 = vsub.f32 %v656, %v603
  %v674 = vsub.f32 %v656, %v604
  %v675 = vsub.f32 %v656, %v605
  %v676 = vsub.f32 %v656, %v606
  %v677 = vsub.f32 %v656, %v607
  %v678 = vsub.f32 %v656, %v608
  %v679 = vsub.f32 %v656, %v609
  %v680 = vsub.f32 %v656, %v610
  %v681 = vsub.f32 %v656, %v611
  %v682 = vsub.f32 %v656, %v612
  %v683 = vsub.f32 %v656, %v613
  %v684 = vsub.f32 %v656, %v614
  %v685 = vsub.f32 %v656, %v615
  %v686 = vsub.f32 %v656, %v616
  %v687 = vsub.f32 %v656, %v617
  %v688 = vsub.f32 %v656, %v618
  %v689 = vsub.f32 %v656, %v619
  %v690 = vsub.f32 %v656, %v620
  %v691 = vsub.f32 %v656, %v621
  %v692 = vsub.f32 %v656, %v622
  %v693 = vsub.f32 %v656, %v623
  %v694 = vsub.f32 %v656, %v624
  %v695 = vsub.f32 %v656, %v625
  %v696 = vsub.f32 %v656, %v626
  %v697 = vsub.f32 %v656, %v627
  %v698 = vsub.f32 %v656, %v628
  %v699 = vsub.f32 %v656, %v629
  %v700 = vsub.f32 %v656, %v630
  %v701 = vsub.f32 %v656, %v631
  %v702 = vsub.f32 %v656, %v632
  %v703 = vsub.f32 %v656, %v633
  %v704 = vsub.f32 %v656, %v634
  %v705 = vsub.f32 %v656, %v635
  %v706 = vsub.f32 %v656, %v636
  %v707 = vsub.f32 %v656, %v637
  %v708 = vsub.f32 %v656, %v638
  %v709 = vsub.f32 %v656, %v639
  %v710 = vsub.f32 %v656, %v640
  %v711 = vsub.f32 %v656, %v641
  %v712 = vsub.f32 %v656, %v642
  %v713 = vsub.f32 %v656, %v643
  %v714 = vsub.f32 %v656, %v644
  %v715 = vsub.f32 %v656, %v645
  %v716 = vsub.f32 %v656, %v646
  %v717 = vsub.f32 %v656, %v647
  %v718 = vsub.f32 %v656, %v648
  %v719 = vsub.f32 %v656, %v649
  %v720 = vsub.f32 %v656, %v650
  %v721 = vsub.f32 %v656, %v651
  %722 = vmin.xlane.f32.xlu0 %v658
  %v723 = vpop.xlane.xlu0 %722
  %724 = vmin.xlane.f32.xlu0 %v659
  %v725 = vpop.xlane.xlu0 %724
  %726 = vmin.xlane.f32.xlu0 %v660
  %v727 = vpop.xlane.xlu0 %726
  %728 = vmin.xlane.f32.xlu0 %v661
  %v729 = vpop.xlane.xlu0 %728
  %730 = vmin.xlane.f32.xlu0 %v662
  %v731 = vpop.xlane.xlu0 %730
  %732 = vmin.xlane.f32.xlu0 %v663
  %v733 = vpop.xlane.xlu0 %732
  %734 = vmin.xlane.f32.xlu0 %v664
  %v735 = vpop.xlane.xlu0 %734
  %736 = vmin.xlane.f32.xlu0 %v665
  %v737 = vpop.xlane.xlu0 %736
  %738 = vmin.xlane.f32.xlu0 %v666
  %v739 = vpop.xlane.xlu0 %738
  %740 = vmin.xlane.f32.xlu0 %v667
  %v741 = vpop.xlane.xlu0 %740
  %742 = vmin.xlane.f32.xlu0 %v668
  %v743 = vpop.xlane.xlu0 %742
  %744 = vmin.xlane.f32.xlu0 %v669
  %v745 = vpop.xlane.xlu0 %744
  %746 = vmin.xlane.f32.xlu0 %v670
  %v747 = vpop.xlane.xlu0 %746
  %748 = vmin.xlane.f32.xlu0 %v671
  %v749 = vpop.xlane.xlu0 %748
  %750 = vmin.xlane.f32.xlu0 %v672
  %v751 = vpop.xlane.xlu0 %750
  %752 = vmin.xlane.f32.xlu0 %v673
  %v753 = vpop.xlane.xlu0 %752
  %754 = vmin.xlane.f32.xlu0 %v674
  %v755 = vpop.xlane.xlu0 %754
  %756 = vmin.xlane.f32.xlu0 %v675
  %v757 = vpop.xlane.xlu0 %756
  %758 = vmin.xlane.f32.xlu0 %v676
  %v759 = vpop.xlane.xlu0 %758
  %760 = vmin.xlane.f32.xlu0 %v677
  %v761 = vpop.xlane.xlu0 %760
  %762 = vmin.xlane.f32.xlu0 %v678
  %v763 = vpop.xlane.xlu0 %762
  %764 = vmin.xlane.f32.xlu0 %v679
  %v765 = vpop.xlane.xlu0 %764
  %766 = vmin.xlane.f32.xlu0 %v680
  %v767 = vpop.xlane.xlu0 %766
  %768 = vmin.xlane.f32.xlu0 %v681
  %v769 = vpop.xlane.xlu0 %768
  %770 = vmin.xlane.f32.xlu0 %v682
  %v771 = vpop.xlane.xlu0 %770
  %772 = vmin.xlane.f32.xlu0 %v683
  %v773 = vpop.xlane.xlu0 %772
  %774 = vmin.xlane.f32.xlu0 %v684
  %v775 = vpop.xlane.xlu0 %774
  %776 = vmin.xlane.f32.xlu0 %v685
  %v777 = vpop.xlane.xlu0 %776
  %778 = vmin.xlane.f32.xlu0 %v686
  %v779 = vpop.xlane.xlu0 %778
  %780 = vmin.xlane.f32.xlu0 %v687
  %v781 = vpop.xlane.xlu0 %780
  %782 = vmin.xlane.f32.xlu0 %v688
  %v783 = vpop.xlane.xlu0 %782
  %784 = vmin.xlane.f32.xlu0 %v689
  %v785 = vpop.xlane.xlu0 %784
  %786 = vmin.xlane.f32.xlu0 %v690
  %v787 = vpop.xlane.xlu0 %786
  %788 = vmin.xlane.f32.xlu0 %v691
  %v789 = vpop.xlane.xlu0 %788
  %790 = vmin.xlane.f32.xlu0 %v692
  %v791 = vpop.xlane.xlu0 %790
  %792 = vmin.xlane.f32.xlu0 %v693
  %v793 = vpop.xlane.xlu0 %792
  %794 = vmin.xlane.f32.xlu0 %v694
  %v795 = vpop.xlane.xlu0 %794
  %796 = vmin.xlane.f32.xlu0 %v695
  %v797 = vpop.xlane.xlu0 %796
  %798 = vmin.xlane.f32.xlu0 %v696
  %v799 = vpop.xlane.xlu0 %798
  %800 = vmin.xlane.f32.xlu0 %v697
  %v801 = vpop.xlane.xlu0 %800
  %802 = vmin.xlane.f32.xlu0 %v698
  %v803 = vpop.xlane.xlu0 %802
  %804 = vmin.xlane.f32.xlu0 %v699
  %v805 = vpop.xlane.xlu0 %804
  %806 = vmin.xlane.f32.xlu0 %v700
  %v807 = vpop.xlane.xlu0 %806
  %808 = vmin.xlane.f32.xlu0 %v701
  %v809 = vpop.xlane.xlu0 %808
  %810 = vmin.xlane.f32.xlu0 %v702
  %v811 = vpop.xlane.xlu0 %810
  %812 = vmin.xlane.f32.xlu0 %v703
  %v813 = vpop.xlane.xlu0 %812
  %814 = vmin.xlane.f32.xlu0 %v704
  %v815 = vpop.xlane.xlu0 %814
  %816 = vmin.xlane.f32.xlu0 %v705
  %v817 = vpop.xlane.xlu0 %816
  %818 = vmin.xlane.f32.xlu0 %v706
  %v819 = vpop.xlane.xlu0 %818
  %820 = vmin.xlane.f32.xlu0 %v707
  %v821 = vpop.xlane.xlu0 %820
  %822 = vmin.xlane.f32.xlu0 %v708
  %v823 = vpop.xlane.xlu0 %822
  %824 = vmin.xlane.f32.xlu0 %v709
  %v825 = vpop.xlane.xlu0 %824
  %826 = vmin.xlane.f32.xlu0 %v710
  %v827 = vpop.xlane.xlu0 %826
  %828 = vmin.xlane.f32.xlu0 %v711
  %v829 = vpop.xlane.xlu0 %828
  %830 = vmin.xlane.f32.xlu0 %v712
  %v831 = vpop.xlane.xlu0 %830
  %832 = vmin.xlane.f32.xlu0 %v713
  %v833 = vpop.xlane.xlu0 %832
  %834 = vmin.xlane.f32.xlu0 %v714
  %v835 = vpop.xlane.xlu0 %834
  %836 = vmin.xlane.f32.xlu0 %v715
  %v837 = vpop.xlane.xlu0 %836
  %838 = vmin.xlane.f32.xlu0 %v716
  %v839 = vpop.xlane.xlu0 %838
  %840 = vmin.xlane.f32.xlu0 %v717
  %v841 = vpop.xlane.xlu0 %840
  %842 = vmin.xlane.f32.xlu0 %v718
  %v843 = vpop.xlane.xlu0 %842
  %844 = vmin.xlane.f32.xlu0 %v719
  %v845 = vpop.xlane.xlu0 %844
  %846 = vmin.xlane.f32.xlu0 %v720
  %v847 = vpop.xlane.xlu0 %846
  %848 = vmin.xlane.f32.xlu0 %v721
  %v849 = vpop.xlane.xlu0 %848
  %v850 = vlaneseq
  %v851 = vand.u32 %v850, 127
  %vm852 = vcmp.le.f32.partialorder %v658, %v723
  %vm853 = vcmp.le.f32.partialorder %v659, %v725
  %vm854 = vcmp.le.f32.partialorder %v660, %v727
  %vm855 = vcmp.le.f32.partialorder %v661, %v729
  %vm856 = vcmp.le.f32.partialorder %v662, %v731
  %vm857 = vcmp.le.f32.partialorder %v663, %v733
  %vm858 = vcmp.le.f32.partialorder %v664, %v735
  %vm859 = vcmp.le.f32.partialorder %v665, %v737
  %vm860 = vcmp.le.f32.partialorder %v666, %v739
  %vm861 = vcmp.le.f32.partialorder %v667, %v741
  %vm862 = vcmp.le.f32.partialorder %v668, %v743
  %vm863 = vcmp.le.f32.partialorder %v669, %v745
  %vm864 = vcmp.le.f32.partialorder %v670, %v747
  %vm865 = vcmp.le.f32.partialorder %v671, %v749
  %vm866 = vcmp.le.f32.partialorder %v672, %v751
  %vm867 = vcmp.le.f32.partialorder %v673, %v753
  %vm868 = vcmp.le.f32.partialorder %v674, %v755
  %vm869 = vcmp.le.f32.partialorder %v675, %v757
  %vm870 = vcmp.le.f32.partialorder %v676, %v759
  %vm871 = vcmp.le.f32.partialorder %v677, %v761
  %vm872 = vcmp.le.f32.partialorder %v678, %v763
  %vm873 = vcmp.le.f32.partialorder %v679, %v765
  %vm874 = vcmp.le.f32.partialorder %v680, %v767
  %vm875 = vcmp.le.f32.partialorder %v681, %v769
  %vm876 = vcmp.le.f32.partialorder %v682, %v771
  %vm877 = vcmp.le.f32.partialorder %v683, %v773
  %vm878 = vcmp.le.f32.partialorder %v684, %v775
  %vm879 = vcmp.le.f32.partialorder %v685, %v777
  %vm880 = vcmp.le.f32.partialorder %v686, %v779
  %vm881 = vcmp.le.f32.partialorder %v687, %v781
  %vm882 = vcmp.le.f32.partialorder %v688, %v783
  %vm883 = vcmp.le.f32.partialorder %v689, %v785
  %vm884 = vcmp.le.f32.partialorder %v690, %v787
  %vm885 = vcmp.le.f32.partialorder %v691, %v789
  %vm886 = vcmp.le.f32.partialorder %v692, %v791
  %vm887 = vcmp.le.f32.partialorder %v693, %v793
  %vm888 = vcmp.le.f32.partialorder %v694, %v795
  %vm889 = vcmp.le.f32.partialorder %v695, %v797
  %vm890 = vcmp.le.f32.partialorder %v696, %v799
  %vm891 = vcmp.le.f32.partialorder %v697, %v801
  %vm892 = vcmp.le.f32.partialorder %v698, %v803
  %vm893 = vcmp.le.f32.partialorder %v699, %v805
  %vm894 = vcmp.le.f32.partialorder %v700, %v807
  %vm895 = vcmp.le.f32.partialorder %v701, %v809
  %vm896 = vcmp.le.f32.partialorder %v702, %v811
  %vm897 = vcmp.le.f32.partialorder %v703, %v813
  %vm898 = vcmp.le.f32.partialorder %v704, %v815
  %vm899 = vcmp.le.f32.partialorder %v705, %v817
  %vm900 = vcmp.le.f32.partialorder %v706, %v819
  %vm901 = vcmp.le.f32.partialorder %v707, %v821
  %vm902 = vcmp.le.f32.partialorder %v708, %v823
  %vm903 = vcmp.le.f32.partialorder %v709, %v825
  %vm904 = vcmp.le.f32.partialorder %v710, %v827
  %vm905 = vcmp.le.f32.partialorder %v711, %v829
  %vm906 = vcmp.le.f32.partialorder %v712, %v831
  %vm907 = vcmp.le.f32.partialorder %v713, %v833
  %vm908 = vcmp.le.f32.partialorder %v714, %v835
  %vm909 = vcmp.le.f32.partialorder %v715, %v837
  %vm910 = vcmp.le.f32.partialorder %v716, %v839
  %vm911 = vcmp.le.f32.partialorder %v717, %v841
  %vm912 = vcmp.le.f32.partialorder %v718, %v843
  %vm913 = vcmp.le.f32.partialorder %v719, %v845
  %vm914 = vcmp.le.f32.partialorder %v720, %v847
  %vm915 = vcmp.le.f32.partialorder %v721, %v849
  %v916 = vsel %vm852, %v851, 128
  %v917 = vsel %vm853, %v851, 128
  %v918 = vsel %vm854, %v851, 128
  %v919 = vsel %vm855, %v851, 128
  %v920 = vsel %vm856, %v851, 128
  %v921 = vsel %vm857, %v851, 128
  %v922 = vsel %vm858, %v851, 128
  %v923 = vsel %vm859, %v851, 128
  %v924 = vsel %vm860, %v851, 128
  %v925 = vsel %vm861, %v851, 128
  %v926 = vsel %vm862, %v851, 128
  %v927 = vsel %vm863, %v851, 128
  %v928 = vsel %vm864, %v851, 128
  %v929 = vsel %vm865, %v851, 128
  %v930 = vsel %vm866, %v851, 128
  %v931 = vsel %vm867, %v851, 128
  %v932 = vsel %vm868, %v851, 128
  %v933 = vsel %vm869, %v851, 128
  %v934 = vsel %vm870, %v851, 128
  %v935 = vsel %vm871, %v851, 128
  %v936 = vsel %vm872, %v851, 128
  %v937 = vsel %vm873, %v851, 128
  %v938 = vsel %vm874, %v851, 128
  %v939 = vsel %vm875, %v851, 128
  %v940 = vsel %vm876, %v851, 128
  %v941 = vsel %vm877, %v851, 128
  %v942 = vsel %vm878, %v851, 128
  %v943 = vsel %vm879, %v851, 128
  %v944 = vsel %vm880, %v851, 128
  %v945 = vsel %vm881, %v851, 128
  %v946 = vsel %vm882, %v851, 128
  %v947 = vsel %vm883, %v851, 128
  %v948 = vsel %vm884, %v851, 128
  %v949 = vsel %vm885, %v851, 128
  %v950 = vsel %vm886, %v851, 128
  %v951 = vsel %vm887, %v851, 128
  %v952 = vsel %vm888, %v851, 128
  %v953 = vsel %vm889, %v851, 128
  %v954 = vsel %vm890, %v851, 128
  %v955 = vsel %vm891, %v851, 128
  %v956 = vsel %vm892, %v851, 128
  %v957 = vsel %vm893, %v851, 128
  %v958 = vsel %vm894, %v851, 128
  %v959 = vsel %vm895, %v851, 128
  %v960 = vsel %vm896, %v851, 128
  %v961 = vsel %vm897, %v851, 128
  %v962 = vsel %vm898, %v851, 128
  %v963 = vsel %vm899, %v851, 128
  %v964 = vsel %vm900, %v851, 128
  %v965 = vsel %vm901, %v851, 128
  %v966 = vsel %vm902, %v851, 128
  %v967 = vsel %vm903, %v851, 128
  %v968 = vsel %vm904, %v851, 128
  %v969 = vsel %vm905, %v851, 128
  %v970 = vsel %vm906, %v851, 128
  %v971 = vsel %vm907, %v851, 128
  %v972 = vsel %vm908, %v851, 128
  %v973 = vsel %vm909, %v851, 128
  %v974 = vsel %vm910, %v851, 128
  %v975 = vsel %vm911, %v851, 128
  %v976 = vsel %vm912, %v851, 128
  %v977 = vsel %vm913, %v851, 128
  %v978 = vsel %vm914, %v851, 128
  %v979 = vsel %vm915, %v851, 128
  %v980 = vand.u32 %v916, 65535
  %v981 = vshra.s32 %v916, 16
  %v982 = vcvt.s32.f32 %v980
  %v983 = vcvt.s32.f32 %v981
  %984 = vmin.xlane.f32.xlu0 %v983
  %v985 = vpop.xlane.xlu0 %984
  %vm986 = vcmp.eq.f32.partialorder %v983, %v985
  %v987 = vsel %vm986, %v982, inf
  %988 = vmin.xlane.f32.xlu0 %v987
  %v989 = vpop.xlane.xlu0 %988
  %v990 = vcvt.f32.s32 %v989
  %v991 = vcvt.f32.s32 %v985
  %v992 = vshll.u32 %v991, 16
  %v993 = vadd.s32 %v992, %v990
  %v994 = vand.u32 %v917, 65535
  %v995 = vshra.s32 %v917, 16
  %v996 = vcvt.s32.f32 %v994
  %v997 = vcvt.s32.f32 %v995
  %998 = vmin.xlane.f32.xlu0 %v997
  %v999 = vpop.xlane.xlu0 %998
  %vm1000 = vcmp.eq.f32.partialorder %v997, %v999
  %v1001 = vsel %vm1000, %v996, inf
  %1002 = vmin.xlane.f32.xlu0 %v1001
  %v1003 = vpop.xlane.xlu0 %1002
  %v1004 = vcvt.f32.s32 %v1003
  %v1005 = vcvt.f32.s32 %v999
  %v1006 = vshll.u32 %v1005, 16
  %v1007 = vadd.s32 %v1006, %v1004
  %v1008 = vand.u32 %v918, 65535
  %v1009 = vshra.s32 %v918, 16
  %v1010 = vcvt.s32.f32 %v1008
  %v1011 = vcvt.s32.f32 %v1009
  %1012 = vmin.xlane.f32.xlu0 %v1011
  %v1013 = vpop.xlane.xlu0 %1012
  %vm1014 = vcmp.eq.f32.partialorder %v1011, %v1013
  %v1015 = vsel %vm1014, %v1010, inf
  %1016 = vmin.xlane.f32.xlu0 %v1015
  %v1017 = vpop.xlane.xlu0 %1016
  %v1018 = vcvt.f32.s32 %v1017
  %v1019 = vcvt.f32.s32 %v1013
  %v1020 = vshll.u32 %v1019, 16
  %v1021 = vadd.s32 %v1020, %v1018
  %v1022 = vand.u32 %v919, 65535
  %v1023 = vshra.s32 %v919, 16
  %v1024 = vcvt.s32.f32 %v1022
  %v1025 = vcvt.s32.f32 %v1023
  %1026 = vmin.xlane.f32.xlu0 %v1025
  %v1027 = vpop.xlane.xlu0 %1026
  %vm1028 = vcmp.eq.f32.partialorder %v1025, %v1027
  %v1029 = vsel %vm1028, %v1024, inf
  %1030 = vmin.xlane.f32.xlu0 %v1029
  %v1031 = vpop.xlane.xlu0 %1030
  %v1032 = vcvt.f32.s32 %v1031
  %v1033 = vcvt.f32.s32 %v1027
  %v1034 = vshll.u32 %v1033, 16
  %v1035 = vadd.s32 %v1034, %v1032
  %v1036 = vand.u32 %v920, 65535
  %v1037 = vshra.s32 %v920, 16
  %v1038 = vcvt.s32.f32 %v1036
  %v1039 = vcvt.s32.f32 %v1037
  %1040 = vmin.xlane.f32.xlu0 %v1039
  %v1041 = vpop.xlane.xlu0 %1040
  %vm1042 = vcmp.eq.f32.partialorder %v1039, %v1041
  %v1043 = vsel %vm1042, %v1038, inf
  %1044 = vmin.xlane.f32.xlu0 %v1043
  %v1045 = vpop.xlane.xlu0 %1044
  %v1046 = vcvt.f32.s32 %v1045
  %v1047 = vcvt.f32.s32 %v1041
  %v1048 = vshll.u32 %v1047, 16
  %v1049 = vadd.s32 %v1048, %v1046
  %v1050 = vand.u32 %v921, 65535
  %v1051 = vshra.s32 %v921, 16
  %v1052 = vcvt.s32.f32 %v1050
  %v1053 = vcvt.s32.f32 %v1051
  %1054 = vmin.xlane.f32.xlu0 %v1053
  %v1055 = vpop.xlane.xlu0 %1054
  %vm1056 = vcmp.eq.f32.partialorder %v1053, %v1055
  %v1057 = vsel %vm1056, %v1052, inf
  %1058 = vmin.xlane.f32.xlu0 %v1057
  %v1059 = vpop.xlane.xlu0 %1058
  %v1060 = vcvt.f32.s32 %v1059
  %v1061 = vcvt.f32.s32 %v1055
  %v1062 = vshll.u32 %v1061, 16
  %v1063 = vadd.s32 %v1062, %v1060
  %v1064 = vand.u32 %v922, 65535
  %v1065 = vshra.s32 %v922, 16
  %v1066 = vcvt.s32.f32 %v1064
  %v1067 = vcvt.s32.f32 %v1065
  %1068 = vmin.xlane.f32.xlu0 %v1067
  %v1069 = vpop.xlane.xlu0 %1068
  %vm1070 = vcmp.eq.f32.partialorder %v1067, %v1069
  %v1071 = vsel %vm1070, %v1066, inf
  %1072 = vmin.xlane.f32.xlu0 %v1071
  %v1073 = vpop.xlane.xlu0 %1072
  %v1074 = vcvt.f32.s32 %v1073
  %v1075 = vcvt.f32.s32 %v1069
  %v1076 = vshll.u32 %v1075, 16
  %v1077 = vadd.s32 %v1076, %v1074
  %v1078 = vand.u32 %v923, 65535
  %v1079 = vshra.s32 %v923, 16
  %v1080 = vcvt.s32.f32 %v1078
  %v1081 = vcvt.s32.f32 %v1079
  %1082 = vmin.xlane.f32.xlu0 %v1081
  %v1083 = vpop.xlane.xlu0 %1082
  %vm1084 = vcmp.eq.f32.partialorder %v1081, %v1083
  %v1085 = vsel %vm1084, %v1080, inf
  %1086 = vmin.xlane.f32.xlu0 %v1085
  %v1087 = vpop.xlane.xlu0 %1086
  %v1088 = vcvt.f32.s32 %v1087
  %v1089 = vcvt.f32.s32 %v1083
  %v1090 = vshll.u32 %v1089, 16
  %v1091 = vadd.s32 %v1090, %v1088
  %v1092 = vand.u32 %v924, 65535
  %v1093 = vshra.s32 %v924, 16
  %v1094 = vcvt.s32.f32 %v1092
  %v1095 = vcvt.s32.f32 %v1093
  %1096 = vmin.xlane.f32.xlu0 %v1095
  %v1097 = vpop.xlane.xlu0 %1096
  %vm1098 = vcmp.eq.f32.partialorder %v1095, %v1097
  %v1099 = vsel %vm1098, %v1094, inf
  %1100 = vmin.xlane.f32.xlu0 %v1099
  %v1101 = vpop.xlane.xlu0 %1100
  %v1102 = vcvt.f32.s32 %v1101
  %v1103 = vcvt.f32.s32 %v1097
  %v1104 = vshll.u32 %v1103, 16
  %v1105 = vadd.s32 %v1104, %v1102
  %v1106 = vand.u32 %v925, 65535
  %v1107 = vshra.s32 %v925, 16
  %v1108 = vcvt.s32.f32 %v1106
  %v1109 = vcvt.s32.f32 %v1107
  %1110 = vmin.xlane.f32.xlu0 %v1109
  %v1111 = vpop.xlane.xlu0 %1110
  %vm1112 = vcmp.eq.f32.partialorder %v1109, %v1111
  %v1113 = vsel %vm1112, %v1108, inf
  %1114 = vmin.xlane.f32.xlu0 %v1113
  %v1115 = vpop.xlane.xlu0 %1114
  %v1116 = vcvt.f32.s32 %v1115
  %v1117 = vcvt.f32.s32 %v1111
  %v1118 = vshll.u32 %v1117, 16
  %v1119 = vadd.s32 %v1118, %v1116
  %v1120 = vand.u32 %v926, 65535
  %v1121 = vshra.s32 %v926, 16
  %v1122 = vcvt.s32.f32 %v1120
  %v1123 = vcvt.s32.f32 %v1121
  %1124 = vmin.xlane.f32.xlu0 %v1123
  %v1125 = vpop.xlane.xlu0 %1124
  %vm1126 = vcmp.eq.f32.partialorder %v1123, %v1125
  %v1127 = vsel %vm1126, %v1122, inf
  %1128 = vmin.xlane.f32.xlu0 %v1127
  %v1129 = vpop.xlane.xlu0 %1128
  %v1130 = vcvt.f32.s32 %v1129
  %v1131 = vcvt.f32.s32 %v1125
  %v1132 = vshll.u32 %v1131, 16
  %v1133 = vadd.s32 %v1132, %v1130
  %v1134 = vand.u32 %v927, 65535
  %v1135 = vshra.s32 %v927, 16
  %v1136 = vcvt.s32.f32 %v1134
  %v1137 = vcvt.s32.f32 %v1135
  %1138 = vmin.xlane.f32.xlu0 %v1137
  %v1139 = vpop.xlane.xlu0 %1138
  %vm1140 = vcmp.eq.f32.partialorder %v1137, %v1139
  %v1141 = vsel %vm1140, %v1136, inf
  %1142 = vmin.xlane.f32.xlu0 %v1141
  %v1143 = vpop.xlane.xlu0 %1142
  %v1144 = vcvt.f32.s32 %v1143
  %v1145 = vcvt.f32.s32 %v1139
  %v1146 = vshll.u32 %v1145, 16
  %v1147 = vadd.s32 %v1146, %v1144
  %v1148 = vand.u32 %v928, 65535
  %v1149 = vshra.s32 %v928, 16
  %v1150 = vcvt.s32.f32 %v1148
  %v1151 = vcvt.s32.f32 %v1149
  %1152 = vmin.xlane.f32.xlu0 %v1151
  %v1153 = vpop.xlane.xlu0 %1152
  %vm1154 = vcmp.eq.f32.partialorder %v1151, %v1153
  %v1155 = vsel %vm1154, %v1150, inf
  %1156 = vmin.xlane.f32.xlu0 %v1155
  %v1157 = vpop.xlane.xlu0 %1156
  %v1158 = vcvt.f32.s32 %v1157
  %v1159 = vcvt.f32.s32 %v1153
  %v1160 = vshll.u32 %v1159, 16
  %v1161 = vadd.s32 %v1160, %v1158
  %v1162 = vand.u32 %v929, 65535
  %v1163 = vshra.s32 %v929, 16
  %v1164 = vcvt.s32.f32 %v1162
  %v1165 = vcvt.s32.f32 %v1163
  %1166 = vmin.xlane.f32.xlu0 %v1165
  %v1167 = vpop.xlane.xlu0 %1166
  %vm1168 = vcmp.eq.f32.partialorder %v1165, %v1167
  %v1169 = vsel %vm1168, %v1164, inf
  %1170 = vmin.xlane.f32.xlu0 %v1169
  %v1171 = vpop.xlane.xlu0 %1170
  %v1172 = vcvt.f32.s32 %v1171
  %v1173 = vcvt.f32.s32 %v1167
  %v1174 = vshll.u32 %v1173, 16
  %v1175 = vadd.s32 %v1174, %v1172
  %v1176 = vand.u32 %v930, 65535
  %v1177 = vshra.s32 %v930, 16
  %v1178 = vcvt.s32.f32 %v1176
  %v1179 = vcvt.s32.f32 %v1177
  %1180 = vmin.xlane.f32.xlu0 %v1179
  %v1181 = vpop.xlane.xlu0 %1180
  %vm1182 = vcmp.eq.f32.partialorder %v1179, %v1181
  %v1183 = vsel %vm1182, %v1178, inf
  %1184 = vmin.xlane.f32.xlu0 %v1183
  %v1185 = vpop.xlane.xlu0 %1184
  %v1186 = vcvt.f32.s32 %v1185
  %v1187 = vcvt.f32.s32 %v1181
  %v1188 = vshll.u32 %v1187, 16
  %v1189 = vadd.s32 %v1188, %v1186
  %v1190 = vand.u32 %v931, 65535
  %v1191 = vshra.s32 %v931, 16
  %v1192 = vcvt.s32.f32 %v1190
  %v1193 = vcvt.s32.f32 %v1191
  %1194 = vmin.xlane.f32.xlu0 %v1193
  %v1195 = vpop.xlane.xlu0 %1194
  %vm1196 = vcmp.eq.f32.partialorder %v1193, %v1195
  %v1197 = vsel %vm1196, %v1192, inf
  %1198 = vmin.xlane.f32.xlu0 %v1197
  %v1199 = vpop.xlane.xlu0 %1198
  %v1200 = vcvt.f32.s32 %v1199
  %v1201 = vcvt.f32.s32 %v1195
  %v1202 = vshll.u32 %v1201, 16
  %v1203 = vadd.s32 %v1202, %v1200
  %v1204 = vand.u32 %v932, 65535
  %v1205 = vshra.s32 %v932, 16
  %v1206 = vcvt.s32.f32 %v1204
  %v1207 = vcvt.s32.f32 %v1205
  %1208 = vmin.xlane.f32.xlu0 %v1207
  %v1209 = vpop.xlane.xlu0 %1208
  %vm1210 = vcmp.eq.f32.partialorder %v1207, %v1209
  %v1211 = vsel %vm1210, %v1206, inf
  %1212 = vmin.xlane.f32.xlu0 %v1211
  %v1213 = vpop.xlane.xlu0 %1212
  %v1214 = vcvt.f32.s32 %v1213
  %v1215 = vcvt.f32.s32 %v1209
  %v1216 = vshll.u32 %v1215, 16
  %v1217 = vadd.s32 %v1216, %v1214
  %v1218 = vand.u32 %v933, 65535
  %v1219 = vshra.s32 %v933, 16
  %v1220 = vcvt.s32.f32 %v1218
  %v1221 = vcvt.s32.f32 %v1219
  %1222 = vmin.xlane.f32.xlu0 %v1221
  %v1223 = vpop.xlane.xlu0 %1222
  %vm1224 = vcmp.eq.f32.partialorder %v1221, %v1223
  %v1225 = vsel %vm1224, %v1220, inf
  %1226 = vmin.xlane.f32.xlu0 %v1225
  %v1227 = vpop.xlane.xlu0 %1226
  %v1228 = vcvt.f32.s32 %v1227
  %v1229 = vcvt.f32.s32 %v1223
  %v1230 = vshll.u32 %v1229, 16
  %v1231 = vadd.s32 %v1230, %v1228
  %v1232 = vand.u32 %v934, 65535
  %v1233 = vshra.s32 %v934, 16
  %v1234 = vcvt.s32.f32 %v1232
  %v1235 = vcvt.s32.f32 %v1233
  %1236 = vmin.xlane.f32.xlu0 %v1235
  %v1237 = vpop.xlane.xlu0 %1236
  %vm1238 = vcmp.eq.f32.partialorder %v1235, %v1237
  %v1239 = vsel %vm1238, %v1234, inf
  %1240 = vmin.xlane.f32.xlu0 %v1239
  %v1241 = vpop.xlane.xlu0 %1240
  %v1242 = vcvt.f32.s32 %v1241
  %v1243 = vcvt.f32.s32 %v1237
  %v1244 = vshll.u32 %v1243, 16
  %v1245 = vadd.s32 %v1244, %v1242
  %v1246 = vand.u32 %v935, 65535
  %v1247 = vshra.s32 %v935, 16
  %v1248 = vcvt.s32.f32 %v1246
  %v1249 = vcvt.s32.f32 %v1247
  %1250 = vmin.xlane.f32.xlu0 %v1249
  %v1251 = vpop.xlane.xlu0 %1250
  %vm1252 = vcmp.eq.f32.partialorder %v1249, %v1251
  %v1253 = vsel %vm1252, %v1248, inf
  %1254 = vmin.xlane.f32.xlu0 %v1253
  %v1255 = vpop.xlane.xlu0 %1254
  %v1256 = vcvt.f32.s32 %v1255
  %v1257 = vcvt.f32.s32 %v1251
  %v1258 = vshll.u32 %v1257, 16
  %v1259 = vadd.s32 %v1258, %v1256
  %v1260 = vand.u32 %v936, 65535
  %v1261 = vshra.s32 %v936, 16
  %v1262 = vcvt.s32.f32 %v1260
  %v1263 = vcvt.s32.f32 %v1261
  %1264 = vmin.xlane.f32.xlu0 %v1263
  %v1265 = vpop.xlane.xlu0 %1264
  %vm1266 = vcmp.eq.f32.partialorder %v1263, %v1265
  %v1267 = vsel %vm1266, %v1262, inf
  %1268 = vmin.xlane.f32.xlu0 %v1267
  %v1269 = vpop.xlane.xlu0 %1268
  %v1270 = vcvt.f32.s32 %v1269
  %v1271 = vcvt.f32.s32 %v1265
  %v1272 = vshll.u32 %v1271, 16
  %v1273 = vadd.s32 %v1272, %v1270
  %v1274 = vand.u32 %v937, 65535
  %v1275 = vshra.s32 %v937, 16
  %v1276 = vcvt.s32.f32 %v1274
  %v1277 = vcvt.s32.f32 %v1275
  %1278 = vmin.xlane.f32.xlu0 %v1277
  %v1279 = vpop.xlane.xlu0 %1278
  %vm1280 = vcmp.eq.f32.partialorder %v1277, %v1279
  %v1281 = vsel %vm1280, %v1276, inf
  %1282 = vmin.xlane.f32.xlu0 %v1281
  %v1283 = vpop.xlane.xlu0 %1282
  %v1284 = vcvt.f32.s32 %v1283
  %v1285 = vcvt.f32.s32 %v1279
  %v1286 = vshll.u32 %v1285, 16
  %v1287 = vadd.s32 %v1286, %v1284
  %v1288 = vand.u32 %v938, 65535
  %v1289 = vshra.s32 %v938, 16
  %v1290 = vcvt.s32.f32 %v1288
  %v1291 = vcvt.s32.f32 %v1289
  %1292 = vmin.xlane.f32.xlu0 %v1291
  %v1293 = vpop.xlane.xlu0 %1292
  %vm1294 = vcmp.eq.f32.partialorder %v1291, %v1293
  %v1295 = vsel %vm1294, %v1290, inf
  %1296 = vmin.xlane.f32.xlu0 %v1295
  %v1297 = vpop.xlane.xlu0 %1296
  %v1298 = vcvt.f32.s32 %v1297
  %v1299 = vcvt.f32.s32 %v1293
  %v1300 = vshll.u32 %v1299, 16
  %v1301 = vadd.s32 %v1300, %v1298
  %v1302 = vand.u32 %v939, 65535
  %v1303 = vshra.s32 %v939, 16
  %v1304 = vcvt.s32.f32 %v1302
  %v1305 = vcvt.s32.f32 %v1303
  %1306 = vmin.xlane.f32.xlu0 %v1305
  %v1307 = vpop.xlane.xlu0 %1306
  %vm1308 = vcmp.eq.f32.partialorder %v1305, %v1307
  %v1309 = vsel %vm1308, %v1304, inf
  %1310 = vmin.xlane.f32.xlu0 %v1309
  %v1311 = vpop.xlane.xlu0 %1310
  %v1312 = vcvt.f32.s32 %v1311
  %v1313 = vcvt.f32.s32 %v1307
  %v1314 = vshll.u32 %v1313, 16
  %v1315 = vadd.s32 %v1314, %v1312
  %v1316 = vand.u32 %v940, 65535
  %v1317 = vshra.s32 %v940, 16
  %v1318 = vcvt.s32.f32 %v1316
  %v1319 = vcvt.s32.f32 %v1317
  %1320 = vmin.xlane.f32.xlu0 %v1319
  %v1321 = vpop.xlane.xlu0 %1320
  %vm1322 = vcmp.eq.f32.partialorder %v1319, %v1321
  %v1323 = vsel %vm1322, %v1318, inf
  %1324 = vmin.xlane.f32.xlu0 %v1323
  %v1325 = vpop.xlane.xlu0 %1324
  %v1326 = vcvt.f32.s32 %v1325
  %v1327 = vcvt.f32.s32 %v1321
  %v1328 = vshll.u32 %v1327, 16
  %v1329 = vadd.s32 %v1328, %v1326
  %v1330 = vand.u32 %v941, 65535
  %v1331 = vshra.s32 %v941, 16
  %v1332 = vcvt.s32.f32 %v1330
  %v1333 = vcvt.s32.f32 %v1331
  %1334 = vmin.xlane.f32.xlu0 %v1333
  %v1335 = vpop.xlane.xlu0 %1334
  %vm1336 = vcmp.eq.f32.partialorder %v1333, %v1335
  %v1337 = vsel %vm1336, %v1332, inf
  %1338 = vmin.xlane.f32.xlu0 %v1337
  %v1339 = vpop.xlane.xlu0 %1338
  %v1340 = vcvt.f32.s32 %v1339
  %v1341 = vcvt.f32.s32 %v1335
  %v1342 = vshll.u32 %v1341, 16
  %v1343 = vadd.s32 %v1342, %v1340
  %v1344 = vand.u32 %v942, 65535
  %v1345 = vshra.s32 %v942, 16
  %v1346 = vcvt.s32.f32 %v1344
  %v1347 = vcvt.s32.f32 %v1345
  %1348 = vmin.xlane.f32.xlu0 %v1347
  %v1349 = vpop.xlane.xlu0 %1348
  %vm1350 = vcmp.eq.f32.partialorder %v1347, %v1349
  %v1351 = vsel %vm1350, %v1346, inf
  %1352 = vmin.xlane.f32.xlu0 %v1351
  %v1353 = vpop.xlane.xlu0 %1352
  %v1354 = vcvt.f32.s32 %v1353
  %v1355 = vcvt.f32.s32 %v1349
  %v1356 = vshll.u32 %v1355, 16
  %v1357 = vadd.s32 %v1356, %v1354
  %v1358 = vand.u32 %v943, 65535
  %v1359 = vshra.s32 %v943, 16
  %v1360 = vcvt.s32.f32 %v1358
  %v1361 = vcvt.s32.f32 %v1359
  %1362 = vmin.xlane.f32.xlu0 %v1361
  %v1363 = vpop.xlane.xlu0 %1362
  %vm1364 = vcmp.eq.f32.partialorder %v1361, %v1363
  %v1365 = vsel %vm1364, %v1360, inf
  %1366 = vmin.xlane.f32.xlu0 %v1365
  %v1367 = vpop.xlane.xlu0 %1366
  %v1368 = vcvt.f32.s32 %v1367
  %v1369 = vcvt.f32.s32 %v1363
  %v1370 = vshll.u32 %v1369, 16
  %v1371 = vadd.s32 %v1370, %v1368
  %v1372 = vand.u32 %v944, 65535
  %v1373 = vshra.s32 %v944, 16
  %v1374 = vcvt.s32.f32 %v1372
  %v1375 = vcvt.s32.f32 %v1373
  %1376 = vmin.xlane.f32.xlu0 %v1375
  %v1377 = vpop.xlane.xlu0 %1376
  %vm1378 = vcmp.eq.f32.partialorder %v1375, %v1377
  %v1379 = vsel %vm1378, %v1374, inf
  %1380 = vmin.xlane.f32.xlu0 %v1379
  %v1381 = vpop.xlane.xlu0 %1380
  %v1382 = vcvt.f32.s32 %v1381
  %v1383 = vcvt.f32.s32 %v1377
  %v1384 = vshll.u32 %v1383, 16
  %v1385 = vadd.s32 %v1384, %v1382
  %v1386 = vand.u32 %v945, 65535
  %v1387 = vshra.s32 %v945, 16
  %v1388 = vcvt.s32.f32 %v1386
  %v1389 = vcvt.s32.f32 %v1387
  %1390 = vmin.xlane.f32.xlu0 %v1389
  %v1391 = vpop.xlane.xlu0 %1390
  %vm1392 = vcmp.eq.f32.partialorder %v1389, %v1391
  %v1393 = vsel %vm1392, %v1388, inf
  %1394 = vmin.xlane.f32.xlu0 %v1393
  %v1395 = vpop.xlane.xlu0 %1394
  %v1396 = vcvt.f32.s32 %v1395
  %v1397 = vcvt.f32.s32 %v1391
  %v1398 = vshll.u32 %v1397, 16
  %v1399 = vadd.s32 %v1398, %v1396
  %v1400 = vand.u32 %v946, 65535
  %v1401 = vshra.s32 %v946, 16
  %v1402 = vcvt.s32.f32 %v1400
  %v1403 = vcvt.s32.f32 %v1401
  %1404 = vmin.xlane.f32.xlu0 %v1403
  %v1405 = vpop.xlane.xlu0 %1404
  %vm1406 = vcmp.eq.f32.partialorder %v1403, %v1405
  %v1407 = vsel %vm1406, %v1402, inf
  %1408 = vmin.xlane.f32.xlu0 %v1407
  %v1409 = vpop.xlane.xlu0 %1408
  %v1410 = vcvt.f32.s32 %v1409
  %v1411 = vcvt.f32.s32 %v1405
  %v1412 = vshll.u32 %v1411, 16
  %v1413 = vadd.s32 %v1412, %v1410
  %v1414 = vand.u32 %v947, 65535
  %v1415 = vshra.s32 %v947, 16
  %v1416 = vcvt.s32.f32 %v1414
  %v1417 = vcvt.s32.f32 %v1415
  %1418 = vmin.xlane.f32.xlu0 %v1417
  %v1419 = vpop.xlane.xlu0 %1418
  %vm1420 = vcmp.eq.f32.partialorder %v1417, %v1419
  %v1421 = vsel %vm1420, %v1416, inf
  %1422 = vmin.xlane.f32.xlu0 %v1421
  %v1423 = vpop.xlane.xlu0 %1422
  %v1424 = vcvt.f32.s32 %v1423
  %v1425 = vcvt.f32.s32 %v1419
  %v1426 = vshll.u32 %v1425, 16
  %v1427 = vadd.s32 %v1426, %v1424
  %v1428 = vand.u32 %v948, 65535
  %v1429 = vshra.s32 %v948, 16
  %v1430 = vcvt.s32.f32 %v1428
  %v1431 = vcvt.s32.f32 %v1429
  %1432 = vmin.xlane.f32.xlu0 %v1431
  %v1433 = vpop.xlane.xlu0 %1432
  %vm1434 = vcmp.eq.f32.partialorder %v1431, %v1433
  %v1435 = vsel %vm1434, %v1430, inf
  %1436 = vmin.xlane.f32.xlu0 %v1435
  %v1437 = vpop.xlane.xlu0 %1436
  %v1438 = vcvt.f32.s32 %v1437
  %v1439 = vcvt.f32.s32 %v1433
  %v1440 = vshll.u32 %v1439, 16
  %v1441 = vadd.s32 %v1440, %v1438
  %v1442 = vand.u32 %v949, 65535
  %v1443 = vshra.s32 %v949, 16
  %v1444 = vcvt.s32.f32 %v1442
  %v1445 = vcvt.s32.f32 %v1443
  %1446 = vmin.xlane.f32.xlu0 %v1445
  %v1447 = vpop.xlane.xlu0 %1446
  %vm1448 = vcmp.eq.f32.partialorder %v1445, %v1447
  %v1449 = vsel %vm1448, %v1444, inf
  %1450 = vmin.xlane.f32.xlu0 %v1449
  %v1451 = vpop.xlane.xlu0 %1450
  %v1452 = vcvt.f32.s32 %v1451
  %v1453 = vcvt.f32.s32 %v1447
  %v1454 = vshll.u32 %v1453, 16
  %v1455 = vadd.s32 %v1454, %v1452
  %v1456 = vand.u32 %v950, 65535
  %v1457 = vshra.s32 %v950, 16
  %v1458 = vcvt.s32.f32 %v1456
  %v1459 = vcvt.s32.f32 %v1457
  %1460 = vmin.xlane.f32.xlu0 %v1459
  %v1461 = vpop.xlane.xlu0 %1460
  %vm1462 = vcmp.eq.f32.partialorder %v1459, %v1461
  %v1463 = vsel %vm1462, %v1458, inf
  %1464 = vmin.xlane.f32.xlu0 %v1463
  %v1465 = vpop.xlane.xlu0 %1464
  %v1466 = vcvt.f32.s32 %v1465
  %v1467 = vcvt.f32.s32 %v1461
  %v1468 = vshll.u32 %v1467, 16
  %v1469 = vadd.s32 %v1468, %v1466
  %v1470 = vand.u32 %v951, 65535
  %v1471 = vshra.s32 %v951, 16
  %v1472 = vcvt.s32.f32 %v1470
  %v1473 = vcvt.s32.f32 %v1471
  %1474 = vmin.xlane.f32.xlu0 %v1473
  %v1475 = vpop.xlane.xlu0 %1474
  %vm1476 = vcmp.eq.f32.partialorder %v1473, %v1475
  %v1477 = vsel %vm1476, %v1472, inf
  %1478 = vmin.xlane.f32.xlu0 %v1477
  %v1479 = vpop.xlane.xlu0 %1478
  %v1480 = vcvt.f32.s32 %v1479
  %v1481 = vcvt.f32.s32 %v1475
  %v1482 = vshll.u32 %v1481, 16
  %v1483 = vadd.s32 %v1482, %v1480
  %v1484 = vand.u32 %v952, 65535
  %v1485 = vshra.s32 %v952, 16
  %v1486 = vcvt.s32.f32 %v1484
  %v1487 = vcvt.s32.f32 %v1485
  %1488 = vmin.xlane.f32.xlu0 %v1487
  %v1489 = vpop.xlane.xlu0 %1488
  %vm1490 = vcmp.eq.f32.partialorder %v1487, %v1489
  %v1491 = vsel %vm1490, %v1486, inf
  %1492 = vmin.xlane.f32.xlu0 %v1491
  %v1493 = vpop.xlane.xlu0 %1492
  %v1494 = vcvt.f32.s32 %v1493
  %v1495 = vcvt.f32.s32 %v1489
  %v1496 = vshll.u32 %v1495, 16
  %v1497 = vadd.s32 %v1496, %v1494
  %v1498 = vand.u32 %v953, 65535
  %v1499 = vshra.s32 %v953, 16
  %v1500 = vcvt.s32.f32 %v1498
  %v1501 = vcvt.s32.f32 %v1499
  %1502 = vmin.xlane.f32.xlu0 %v1501
  %v1503 = vpop.xlane.xlu0 %1502
  %vm1504 = vcmp.eq.f32.partialorder %v1501, %v1503
  %v1505 = vsel %vm1504, %v1500, inf
  %1506 = vmin.xlane.f32.xlu0 %v1505
  %v1507 = vpop.xlane.xlu0 %1506
  %v1508 = vcvt.f32.s32 %v1507
  %v1509 = vcvt.f32.s32 %v1503
  %v1510 = vshll.u32 %v1509, 16
  %v1511 = vadd.s32 %v1510, %v1508
  %v1512 = vand.u32 %v954, 65535
  %v1513 = vshra.s32 %v954, 16
  %v1514 = vcvt.s32.f32 %v1512
  %v1515 = vcvt.s32.f32 %v1513
  %1516 = vmin.xlane.f32.xlu0 %v1515
  %v1517 = vpop.xlane.xlu0 %1516
  %vm1518 = vcmp.eq.f32.partialorder %v1515, %v1517
  %v1519 = vsel %vm1518, %v1514, inf
  %1520 = vmin.xlane.f32.xlu0 %v1519
  %v1521 = vpop.xlane.xlu0 %1520
  %v1522 = vcvt.f32.s32 %v1521
  %v1523 = vcvt.f32.s32 %v1517
  %v1524 = vshll.u32 %v1523, 16
  %v1525 = vadd.s32 %v1524, %v1522
  %v1526 = vand.u32 %v955, 65535
  %v1527 = vshra.s32 %v955, 16
  %v1528 = vcvt.s32.f32 %v1526
  %v1529 = vcvt.s32.f32 %v1527
  %1530 = vmin.xlane.f32.xlu0 %v1529
  %v1531 = vpop.xlane.xlu0 %1530
  %vm1532 = vcmp.eq.f32.partialorder %v1529, %v1531
  %v1533 = vsel %vm1532, %v1528, inf
  %1534 = vmin.xlane.f32.xlu0 %v1533
  %v1535 = vpop.xlane.xlu0 %1534
  %v1536 = vcvt.f32.s32 %v1535
  %v1537 = vcvt.f32.s32 %v1531
  %v1538 = vshll.u32 %v1537, 16
  %v1539 = vadd.s32 %v1538, %v1536
  %v1540 = vand.u32 %v956, 65535
  %v1541 = vshra.s32 %v956, 16
  %v1542 = vcvt.s32.f32 %v1540
  %v1543 = vcvt.s32.f32 %v1541
  %1544 = vmin.xlane.f32.xlu0 %v1543
  %v1545 = vpop.xlane.xlu0 %1544
  %vm1546 = vcmp.eq.f32.partialorder %v1543, %v1545
  %v1547 = vsel %vm1546, %v1542, inf
  %1548 = vmin.xlane.f32.xlu0 %v1547
  %v1549 = vpop.xlane.xlu0 %1548
  %v1550 = vcvt.f32.s32 %v1549
  %v1551 = vcvt.f32.s32 %v1545
  %v1552 = vshll.u32 %v1551, 16
  %v1553 = vadd.s32 %v1552, %v1550
  %v1554 = vand.u32 %v957, 65535
  %v1555 = vshra.s32 %v957, 16
  %v1556 = vcvt.s32.f32 %v1554
  %v1557 = vcvt.s32.f32 %v1555
  %1558 = vmin.xlane.f32.xlu0 %v1557
  %v1559 = vpop.xlane.xlu0 %1558
  %vm1560 = vcmp.eq.f32.partialorder %v1557, %v1559
  %v1561 = vsel %vm1560, %v1556, inf
  %1562 = vmin.xlane.f32.xlu0 %v1561
  %v1563 = vpop.xlane.xlu0 %1562
  %v1564 = vcvt.f32.s32 %v1563
  %v1565 = vcvt.f32.s32 %v1559
  %v1566 = vshll.u32 %v1565, 16
  %v1567 = vadd.s32 %v1566, %v1564
  %v1568 = vand.u32 %v958, 65535
  %v1569 = vshra.s32 %v958, 16
  %v1570 = vcvt.s32.f32 %v1568
  %v1571 = vcvt.s32.f32 %v1569
  %1572 = vmin.xlane.f32.xlu0 %v1571
  %v1573 = vpop.xlane.xlu0 %1572
  %vm1574 = vcmp.eq.f32.partialorder %v1571, %v1573
  %v1575 = vsel %vm1574, %v1570, inf
  %1576 = vmin.xlane.f32.xlu0 %v1575
  %v1577 = vpop.xlane.xlu0 %1576
  %v1578 = vcvt.f32.s32 %v1577
  %v1579 = vcvt.f32.s32 %v1573
  %v1580 = vshll.u32 %v1579, 16
  %v1581 = vadd.s32 %v1580, %v1578
  %v1582 = vand.u32 %v959, 65535
  %v1583 = vshra.s32 %v959, 16
  %v1584 = vcvt.s32.f32 %v1582
  %v1585 = vcvt.s32.f32 %v1583
  %1586 = vmin.xlane.f32.xlu0 %v1585
  %v1587 = vpop.xlane.xlu0 %1586
  %vm1588 = vcmp.eq.f32.partialorder %v1585, %v1587
  %v1589 = vsel %vm1588, %v1584, inf
  %1590 = vmin.xlane.f32.xlu0 %v1589
  %v1591 = vpop.xlane.xlu0 %1590
  %v1592 = vcvt.f32.s32 %v1591
  %v1593 = vcvt.f32.s32 %v1587
  %v1594 = vshll.u32 %v1593, 16
  %v1595 = vadd.s32 %v1594, %v1592
  %v1596 = vand.u32 %v960, 65535
  %v1597 = vshra.s32 %v960, 16
  %v1598 = vcvt.s32.f32 %v1596
  %v1599 = vcvt.s32.f32 %v1597
  %1600 = vmin.xlane.f32.xlu0 %v1599
  %v1601 = vpop.xlane.xlu0 %1600
  %vm1602 = vcmp.eq.f32.partialorder %v1599, %v1601
  %v1603 = vsel %vm1602, %v1598, inf
  %1604 = vmin.xlane.f32.xlu0 %v1603
  %v1605 = vpop.xlane.xlu0 %1604
  %v1606 = vcvt.f32.s32 %v1605
  %v1607 = vcvt.f32.s32 %v1601
  %v1608 = vshll.u32 %v1607, 16
  %v1609 = vadd.s32 %v1608, %v1606
  %v1610 = vand.u32 %v961, 65535
  %v1611 = vshra.s32 %v961, 16
  %v1612 = vcvt.s32.f32 %v1610
  %v1613 = vcvt.s32.f32 %v1611
  %1614 = vmin.xlane.f32.xlu0 %v1613
  %v1615 = vpop.xlane.xlu0 %1614
  %vm1616 = vcmp.eq.f32.partialorder %v1613, %v1615
  %v1617 = vsel %vm1616, %v1612, inf
  %1618 = vmin.xlane.f32.xlu0 %v1617
  %v1619 = vpop.xlane.xlu0 %1618
  %v1620 = vcvt.f32.s32 %v1619
  %v1621 = vcvt.f32.s32 %v1615
  %v1622 = vshll.u32 %v1621, 16
  %v1623 = vadd.s32 %v1622, %v1620
  %v1624 = vand.u32 %v962, 65535
  %v1625 = vshra.s32 %v962, 16
  %v1626 = vcvt.s32.f32 %v1624
  %v1627 = vcvt.s32.f32 %v1625
  %1628 = vmin.xlane.f32.xlu0 %v1627
  %v1629 = vpop.xlane.xlu0 %1628
  %vm1630 = vcmp.eq.f32.partialorder %v1627, %v1629
  %v1631 = vsel %vm1630, %v1626, inf
  %1632 = vmin.xlane.f32.xlu0 %v1631
  %v1633 = vpop.xlane.xlu0 %1632
  %v1634 = vcvt.f32.s32 %v1633
  %v1635 = vcvt.f32.s32 %v1629
  %v1636 = vshll.u32 %v1635, 16
  %v1637 = vadd.s32 %v1636, %v1634
  %v1638 = vand.u32 %v963, 65535
  %v1639 = vshra.s32 %v963, 16
  %v1640 = vcvt.s32.f32 %v1638
  %v1641 = vcvt.s32.f32 %v1639
  %1642 = vmin.xlane.f32.xlu0 %v1641
  %v1643 = vpop.xlane.xlu0 %1642
  %vm1644 = vcmp.eq.f32.partialorder %v1641, %v1643
  %v1645 = vsel %vm1644, %v1640, inf
  %1646 = vmin.xlane.f32.xlu0 %v1645
  %v1647 = vpop.xlane.xlu0 %1646
  %v1648 = vcvt.f32.s32 %v1647
  %v1649 = vcvt.f32.s32 %v1643
  %v1650 = vshll.u32 %v1649, 16
  %v1651 = vadd.s32 %v1650, %v1648
  %v1652 = vand.u32 %v964, 65535
  %v1653 = vshra.s32 %v964, 16
  %v1654 = vcvt.s32.f32 %v1652
  %v1655 = vcvt.s32.f32 %v1653
  %1656 = vmin.xlane.f32.xlu0 %v1655
  %v1657 = vpop.xlane.xlu0 %1656
  %vm1658 = vcmp.eq.f32.partialorder %v1655, %v1657
  %v1659 = vsel %vm1658, %v1654, inf
  %1660 = vmin.xlane.f32.xlu0 %v1659
  %v1661 = vpop.xlane.xlu0 %1660
  %v1662 = vcvt.f32.s32 %v1661
  %v1663 = vcvt.f32.s32 %v1657
  %v1664 = vshll.u32 %v1663, 16
  %v1665 = vadd.s32 %v1664, %v1662
  %v1666 = vand.u32 %v965, 65535
  %v1667 = vshra.s32 %v965, 16
  %v1668 = vcvt.s32.f32 %v1666
  %v1669 = vcvt.s32.f32 %v1667
  %1670 = vmin.xlane.f32.xlu0 %v1669
  %v1671 = vpop.xlane.xlu0 %1670
  %vm1672 = vcmp.eq.f32.partialorder %v1669, %v1671
  %v1673 = vsel %vm1672, %v1668, inf
  %1674 = vmin.xlane.f32.xlu0 %v1673
  %v1675 = vpop.xlane.xlu0 %1674
  %v1676 = vcvt.f32.s32 %v1675
  %v1677 = vcvt.f32.s32 %v1671
  %v1678 = vshll.u32 %v1677, 16
  %v1679 = vadd.s32 %v1678, %v1676
  %v1680 = vand.u32 %v966, 65535
  %v1681 = vshra.s32 %v966, 16
  %v1682 = vcvt.s32.f32 %v1680
  %v1683 = vcvt.s32.f32 %v1681
  %1684 = vmin.xlane.f32.xlu0 %v1683
  %v1685 = vpop.xlane.xlu0 %1684
  %vm1686 = vcmp.eq.f32.partialorder %v1683, %v1685
  %v1687 = vsel %vm1686, %v1682, inf
  %1688 = vmin.xlane.f32.xlu0 %v1687
  %v1689 = vpop.xlane.xlu0 %1688
  %v1690 = vcvt.f32.s32 %v1689
  %v1691 = vcvt.f32.s32 %v1685
  %v1692 = vshll.u32 %v1691, 16
  %v1693 = vadd.s32 %v1692, %v1690
  %v1694 = vand.u32 %v967, 65535
  %v1695 = vshra.s32 %v967, 16
  %v1696 = vcvt.s32.f32 %v1694
  %v1697 = vcvt.s32.f32 %v1695
  %1698 = vmin.xlane.f32.xlu0 %v1697
  %v1699 = vpop.xlane.xlu0 %1698
  %vm1700 = vcmp.eq.f32.partialorder %v1697, %v1699
  %v1701 = vsel %vm1700, %v1696, inf
  %1702 = vmin.xlane.f32.xlu0 %v1701
  %v1703 = vpop.xlane.xlu0 %1702
  %v1704 = vcvt.f32.s32 %v1703
  %v1705 = vcvt.f32.s32 %v1699
  %v1706 = vshll.u32 %v1705, 16
  %v1707 = vadd.s32 %v1706, %v1704
  %v1708 = vand.u32 %v968, 65535
  %v1709 = vshra.s32 %v968, 16
  %v1710 = vcvt.s32.f32 %v1708
  %v1711 = vcvt.s32.f32 %v1709
  %1712 = vmin.xlane.f32.xlu0 %v1711
  %v1713 = vpop.xlane.xlu0 %1712
  %vm1714 = vcmp.eq.f32.partialorder %v1711, %v1713
  %v1715 = vsel %vm1714, %v1710, inf
  %1716 = vmin.xlane.f32.xlu0 %v1715
  %v1717 = vpop.xlane.xlu0 %1716
  %v1718 = vcvt.f32.s32 %v1717
  %v1719 = vcvt.f32.s32 %v1713
  %v1720 = vshll.u32 %v1719, 16
  %v1721 = vadd.s32 %v1720, %v1718
  %v1722 = vand.u32 %v969, 65535
  %v1723 = vshra.s32 %v969, 16
  %v1724 = vcvt.s32.f32 %v1722
  %v1725 = vcvt.s32.f32 %v1723
  %1726 = vmin.xlane.f32.xlu0 %v1725
  %v1727 = vpop.xlane.xlu0 %1726
  %vm1728 = vcmp.eq.f32.partialorder %v1725, %v1727
  %v1729 = vsel %vm1728, %v1724, inf
  %1730 = vmin.xlane.f32.xlu0 %v1729
  %v1731 = vpop.xlane.xlu0 %1730
  %v1732 = vcvt.f32.s32 %v1731
  %v1733 = vcvt.f32.s32 %v1727
  %v1734 = vshll.u32 %v1733, 16
  %v1735 = vadd.s32 %v1734, %v1732
  %v1736 = vand.u32 %v970, 65535
  %v1737 = vshra.s32 %v970, 16
  %v1738 = vcvt.s32.f32 %v1736
  %v1739 = vcvt.s32.f32 %v1737
  %1740 = vmin.xlane.f32.xlu0 %v1739
  %v1741 = vpop.xlane.xlu0 %1740
  %vm1742 = vcmp.eq.f32.partialorder %v1739, %v1741
  %v1743 = vsel %vm1742, %v1738, inf
  %1744 = vmin.xlane.f32.xlu0 %v1743
  %v1745 = vpop.xlane.xlu0 %1744
  %v1746 = vcvt.f32.s32 %v1745
  %v1747 = vcvt.f32.s32 %v1741
  %v1748 = vshll.u32 %v1747, 16
  %v1749 = vadd.s32 %v1748, %v1746
  %v1750 = vand.u32 %v971, 65535
  %v1751 = vshra.s32 %v971, 16
  %v1752 = vcvt.s32.f32 %v1750
  %v1753 = vcvt.s32.f32 %v1751
  %1754 = vmin.xlane.f32.xlu0 %v1753
  %v1755 = vpop.xlane.xlu0 %1754
  %vm1756 = vcmp.eq.f32.partialorder %v1753, %v1755
  %v1757 = vsel %vm1756, %v1752, inf
  %1758 = vmin.xlane.f32.xlu0 %v1757
  %v1759 = vpop.xlane.xlu0 %1758
  %v1760 = vcvt.f32.s32 %v1759
  %v1761 = vcvt.f32.s32 %v1755
  %v1762 = vshll.u32 %v1761, 16
  %v1763 = vadd.s32 %v1762, %v1760
  %v1764 = vand.u32 %v972, 65535
  %v1765 = vshra.s32 %v972, 16
  %v1766 = vcvt.s32.f32 %v1764
  %v1767 = vcvt.s32.f32 %v1765
  %1768 = vmin.xlane.f32.xlu0 %v1767
  %v1769 = vpop.xlane.xlu0 %1768
  %vm1770 = vcmp.eq.f32.partialorder %v1767, %v1769
  %v1771 = vsel %vm1770, %v1766, inf
  %1772 = vmin.xlane.f32.xlu0 %v1771
  %v1773 = vpop.xlane.xlu0 %1772
  %v1774 = vcvt.f32.s32 %v1773
  %v1775 = vcvt.f32.s32 %v1769
  %v1776 = vshll.u32 %v1775, 16
  %v1777 = vadd.s32 %v1776, %v1774
  %v1778 = vand.u32 %v973, 65535
  %v1779 = vshra.s32 %v973, 16
  %v1780 = vcvt.s32.f32 %v1778
  %v1781 = vcvt.s32.f32 %v1779
  %1782 = vmin.xlane.f32.xlu0 %v1781
  %v1783 = vpop.xlane.xlu0 %1782
  %vm1784 = vcmp.eq.f32.partialorder %v1781, %v1783
  %v1785 = vsel %vm1784, %v1780, inf
  %1786 = vmin.xlane.f32.xlu0 %v1785
  %v1787 = vpop.xlane.xlu0 %1786
  %v1788 = vcvt.f32.s32 %v1787
  %v1789 = vcvt.f32.s32 %v1783
  %v1790 = vshll.u32 %v1789, 16
  %v1791 = vadd.s32 %v1790, %v1788
  %v1792 = vand.u32 %v974, 65535
  %v1793 = vshra.s32 %v974, 16
  %v1794 = vcvt.s32.f32 %v1792
  %v1795 = vcvt.s32.f32 %v1793
  %1796 = vmin.xlane.f32.xlu0 %v1795
  %v1797 = vpop.xlane.xlu0 %1796
  %vm1798 = vcmp.eq.f32.partialorder %v1795, %v1797
  %v1799 = vsel %vm1798, %v1794, inf
  %1800 = vmin.xlane.f32.xlu0 %v1799
  %v1801 = vpop.xlane.xlu0 %1800
  %v1802 = vcvt.f32.s32 %v1801
  %v1803 = vcvt.f32.s32 %v1797
  %v1804 = vshll.u32 %v1803, 16
  %v1805 = vadd.s32 %v1804, %v1802
  %v1806 = vand.u32 %v975, 65535
  %v1807 = vshra.s32 %v975, 16
  %v1808 = vcvt.s32.f32 %v1806
  %v1809 = vcvt.s32.f32 %v1807
  %1810 = vmin.xlane.f32.xlu0 %v1809
  %v1811 = vpop.xlane.xlu0 %1810
  %vm1812 = vcmp.eq.f32.partialorder %v1809, %v1811
  %v1813 = vsel %vm1812, %v1808, inf
  %1814 = vmin.xlane.f32.xlu0 %v1813
  %v1815 = vpop.xlane.xlu0 %1814
  %v1816 = vcvt.f32.s32 %v1815
  %v1817 = vcvt.f32.s32 %v1811
  %v1818 = vshll.u32 %v1817, 16
  %v1819 = vadd.s32 %v1818, %v1816
  %v1820 = vand.u32 %v976, 65535
  %v1821 = vshra.s32 %v976, 16
  %v1822 = vcvt.s32.f32 %v1820
  %v1823 = vcvt.s32.f32 %v1821
  %1824 = vmin.xlane.f32.xlu0 %v1823
  %v1825 = vpop.xlane.xlu0 %1824
  %vm1826 = vcmp.eq.f32.partialorder %v1823, %v1825
  %v1827 = vsel %vm1826, %v1822, inf
  %1828 = vmin.xlane.f32.xlu0 %v1827
  %v1829 = vpop.xlane.xlu0 %1828
  %v1830 = vcvt.f32.s32 %v1829
  %v1831 = vcvt.f32.s32 %v1825
  %v1832 = vshll.u32 %v1831, 16
  %v1833 = vadd.s32 %v1832, %v1830
  %v1834 = vand.u32 %v977, 65535
  %v1835 = vshra.s32 %v977, 16
  %v1836 = vcvt.s32.f32 %v1834
  %v1837 = vcvt.s32.f32 %v1835
  %1838 = vmin.xlane.f32.xlu0 %v1837
  %v1839 = vpop.xlane.xlu0 %1838
  %vm1840 = vcmp.eq.f32.partialorder %v1837, %v1839
  %v1841 = vsel %vm1840, %v1836, inf
  %1842 = vmin.xlane.f32.xlu0 %v1841
  %v1843 = vpop.xlane.xlu0 %1842
  %v1844 = vcvt.f32.s32 %v1843
  %v1845 = vcvt.f32.s32 %v1839
  %v1846 = vshll.u32 %v1845, 16
  %v1847 = vadd.s32 %v1846, %v1844
  %v1848 = vand.u32 %v978, 65535
  %v1849 = vshra.s32 %v978, 16
  %v1850 = vcvt.s32.f32 %v1848
  %v1851 = vcvt.s32.f32 %v1849
  %1852 = vmin.xlane.f32.xlu0 %v1851
  %v1853 = vpop.xlane.xlu0 %1852
  %vm1854 = vcmp.eq.f32.partialorder %v1851, %v1853
  %v1855 = vsel %vm1854, %v1850, inf
  %1856 = vmin.xlane.f32.xlu0 %v1855
  %v1857 = vpop.xlane.xlu0 %1856
  %v1858 = vcvt.f32.s32 %v1857
  %v1859 = vcvt.f32.s32 %v1853
  %v1860 = vshll.u32 %v1859, 16
  %v1861 = vadd.s32 %v1860, %v1858
  %v1862 = vand.u32 %v979, 65535
  %v1863 = vshra.s32 %v979, 16
  %v1864 = vcvt.s32.f32 %v1862
  %v1865 = vcvt.s32.f32 %v1863
  %1866 = vmin.xlane.f32.xlu0 %v1865
  %v1867 = vpop.xlane.xlu0 %1866
  %vm1868 = vcmp.eq.f32.partialorder %v1865, %v1867
  %v1869 = vsel %vm1868, %v1864, inf
  %1870 = vmin.xlane.f32.xlu0 %v1869
  %v1871 = vpop.xlane.xlu0 %1870
  %v1872 = vcvt.f32.s32 %v1871
  %v1873 = vcvt.f32.s32 %v1867
  %v1874 = vshll.u32 %v1873, 16
  %v1875 = vadd.s32 %v1874, %v1872
  %vm1876 = vcmp.eq.s32.totalorder %v851, %v993
  %vm1877 = vcmp.eq.s32.totalorder %v851, %v1007
  %vm1878 = vcmp.eq.s32.totalorder %v851, %v1021
  %vm1879 = vcmp.eq.s32.totalorder %v851, %v1035
  %vm1880 = vcmp.eq.s32.totalorder %v851, %v1049
  %vm1881 = vcmp.eq.s32.totalorder %v851, %v1063
  %vm1882 = vcmp.eq.s32.totalorder %v851, %v1077
  %vm1883 = vcmp.eq.s32.totalorder %v851, %v1091
  %vm1884 = vcmp.eq.s32.totalorder %v851, %v1105
  %vm1885 = vcmp.eq.s32.totalorder %v851, %v1119
  %vm1886 = vcmp.eq.s32.totalorder %v851, %v1133
  %vm1887 = vcmp.eq.s32.totalorder %v851, %v1147
  %vm1888 = vcmp.eq.s32.totalorder %v851, %v1161
  %vm1889 = vcmp.eq.s32.totalorder %v851, %v1175
  %vm1890 = vcmp.eq.s32.totalorder %v851, %v1189
  %vm1891 = vcmp.eq.s32.totalorder %v851, %v1203
  %vm1892 = vcmp.eq.s32.totalorder %v851, %v1217
  %vm1893 = vcmp.eq.s32.totalorder %v851, %v1231
  %vm1894 = vcmp.eq.s32.totalorder %v851, %v1245
  %vm1895 = vcmp.eq.s32.totalorder %v851, %v1259
  %vm1896 = vcmp.eq.s32.totalorder %v851, %v1273
  %vm1897 = vcmp.eq.s32.totalorder %v851, %v1287
  %vm1898 = vcmp.eq.s32.totalorder %v851, %v1301
  %vm1899 = vcmp.eq.s32.totalorder %v851, %v1315
  %vm1900 = vcmp.eq.s32.totalorder %v851, %v1329
  %vm1901 = vcmp.eq.s32.totalorder %v851, %v1343
  %vm1902 = vcmp.eq.s32.totalorder %v851, %v1357
  %vm1903 = vcmp.eq.s32.totalorder %v851, %v1371
  %vm1904 = vcmp.eq.s32.totalorder %v851, %v1385
  %vm1905 = vcmp.eq.s32.totalorder %v851, %v1399
  %vm1906 = vcmp.eq.s32.totalorder %v851, %v1413
  %vm1907 = vcmp.eq.s32.totalorder %v851, %v1427
  %vm1908 = vcmp.eq.s32.totalorder %v851, %v1441
  %vm1909 = vcmp.eq.s32.totalorder %v851, %v1455
  %vm1910 = vcmp.eq.s32.totalorder %v851, %v1469
  %vm1911 = vcmp.eq.s32.totalorder %v851, %v1483
  %vm1912 = vcmp.eq.s32.totalorder %v851, %v1497
  %vm1913 = vcmp.eq.s32.totalorder %v851, %v1511
  %vm1914 = vcmp.eq.s32.totalorder %v851, %v1525
  %vm1915 = vcmp.eq.s32.totalorder %v851, %v1539
  %vm1916 = vcmp.eq.s32.totalorder %v851, %v1553
  %vm1917 = vcmp.eq.s32.totalorder %v851, %v1567
  %vm1918 = vcmp.eq.s32.totalorder %v851, %v1581
  %vm1919 = vcmp.eq.s32.totalorder %v851, %v1595
  %vm1920 = vcmp.eq.s32.totalorder %v851, %v1609
  %vm1921 = vcmp.eq.s32.totalorder %v851, %v1623
  %vm1922 = vcmp.eq.s32.totalorder %v851, %v1637
  %vm1923 = vcmp.eq.s32.totalorder %v851, %v1651
  %vm1924 = vcmp.eq.s32.totalorder %v851, %v1665
  %vm1925 = vcmp.eq.s32.totalorder %v851, %v1679
  %vm1926 = vcmp.eq.s32.totalorder %v851, %v1693
  %vm1927 = vcmp.eq.s32.totalorder %v851, %v1707
  %vm1928 = vcmp.eq.s32.totalorder %v851, %v1721
  %vm1929 = vcmp.eq.s32.totalorder %v851, %v1735
  %vm1930 = vcmp.eq.s32.totalorder %v851, %v1749
  %vm1931 = vcmp.eq.s32.totalorder %v851, %v1763
  %vm1932 = vcmp.eq.s32.totalorder %v851, %v1777
  %vm1933 = vcmp.eq.s32.totalorder %v851, %v1791
  %vm1934 = vcmp.eq.s32.totalorder %v851, %v1805
  %vm1935 = vcmp.eq.s32.totalorder %v851, %v1819
  %vm1936 = vcmp.eq.s32.totalorder %v851, %v1833
  %vm1937 = vcmp.eq.s32.totalorder %v851, %v1847
  %vm1938 = vcmp.eq.s32.totalorder %v851, %v1861
  %vm1939 = vcmp.eq.s32.totalorder %v851, %v1875
  %v1940 = vsel %vm1876, 1, 0
  %v1941 = vsel %vm1877, 1, 0
  %v1942 = vsel %vm1878, 1, 0
  %v1943 = vsel %vm1879, 1, 0
  %v1944 = vsel %vm1880, 1, 0
  %v1945 = vsel %vm1881, 1, 0
  %v1946 = vsel %vm1882, 1, 0
  %v1947 = vsel %vm1883, 1, 0
  %v1948 = vsel %vm1884, 1, 0
  %v1949 = vsel %vm1885, 1, 0
  %v1950 = vsel %vm1886, 1, 0
  %v1951 = vsel %vm1887, 1, 0
  %v1952 = vsel %vm1888, 1, 0
  %v1953 = vsel %vm1889, 1, 0
  %v1954 = vsel %vm1890, 1, 0
  %v1955 = vsel %vm1891, 1, 0
  %v1956 = vsel %vm1892, 1, 0
  %v1957 = vsel %vm1893, 1, 0
  %v1958 = vsel %vm1894, 1, 0
  %v1959 = vsel %vm1895, 1, 0
  %v1960 = vsel %vm1896, 1, 0
  %v1961 = vsel %vm1897, 1, 0
  %v1962 = vsel %vm1898, 1, 0
  %v1963 = vsel %vm1899, 1, 0
  %v1964 = vsel %vm1900, 1, 0
  %v1965 = vsel %vm1901, 1, 0
  %v1966 = vsel %vm1902, 1, 0
  %v1967 = vsel %vm1903, 1, 0
  %v1968 = vsel %vm1904, 1, 0
  %v1969 = vsel %vm1905, 1, 0
  %v1970 = vsel %vm1906, 1, 0
  %v1971 = vsel %vm1907, 1, 0
  %v1972 = vsel %vm1908, 1, 0
  %v1973 = vsel %vm1909, 1, 0
  %v1974 = vsel %vm1910, 1, 0
  %v1975 = vsel %vm1911, 1, 0
  %v1976 = vsel %vm1912, 1, 0
  %v1977 = vsel %vm1913, 1, 0
  %v1978 = vsel %vm1914, 1, 0
  %v1979 = vsel %vm1915, 1, 0
  %v1980 = vsel %vm1916, 1, 0
  %v1981 = vsel %vm1917, 1, 0
  %v1982 = vsel %vm1918, 1, 0
  %v1983 = vsel %vm1919, 1, 0
  %v1984 = vsel %vm1920, 1, 0
  %v1985 = vsel %vm1921, 1, 0
  %v1986 = vsel %vm1922, 1, 0
  %v1987 = vsel %vm1923, 1, 0
  %v1988 = vsel %vm1924, 1, 0
  %v1989 = vsel %vm1925, 1, 0
  %v1990 = vsel %vm1926, 1, 0
  %v1991 = vsel %vm1927, 1, 0
  %v1992 = vsel %vm1928, 1, 0
  %v1993 = vsel %vm1929, 1, 0
  %v1994 = vsel %vm1930, 1, 0
  %v1995 = vsel %vm1931, 1, 0
  %v1996 = vsel %vm1932, 1, 0
  %v1997 = vsel %vm1933, 1, 0
  %v1998 = vsel %vm1934, 1, 0
  %v1999 = vsel %vm1935, 1, 0
  %v2000 = vsel %vm1936, 1, 0
  %v2001 = vsel %vm1937, 1, 0
  %v2002 = vsel %vm1938, 1, 0
  %v2003 = vsel %vm1939, 1, 0
  %v2004 = vcvt.s32.f32 %v1940
  %v2005 = vcvt.s32.f32 %v1941
  %v2006 = vcvt.s32.f32 %v1942
  %v2007 = vcvt.s32.f32 %v1943
  %v2008 = vcvt.s32.f32 %v1944
  %v2009 = vcvt.s32.f32 %v1945
  %v2010 = vcvt.s32.f32 %v1946
  %v2011 = vcvt.s32.f32 %v1947
  %v2012 = vcvt.s32.f32 %v1948
  %v2013 = vcvt.s32.f32 %v1949
  %v2014 = vcvt.s32.f32 %v1950
  %v2015 = vcvt.s32.f32 %v1951
  %v2016 = vcvt.s32.f32 %v1952
  %v2017 = vcvt.s32.f32 %v1953
  %v2018 = vcvt.s32.f32 %v1954
  %v2019 = vcvt.s32.f32 %v1955
  %v2020 = vcvt.s32.f32 %v1956
  %v2021 = vcvt.s32.f32 %v1957
  %v2022 = vcvt.s32.f32 %v1958
  %v2023 = vcvt.s32.f32 %v1959
  %v2024 = vcvt.s32.f32 %v1960
  %v2025 = vcvt.s32.f32 %v1961
  %v2026 = vcvt.s32.f32 %v1962
  %v2027 = vcvt.s32.f32 %v1963
  %v2028 = vcvt.s32.f32 %v1964
  %v2029 = vcvt.s32.f32 %v1965
  %v2030 = vcvt.s32.f32 %v1966
  %v2031 = vcvt.s32.f32 %v1967
  %v2032 = vcvt.s32.f32 %v1968
  %v2033 = vcvt.s32.f32 %v1969
  %v2034 = vcvt.s32.f32 %v1970
  %v2035 = vcvt.s32.f32 %v1971
  %v2036 = vcvt.s32.f32 %v1972
  %v2037 = vcvt.s32.f32 %v1973
  %v2038 = vcvt.s32.f32 %v1974
  %v2039 = vcvt.s32.f32 %v1975
  %v2040 = vcvt.s32.f32 %v1976
  %v2041 = vcvt.s32.f32 %v1977
  %v2042 = vcvt.s32.f32 %v1978
  %v2043 = vcvt.s32.f32 %v1979
  %v2044 = vcvt.s32.f32 %v1980
  %v2045 = vcvt.s32.f32 %v1981
  %v2046 = vcvt.s32.f32 %v1982
  %v2047 = vcvt.s32.f32 %v1983
  %v2048 = vcvt.s32.f32 %v1984
  %v2049 = vcvt.s32.f32 %v1985
  %v2050 = vcvt.s32.f32 %v1986
  %v2051 = vcvt.s32.f32 %v1987
  %v2052 = vcvt.s32.f32 %v1988
  %v2053 = vcvt.s32.f32 %v1989
  %v2054 = vcvt.s32.f32 %v1990
  %v2055 = vcvt.s32.f32 %v1991
  %v2056 = vcvt.s32.f32 %v1992
  %v2057 = vcvt.s32.f32 %v1993
  %v2058 = vcvt.s32.f32 %v1994
  %v2059 = vcvt.s32.f32 %v1995
  %v2060 = vcvt.s32.f32 %v1996
  %v2061 = vcvt.s32.f32 %v1997
  %v2062 = vcvt.s32.f32 %v1998
  %v2063 = vcvt.s32.f32 %v1999
  %v2064 = vcvt.s32.f32 %v2000
  %v2065 = vcvt.s32.f32 %v2001
  %v2066 = vcvt.s32.f32 %v2002
  %v2067 = vcvt.s32.f32 %v2003
  %2068 = vmatprep.subr.mxu0 0.0
  %2069 = vmatpush1.msra.mxu0 %v97
  %2070 = vmatprep.subr.mxu0 0.0
  %2071 = vmatpush1.msra.mxu0 %v96
  %2072 = vmatprep.subr.mxu0 0.0
  %2073 = vmatpush1.msra.mxu0 %v95
  %2074 = vmatprep.subr.mxu0 0.0
  %2075 = vmatpush1.msra.mxu0 %v94
  %2076 = vmatprep.subr.mxu0 0.0
  %2077 = vmatpush1.msra.mxu0 %v93
  %2078 = vmatprep.subr.mxu0 0.0
  %2079 = vmatpush1.msra.mxu0 %v92
  %2080 = vmatprep.subr.mxu0 0.0
  %2081 = vmatpush1.msra.mxu0 %v91
  %2082 = vmatprep.subr.mxu0 0.0
  %2083 = vmatpush1.msra.mxu0 %v90
  %2084 = vmatprep.subr.mxu0 0.0
  %2085 = vmatpush1.msra.mxu0 %v89
  %2086 = vmatprep.subr.mxu0 0.0
  %2087 = vmatpush1.msra.mxu0 %v88
  %2088 = vmatprep.subr.mxu0 0.0
  %2089 = vmatpush1.msra.mxu0 %v87
  %2090 = vmatprep.subr.mxu0 0.0
  %2091 = vmatpush1.msra.mxu0 %v86
  %2092 = vmatprep.subr.mxu0 0.0
  %2093 = vmatpush1.msra.mxu0 %v85
  %2094 = vmatprep.subr.mxu0 0.0
  %2095 = vmatpush1.msra.mxu0 %v84
  %2096 = vmatprep.subr.mxu0 0.0
  %2097 = vmatpush1.msra.mxu0 %v83
  %2098 = vmatprep.subr.mxu0 0.0
  %2099 = vmatpush1.msra.mxu0 %v82
  %2100 = vmatprep.subr.mxu0 0.0
  %2101 = vmatpush2.msra.mxu0 0.0
  %2102 = vmatprep.subr.mxu0 0.0
  %2103 = vmatpush2.msra.mxu0 0.0
  %2104 = vmatprep.subr.mxu0 0.0
  %2105 = vmatpush2.msra.mxu0 0.0
  %2106 = vmatprep.subr.mxu0 0.0
  %2107 = vmatpush2.msra.mxu0 0.0
  %2108 = vmatprep.subr.mxu0 0.0
  %2109 = vmatpush2.msra.mxu0 0.0
  %2110 = vmatprep.subr.mxu0 0.0
  %2111 = vmatpush2.msra.mxu0 0.0
  %2112 = vmatprep.subr.mxu0 0.0
  %2113 = vmatpush2.msra.mxu0 0.0
  %2114 = vmatprep.subr.mxu0 0.0
  %2115 = vmatpush2.msra.mxu0 0.0
  %2116 = vmatprep.subr.mxu0 0.0
  %2117 = vmatpush2.msra.mxu0 0.0
  %2118 = vmatprep.subr.mxu0 0.0
  %2119 = vmatpush2.msra.mxu0 0.0
  %2120 = vmatprep.subr.mxu0 0.0
  %2121 = vmatpush2.msra.mxu0 0.0
  %2122 = vmatprep.subr.mxu0 0.0
  %2123 = vmatpush2.msra.mxu0 0.0
  %2124 = vmatprep.subr.mxu0 0.0
  %2125 = vmatpush2.msra.mxu0 0.0
  %2126 = vmatprep.subr.mxu0 0.0
  %2127 = vmatpush2.msra.mxu0 0.0
  %2128 = vmatprep.subr.mxu0 0.0
  %2129 = vmatpush2.msra.mxu0 0.0
  %2130 = vmatprep.subr.mxu0 0.0
  %2131 = vmatpush2.msra.mxu0 0.0
  %2132 = vmatprep.mubr.f32.mxu0 0.0
  %2133 = vmatmul.mubr.f32.gmra.mxu0 %v2004
  %v2134 = vpop.f32.mrf.mxu0
  %v2135 = vadd.f32 0.0, %v2134
  %v2136 = vpop.f32.mrf.mxu0
  %2137 = vmatprep.mubr.f32.mxu0 0.0
  %2138 = vmatmul.mubr.f32.gmra.mxu0 %v2005
  %v2139 = vpop.f32.mrf.mxu0
  %v2140 = vadd.f32 0.0, %v2139
  %v2141 = vpop.f32.mrf.mxu0
  %2142 = vmatprep.mubr.f32.mxu0 0.0
  %2143 = vmatmul.mubr.f32.gmra.mxu0 %v2006
  %v2144 = vpop.f32.mrf.mxu0
  %v2145 = vadd.f32 0.0, %v2144
  %v2146 = vpop.f32.mrf.mxu0
  %2147 = vmatprep.mubr.f32.mxu0 0.0
  %2148 = vmatmul.mubr.f32.gmra.mxu0 %v2007
  %v2149 = vpop.f32.mrf.mxu0
  %v2150 = vadd.f32 0.0, %v2149
  %v2151 = vpop.f32.mrf.mxu0
  %2152 = vmatprep.mubr.f32.mxu0 0.0
  %2153 = vmatmul.mubr.f32.gmra.mxu0 %v2008
  %v2154 = vpop.f32.mrf.mxu0
  %v2155 = vadd.f32 0.0, %v2154
  %v2156 = vpop.f32.mrf.mxu0
  %2157 = vmatprep.mubr.f32.mxu0 0.0
  %2158 = vmatmul.mubr.f32.gmra.mxu0 %v2009
  %v2159 = vpop.f32.mrf.mxu0
  %v2160 = vadd.f32 0.0, %v2159
  %v2161 = vpop.f32.mrf.mxu0
  %2162 = vmatprep.mubr.f32.mxu0 0.0
  %2163 = vmatmul.mubr.f32.gmra.mxu0 %v2010
  %v2164 = vpop.f32.mrf.mxu0
  %v2165 = vadd.f32 0.0, %v2164
  %v2166 = vpop.f32.mrf.mxu0
  %2167 = vmatprep.mubr.f32.mxu0 0.0
  %2168 = vmatmul.mubr.f32.gmra.mxu0 %v2011
  %v2169 = vpop.f32.mrf.mxu0
  %v2170 = vadd.f32 0.0, %v2169
  %v2171 = vpop.f32.mrf.mxu0
  %2172 = vmatprep.mubr.f32.mxu0 0.0
  %2173 = vmatmul.mubr.f32.gmra.mxu0 %v2012
  %v2174 = vpop.f32.mrf.mxu0
  %v2175 = vadd.f32 0.0, %v2174
  %v2176 = vpop.f32.mrf.mxu0
  %2177 = vmatprep.mubr.f32.mxu0 0.0
  %2178 = vmatmul.mubr.f32.gmra.mxu0 %v2013
  %v2179 = vpop.f32.mrf.mxu0
  %v2180 = vadd.f32 0.0, %v2179
  %v2181 = vpop.f32.mrf.mxu0
  %2182 = vmatprep.mubr.f32.mxu0 0.0
  %2183 = vmatmul.mubr.f32.gmra.mxu0 %v2014
  %v2184 = vpop.f32.mrf.mxu0
  %v2185 = vadd.f32 0.0, %v2184
  %v2186 = vpop.f32.mrf.mxu0
  %2187 = vmatprep.mubr.f32.mxu0 0.0
  %2188 = vmatmul.mubr.f32.gmra.mxu0 %v2015
  %v2189 = vpop.f32.mrf.mxu0
  %v2190 = vadd.f32 0.0, %v2189
  %v2191 = vpop.f32.mrf.mxu0
  %2192 = vmatprep.mubr.f32.mxu0 0.0
  %2193 = vmatmul.mubr.f32.gmra.mxu0 %v2016
  %v2194 = vpop.f32.mrf.mxu0
  %v2195 = vadd.f32 0.0, %v2194
  %v2196 = vpop.f32.mrf.mxu0
  %2197 = vmatprep.mubr.f32.mxu0 0.0
  %2198 = vmatmul.mubr.f32.gmra.mxu0 %v2017
  %v2199 = vpop.f32.mrf.mxu0
  %v2200 = vadd.f32 0.0, %v2199
  %v2201 = vpop.f32.mrf.mxu0
  %2202 = vmatprep.mubr.f32.mxu0 0.0
  %2203 = vmatmul.mubr.f32.gmra.mxu0 %v2018
  %v2204 = vpop.f32.mrf.mxu0
  %v2205 = vadd.f32 0.0, %v2204
  %v2206 = vpop.f32.mrf.mxu0
  %2207 = vmatprep.mubr.f32.mxu0 0.0
  %2208 = vmatmul.mubr.f32.gmra.mxu0 %v2019
  %v2209 = vpop.f32.mrf.mxu0
  %v2210 = vadd.f32 0.0, %v2209
  %v2211 = vpop.f32.mrf.mxu0
  %2212 = vmatprep.mubr.f32.mxu0 0.0
  %2213 = vmatmul.mubr.f32.gmra.mxu0 %v2020
  %v2214 = vpop.f32.mrf.mxu0
  %v2215 = vadd.f32 0.0, %v2214
  %v2216 = vpop.f32.mrf.mxu0
  %2217 = vmatprep.mubr.f32.mxu0 0.0
  %2218 = vmatmul.mubr.f32.gmra.mxu0 %v2021
  %v2219 = vpop.f32.mrf.mxu0
  %v2220 = vadd.f32 0.0, %v2219
  %v2221 = vpop.f32.mrf.mxu0
  %2222 = vmatprep.mubr.f32.mxu0 0.0
  %2223 = vmatmul.mubr.f32.gmra.mxu0 %v2022
  %v2224 = vpop.f32.mrf.mxu0
  %v2225 = vadd.f32 0.0, %v2224
  %v2226 = vpop.f32.mrf.mxu0
  %2227 = vmatprep.mubr.f32.mxu0 0.0
  %2228 = vmatmul.mubr.f32.gmra.mxu0 %v2023
  %v2229 = vpop.f32.mrf.mxu0
  %v2230 = vadd.f32 0.0, %v2229
  %v2231 = vpop.f32.mrf.mxu0
  %2232 = vmatprep.mubr.f32.mxu0 0.0
  %2233 = vmatmul.mubr.f32.gmra.mxu0 %v2024
  %v2234 = vpop.f32.mrf.mxu0
  %v2235 = vadd.f32 0.0, %v2234
  %v2236 = vpop.f32.mrf.mxu0
  %2237 = vmatprep.mubr.f32.mxu0 0.0
  %2238 = vmatmul.mubr.f32.gmra.mxu0 %v2025
  %v2239 = vpop.f32.mrf.mxu0
  %v2240 = vadd.f32 0.0, %v2239
  %v2241 = vpop.f32.mrf.mxu0
  %2242 = vmatprep.mubr.f32.mxu0 0.0
  %2243 = vmatmul.mubr.f32.gmra.mxu0 %v2026
  %v2244 = vpop.f32.mrf.mxu0
  %v2245 = vadd.f32 0.0, %v2244
  %v2246 = vpop.f32.mrf.mxu0
  %2247 = vmatprep.mubr.f32.mxu0 0.0
  %2248 = vmatmul.mubr.f32.gmra.mxu0 %v2027
  %v2249 = vpop.f32.mrf.mxu0
  %v2250 = vadd.f32 0.0, %v2249
  %v2251 = vpop.f32.mrf.mxu0
  %2252 = vmatprep.mubr.f32.mxu0 0.0
  %2253 = vmatmul.mubr.f32.gmra.mxu0 %v2028
  %v2254 = vpop.f32.mrf.mxu0
  %v2255 = vadd.f32 0.0, %v2254
  %v2256 = vpop.f32.mrf.mxu0
  %2257 = vmatprep.mubr.f32.mxu0 0.0
  %2258 = vmatmul.mubr.f32.gmra.mxu0 %v2029
  %v2259 = vpop.f32.mrf.mxu0
  %v2260 = vadd.f32 0.0, %v2259
  %v2261 = vpop.f32.mrf.mxu0
  %2262 = vmatprep.mubr.f32.mxu0 0.0
  %2263 = vmatmul.mubr.f32.gmra.mxu0 %v2030
  %v2264 = vpop.f32.mrf.mxu0
  %v2265 = vadd.f32 0.0, %v2264
  %v2266 = vpop.f32.mrf.mxu0
  %2267 = vmatprep.mubr.f32.mxu0 0.0
  %2268 = vmatmul.mubr.f32.gmra.mxu0 %v2031
  %v2269 = vpop.f32.mrf.mxu0
  %v2270 = vadd.f32 0.0, %v2269
  %v2271 = vpop.f32.mrf.mxu0
  %2272 = vmatprep.mubr.f32.mxu0 0.0
  %2273 = vmatmul.mubr.f32.gmra.mxu0 %v2032
  %v2274 = vpop.f32.mrf.mxu0
  %v2275 = vadd.f32 0.0, %v2274
  %v2276 = vpop.f32.mrf.mxu0
  %2277 = vmatprep.mubr.f32.mxu0 0.0
  %2278 = vmatmul.mubr.f32.gmra.mxu0 %v2033
  %v2279 = vpop.f32.mrf.mxu0
  %v2280 = vadd.f32 0.0, %v2279
  %v2281 = vpop.f32.mrf.mxu0
  %2282 = vmatprep.mubr.f32.mxu0 0.0
  %2283 = vmatmul.mubr.f32.gmra.mxu0 %v2034
  %v2284 = vpop.f32.mrf.mxu0
  %v2285 = vadd.f32 0.0, %v2284
  %v2286 = vpop.f32.mrf.mxu0
  %2287 = vmatprep.mubr.f32.mxu0 0.0
  %2288 = vmatmul.mubr.f32.gmra.mxu0 %v2035
  %v2289 = vpop.f32.mrf.mxu0
  %v2290 = vadd.f32 0.0, %v2289
  %v2291 = vpop.f32.mrf.mxu0
  %2292 = vmatprep.mubr.f32.mxu0 0.0
  %2293 = vmatmul.mubr.f32.gmra.mxu0 %v2036
  %v2294 = vpop.f32.mrf.mxu0
  %v2295 = vadd.f32 0.0, %v2294
  %v2296 = vpop.f32.mrf.mxu0
  %2297 = vmatprep.mubr.f32.mxu0 0.0
  %2298 = vmatmul.mubr.f32.gmra.mxu0 %v2037
  %v2299 = vpop.f32.mrf.mxu0
  %v2300 = vadd.f32 0.0, %v2299
  %v2301 = vpop.f32.mrf.mxu0
  %2302 = vmatprep.mubr.f32.mxu0 0.0
  %2303 = vmatmul.mubr.f32.gmra.mxu0 %v2038
  %v2304 = vpop.f32.mrf.mxu0
  %v2305 = vadd.f32 0.0, %v2304
  %v2306 = vpop.f32.mrf.mxu0
  %2307 = vmatprep.mubr.f32.mxu0 0.0
  %2308 = vmatmul.mubr.f32.gmra.mxu0 %v2039
  %v2309 = vpop.f32.mrf.mxu0
  %v2310 = vadd.f32 0.0, %v2309
  %v2311 = vpop.f32.mrf.mxu0
  %2312 = vmatprep.mubr.f32.mxu0 0.0
  %2313 = vmatmul.mubr.f32.gmra.mxu0 %v2040
  %v2314 = vpop.f32.mrf.mxu0
  %v2315 = vadd.f32 0.0, %v2314
  %v2316 = vpop.f32.mrf.mxu0
  %2317 = vmatprep.mubr.f32.mxu0 0.0
  %2318 = vmatmul.mubr.f32.gmra.mxu0 %v2041
  %v2319 = vpop.f32.mrf.mxu0
  %v2320 = vadd.f32 0.0, %v2319
  %v2321 = vpop.f32.mrf.mxu0
  %2322 = vmatprep.mubr.f32.mxu0 0.0
  %2323 = vmatmul.mubr.f32.gmra.mxu0 %v2042
  %v2324 = vpop.f32.mrf.mxu0
  %v2325 = vadd.f32 0.0, %v2324
  %v2326 = vpop.f32.mrf.mxu0
  %2327 = vmatprep.mubr.f32.mxu0 0.0
  %2328 = vmatmul.mubr.f32.gmra.mxu0 %v2043
  %v2329 = vpop.f32.mrf.mxu0
  %v2330 = vadd.f32 0.0, %v2329
  %v2331 = vpop.f32.mrf.mxu0
  %2332 = vmatprep.mubr.f32.mxu0 0.0
  %2333 = vmatmul.mubr.f32.gmra.mxu0 %v2044
  %v2334 = vpop.f32.mrf.mxu0
  %v2335 = vadd.f32 0.0, %v2334
  %v2336 = vpop.f32.mrf.mxu0
  %2337 = vmatprep.mubr.f32.mxu0 0.0
  %2338 = vmatmul.mubr.f32.gmra.mxu0 %v2045
  %v2339 = vpop.f32.mrf.mxu0
  %v2340 = vadd.f32 0.0, %v2339
  %v2341 = vpop.f32.mrf.mxu0
  %2342 = vmatprep.mubr.f32.mxu0 0.0
  %2343 = vmatmul.mubr.f32.gmra.mxu0 %v2046
  %v2344 = vpop.f32.mrf.mxu0
  %v2345 = vadd.f32 0.0, %v2344
  %v2346 = vpop.f32.mrf.mxu0
  %2347 = vmatprep.mubr.f32.mxu0 0.0
  %2348 = vmatmul.mubr.f32.gmra.mxu0 %v2047
  %v2349 = vpop.f32.mrf.mxu0
  %v2350 = vadd.f32 0.0, %v2349
  %v2351 = vpop.f32.mrf.mxu0
  %2352 = vmatprep.mubr.f32.mxu0 0.0
  %2353 = vmatmul.mubr.f32.gmra.mxu0 %v2048
  %v2354 = vpop.f32.mrf.mxu0
  %v2355 = vadd.f32 0.0, %v2354
  %v2356 = vpop.f32.mrf.mxu0
  %2357 = vmatprep.mubr.f32.mxu0 0.0
  %2358 = vmatmul.mubr.f32.gmra.mxu0 %v2049
  %v2359 = vpop.f32.mrf.mxu0
  %v2360 = vadd.f32 0.0, %v2359
  %v2361 = vpop.f32.mrf.mxu0
  %2362 = vmatprep.mubr.f32.mxu0 0.0
  %2363 = vmatmul.mubr.f32.gmra.mxu0 %v2050
  %v2364 = vpop.f32.mrf.mxu0
  %v2365 = vadd.f32 0.0, %v2364
  %v2366 = vpop.f32.mrf.mxu0
  %2367 = vmatprep.mubr.f32.mxu0 0.0
  %2368 = vmatmul.mubr.f32.gmra.mxu0 %v2051
  %v2369 = vpop.f32.mrf.mxu0
  %v2370 = vadd.f32 0.0, %v2369
  %v2371 = vpop.f32.mrf.mxu0
  %2372 = vmatprep.mubr.f32.mxu0 0.0
  %2373 = vmatmul.mubr.f32.gmra.mxu0 %v2052
  %v2374 = vpop.f32.mrf.mxu0
  %v2375 = vadd.f32 0.0, %v2374
  %v2376 = vpop.f32.mrf.mxu0
  %2377 = vmatprep.mubr.f32.mxu0 0.0
  %2378 = vmatmul.mubr.f32.gmra.mxu0 %v2053
  %v2379 = vpop.f32.mrf.mxu0
  %v2380 = vadd.f32 0.0, %v2379
  %v2381 = vpop.f32.mrf.mxu0
  %2382 = vmatprep.mubr.f32.mxu0 0.0
  %2383 = vmatmul.mubr.f32.gmra.mxu0 %v2054
  %v2384 = vpop.f32.mrf.mxu0
  %v2385 = vadd.f32 0.0, %v2384
  %v2386 = vpop.f32.mrf.mxu0
  %2387 = vmatprep.mubr.f32.mxu0 0.0
  %2388 = vmatmul.mubr.f32.gmra.mxu0 %v2055
  %v2389 = vpop.f32.mrf.mxu0
  %v2390 = vadd.f32 0.0, %v2389
  %v2391 = vpop.f32.mrf.mxu0
  %2392 = vmatprep.mubr.f32.mxu0 0.0
  %2393 = vmatmul.mubr.f32.gmra.mxu0 %v2056
  %v2394 = vpop.f32.mrf.mxu0
  %v2395 = vadd.f32 0.0, %v2394
  %v2396 = vpop.f32.mrf.mxu0
  %2397 = vmatprep.mubr.f32.mxu0 0.0
  %2398 = vmatmul.mubr.f32.gmra.mxu0 %v2057
  %v2399 = vpop.f32.mrf.mxu0
  %v2400 = vadd.f32 0.0, %v2399
  %v2401 = vpop.f32.mrf.mxu0
  %2402 = vmatprep.mubr.f32.mxu0 0.0
  %2403 = vmatmul.mubr.f32.gmra.mxu0 %v2058
  %v2404 = vpop.f32.mrf.mxu0
  %v2405 = vadd.f32 0.0, %v2404
  %v2406 = vpop.f32.mrf.mxu0
  %2407 = vmatprep.mubr.f32.mxu0 0.0
  %2408 = vmatmul.mubr.f32.gmra.mxu0 %v2059
  %v2409 = vpop.f32.mrf.mxu0
  %v2410 = vadd.f32 0.0, %v2409
  %v2411 = vpop.f32.mrf.mxu0
  %2412 = vmatprep.mubr.f32.mxu0 0.0
  %2413 = vmatmul.mubr.f32.gmra.mxu0 %v2060
  %v2414 = vpop.f32.mrf.mxu0
  %v2415 = vadd.f32 0.0, %v2414
  %v2416 = vpop.f32.mrf.mxu0
  %2417 = vmatprep.mubr.f32.mxu0 0.0
  %2418 = vmatmul.mubr.f32.gmra.mxu0 %v2061
  %v2419 = vpop.f32.mrf.mxu0
  %v2420 = vadd.f32 0.0, %v2419
  %v2421 = vpop.f32.mrf.mxu0
  %2422 = vmatprep.mubr.f32.mxu0 0.0
  %2423 = vmatmul.mubr.f32.gmra.mxu0 %v2062
  %v2424 = vpop.f32.mrf.mxu0
  %v2425 = vadd.f32 0.0, %v2424
  %v2426 = vpop.f32.mrf.mxu0
  %2427 = vmatprep.mubr.f32.mxu0 0.0
  %2428 = vmatmul.mubr.f32.gmra.mxu0 %v2063
  %v2429 = vpop.f32.mrf.mxu0
  %v2430 = vadd.f32 0.0, %v2429
  %v2431 = vpop.f32.mrf.mxu0
  %2432 = vmatprep.mubr.f32.mxu0 0.0
  %2433 = vmatmul.mubr.f32.gmra.mxu0 %v2064
  %v2434 = vpop.f32.mrf.mxu0
  %v2435 = vadd.f32 0.0, %v2434
  %v2436 = vpop.f32.mrf.mxu0
  %2437 = vmatprep.mubr.f32.mxu0 0.0
  %2438 = vmatmul.mubr.f32.gmra.mxu0 %v2065
  %v2439 = vpop.f32.mrf.mxu0
  %v2440 = vadd.f32 0.0, %v2439
  %v2441 = vpop.f32.mrf.mxu0
  %2442 = vmatprep.mubr.f32.mxu0 0.0
  %2443 = vmatmul.mubr.f32.gmra.mxu0 %v2066
  %v2444 = vpop.f32.mrf.mxu0
  %v2445 = vadd.f32 0.0, %v2444
  %v2446 = vpop.f32.mrf.mxu0
  %2447 = vmatprep.mubr.f32.mxu0 0.0
  %2448 = vmatmul.mubr.f32.gmra.mxu0 %v2067
  %v2449 = vpop.f32.mrf.mxu0
  %v2450 = vadd.f32 0.0, %v2449
  %v2451 = vpop.f32.mrf.mxu0
  %2452 = vdwg.mxu0
  %v2453 = vpack.c.bf16 %v2140, %v2135
  %v2454 = vpack.c.bf16 %v2150, %v2145
  %v2455 = vpack.c.bf16 %v2160, %v2155
  %v2456 = vpack.c.bf16 %v2170, %v2165
  %v2457 = vpack.c.bf16 %v2180, %v2175
  %v2458 = vpack.c.bf16 %v2190, %v2185
  %v2459 = vpack.c.bf16 %v2200, %v2195
  %v2460 = vpack.c.bf16 %v2210, %v2205
  %v2461 = vpack.c.bf16 %v2220, %v2215
  %v2462 = vpack.c.bf16 %v2230, %v2225
  %v2463 = vpack.c.bf16 %v2240, %v2235
  %v2464 = vpack.c.bf16 %v2250, %v2245
  %v2465 = vpack.c.bf16 %v2260, %v2255
  %v2466 = vpack.c.bf16 %v2270, %v2265
  %v2467 = vpack.c.bf16 %v2280, %v2275
  %v2468 = vpack.c.bf16 %v2290, %v2285
  %v2469 = vpack.c.bf16 %v2300, %v2295
  %v2470 = vpack.c.bf16 %v2310, %v2305
  %v2471 = vpack.c.bf16 %v2320, %v2315
  %v2472 = vpack.c.bf16 %v2330, %v2325
  %v2473 = vpack.c.bf16 %v2340, %v2335
  %v2474 = vpack.c.bf16 %v2350, %v2345
  %v2475 = vpack.c.bf16 %v2360, %v2355
  %v2476 = vpack.c.bf16 %v2370, %v2365
  %v2477 = vpack.c.bf16 %v2380, %v2375
  %v2478 = vpack.c.bf16 %v2390, %v2385
  %v2479 = vpack.c.bf16 %v2400, %v2395
  %v2480 = vpack.c.bf16 %v2410, %v2405
  %v2481 = vpack.c.bf16 %v2420, %v2415
  %v2482 = vpack.c.bf16 %v2430, %v2425
  %v2483 = vpack.c.bf16 %v2440, %v2435
  %v2484 = vpack.c.bf16 %v2450, %v2445
  %v2517 = vunpack.c.l.b16 %v2453
  %v2518 = vunpack.c.h.b16 %v2453
  %v2519 = vunpack.c.l.b16 %v2454
  %v2520 = vunpack.c.h.b16 %v2454
  %v2521 = vunpack.c.l.b16 %v2455
  %v2522 = vunpack.c.h.b16 %v2455
  %v2523 = vunpack.c.l.b16 %v2456
  %v2524 = vunpack.c.h.b16 %v2456
  %v2525 = vunpack.c.l.b16 %v2457
  %v2526 = vunpack.c.h.b16 %v2457
  %v2527 = vunpack.c.l.b16 %v2458
  %v2528 = vunpack.c.h.b16 %v2458
  %v2529 = vunpack.c.l.b16 %v2459
  %v2530 = vunpack.c.h.b16 %v2459
  %v2531 = vunpack.c.l.b16 %v2460
  %v2532 = vunpack.c.h.b16 %v2460
  %v2533 = vunpack.c.l.b16 %v2461
  %v2534 = vunpack.c.h.b16 %v2461
  %v2535 = vunpack.c.l.b16 %v2462
  %v2536 = vunpack.c.h.b16 %v2462
  %v2537 = vunpack.c.l.b16 %v2463
  %v2538 = vunpack.c.h.b16 %v2463
  %v2539 = vunpack.c.l.b16 %v2464
  %v2540 = vunpack.c.h.b16 %v2464
  %v2541 = vunpack.c.l.b16 %v2465
  %v2542 = vunpack.c.h.b16 %v2465
  %v2543 = vunpack.c.l.b16 %v2466
  %v2544 = vunpack.c.h.b16 %v2466
  %v2545 = vunpack.c.l.b16 %v2467
  %v2546 = vunpack.c.h.b16 %v2467
  %v2547 = vunpack.c.l.b16 %v2468
  %v2548 = vunpack.c.h.b16 %v2468
  %v2549 = vunpack.c.l.b16 %v2469
  %v2550 = vunpack.c.h.b16 %v2469
  %v2551 = vunpack.c.l.b16 %v2470
  %v2552 = vunpack.c.h.b16 %v2470
  %v2553 = vunpack.c.l.b16 %v2471
  %v2554 = vunpack.c.h.b16 %v2471
  %v2555 = vunpack.c.l.b16 %v2472
  %v2556 = vunpack.c.h.b16 %v2472
  %v2557 = vunpack.c.l.b16 %v2473
  %v2558 = vunpack.c.h.b16 %v2473
  %v2559 = vunpack.c.l.b16 %v2474
  %v2560 = vunpack.c.h.b16 %v2474
  %v2561 = vunpack.c.l.b16 %v2475
  %v2562 = vunpack.c.h.b16 %v2475
  %v2563 = vunpack.c.l.b16 %v2476
  %v2564 = vunpack.c.h.b16 %v2476
  %v2565 = vunpack.c.l.b16 %v2477
  %v2566 = vunpack.c.h.b16 %v2477
  %v2567 = vunpack.c.l.b16 %v2478
  %v2568 = vunpack.c.h.b16 %v2478
  %v2569 = vunpack.c.l.b16 %v2479
  %v2570 = vunpack.c.h.b16 %v2479
  %v2571 = vunpack.c.l.b16 %v2480
  %v2572 = vunpack.c.h.b16 %v2480
  %v2573 = vunpack.c.l.b16 %v2481
  %v2574 = vunpack.c.h.b16 %v2481
  %v2575 = vunpack.c.l.b16 %v2482
  %v2576 = vunpack.c.h.b16 %v2482
  %v2577 = vunpack.c.l.b16 %v2483
  %v2578 = vunpack.c.h.b16 %v2483
  %v2579 = vunpack.c.l.b16 %v2484
  %v2580 = vunpack.c.h.b16 %v2484
  %v2581 = vpack.c.b16 %v2517, %v2517
  %v2582 = vpack.c.b16 %v2518, %v2518
  %v2583 = vpack.c.b16 %v2519, %v2519
  %v2584 = vpack.c.b16 %v2520, %v2520
  %v2585 = vpack.c.b16 %v2521, %v2521
  %v2586 = vpack.c.b16 %v2522, %v2522
  %v2587 = vpack.c.b16 %v2523, %v2523
  %v2588 = vpack.c.b16 %v2524, %v2524
  %v2589 = vpack.c.b16 %v2525, %v2525
  %v2590 = vpack.c.b16 %v2526, %v2526
  %v2591 = vpack.c.b16 %v2527, %v2527
  %v2592 = vpack.c.b16 %v2528, %v2528
  %v2593 = vpack.c.b16 %v2529, %v2529
  %v2594 = vpack.c.b16 %v2530, %v2530
  %v2595 = vpack.c.b16 %v2531, %v2531
  %v2596 = vpack.c.b16 %v2532, %v2532
  %v2597 = vpack.c.b16 %v2533, %v2533
  %v2598 = vpack.c.b16 %v2534, %v2534
  %v2599 = vpack.c.b16 %v2535, %v2535
  %v2600 = vpack.c.b16 %v2536, %v2536
  %v2601 = vpack.c.b16 %v2537, %v2537
  %v2602 = vpack.c.b16 %v2538, %v2538
  %v2603 = vpack.c.b16 %v2539, %v2539
  %v2604 = vpack.c.b16 %v2540, %v2540
  %v2605 = vpack.c.b16 %v2541, %v2541
  %v2606 = vpack.c.b16 %v2542, %v2542
  %v2607 = vpack.c.b16 %v2543, %v2543
  %v2608 = vpack.c.b16 %v2544, %v2544
  %v2609 = vpack.c.b16 %v2545, %v2545
  %v2610 = vpack.c.b16 %v2546, %v2546
  %v2611 = vpack.c.b16 %v2547, %v2547
  %v2612 = vpack.c.b16 %v2548, %v2548
  %v2613 = vpack.c.b16 %v2549, %v2549
  %v2614 = vpack.c.b16 %v2550, %v2550
  %v2615 = vpack.c.b16 %v2551, %v2551
  %v2616 = vpack.c.b16 %v2552, %v2552
  %v2617 = vpack.c.b16 %v2553, %v2553
  %v2618 = vpack.c.b16 %v2554, %v2554
  %v2619 = vpack.c.b16 %v2555, %v2555
  %v2620 = vpack.c.b16 %v2556, %v2556
  %v2621 = vpack.c.b16 %v2557, %v2557
  %v2622 = vpack.c.b16 %v2558, %v2558
  %v2623 = vpack.c.b16 %v2559, %v2559
  %v2624 = vpack.c.b16 %v2560, %v2560
  %v2625 = vpack.c.b16 %v2561, %v2561
  %v2626 = vpack.c.b16 %v2562, %v2562
  %v2627 = vpack.c.b16 %v2563, %v2563
  %v2628 = vpack.c.b16 %v2564, %v2564
  %v2629 = vpack.c.b16 %v2565, %v2565
  %v2630 = vpack.c.b16 %v2566, %v2566
  %v2631 = vpack.c.b16 %v2567, %v2567
  %v2632 = vpack.c.b16 %v2568, %v2568
  %v2633 = vpack.c.b16 %v2569, %v2569
  %v2634 = vpack.c.b16 %v2570, %v2570
  %v2635 = vpack.c.b16 %v2571, %v2571
  %v2636 = vpack.c.b16 %v2572, %v2572
  %v2637 = vpack.c.b16 %v2573, %v2573
  %v2638 = vpack.c.b16 %v2574, %v2574
  %v2639 = vpack.c.b16 %v2575, %v2575
  %v2640 = vpack.c.b16 %v2576, %v2576
  %v2641 = vpack.c.b16 %v2577, %v2577
  %v2642 = vpack.c.b16 %v2578, %v2578
  %v2643 = vpack.c.b16 %v2579, %v2579
  %v2644 = vpack.c.b16 %v2580, %v2580
  %2709 = vst [vmem:[%s3] sm:$0xf] %v2581
  %2710 = vst [vmem:[%s3 + $0x4] sm:$0xf] %v2582
  %2711 = vst [vmem:[%s3 + $0x8] sm:$0xf] %v2583
  %2712 = vst [vmem:[%s3 + $0xc] sm:$0xf] %v2584
  %2713 = vst [vmem:[%s3 + $0x10] sm:$0xf] %v2585
  %2714 = vst [vmem:[%s3 + $0x14] sm:$0xf] %v2586
  %2715 = vst [vmem:[%s3 + $0x18] sm:$0xf] %v2587
  %2716 = vst [vmem:[%s3 + $0x1c] sm:$0xf] %v2588
  %2717 = vst [vmem:[%s3 + $0x20] sm:$0xf] %v2589
  %2718 = vst [vmem:[%s3 + $0x24] sm:$0xf] %v2590
  %2719 = vst [vmem:[%s3 + $0x28] sm:$0xf] %v2591
  %2720 = vst [vmem:[%s3 + $0x2c] sm:$0xf] %v2592
  %2721 = vst [vmem:[%s3 + $0x30] sm:$0xf] %v2593
  %2722 = vst [vmem:[%s3 + $0x34] sm:$0xf] %v2594
  %2723 = vst [vmem:[%s3 + $0x38] sm:$0xf] %v2595
  %2724 = vst [vmem:[%s3 + $0x3c] sm:$0xf] %v2596
  %2725 = vst [vmem:[%s3 + $0x40] sm:$0xf] %v2597
  %2726 = vst [vmem:[%s3 + $0x44] sm:$0xf] %v2598
  %2727 = vst [vmem:[%s3 + $0x48] sm:$0xf] %v2599
  %2728 = vst [vmem:[%s3 + $0x4c] sm:$0xf] %v2600
  %2729 = vst [vmem:[%s3 + $0x50] sm:$0xf] %v2601
  %2730 = vst [vmem:[%s3 + $0x54] sm:$0xf] %v2602
  %2731 = vst [vmem:[%s3 + $0x58] sm:$0xf] %v2603
  %2732 = vst [vmem:[%s3 + $0x5c] sm:$0xf] %v2604
  %2733 = vst [vmem:[%s3 + $0x60] sm:$0xf] %v2605
  %2734 = vst [vmem:[%s3 + $0x64] sm:$0xf] %v2606
  %2735 = vst [vmem:[%s3 + $0x68] sm:$0xf] %v2607
  %2736 = vst [vmem:[%s3 + $0x6c] sm:$0xf] %v2608
  %2737 = vst [vmem:[%s3 + $0x70] sm:$0xf] %v2609
  %2738 = vst [vmem:[%s3 + $0x74] sm:$0xf] %v2610
  %2739 = vst [vmem:[%s3 + $0x78] sm:$0xf] %v2611
  %2740 = vst [vmem:[%s3 + $0x7c] sm:$0xf] %v2612
  %2741 = vst [vmem:[%s3 + $0x80] sm:$0xf] %v2613
  %2742 = vst [vmem:[%s3 + $0x84] sm:$0xf] %v2614
  %2743 = vst [vmem:[%s3 + $0x88] sm:$0xf] %v2615
  %2744 = vst [vmem:[%s3 + $0x8c] sm:$0xf] %v2616
  %2745 = vst [vmem:[%s3 + $0x90] sm:$0xf] %v2617
  %2746 = vst [vmem:[%s3 + $0x94] sm:$0xf] %v2618
  %2747 = vst [vmem:[%s3 + $0x98] sm:$0xf] %v2619
  %2748 = vst [vmem:[%s3 + $0x9c] sm:$0xf] %v2620
  %2749 = vst [vmem:[%s3 + $0xa0] sm:$0xf] %v2621
  %2750 = vst [vmem:[%s3 + $0xa4] sm:$0xf] %v2622
  %2751 = vst [vmem:[%s3 + $0xa8] sm:$0xf] %v2623
  %2752 = vst [vmem:[%s3 + $0xac] sm:$0xf] %v2624
  %2753 = vst [vmem:[%s3 + $0xb0] sm:$0xf] %v2625
  %2754 = vst [vmem:[%s3 + $0xb4] sm:$0xf] %v2626
  %2755 = vst [vmem:[%s3 + $0xb8] sm:$0xf] %v2627
  %2756 = vst [vmem:[%s3 + $0xbc] sm:$0xf] %v2628
  %2757 = vst [vmem:[%s3 + $0xc0] sm:$0xf] %v2629
  %2758 = vst [vmem:[%s3 + $0xc4] sm:$0xf] %v2630
  %2759 = vst [vmem:[%s3 + $0xc8] sm:$0xf] %v2631
  %2760 = vst [vmem:[%s3 + $0xcc] sm:$0xf] %v2632
  %2761 = vst [vmem:[%s3 + $0xd0] sm:$0xf] %v2633
  %2762 = vst [vmem:[%s3 + $0xd4] sm:$0xf] %v2634
  %2763 = vst [vmem:[%s3 + $0xd8] sm:$0xf] %v2635
  %2764 = vst [vmem:[%s3 + $0xdc] sm:$0xf] %v2636
  %2765 = vst [vmem:[%s3 + $0xe0] sm:$0xf] %v2637
  %2766 = vst [vmem:[%s3 + $0xe4] sm:$0xf] %v2638
  %2767 = vst [vmem:[%s3 + $0xe8] sm:$0xf] %v2639
  %2768 = vst [vmem:[%s3 + $0xec] sm:$0xf] %v2640
  %2769 = vst [vmem:[%s3 + $0xf0] sm:$0xf] %v2641
  %2770 = vst [vmem:[%s3 + $0xf4] sm:$0xf] %v2642
  %2771 = vst [vmem:[%s3 + $0xf8] sm:$0xf] %v2643
  %2772 = vst [vmem:[%s3 + $0xfc] sm:$0xf] %v2644
  %v2773 = vunpack.c.l.bf16 %v18
  %v2774 = vunpack.c.l.bf16 %v19
  %v2775 = vunpack.c.l.bf16 %v20
  %v2776 = vunpack.c.l.bf16 %v21
  %v2777 = vunpack.c.l.bf16 %v22
  %v2778 = vunpack.c.l.bf16 %v23
  %v2779 = vunpack.c.l.bf16 %v24
  %v2780 = vunpack.c.l.bf16 %v25
  %v2781 = vunpack.c.l.bf16 %v26
  %v2782 = vunpack.c.l.bf16 %v27
  %v2783 = vunpack.c.l.bf16 %v28
  %v2784 = vunpack.c.l.bf16 %v29
  %v2785 = vunpack.c.l.bf16 %v30
  %v2786 = vunpack.c.l.bf16 %v31
  %v2787 = vunpack.c.l.bf16 %v32
  %v2788 = vunpack.c.l.bf16 %v33
  %v2789 = vunpack.c.l.bf16 %v34
  %v2790 = vunpack.c.l.bf16 %v35
  %v2791 = vunpack.c.l.bf16 %v36
  %v2792 = vunpack.c.l.bf16 %v37
  %v2793 = vunpack.c.l.bf16 %v38
  %v2794 = vunpack.c.l.bf16 %v39
  %v2795 = vunpack.c.l.bf16 %v40
  %v2796 = vunpack.c.l.bf16 %v41
  %v2797 = vunpack.c.l.bf16 %v42
  %v2798 = vunpack.c.l.bf16 %v43
  %v2799 = vunpack.c.l.bf16 %v44
  %v2800 = vunpack.c.l.bf16 %v45
  %v2801 = vunpack.c.l.bf16 %v46
  %v2802 = vunpack.c.l.bf16 %v47
  %v2803 = vunpack.c.l.bf16 %v48
  %v2804 = vunpack.c.l.bf16 %v49
  %v2805 = vunpack.c.l.bf16 %v50
  %v2806 = vunpack.c.l.bf16 %v51
  %v2807 = vunpack.c.l.bf16 %v52
  %v2808 = vunpack.c.l.bf16 %v53
  %v2809 = vunpack.c.l.bf16 %v54
  %v2810 = vunpack.c.l.bf16 %v55
  %v2811 = vunpack.c.l.bf16 %v56
  %v2812 = vunpack.c.l.bf16 %v57
  %v2813 = vunpack.c.l.bf16 %v58
  %v2814 = vunpack.c.l.bf16 %v59
  %v2815 = vunpack.c.l.bf16 %v60
  %v2816 = vunpack.c.l.bf16 %v61
  %v2817 = vunpack.c.l.bf16 %v62
  %v2818 = vunpack.c.l.bf16 %v63
  %v2819 = vunpack.c.l.bf16 %v64
  %v2820 = vunpack.c.l.bf16 %v65
  %v2821 = vunpack.c.l.bf16 %v66
  %v2822 = vunpack.c.l.bf16 %v67
  %v2823 = vunpack.c.l.bf16 %v68
  %v2824 = vunpack.c.l.bf16 %v69
  %v2825 = vunpack.c.l.bf16 %v70
  %v2826 = vunpack.c.l.bf16 %v71
  %v2827 = vunpack.c.l.bf16 %v72
  %v2828 = vunpack.c.l.bf16 %v73
  %v2829 = vunpack.c.l.bf16 %v74
  %v2830 = vunpack.c.l.bf16 %v75
  %v2831 = vunpack.c.l.bf16 %v76
  %v2832 = vunpack.c.l.bf16 %v77
  %v2833 = vunpack.c.l.bf16 %v78
  %v2834 = vunpack.c.l.bf16 %v79
  %v2835 = vunpack.c.l.bf16 %v80
  %v2836 = vunpack.c.l.bf16 %v81
  %v2837 = vlaneseq
  %v2838 = vshrl.u32 %v2837, 7
  %v2839 = vadd.s32 %v2838, 8
  %v2840 = vadd.s32 %v2838, 16
  %v2841 = vadd.s32 %v2838, 24
  %v2842 = vadd.s32 %v2838, 32
  %v2843 = vadd.s32 %v2838, 40
  %v2844 = vadd.s32 %v2838, 48
  %v2845 = vadd.s32 %v2838, 56
  %v2846 = vadd.s32 %v2838, 64
  %v2847 = vadd.s32 %v2838, 72
  %v2848 = vadd.s32 %v2838, 80
  %v2849 = vadd.s32 %v2838, 88
  %v2850 = vadd.s32 %v2838, 96
  %v2851 = vadd.s32 %v2838, 104
  %v2852 = vadd.s32 %v2838, 112
  %v2853 = vadd.s32 %v2838, 120
  %v2854 = vadd.s32 %v2838, 128
  %v2855 = vadd.s32 %v2838, 136
  %v2856 = vadd.s32 %v2838, 144
  %v2857 = vadd.s32 %v2838, 152
  %v2858 = vadd.s32 %v2838, 160
  %v2859 = vadd.s32 %v2838, 168
  %v2860 = vadd.s32 %v2838, 176
  %v2861 = vadd.s32 %v2838, 184
  %v2862 = vadd.s32 %v2838, 192
  %v2863 = vadd.s32 %v2838, 200
  %v2864 = vadd.s32 %v2838, 208
  %v2865 = vadd.s32 %v2838, 216
  %v2866 = vadd.s32 %v2838, 224
  %v2867 = vadd.s32 %v2838, 232
  %v2868 = vadd.s32 %v2838, 240
  %v2869 = vadd.s32 %v2838, 248
  %v2870 = vadd.s32 %v2838, 256
  %v2871 = vadd.s32 %v2838, 264
  %v2872 = vadd.s32 %v2838, 272
  %v2873 = vadd.s32 %v2838, 280
  %v2874 = vadd.s32 %v2838, 288
  %v2875 = vadd.s32 %v2838, 296
  %v2876 = vadd.s32 %v2838, 304
  %v2877 = vadd.s32 %v2838, 312
  %v2878 = vadd.s32 %v2838, 320
  %v2879 = vadd.s32 %v2838, 328
  %v2880 = vadd.s32 %v2838, 336
  %v2881 = vadd.s32 %v2838, 344
  %v2882 = vadd.s32 %v2838, 352
  %v2883 = vadd.s32 %v2838, 360
  %v2884 = vadd.s32 %v2838, 368
  %v2885 = vadd.s32 %v2838, 376
  %v2886 = vadd.s32 %v2838, 384
  %v2887 = vadd.s32 %v2838, 392
  %v2888 = vadd.s32 %v2838, 400
  %v2889 = vadd.s32 %v2838, 408
  %v2890 = vadd.s32 %v2838, 416
  %v2891 = vadd.s32 %v2838, 424
  %v2892 = vadd.s32 %v2838, 432
  %v2893 = vadd.s32 %v2838, 440
  %v2894 = vadd.s32 %v2838, 448
  %v2895 = vadd.s32 %v2838, 456
  %v2896 = vadd.s32 %v2838, 464
  %v2897 = vadd.s32 %v2838, 472
  %v2898 = vadd.s32 %v2838, 480
  %v2899 = vadd.s32 %v2838, 488
  %v2900 = vadd.s32 %v2838, 496
  %v2901 = vadd.s32 %v2838, 504
  %s2902 = smul.u32 0, 512
  %v2903 = vstv %s2902
  %v2904 = vadd.s32 %v2838, %v2903
  %v2905 = vadd.s32 %v2839, %v2903
  %v2906 = vadd.s32 %v2840, %v2903
  %v2907 = vadd.s32 %v2841, %v2903
  %v2908 = vadd.s32 %v2842, %v2903
  %v2909 = vadd.s32 %v2843, %v2903
  %v2910 = vadd.s32 %v2844, %v2903
  %v2911 = vadd.s32 %v2845, %v2903
  %v2912 = vadd.s32 %v2846, %v2903
  %v2913 = vadd.s32 %v2847, %v2903
  %v2914 = vadd.s32 %v2848, %v2903
  %v2915 = vadd.s32 %v2849, %v2903
  %v2916 = vadd.s32 %v2850, %v2903
  %v2917 = vadd.s32 %v2851, %v2903
  %v2918 = vadd.s32 %v2852, %v2903
  %v2919 = vadd.s32 %v2853, %v2903
  %v2920 = vadd.s32 %v2854, %v2903
  %v2921 = vadd.s32 %v2855, %v2903
  %v2922 = vadd.s32 %v2856, %v2903
  %v2923 = vadd.s32 %v2857, %v2903
  %v2924 = vadd.s32 %v2858, %v2903
  %v2925 = vadd.s32 %v2859, %v2903
  %v2926 = vadd.s32 %v2860, %v2903
  %v2927 = vadd.s32 %v2861, %v2903
  %v2928 = vadd.s32 %v2862, %v2903
  %v2929 = vadd.s32 %v2863, %v2903
  %v2930 = vadd.s32 %v2864, %v2903
  %v2931 = vadd.s32 %v2865, %v2903
  %v2932 = vadd.s32 %v2866, %v2903
  %v2933 = vadd.s32 %v2867, %v2903
  %v2934 = vadd.s32 %v2868, %v2903
  %v2935 = vadd.s32 %v2869, %v2903
  %v2936 = vadd.s32 %v2870, %v2903
  %v2937 = vadd.s32 %v2871, %v2903
  %v2938 = vadd.s32 %v2872, %v2903
  %v2939 = vadd.s32 %v2873, %v2903
  %v2940 = vadd.s32 %v2874, %v2903
  %v2941 = vadd.s32 %v2875, %v2903
  %v2942 = vadd.s32 %v2876, %v2903
  %v2943 = vadd.s32 %v2877, %v2903
  %v2944 = vadd.s32 %v2878, %v2903
  %v2945 = vadd.s32 %v2879, %v2903
  %v2946 = vadd.s32 %v2880, %v2903
  %v2947 = vadd.s32 %v2881, %v2903
  %v2948 = vadd.s32 %v2882, %v2903
  %v2949 = vadd.s32 %v2883, %v2903
  %v2950 = vadd.s32 %v2884, %v2903
  %v2951 = vadd.s32 %v2885, %v2903
  %v2952 = vadd.s32 %v2886, %v2903
  %v2953 = vadd.s32 %v2887, %v2903
  %v2954 = vadd.s32 %v2888, %v2903
  %v2955 = vadd.s32 %v2889, %v2903
  %v2956 = vadd.s32 %v2890, %v2903
  %v2957 = vadd.s32 %v2891, %v2903
  %v2958 = vadd.s32 %v2892, %v2903
  %v2959 = vadd.s32 %v2893, %v2903
  %v2960 = vadd.s32 %v2894, %v2903
  %v2961 = vadd.s32 %v2895, %v2903
  %v2962 = vadd.s32 %v2896, %v2903
  %v2963 = vadd.s32 %v2897, %v2903
  %v2964 = vadd.s32 %v2898, %v2903
  %v2965 = vadd.s32 %v2899, %v2903
  %v2966 = vadd.s32 %v2900, %v2903
  %v2967 = vadd.s32 %v2901, %v2903
  %vm2968 = vcmp.lt.s32.totalorder %v2904, 16
  %vm2969 = vcmp.lt.s32.totalorder %v2905, 16
  %vm2970 = vcmp.lt.s32.totalorder %v2906, 16
  %vm2971 = vcmp.lt.s32.totalorder %v2907, 16
  %vm2972 = vcmp.lt.s32.totalorder %v2908, 16
  %vm2973 = vcmp.lt.s32.totalorder %v2909, 16
  %vm2974 = vcmp.lt.s32.totalorder %v2910, 16
  %vm2975 = vcmp.lt.s32.totalorder %v2911, 16
  %vm2976 = vcmp.lt.s32.totalorder %v2912, 16
  %vm2977 = vcmp.lt.s32.totalorder %v2913, 16
  %vm2978 = vcmp.lt.s32.totalorder %v2914, 16
  %vm2979 = vcmp.lt.s32.totalorder %v2915, 16
  %vm2980 = vcmp.lt.s32.totalorder %v2916, 16
  %vm2981 = vcmp.lt.s32.totalorder %v2917, 16
  %vm2982 = vcmp.lt.s32.totalorder %v2918, 16
  %vm2983 = vcmp.lt.s32.totalorder %v2919, 16
  %vm2984 = vcmp.lt.s32.totalorder %v2920, 16
  %vm2985 = vcmp.lt.s32.totalorder %v2921, 16
  %vm2986 = vcmp.lt.s32.totalorder %v2922, 16
  %vm2987 = vcmp.lt.s32.totalorder %v2923, 16
  %vm2988 = vcmp.lt.s32.totalorder %v2924, 16
  %vm2989 = vcmp.lt.s32.totalorder %v2925, 16
  %vm2990 = vcmp.lt.s32.totalorder %v2926, 16
  %vm2991 = vcmp.lt.s32.totalorder %v2927, 16
  %vm2992 = vcmp.lt.s32.totalorder %v2928, 16
  %vm2993 = vcmp.lt.s32.totalorder %v2929, 16
  %vm2994 = vcmp.lt.s32.totalorder %v2930, 16
  %vm2995 = vcmp.lt.s32.totalorder %v2931, 16
  %vm2996 = vcmp.lt.s32.totalorder %v2932, 16
  %vm2997 = vcmp.lt.s32.totalorder %v2933, 16
  %vm2998 = vcmp.lt.s32.totalorder %v2934, 16
  %vm2999 = vcmp.lt.s32.totalorder %v2935, 16
  %vm3000 = vcmp.lt.s32.totalorder %v2936, 16
  %vm3001 = vcmp.lt.s32.totalorder %v2937, 16
  %vm3002 = vcmp.lt.s32.totalorder %v2938, 16
  %vm3003 = vcmp.lt.s32.totalorder %v2939, 16
  %vm3004 = vcmp.lt.s32.totalorder %v2940, 16
  %vm3005 = vcmp.lt.s32.totalorder %v2941, 16
  %vm3006 = vcmp.lt.s32.totalorder %v2942, 16
  %vm3007 = vcmp.lt.s32.totalorder %v2943, 16
  %vm3008 = vcmp.lt.s32.totalorder %v2944, 16
  %vm3009 = vcmp.lt.s32.totalorder %v2945, 16
  %vm3010 = vcmp.lt.s32.totalorder %v2946, 16
  %vm3011 = vcmp.lt.s32.totalorder %v2947, 16
  %vm3012 = vcmp.lt.s32.totalorder %v2948, 16
  %vm3013 = vcmp.lt.s32.totalorder %v2949, 16
  %vm3014 = vcmp.lt.s32.totalorder %v2950, 16
  %vm3015 = vcmp.lt.s32.totalorder %v2951, 16
  %vm3016 = vcmp.lt.s32.totalorder %v2952, 16
  %vm3017 = vcmp.lt.s32.totalorder %v2953, 16
  %vm3018 = vcmp.lt.s32.totalorder %v2954, 16
  %vm3019 = vcmp.lt.s32.totalorder %v2955, 16
  %vm3020 = vcmp.lt.s32.totalorder %v2956, 16
  %vm3021 = vcmp.lt.s32.totalorder %v2957, 16
  %vm3022 = vcmp.lt.s32.totalorder %v2958, 16
  %vm3023 = vcmp.lt.s32.totalorder %v2959, 16
  %vm3024 = vcmp.lt.s32.totalorder %v2960, 16
  %vm3025 = vcmp.lt.s32.totalorder %v2961, 16
  %vm3026 = vcmp.lt.s32.totalorder %v2962, 16
  %vm3027 = vcmp.lt.s32.totalorder %v2963, 16
  %vm3028 = vcmp.lt.s32.totalorder %v2964, 16
  %vm3029 = vcmp.lt.s32.totalorder %v2965, 16
  %vm3030 = vcmp.lt.s32.totalorder %v2966, 16
  %vm3031 = vcmp.lt.s32.totalorder %v2967, 16
  %v3032 = vsel %vm2968, 1, 0
  %v3033 = vsel %vm2969, 1, 0
  %v3034 = vsel %vm2970, 1, 0
  %v3035 = vsel %vm2971, 1, 0
  %v3036 = vsel %vm2972, 1, 0
  %v3037 = vsel %vm2973, 1, 0
  %v3038 = vsel %vm2974, 1, 0
  %v3039 = vsel %vm2975, 1, 0
  %v3040 = vsel %vm2976, 1, 0
  %v3041 = vsel %vm2977, 1, 0
  %v3042 = vsel %vm2978, 1, 0
  %v3043 = vsel %vm2979, 1, 0
  %v3044 = vsel %vm2980, 1, 0
  %v3045 = vsel %vm2981, 1, 0
  %v3046 = vsel %vm2982, 1, 0
  %v3047 = vsel %vm2983, 1, 0
  %v3048 = vsel %vm2984, 1, 0
  %v3049 = vsel %vm2985, 1, 0
  %v3050 = vsel %vm2986, 1, 0
  %v3051 = vsel %vm2987, 1, 0
  %v3052 = vsel %vm2988, 1, 0
  %v3053 = vsel %vm2989, 1, 0
  %v3054 = vsel %vm2990, 1, 0
  %v3055 = vsel %vm2991, 1, 0
  %v3056 = vsel %vm2992, 1, 0
  %v3057 = vsel %vm2993, 1, 0
  %v3058 = vsel %vm2994, 1, 0
  %v3059 = vsel %vm2995, 1, 0
  %v3060 = vsel %vm2996, 1, 0
  %v3061 = vsel %vm2997, 1, 0
  %v3062 = vsel %vm2998, 1, 0
  %v3063 = vsel %vm2999, 1, 0
  %v3064 = vsel %vm3000, 1, 0
  %v3065 = vsel %vm3001, 1, 0
  %v3066 = vsel %vm3002, 1, 0
  %v3067 = vsel %vm3003, 1, 0
  %v3068 = vsel %vm3004, 1, 0
  %v3069 = vsel %vm3005, 1, 0
  %v3070 = vsel %vm3006, 1, 0
  %v3071 = vsel %vm3007, 1, 0
  %v3072 = vsel %vm3008, 1, 0
  %v3073 = vsel %vm3009, 1, 0
  %v3074 = vsel %vm3010, 1, 0
  %v3075 = vsel %vm3011, 1, 0
  %v3076 = vsel %vm3012, 1, 0
  %v3077 = vsel %vm3013, 1, 0
  %v3078 = vsel %vm3014, 1, 0
  %v3079 = vsel %vm3015, 1, 0
  %v3080 = vsel %vm3016, 1, 0
  %v3081 = vsel %vm3017, 1, 0
  %v3082 = vsel %vm3018, 1, 0
  %v3083 = vsel %vm3019, 1, 0
  %v3084 = vsel %vm3020, 1, 0
  %v3085 = vsel %vm3021, 1, 0
  %v3086 = vsel %vm3022, 1, 0
  %v3087 = vsel %vm3023, 1, 0
  %v3088 = vsel %vm3024, 1, 0
  %v3089 = vsel %vm3025, 1, 0
  %v3090 = vsel %vm3026, 1, 0
  %v3091 = vsel %vm3027, 1, 0
  %v3092 = vsel %vm3028, 1, 0
  %v3093 = vsel %vm3029, 1, 0
  %v3094 = vsel %vm3030, 1, 0
  %v3095 = vsel %vm3031, 1, 0
  %v3096 = vcvt.s32.f32 %v3032
  %v3097 = vcvt.s32.f32 %v3033
  %v3098 = vcvt.s32.f32 %v3034
  %v3099 = vcvt.s32.f32 %v3035
  %v3100 = vcvt.s32.f32 %v3036
  %v3101 = vcvt.s32.f32 %v3037
  %v3102 = vcvt.s32.f32 %v3038
  %v3103 = vcvt.s32.f32 %v3039
  %v3104 = vcvt.s32.f32 %v3040
  %v3105 = vcvt.s32.f32 %v3041
  %v3106 = vcvt.s32.f32 %v3042
  %v3107 = vcvt.s32.f32 %v3043
  %v3108 = vcvt.s32.f32 %v3044
  %v3109 = vcvt.s32.f32 %v3045
  %v3110 = vcvt.s32.f32 %v3046
  %v3111 = vcvt.s32.f32 %v3047
  %v3112 = vcvt.s32.f32 %v3048
  %v3113 = vcvt.s32.f32 %v3049
  %v3114 = vcvt.s32.f32 %v3050
  %v3115 = vcvt.s32.f32 %v3051
  %v3116 = vcvt.s32.f32 %v3052
  %v3117 = vcvt.s32.f32 %v3053
  %v3118 = vcvt.s32.f32 %v3054
  %v3119 = vcvt.s32.f32 %v3055
  %v3120 = vcvt.s32.f32 %v3056
  %v3121 = vcvt.s32.f32 %v3057
  %v3122 = vcvt.s32.f32 %v3058
  %v3123 = vcvt.s32.f32 %v3059
  %v3124 = vcvt.s32.f32 %v3060
  %v3125 = vcvt.s32.f32 %v3061
  %v3126 = vcvt.s32.f32 %v3062
  %v3127 = vcvt.s32.f32 %v3063
  %v3128 = vcvt.s32.f32 %v3064
  %v3129 = vcvt.s32.f32 %v3065
  %v3130 = vcvt.s32.f32 %v3066
  %v3131 = vcvt.s32.f32 %v3067
  %v3132 = vcvt.s32.f32 %v3068
  %v3133 = vcvt.s32.f32 %v3069
  %v3134 = vcvt.s32.f32 %v3070
  %v3135 = vcvt.s32.f32 %v3071
  %v3136 = vcvt.s32.f32 %v3072
  %v3137 = vcvt.s32.f32 %v3073
  %v3138 = vcvt.s32.f32 %v3074
  %v3139 = vcvt.s32.f32 %v3075
  %v3140 = vcvt.s32.f32 %v3076
  %v3141 = vcvt.s32.f32 %v3077
  %v3142 = vcvt.s32.f32 %v3078
  %v3143 = vcvt.s32.f32 %v3079
  %v3144 = vcvt.s32.f32 %v3080
  %v3145 = vcvt.s32.f32 %v3081
  %v3146 = vcvt.s32.f32 %v3082
  %v3147 = vcvt.s32.f32 %v3083
  %v3148 = vcvt.s32.f32 %v3084
  %v3149 = vcvt.s32.f32 %v3085
  %v3150 = vcvt.s32.f32 %v3086
  %v3151 = vcvt.s32.f32 %v3087
  %v3152 = vcvt.s32.f32 %v3088
  %v3153 = vcvt.s32.f32 %v3089
  %v3154 = vcvt.s32.f32 %v3090
  %v3155 = vcvt.s32.f32 %v3091
  %v3156 = vcvt.s32.f32 %v3092
  %v3157 = vcvt.s32.f32 %v3093
  %v3158 = vcvt.s32.f32 %v3094
  %v3159 = vcvt.s32.f32 %v3095
  %v3160 = vsub.f32 %v2135, %v2773
  %v3161 = vsub.f32 %v2140, %v2774
  %v3162 = vsub.f32 %v2145, %v2775
  %v3163 = vsub.f32 %v2150, %v2776
  %v3164 = vsub.f32 %v2155, %v2777
  %v3165 = vsub.f32 %v2160, %v2778
  %v3166 = vsub.f32 %v2165, %v2779
  %v3167 = vsub.f32 %v2170, %v2780
  %v3168 = vsub.f32 %v2175, %v2781
  %v3169 = vsub.f32 %v2180, %v2782
  %v3170 = vsub.f32 %v2185, %v2783
  %v3171 = vsub.f32 %v2190, %v2784
  %v3172 = vsub.f32 %v2195, %v2785
  %v3173 = vsub.f32 %v2200, %v2786
  %v3174 = vsub.f32 %v2205, %v2787
  %v3175 = vsub.f32 %v2210, %v2788
  %v3176 = vsub.f32 %v2215, %v2789
  %v3177 = vsub.f32 %v2220, %v2790
  %v3178 = vsub.f32 %v2225, %v2791
  %v3179 = vsub.f32 %v2230, %v2792
  %v3180 = vsub.f32 %v2235, %v2793
  %v3181 = vsub.f32 %v2240, %v2794
  %v3182 = vsub.f32 %v2245, %v2795
  %v3183 = vsub.f32 %v2250, %v2796
  %v3184 = vsub.f32 %v2255, %v2797
  %v3185 = vsub.f32 %v2260, %v2798
  %v3186 = vsub.f32 %v2265, %v2799
  %v3187 = vsub.f32 %v2270, %v2800
  %v3188 = vsub.f32 %v2275, %v2801
  %v3189 = vsub.f32 %v2280, %v2802
  %v3190 = vsub.f32 %v2285, %v2803
  %v3191 = vsub.f32 %v2290, %v2804
  %v3192 = vsub.f32 %v2295, %v2805
  %v3193 = vsub.f32 %v2300, %v2806
  %v3194 = vsub.f32 %v2305, %v2807
  %v3195 = vsub.f32 %v2310, %v2808
  %v3196 = vsub.f32 %v2315, %v2809
  %v3197 = vsub.f32 %v2320, %v2810
  %v3198 = vsub.f32 %v2325, %v2811
  %v3199 = vsub.f32 %v2330, %v2812
  %v3200 = vsub.f32 %v2335, %v2813
  %v3201 = vsub.f32 %v2340, %v2814
  %v3202 = vsub.f32 %v2345, %v2815
  %v3203 = vsub.f32 %v2350, %v2816
  %v3204 = vsub.f32 %v2355, %v2817
  %v3205 = vsub.f32 %v2360, %v2818
  %v3206 = vsub.f32 %v2365, %v2819
  %v3207 = vsub.f32 %v2370, %v2820
  %v3208 = vsub.f32 %v2375, %v2821
  %v3209 = vsub.f32 %v2380, %v2822
  %v3210 = vsub.f32 %v2385, %v2823
  %v3211 = vsub.f32 %v2390, %v2824
  %v3212 = vsub.f32 %v2395, %v2825
  %v3213 = vsub.f32 %v2400, %v2826
  %v3214 = vsub.f32 %v2405, %v2827
  %v3215 = vsub.f32 %v2410, %v2828
  %v3216 = vsub.f32 %v2415, %v2829
  %v3217 = vsub.f32 %v2420, %v2830
  %v3218 = vsub.f32 %v2425, %v2831
  %v3219 = vsub.f32 %v2430, %v2832
  %v3220 = vsub.f32 %v2435, %v2833
  %v3221 = vsub.f32 %v2440, %v2834
  %v3222 = vsub.f32 %v2445, %v2835
  %v3223 = vsub.f32 %v2450, %v2836
  %v3224 = vmul.f32 %v3160, %v3160
  %v3225 = vmul.f32 %v3161, %v3161
  %v3226 = vmul.f32 %v3162, %v3162
  %v3227 = vmul.f32 %v3163, %v3163
  %v3228 = vmul.f32 %v3164, %v3164
  %v3229 = vmul.f32 %v3165, %v3165
  %v3230 = vmul.f32 %v3166, %v3166
  %v3231 = vmul.f32 %v3167, %v3167
  %v3232 = vmul.f32 %v3168, %v3168
  %v3233 = vmul.f32 %v3169, %v3169
  %v3234 = vmul.f32 %v3170, %v3170
  %v3235 = vmul.f32 %v3171, %v3171
  %v3236 = vmul.f32 %v3172, %v3172
  %v3237 = vmul.f32 %v3173, %v3173
  %v3238 = vmul.f32 %v3174, %v3174
  %v3239 = vmul.f32 %v3175, %v3175
  %v3240 = vmul.f32 %v3176, %v3176
  %v3241 = vmul.f32 %v3177, %v3177
  %v3242 = vmul.f32 %v3178, %v3178
  %v3243 = vmul.f32 %v3179, %v3179
  %v3244 = vmul.f32 %v3180, %v3180
  %v3245 = vmul.f32 %v3181, %v3181
  %v3246 = vmul.f32 %v3182, %v3182
  %v3247 = vmul.f32 %v3183, %v3183
  %v3248 = vmul.f32 %v3184, %v3184
  %v3249 = vmul.f32 %v3185, %v3185
  %v3250 = vmul.f32 %v3186, %v3186
  %v3251 = vmul.f32 %v3187, %v3187
  %v3252 = vmul.f32 %v3188, %v3188
  %v3253 = vmul.f32 %v3189, %v3189
  %v3254 = vmul.f32 %v3190, %v3190
  %v3255 = vmul.f32 %v3191, %v3191
  %v3256 = vmul.f32 %v3192, %v3192
  %v3257 = vmul.f32 %v3193, %v3193
  %v3258 = vmul.f32 %v3194, %v3194
  %v3259 = vmul.f32 %v3195, %v3195
  %v3260 = vmul.f32 %v3196, %v3196
  %v3261 = vmul.f32 %v3197, %v3197
  %v3262 = vmul.f32 %v3198, %v3198
  %v3263 = vmul.f32 %v3199, %v3199
  %v3264 = vmul.f32 %v3200, %v3200
  %v3265 = vmul.f32 %v3201, %v3201
  %v3266 = vmul.f32 %v3202, %v3202
  %v3267 = vmul.f32 %v3203, %v3203
  %v3268 = vmul.f32 %v3204, %v3204
  %v3269 = vmul.f32 %v3205, %v3205
  %v3270 = vmul.f32 %v3206, %v3206
  %v3271 = vmul.f32 %v3207, %v3207
  %v3272 = vmul.f32 %v3208, %v3208
  %v3273 = vmul.f32 %v3209, %v3209
  %v3274 = vmul.f32 %v3210, %v3210
  %v3275 = vmul.f32 %v3211, %v3211
  %v3276 = vmul.f32 %v3212, %v3212
  %v3277 = vmul.f32 %v3213, %v3213
  %v3278 = vmul.f32 %v3214, %v3214
  %v3279 = vmul.f32 %v3215, %v3215
  %v3280 = vmul.f32 %v3216, %v3216
  %v3281 = vmul.f32 %v3217, %v3217
  %v3282 = vmul.f32 %v3218, %v3218
  %v3283 = vmul.f32 %v3219, %v3219
  %v3284 = vmul.f32 %v3220, %v3220
  %v3285 = vmul.f32 %v3221, %v3221
  %v3286 = vmul.f32 %v3222, %v3222
  %v3287 = vmul.f32 %v3223, %v3223
  %3288 = vadd.xlane.f32.xlu0 %v3224
  %v3289 = vpop.xlane.xlu0 %3288
  %3290 = vadd.xlane.f32.xlu0 %v3225
  %v3291 = vpop.xlane.xlu0 %3290
  %3292 = vadd.xlane.f32.xlu0 %v3226
  %v3293 = vpop.xlane.xlu0 %3292
  %3294 = vadd.xlane.f32.xlu0 %v3227
  %v3295 = vpop.xlane.xlu0 %3294
  %3296 = vadd.xlane.f32.xlu0 %v3228
  %v3297 = vpop.xlane.xlu0 %3296
  %3298 = vadd.xlane.f32.xlu0 %v3229
  %v3299 = vpop.xlane.xlu0 %3298
  %3300 = vadd.xlane.f32.xlu0 %v3230
  %v3301 = vpop.xlane.xlu0 %3300
  %3302 = vadd.xlane.f32.xlu0 %v3231
  %v3303 = vpop.xlane.xlu0 %3302
  %3304 = vadd.xlane.f32.xlu0 %v3232
  %v3305 = vpop.xlane.xlu0 %3304
  %3306 = vadd.xlane.f32.xlu0 %v3233
  %v3307 = vpop.xlane.xlu0 %3306
  %3308 = vadd.xlane.f32.xlu0 %v3234
  %v3309 = vpop.xlane.xlu0 %3308
  %3310 = vadd.xlane.f32.xlu0 %v3235
  %v3311 = vpop.xlane.xlu0 %3310
  %3312 = vadd.xlane.f32.xlu0 %v3236
  %v3313 = vpop.xlane.xlu0 %3312
  %3314 = vadd.xlane.f32.xlu0 %v3237
  %v3315 = vpop.xlane.xlu0 %3314
  %3316 = vadd.xlane.f32.xlu0 %v3238
  %v3317 = vpop.xlane.xlu0 %3316
  %3318 = vadd.xlane.f32.xlu0 %v3239
  %v3319 = vpop.xlane.xlu0 %3318
  %3320 = vadd.xlane.f32.xlu0 %v3240
  %v3321 = vpop.xlane.xlu0 %3320
  %3322 = vadd.xlane.f32.xlu0 %v3241
  %v3323 = vpop.xlane.xlu0 %3322
  %3324 = vadd.xlane.f32.xlu0 %v3242
  %v3325 = vpop.xlane.xlu0 %3324
  %3326 = vadd.xlane.f32.xlu0 %v3243
  %v3327 = vpop.xlane.xlu0 %3326
  %3328 = vadd.xlane.f32.xlu0 %v3244
  %v3329 = vpop.xlane.xlu0 %3328
  %3330 = vadd.xlane.f32.xlu0 %v3245
  %v3331 = vpop.xlane.xlu0 %3330
  %3332 = vadd.xlane.f32.xlu0 %v3246
  %v3333 = vpop.xlane.xlu0 %3332
  %3334 = vadd.xlane.f32.xlu0 %v3247
  %v3335 = vpop.xlane.xlu0 %3334
  %3336 = vadd.xlane.f32.xlu0 %v3248
  %v3337 = vpop.xlane.xlu0 %3336
  %3338 = vadd.xlane.f32.xlu0 %v3249
  %v3339 = vpop.xlane.xlu0 %3338
  %3340 = vadd.xlane.f32.xlu0 %v3250
  %v3341 = vpop.xlane.xlu0 %3340
  %3342 = vadd.xlane.f32.xlu0 %v3251
  %v3343 = vpop.xlane.xlu0 %3342
  %3344 = vadd.xlane.f32.xlu0 %v3252
  %v3345 = vpop.xlane.xlu0 %3344
  %3346 = vadd.xlane.f32.xlu0 %v3253
  %v3347 = vpop.xlane.xlu0 %3346
  %3348 = vadd.xlane.f32.xlu0 %v3254
  %v3349 = vpop.xlane.xlu0 %3348
  %3350 = vadd.xlane.f32.xlu0 %v3255
  %v3351 = vpop.xlane.xlu0 %3350
  %3352 = vadd.xlane.f32.xlu0 %v3256
  %v3353 = vpop.xlane.xlu0 %3352
  %3354 = vadd.xlane.f32.xlu0 %v3257
  %v3355 = vpop.xlane.xlu0 %3354
  %3356 = vadd.xlane.f32.xlu0 %v3258
  %v3357 = vpop.xlane.xlu0 %3356
  %3358 = vadd.xlane.f32.xlu0 %v3259
  %v3359 = vpop.xlane.xlu0 %3358
  %3360 = vadd.xlane.f32.xlu0 %v3260
  %v3361 = vpop.xlane.xlu0 %3360
  %3362 = vadd.xlane.f32.xlu0 %v3261
  %v3363 = vpop.xlane.xlu0 %3362
  %3364 = vadd.xlane.f32.xlu0 %v3262
  %v3365 = vpop.xlane.xlu0 %3364
  %3366 = vadd.xlane.f32.xlu0 %v3263
  %v3367 = vpop.xlane.xlu0 %3366
  %3368 = vadd.xlane.f32.xlu0 %v3264
  %v3369 = vpop.xlane.xlu0 %3368
  %3370 = vadd.xlane.f32.xlu0 %v3265
  %v3371 = vpop.xlane.xlu0 %3370
  %3372 = vadd.xlane.f32.xlu0 %v3266
  %v3373 = vpop.xlane.xlu0 %3372
  %3374 = vadd.xlane.f32.xlu0 %v3267
  %v3375 = vpop.xlane.xlu0 %3374
  %3376 = vadd.xlane.f32.xlu0 %v3268
  %v3377 = vpop.xlane.xlu0 %3376
  %3378 = vadd.xlane.f32.xlu0 %v3269
  %v3379 = vpop.xlane.xlu0 %3378
  %3380 = vadd.xlane.f32.xlu0 %v3270
  %v3381 = vpop.xlane.xlu0 %3380
  %3382 = vadd.xlane.f32.xlu0 %v3271
  %v3383 = vpop.xlane.xlu0 %3382
  %3384 = vadd.xlane.f32.xlu0 %v3272
  %v3385 = vpop.xlane.xlu0 %3384
  %3386 = vadd.xlane.f32.xlu0 %v3273
  %v3387 = vpop.xlane.xlu0 %3386
  %3388 = vadd.xlane.f32.xlu0 %v3274
  %v3389 = vpop.xlane.xlu0 %3388
  %3390 = vadd.xlane.f32.xlu0 %v3275
  %v3391 = vpop.xlane.xlu0 %3390
  %3392 = vadd.xlane.f32.xlu0 %v3276
  %v3393 = vpop.xlane.xlu0 %3392
  %3394 = vadd.xlane.f32.xlu0 %v3277
  %v3395 = vpop.xlane.xlu0 %3394
  %3396 = vadd.xlane.f32.xlu0 %v3278
  %v3397 = vpop.xlane.xlu0 %3396
  %3398 = vadd.xlane.f32.xlu0 %v3279
  %v3399 = vpop.xlane.xlu0 %3398
  %3400 = vadd.xlane.f32.xlu0 %v3280
  %v3401 = vpop.xlane.xlu0 %3400
  %3402 = vadd.xlane.f32.xlu0 %v3281
  %v3403 = vpop.xlane.xlu0 %3402
  %3404 = vadd.xlane.f32.xlu0 %v3282
  %v3405 = vpop.xlane.xlu0 %3404
  %3406 = vadd.xlane.f32.xlu0 %v3283
  %v3407 = vpop.xlane.xlu0 %3406
  %3408 = vadd.xlane.f32.xlu0 %v3284
  %v3409 = vpop.xlane.xlu0 %3408
  %3410 = vadd.xlane.f32.xlu0 %v3285
  %v3411 = vpop.xlane.xlu0 %3410
  %3412 = vadd.xlane.f32.xlu0 %v3286
  %v3413 = vpop.xlane.xlu0 %3412
  %3414 = vadd.xlane.f32.xlu0 %v3287
  %v3415 = vpop.xlane.xlu0 %3414
  %v3416 = vmul.f32 %v3289, %v3096
  %v3417 = vmul.f32 %v3291, %v3097
  %v3418 = vmul.f32 %v3293, %v3098
  %v3419 = vmul.f32 %v3295, %v3099
  %v3420 = vmul.f32 %v3297, %v3100
  %v3421 = vmul.f32 %v3299, %v3101
  %v3422 = vmul.f32 %v3301, %v3102
  %v3423 = vmul.f32 %v3303, %v3103
  %v3424 = vmul.f32 %v3305, %v3104
  %v3425 = vmul.f32 %v3307, %v3105
  %v3426 = vmul.f32 %v3309, %v3106
  %v3427 = vmul.f32 %v3311, %v3107
  %v3428 = vmul.f32 %v3313, %v3108
  %v3429 = vmul.f32 %v3315, %v3109
  %v3430 = vmul.f32 %v3317, %v3110
  %v3431 = vmul.f32 %v3319, %v3111
  %v3432 = vmul.f32 %v3321, %v3112
  %v3433 = vmul.f32 %v3323, %v3113
  %v3434 = vmul.f32 %v3325, %v3114
  %v3435 = vmul.f32 %v3327, %v3115
  %v3436 = vmul.f32 %v3329, %v3116
  %v3437 = vmul.f32 %v3331, %v3117
  %v3438 = vmul.f32 %v3333, %v3118
  %v3439 = vmul.f32 %v3335, %v3119
  %v3440 = vmul.f32 %v3337, %v3120
  %v3441 = vmul.f32 %v3339, %v3121
  %v3442 = vmul.f32 %v3341, %v3122
  %v3443 = vmul.f32 %v3343, %v3123
  %v3444 = vmul.f32 %v3345, %v3124
  %v3445 = vmul.f32 %v3347, %v3125
  %v3446 = vmul.f32 %v3349, %v3126
  %v3447 = vmul.f32 %v3351, %v3127
  %v3448 = vmul.f32 %v3353, %v3128
  %v3449 = vmul.f32 %v3355, %v3129
  %v3450 = vmul.f32 %v3357, %v3130
  %v3451 = vmul.f32 %v3359, %v3131
  %v3452 = vmul.f32 %v3361, %v3132
  %v3453 = vmul.f32 %v3363, %v3133
  %v3454 = vmul.f32 %v3365, %v3134
  %v3455 = vmul.f32 %v3367, %v3135
  %v3456 = vmul.f32 %v3369, %v3136
  %v3457 = vmul.f32 %v3371, %v3137
  %v3458 = vmul.f32 %v3373, %v3138
  %v3459 = vmul.f32 %v3375, %v3139
  %v3460 = vmul.f32 %v3377, %v3140
  %v3461 = vmul.f32 %v3379, %v3141
  %v3462 = vmul.f32 %v3381, %v3142
  %v3463 = vmul.f32 %v3383, %v3143
  %v3464 = vmul.f32 %v3385, %v3144
  %v3465 = vmul.f32 %v3387, %v3145
  %v3466 = vmul.f32 %v3389, %v3146
  %v3467 = vmul.f32 %v3391, %v3147
  %v3468 = vmul.f32 %v3393, %v3148
  %v3469 = vmul.f32 %v3395, %v3149
  %v3470 = vmul.f32 %v3397, %v3150
  %v3471 = vmul.f32 %v3399, %v3151
  %v3472 = vmul.f32 %v3401, %v3152
  %v3473 = vmul.f32 %v3403, %v3153
  %v3474 = vmul.f32 %v3405, %v3154
  %v3475 = vmul.f32 %v3407, %v3155
  %v3476 = vmul.f32 %v3409, %v3156
  %v3477 = vmul.f32 %v3411, %v3157
  %v3478 = vmul.f32 %v3413, %v3158
  %v3479 = vmul.f32 %v3415, %v3159
  %vm3480 = vcmask 7168
  %v3481 = vsel %vm3480, %v3416, 0.0
  %v3482 = vsel %vm3480, %v3417, 0.0
  %v3483 = vadd.f32 %v3481, %v3482
  %v3484 = vsel %vm3480, %v3418, 0.0
  %v3485 = vadd.f32 %v3483, %v3484
  %v3486 = vsel %vm3480, %v3419, 0.0
  %v3487 = vadd.f32 %v3485, %v3486
  %v3488 = vsel %vm3480, %v3420, 0.0
  %v3489 = vadd.f32 %v3487, %v3488
  %v3490 = vsel %vm3480, %v3421, 0.0
  %v3491 = vadd.f32 %v3489, %v3490
  %v3492 = vsel %vm3480, %v3422, 0.0
  %v3493 = vadd.f32 %v3491, %v3492
  %v3494 = vsel %vm3480, %v3423, 0.0
  %v3495 = vadd.f32 %v3493, %v3494
  %v3496 = vsel %vm3480, %v3424, 0.0
  %v3497 = vadd.f32 %v3495, %v3496
  %v3498 = vsel %vm3480, %v3425, 0.0
  %v3499 = vadd.f32 %v3497, %v3498
  %v3500 = vsel %vm3480, %v3426, 0.0
  %v3501 = vadd.f32 %v3499, %v3500
  %v3502 = vsel %vm3480, %v3427, 0.0
  %v3503 = vadd.f32 %v3501, %v3502
  %v3504 = vsel %vm3480, %v3428, 0.0
  %v3505 = vadd.f32 %v3503, %v3504
  %v3506 = vsel %vm3480, %v3429, 0.0
  %v3507 = vadd.f32 %v3505, %v3506
  %v3508 = vsel %vm3480, %v3430, 0.0
  %v3509 = vadd.f32 %v3507, %v3508
  %v3510 = vsel %vm3480, %v3431, 0.0
  %v3511 = vadd.f32 %v3509, %v3510
  %v3512 = vsel %vm3480, %v3432, 0.0
  %v3513 = vadd.f32 %v3511, %v3512
  %v3514 = vsel %vm3480, %v3433, 0.0
  %v3515 = vadd.f32 %v3513, %v3514
  %v3516 = vsel %vm3480, %v3434, 0.0
  %v3517 = vadd.f32 %v3515, %v3516
  %v3518 = vsel %vm3480, %v3435, 0.0
  %v3519 = vadd.f32 %v3517, %v3518
  %v3520 = vsel %vm3480, %v3436, 0.0
  %v3521 = vadd.f32 %v3519, %v3520
  %v3522 = vsel %vm3480, %v3437, 0.0
  %v3523 = vadd.f32 %v3521, %v3522
  %v3524 = vsel %vm3480, %v3438, 0.0
  %v3525 = vadd.f32 %v3523, %v3524
  %v3526 = vsel %vm3480, %v3439, 0.0
  %v3527 = vadd.f32 %v3525, %v3526
  %v3528 = vsel %vm3480, %v3440, 0.0
  %v3529 = vadd.f32 %v3527, %v3528
  %v3530 = vsel %vm3480, %v3441, 0.0
  %v3531 = vadd.f32 %v3529, %v3530
  %v3532 = vsel %vm3480, %v3442, 0.0
  %v3533 = vadd.f32 %v3531, %v3532
  %v3534 = vsel %vm3480, %v3443, 0.0
  %v3535 = vadd.f32 %v3533, %v3534
  %v3536 = vsel %vm3480, %v3444, 0.0
  %v3537 = vadd.f32 %v3535, %v3536
  %v3538 = vsel %vm3480, %v3445, 0.0
  %v3539 = vadd.f32 %v3537, %v3538
  %v3540 = vsel %vm3480, %v3446, 0.0
  %v3541 = vadd.f32 %v3539, %v3540
  %v3542 = vsel %vm3480, %v3447, 0.0
  %v3543 = vadd.f32 %v3541, %v3542
  %v3544 = vsel %vm3480, %v3448, 0.0
  %v3545 = vadd.f32 %v3543, %v3544
  %v3546 = vsel %vm3480, %v3449, 0.0
  %v3547 = vadd.f32 %v3545, %v3546
  %v3548 = vsel %vm3480, %v3450, 0.0
  %v3549 = vadd.f32 %v3547, %v3548
  %v3550 = vsel %vm3480, %v3451, 0.0
  %v3551 = vadd.f32 %v3549, %v3550
  %v3552 = vsel %vm3480, %v3452, 0.0
  %v3553 = vadd.f32 %v3551, %v3552
  %v3554 = vsel %vm3480, %v3453, 0.0
  %v3555 = vadd.f32 %v3553, %v3554
  %v3556 = vsel %vm3480, %v3454, 0.0
  %v3557 = vadd.f32 %v3555, %v3556
  %v3558 = vsel %vm3480, %v3455, 0.0
  %v3559 = vadd.f32 %v3557, %v3558
  %v3560 = vsel %vm3480, %v3456, 0.0
  %v3561 = vadd.f32 %v3559, %v3560
  %v3562 = vsel %vm3480, %v3457, 0.0
  %v3563 = vadd.f32 %v3561, %v3562
  %v3564 = vsel %vm3480, %v3458, 0.0
  %v3565 = vadd.f32 %v3563, %v3564
  %v3566 = vsel %vm3480, %v3459, 0.0
  %v3567 = vadd.f32 %v3565, %v3566
  %v3568 = vsel %vm3480, %v3460, 0.0
  %v3569 = vadd.f32 %v3567, %v3568
  %v3570 = vsel %vm3480, %v3461, 0.0
  %v3571 = vadd.f32 %v3569, %v3570
  %v3572 = vsel %vm3480, %v3462, 0.0
  %v3573 = vadd.f32 %v3571, %v3572
  %v3574 = vsel %vm3480, %v3463, 0.0
  %v3575 = vadd.f32 %v3573, %v3574
  %v3576 = vsel %vm3480, %v3464, 0.0
  %v3577 = vadd.f32 %v3575, %v3576
  %v3578 = vsel %vm3480, %v3465, 0.0
  %v3579 = vadd.f32 %v3577, %v3578
  %v3580 = vsel %vm3480, %v3466, 0.0
  %v3581 = vadd.f32 %v3579, %v3580
  %v3582 = vsel %vm3480, %v3467, 0.0
  %v3583 = vadd.f32 %v3581, %v3582
  %v3584 = vsel %vm3480, %v3468, 0.0
  %v3585 = vadd.f32 %v3583, %v3584
  %v3586 = vsel %vm3480, %v3469, 0.0
  %v3587 = vadd.f32 %v3585, %v3586
  %v3588 = vsel %vm3480, %v3470, 0.0
  %v3589 = vadd.f32 %v3587, %v3588
  %v3590 = vsel %vm3480, %v3471, 0.0
  %v3591 = vadd.f32 %v3589, %v3590
  %v3592 = vsel %vm3480, %v3472, 0.0
  %v3593 = vadd.f32 %v3591, %v3592
  %v3594 = vsel %vm3480, %v3473, 0.0
  %v3595 = vadd.f32 %v3593, %v3594
  %v3596 = vsel %vm3480, %v3474, 0.0
  %v3597 = vadd.f32 %v3595, %v3596
  %v3598 = vsel %vm3480, %v3475, 0.0
  %v3599 = vadd.f32 %v3597, %v3598
  %v3600 = vsel %vm3480, %v3476, 0.0
  %v3601 = vadd.f32 %v3599, %v3600
  %v3602 = vsel %vm3480, %v3477, 0.0
  %v3603 = vadd.f32 %v3601, %v3602
  %v3604 = vsel %vm3480, %v3478, 0.0
  %v3605 = vadd.f32 %v3603, %v3604
  %v3606 = vsel %vm3480, %v3479, 0.0
  %v3607 = vadd.f32 %v3605, %v3606
  %3608 = vadd.xlane.f32.xlu0 %v3607
  %v3609 = vpop.xlane.xlu0 %3608
  %v3610 = vrot.slane %v3609, 4
  %v3611 = vadd.f32 %v3609, %v3610
  %v3612 = vrot.slane %v3611, 2
  %v3613 = vadd.f32 %v3611, %v3612
  %v3614 = vrot.slane %v3613, 1
  %v3615 = vadd.f32 %v3613, %v3614
  %s3616 = vtos %v3615
  %v3617 = vstv %s3616
  %3618 = vst [vmem:[%s4] sm:$0x1] %v3617
  %v3619 = vmul.f32 %v2004, %v3096
  %v3620 = vmul.f32 %v2005, %v3097
  %v3621 = vmul.f32 %v2006, %v3098
  %v3622 = vmul.f32 %v2007, %v3099
  %v3623 = vmul.f32 %v2008, %v3100
  %v3624 = vmul.f32 %v2009, %v3101
  %v3625 = vmul.f32 %v2010, %v3102
  %v3626 = vmul.f32 %v2011, %v3103
  %v3627 = vmul.f32 %v2012, %v3104
  %v3628 = vmul.f32 %v2013, %v3105
  %v3629 = vmul.f32 %v2014, %v3106
  %v3630 = vmul.f32 %v2015, %v3107
  %v3631 = vmul.f32 %v2016, %v3108
  %v3632 = vmul.f32 %v2017, %v3109
  %v3633 = vmul.f32 %v2018, %v3110
  %v3634 = vmul.f32 %v2019, %v3111
  %v3635 = vmul.f32 %v2020, %v3112
  %v3636 = vmul.f32 %v2021, %v3113
  %v3637 = vmul.f32 %v2022, %v3114
  %v3638 = vmul.f32 %v2023, %v3115
  %v3639 = vmul.f32 %v2024, %v3116
  %v3640 = vmul.f32 %v2025, %v3117
  %v3641 = vmul.f32 %v2026, %v3118
  %v3642 = vmul.f32 %v2027, %v3119
  %v3643 = vmul.f32 %v2028, %v3120
  %v3644 = vmul.f32 %v2029, %v3121
  %v3645 = vmul.f32 %v2030, %v3122
  %v3646 = vmul.f32 %v2031, %v3123
  %v3647 = vmul.f32 %v2032, %v3124
  %v3648 = vmul.f32 %v2033, %v3125
  %v3649 = vmul.f32 %v2034, %v3126
  %v3650 = vmul.f32 %v2035, %v3127
  %v3651 = vmul.f32 %v2036, %v3128
  %v3652 = vmul.f32 %v2037, %v3129
  %v3653 = vmul.f32 %v2038, %v3130
  %v3654 = vmul.f32 %v2039, %v3131
  %v3655 = vmul.f32 %v2040, %v3132
  %v3656 = vmul.f32 %v2041, %v3133
  %v3657 = vmul.f32 %v2042, %v3134
  %v3658 = vmul.f32 %v2043, %v3135
  %v3659 = vmul.f32 %v2044, %v3136
  %v3660 = vmul.f32 %v2045, %v3137
  %v3661 = vmul.f32 %v2046, %v3138
  %v3662 = vmul.f32 %v2047, %v3139
  %v3663 = vmul.f32 %v2048, %v3140
  %v3664 = vmul.f32 %v2049, %v3141
  %v3665 = vmul.f32 %v2050, %v3142
  %v3666 = vmul.f32 %v2051, %v3143
  %v3667 = vmul.f32 %v2052, %v3144
  %v3668 = vmul.f32 %v2053, %v3145
  %v3669 = vmul.f32 %v2054, %v3146
  %v3670 = vmul.f32 %v2055, %v3147
  %v3671 = vmul.f32 %v2056, %v3148
  %v3672 = vmul.f32 %v2057, %v3149
  %v3673 = vmul.f32 %v2058, %v3150
  %v3674 = vmul.f32 %v2059, %v3151
  %v3675 = vmul.f32 %v2060, %v3152
  %v3676 = vmul.f32 %v2061, %v3153
  %v3677 = vmul.f32 %v2062, %v3154
  %v3678 = vmul.f32 %v2063, %v3155
  %v3679 = vmul.f32 %v2064, %v3156
  %v3680 = vmul.f32 %v2065, %v3157
  %v3681 = vmul.f32 %v2066, %v3158
  %v3682 = vmul.f32 %v2067, %v3159
  %v3683 = vadd.f32 %v3619, %v3620
  %v3684 = vadd.f32 %v3683, %v3621
  %v3685 = vadd.f32 %v3684, %v3622
  %v3686 = vadd.f32 %v3685, %v3623
  %v3687 = vadd.f32 %v3686, %v3624
  %v3688 = vadd.f32 %v3687, %v3625
  %v3689 = vadd.f32 %v3688, %v3626
  %v3690 = vadd.f32 %v3689, %v3627
  %v3691 = vadd.f32 %v3690, %v3628
  %v3692 = vadd.f32 %v3691, %v3629
  %v3693 = vadd.f32 %v3692, %v3630
  %v3694 = vadd.f32 %v3693, %v3631
  %v3695 = vadd.f32 %v3694, %v3632
  %v3696 = vadd.f32 %v3695, %v3633
  %v3697 = vadd.f32 %v3696, %v3634
  %v3698 = vadd.f32 %v3697, %v3635
  %v3699 = vadd.f32 %v3698, %v3636
  %v3700 = vadd.f32 %v3699, %v3637
  %v3701 = vadd.f32 %v3700, %v3638
  %v3702 = vadd.f32 %v3701, %v3639
  %v3703 = vadd.f32 %v3702, %v3640
  %v3704 = vadd.f32 %v3703, %v3641
  %v3705 = vadd.f32 %v3704, %v3642
  %v3706 = vadd.f32 %v3705, %v3643
  %v3707 = vadd.f32 %v3706, %v3644
  %v3708 = vadd.f32 %v3707, %v3645
  %v3709 = vadd.f32 %v3708, %v3646
  %v3710 = vadd.f32 %v3709, %v3647
  %v3711 = vadd.f32 %v3710, %v3648
  %v3712 = vadd.f32 %v3711, %v3649
  %v3713 = vadd.f32 %v3712, %v3650
  %v3714 = vadd.f32 %v3713, %v3651
  %v3715 = vadd.f32 %v3714, %v3652
  %v3716 = vadd.f32 %v3715, %v3653
  %v3717 = vadd.f32 %v3716, %v3654
  %v3718 = vadd.f32 %v3717, %v3655
  %v3719 = vadd.f32 %v3718, %v3656
  %v3720 = vadd.f32 %v3719, %v3657
  %v3721 = vadd.f32 %v3720, %v3658
  %v3722 = vadd.f32 %v3721, %v3659
  %v3723 = vadd.f32 %v3722, %v3660
  %v3724 = vadd.f32 %v3723, %v3661
  %v3725 = vadd.f32 %v3724, %v3662
  %v3726 = vadd.f32 %v3725, %v3663
  %v3727 = vadd.f32 %v3726, %v3664
  %v3728 = vadd.f32 %v3727, %v3665
  %v3729 = vadd.f32 %v3728, %v3666
  %v3730 = vadd.f32 %v3729, %v3667
  %v3731 = vadd.f32 %v3730, %v3668
  %v3732 = vadd.f32 %v3731, %v3669
  %v3733 = vadd.f32 %v3732, %v3670
  %v3734 = vadd.f32 %v3733, %v3671
  %v3735 = vadd.f32 %v3734, %v3672
  %v3736 = vadd.f32 %v3735, %v3673
  %v3737 = vadd.f32 %v3736, %v3674
  %v3738 = vadd.f32 %v3737, %v3675
  %v3739 = vadd.f32 %v3738, %v3676
  %v3740 = vadd.f32 %v3739, %v3677
  %v3741 = vadd.f32 %v3740, %v3678
  %v3742 = vadd.f32 %v3741, %v3679
  %v3743 = vadd.f32 %v3742, %v3680
  %v3744 = vadd.f32 %v3743, %v3681
  %v3745 = vadd.f32 %v3744, %v3682
  %v3746 = vrot.slane %v3745, 4
  %v3747 = vadd.f32 %v3745, %v3746
  %v3748 = vrot.slane %v3747, 2
  %v3749 = vadd.f32 %v3747, %v3748
  %v3750 = vrot.slane %v3749, 1
  %v3751 = vadd.f32 %v3749, %v3750
  %3752 = vst [vmem:[%s5] sm:$0x1] %v3751
  // Predicated region
  $region14: #{vqvae_forward.24} parent=0 // pred_check
    _
  $region15: #{vqvae_forward.24} parent=0 // pred_check_branch
    %3754 = sbr.rel (0) target = $region17
  $region16: #{vqvae_forward.24} parent=0 // pred_region
    _
  $region17: #{vqvae_forward.24} parent=0 // pred_fallthru
    _
  // Predicated region
  $region18: #{vqvae_forward.24} parent=0 // pred_check
    _
  $region19: #{vqvae_forward.24} parent=0 // pred_check_branch
    %3756 = sbr.rel (0) target = $region21
  $region20: #{vqvae_forward.24} parent=0 // pred_region
    _
  $region21: #{vqvae_forward.24} parent=0 // pred_fallthru
    _
  // Predicated region
  $region22: #{vqvae_forward.24} parent=0 // pred_check
    _
  $region23: #{vqvae_forward.24} parent=0 // pred_check_branch
    %3758 = sbr.rel (0) target = $region25
  $region24: #{vqvae_forward.24} parent=0 // pred_region
    _
  $region25: #{vqvae_forward.24} parent=0 // pred_fallthru
    _
  // Predicated region
  $region26: #{vqvae_forward.24} parent=0 // pred_check
    _
  $region27: #{vqvae_forward.24} parent=0 // pred_check_branch
    %3760 = sbr.rel (0) target = $region29
  $region28: #{vqvae_forward.24} parent=0 // pred_region
    _
  $region29: #{vqvae_forward.24} parent=0 // pred_fallthru
    _
  // Predicated region
  $region30: #{vqvae_forward.24} parent=0 // pred_check
    _
  $region31: #{vqvae_forward.24} parent=0 // pred_check_branch
    %3762 = sbr.rel (0) target = $region33
  $region32: #{vqvae_forward.24} parent=0 // pred_region
    _
  $region33: #{vqvae_forward.24} parent=0 // pred_fallthru
    _
  // Predicated region
  $region34: #{vqvae_forward.24} parent=0 // pred_check
    _
  $region35: #{vqvae_forward.24} parent=0 // pred_check_branch
    %3764 = sbr.rel (0) target = $region37
  $region36: #{vqvae_forward.24} parent=0 // pred_region
    _
  $region37: #{vqvae_forward.24} parent=0 // pred_fallthru
    _

// kernel: vqvae_forward.25
$region0: #{vqvae_forward.25}
  #allocation0 [shape = 'u32[]', space=smem, size = 0x4, offset = 0x4, fixed_abs, tag = 'smem constant byte address 0x4 - core index']
  #allocation1 [shape = 'u32[144,128]{1,0:T(1,128)}', space=vmem, size = 0x12000, scoped, tag = 'internal scratch']
  #allocation2 [shape = 'f32[128,128]{1,0:T(8,128)}', space=vmem, size = 0x10000, scoped, tag = 'scratch operand']
  %s0 = inlined_call_operand.vmem [shape: bf16[128,224], index: 0, kind: input, shape index: {}]
  %s1 = inlined_call_operand.vmem [shape: bf16[224,128], index: 1, kind: input, shape index: {}]
  %s2 = inlined_call_operand.vmem [shape: f32[1,128], index: 2, kind: input, shape index: {}]
  %s3 = inlined_call_operand.vmem [shape: bf16[128,128], index: 3, kind: output, shape index: {}]
  %s4 = sld [smem:[#allocation0]]
  $region30: #{vqvae_forward.25} parent=0
    _
  %s6 = ssub.s32 1, %s4
  %s7 = scalar_select 0, %s6, %s4
  // Predicated region
  $region2: #{vqvae_forward.25} parent=0 // pred_check
    _
  $region3: #{vqvae_forward.25} parent=0 // pred_check_branch
    %9 = sbr.rel (0) target = $region5
  $region4: #{vqvae_forward.25} parent=0 // pred_region
    _
  $region5: #{vqvae_forward.25} parent=0 // pred_fallthru
    _
  // Predicated region
  $region6: #{vqvae_forward.25} parent=0 // pred_check
    _
  $region7: #{vqvae_forward.25} parent=0 // pred_check_branch
    %11 = sbr.rel (0) target = $region9
  $region8: #{vqvae_forward.25} parent=0 // pred_region
    _
  $region9: #{vqvae_forward.25} parent=0 // pred_fallthru
    _
  // Predicated region
  $region10: #{vqvae_forward.25} parent=0 // pred_check
    _
  $region11: #{vqvae_forward.25} parent=0 // pred_check_branch
    %13 = sbr.rel (0) target = $region13
  $region12: #{vqvae_forward.25} parent=0 // pred_region
    _
  $region13: #{vqvae_forward.25} parent=0 // pred_fallthru
    _
  %p15 = scmp.eq.s32.totalorder 0, 0
  // Predicated region
  $region14: #{vqvae_forward.25} parent=0 // pred_check
    %p16 = pneg %p15
  $region15: #{vqvae_forward.25} parent=0 // pred_check_branch
    %18 = sbr.rel (%p16) target = $region17
  $region16: #{vqvae_forward.25} parent=0 // pred_region
    %19 = vst [vmem:[#allocation2] sm:$0xff] 0.0
    %20 = vst [vmem:[#allocation2 + $0x8] sm:$0xff] 0.0
    %21 = vst [vmem:[#allocation2 + $0x10] sm:$0xff] 0.0
    %22 = vst [vmem:[#allocation2 + $0x18] sm:$0xff] 0.0
    %23 = vst [vmem:[#allocation2 + $0x20] sm:$0xff] 0.0
    %24 = vst [vmem:[#allocation2 + $0x28] sm:$0xff] 0.0
    %25 = vst [vmem:[#allocation2 + $0x30] sm:$0xff] 0.0
    %26 = vst [vmem:[#allocation2 + $0x38] sm:$0xff] 0.0
    %27 = vst [vmem:[#allocation2 + $0x40] sm:$0xff] 0.0
    %28 = vst [vmem:[#allocation2 + $0x48] sm:$0xff] 0.0
    %29 = vst [vmem:[#allocation2 + $0x50] sm:$0xff] 0.0
    %30 = vst [vmem:[#allocation2 + $0x58] sm:$0xff] 0.0
    %31 = vst [vmem:[#allocation2 + $0x60] sm:$0xff] 0.0
    %32 = vst [vmem:[#allocation2 + $0x68] sm:$0xff] 0.0
    %33 = vst [vmem:[#allocation2 + $0x70] sm:$0xff] 0.0
    %34 = vst [vmem:[#allocation2 + $0x78] sm:$0xff] 0.0
  $region17: #{vqvae_forward.25} parent=0 // pred_fallthru
    _
  %v35 = vld [vmem:[#allocation2] sm:$0xff]
  %v36 = vld [vmem:[#allocation2 + $0x8] sm:$0xff]
  %v37 = vld [vmem:[#allocation2 + $0x10] sm:$0xff]
  %v38 = vld [vmem:[#allocation2 + $0x18] sm:$0xff]
  %v39 = vld [vmem:[#allocation2 + $0x20] sm:$0xff]
  %v40 = vld [vmem:[#allocation2 + $0x28] sm:$0xff]
  %v41 = vld [vmem:[#allocation2 + $0x30] sm:$0xff]
  %v42 = vld [vmem:[#allocation2 + $0x38] sm:$0xff]
  %v43 = vld [vmem:[#allocation2 + $0x40] sm:$0xff]
  %v44 = vld [vmem:[#allocation2 + $0x48] sm:$0xff]
  %v45 = vld [vmem:[#allocation2 + $0x50] sm:$0xff]
  %v46 = vld [vmem:[#allocation2 + $0x58] sm:$0xff]
  %v47 = vld [vmem:[#allocation2 + $0x60] sm:$0xff]
  %v48 = vld [vmem:[#allocation2 + $0x68] sm:$0xff]
  %v49 = vld [vmem:[#allocation2 + $0x70] sm:$0xff]
  %v50 = vld [vmem:[#allocation2 + $0x78] sm:$0xff]
  %v51 = vld [vmem:[%s0] sm:$0xff]
  %v52 = vld [vmem:[%s0 + $0x8] sm:$0xff]
  %v53 = vld [vmem:[%s0 + $0x10] sm:$0xff]
  %v54 = vld [vmem:[%s0 + $0x18] sm:$0xff]
  %v55 = vld [vmem:[%s0 + $0x20] sm:$0xff]
  %v56 = vld [vmem:[%s0 + $0x28] sm:$0xff]
  %v57 = vld [vmem:[%s0 + $0x30] sm:$0xff]
  %v58 = vld [vmem:[%s0 + $0x38] sm:$0xff]
  %v59 = vld [vmem:[%s0 + $0x40] sm:$0xff]
  %v60 = vld [vmem:[%s0 + $0x48] sm:$0xff]
  %v61 = vld [vmem:[%s0 + $0x50] sm:$0xff]
  %v62 = vld [vmem:[%s0 + $0x58] sm:$0xff]
  %v63 = vld [vmem:[%s0 + $0x60] sm:$0xff]
  %v64 = vld [vmem:[%s0 + $0x68] sm:$0xff]
  %v65 = vld [vmem:[%s0 + $0x70] sm:$0xff]
  %v66 = vld [vmem:[%s0 + $0x78] sm:$0xff]
  %v67 = vld [vmem:[%s1] sm:$0xf]
  %v68 = vld [vmem:[%s1 + $0x4] sm:$0xf]
  %v69 = vld [vmem:[%s1 + $0x8] sm:$0xf]
  %v70 = vld [vmem:[%s1 + $0xc] sm:$0xf]
  %v71 = vld [vmem:[%s1 + $0x10] sm:$0xf]
  %v72 = vld [vmem:[%s1 + $0x14] sm:$0xf]
  %v73 = vld [vmem:[%s1 + $0x18] sm:$0xf]
  %v74 = vld [vmem:[%s1 + $0x1c] sm:$0xf]
  %v75 = vld [vmem:[%s1 + $0x20] sm:$0xf]
  %v76 = vld [vmem:[%s1 + $0x24] sm:$0xf]
  %v77 = vld [vmem:[%s1 + $0x28] sm:$0xf]
  %v78 = vld [vmem:[%s1 + $0x2c] sm:$0xf]
  %v79 = vld [vmem:[%s1 + $0x30] sm:$0xf]
  %v80 = vld [vmem:[%s1 + $0x34] sm:$0xf]
  %v81 = vld [vmem:[%s1 + $0x38] sm:$0xf]
  %v82 = vld [vmem:[%s1 + $0x3c] sm:$0xf]
  %v83 = vld [vmem:[%s1 + $0x40] sm:$0xf]
  %v84 = vld [vmem:[%s1 + $0x44] sm:$0xf]
  %v85 = vld [vmem:[%s1 + $0x48] sm:$0xf]
  %v86 = vld [vmem:[%s1 + $0x4c] sm:$0xf]
  %v87 = vld [vmem:[%s1 + $0x50] sm:$0xf]
  %v88 = vld [vmem:[%s1 + $0x54] sm:$0xf]
  %v89 = vld [vmem:[%s1 + $0x58] sm:$0xf]
  %v90 = vld [vmem:[%s1 + $0x5c] sm:$0xf]
  %v91 = vld [vmem:[%s1 + $0x60] sm:$0xf]
  %v92 = vld [vmem:[%s1 + $0x64] sm:$0xf]
  %v93 = vld [vmem:[%s1 + $0x68] sm:$0xf]
  %v94 = vld [vmem:[%s1 + $0x6c] sm:$0xf]
  %v111 = vunpack.c.l.b16 %v51
  %v112 = vunpack.c.h.b16 %v51
  %v113 = vunpack.c.l.b16 %v52
  %v114 = vunpack.c.h.b16 %v52
  %v115 = vunpack.c.l.b16 %v53
  %v116 = vunpack.c.h.b16 %v53
  %v117 = vunpack.c.l.b16 %v54
  %v118 = vunpack.c.h.b16 %v54
  %v119 = vunpack.c.l.b16 %v55
  %v120 = vunpack.c.h.b16 %v55
  %v121 = vunpack.c.l.b16 %v56
  %v122 = vunpack.c.h.b16 %v56
  %v123 = vunpack.c.l.b16 %v57
  %v124 = vunpack.c.h.b16 %v57
  %v125 = vunpack.c.l.b16 %v58
  %v126 = vunpack.c.h.b16 %v58
  %v127 = vunpack.c.l.b16 %v59
  %v128 = vunpack.c.h.b16 %v59
  %v129 = vunpack.c.l.b16 %v60
  %v130 = vunpack.c.h.b16 %v60
  %v131 = vunpack.c.l.b16 %v61
  %v132 = vunpack.c.h.b16 %v61
  %v133 = vunpack.c.l.b16 %v62
  %v134 = vunpack.c.h.b16 %v62
  %v135 = vunpack.c.l.b16 %v63
  %v136 = vunpack.c.h.b16 %v63
  %v137 = vunpack.c.l.b16 %v64
  %v138 = vunpack.c.h.b16 %v64
  %v139 = vunpack.c.l.b16 %v65
  %v140 = vunpack.c.h.b16 %v65
  %v141 = vunpack.c.l.b16 %v66
  %v142 = vunpack.c.h.b16 %v66
  %v143 = vpack.c.b16 %v113, %v111
  %v144 = vpack.c.b16 %v114, %v112
  %v145 = vpack.c.b16 %v117, %v115
  %v146 = vpack.c.b16 %v118, %v116
  %v147 = vpack.c.b16 %v121, %v119
  %v148 = vpack.c.b16 %v122, %v120
  %v149 = vpack.c.b16 %v125, %v123
  %v150 = vpack.c.b16 %v126, %v124
  %v151 = vpack.c.b16 %v129, %v127
  %v152 = vpack.c.b16 %v130, %v128
  %v153 = vpack.c.b16 %v133, %v131
  %v154 = vpack.c.b16 %v134, %v132
  %v155 = vpack.c.b16 %v137, %v135
  %v156 = vpack.c.b16 %v138, %v136
  %v157 = vpack.c.b16 %v141, %v139
  %v158 = vpack.c.b16 %v142, %v140
  %v195 = vunpack.c.l.b16 %v67
  %v196 = vunpack.c.l.b16 %v68
  %v197 = vunpack.c.l.b16 %v69
  %v198 = vunpack.c.l.b16 %v70
  %v199 = vunpack.c.l.b16 %v71
  %v200 = vunpack.c.l.b16 %v72
  %v201 = vunpack.c.l.b16 %v73
  %v202 = vunpack.c.l.b16 %v74
  %v203 = vunpack.c.l.b16 %v75
  %v204 = vunpack.c.l.b16 %v76
  %v205 = vunpack.c.l.b16 %v77
  %v206 = vunpack.c.l.b16 %v78
  %v207 = vunpack.c.l.b16 %v79
  %v208 = vunpack.c.l.b16 %v80
  %v209 = vunpack.c.l.b16 %v81
  %v210 = vunpack.c.l.b16 %v82
  %v211 = vunpack.c.l.b16 %v83
  %v212 = vunpack.c.l.b16 %v84
  %v213 = vunpack.c.l.b16 %v85
  %v214 = vunpack.c.l.b16 %v86
  %v215 = vunpack.c.l.b16 %v87
  %v216 = vunpack.c.l.b16 %v88
  %v217 = vunpack.c.l.b16 %v89
  %v218 = vunpack.c.l.b16 %v90
  %v219 = vunpack.c.l.b16 %v91
  %v220 = vunpack.c.l.b16 %v92
  %v221 = vunpack.c.l.b16 %v93
  %v222 = vunpack.c.l.b16 %v94
  %v223 = vpack.c.b16 %v196, %v195
  %v224 = vpack.c.b16 %v198, %v197
  %v225 = vpack.c.b16 %v200, %v199
  %v226 = vpack.c.b16 %v202, %v201
  %v227 = vpack.c.b16 %v204, %v203
  %v228 = vpack.c.b16 %v206, %v205
  %v229 = vpack.c.b16 %v208, %v207
  %v230 = vpack.c.b16 %v210, %v209
  %v231 = vpack.c.b16 %v212, %v211
  %v232 = vpack.c.b16 %v214, %v213
  %v233 = vpack.c.b16 %v216, %v215
  %v234 = vpack.c.b16 %v218, %v217
  %v235 = vpack.c.b16 %v220, %v219
  %v236 = vpack.c.b16 %v222, %v221
  %vm251 = vcmask 785408
  %v253 = vsel %vm251, %v144, 0
  %v256 = vsel %vm251, %v146, 0
  %v259 = vsel %vm251, %v148, 0
  %v262 = vsel %vm251, %v150, 0
  %v265 = vsel %vm251, %v152, 0
  %v268 = vsel %vm251, %v154, 0
  %v271 = vsel %vm251, %v156, 0
  %v274 = vsel %vm251, %v158, 0
  %276 = vmatprep.subr.bf16.mxu0 0
  %277 = vmatpush1.bf16.msra.mxu0 %v230
  %278 = vmatprep.subr.bf16.mxu0 0
  %279 = vmatpush1.bf16.msra.mxu0 %v229
  %280 = vmatprep.subr.bf16.mxu0 0
  %281 = vmatpush1.bf16.msra.mxu0 %v228
  %282 = vmatprep.subr.bf16.mxu0 0
  %283 = vmatpush1.bf16.msra.mxu0 %v227
  %284 = vmatprep.subr.bf16.mxu0 0
  %285 = vmatpush1.bf16.msra.mxu0 %v226
  %286 = vmatprep.subr.bf16.mxu0 0
  %287 = vmatpush1.bf16.msra.mxu0 %v225
  %288 = vmatprep.subr.bf16.mxu0 0
  %289 = vmatpush1.bf16.msra.mxu0 %v224
  %290 = vmatprep.subr.bf16.mxu0 0
  %291 = vmatpush1.bf16.msra.mxu0 %v223
  %292 = vmatprep.subr.bf16.mxu0 0
  %293 = vmatpush2.bf16.msra.mxu0 0
  %294 = vmatprep.subr.bf16.mxu0 0
  %295 = vmatpush2.bf16.msra.mxu0 0
  %296 = vmatprep.subr.bf16.mxu0 0
  %297 = vmatpush2.bf16.msra.mxu0 %v236
  %298 = vmatprep.subr.bf16.mxu0 0
  %299 = vmatpush2.bf16.msra.mxu0 %v235
  %300 = vmatprep.subr.bf16.mxu0 0
  %301 = vmatpush2.bf16.msra.mxu0 %v234
  %302 = vmatprep.subr.bf16.mxu0 0
  %303 = vmatpush2.bf16.msra.mxu0 %v233
  %304 = vmatprep.subr.bf16.mxu0 0
  %305 = vmatpush2.bf16.msra.mxu0 %v232
  %306 = vmatprep.subr.bf16.mxu0 0
  %307 = vmatpush2.bf16.msra.mxu0 %v231
  %308 = vmatprep.mubr.bf16.mxu0 %v253
  %309 = vmatmul.mubr.bf16.gmra.mxu0 %v143
  %v310 = vpop.f32.mrf.mxu0
  %v311 = vadd.f32 0.0, %v310
  %v312 = vpop.f32.mrf.mxu0
  %v313 = vpop.f32.mrf.mxu0
  %v314 = vadd.f32 0.0, %v313
  %v315 = vpop.f32.mrf.mxu0
  %316 = vmatprep.mubr.bf16.mxu0 %v256
  %317 = vmatmul.mubr.bf16.gmra.mxu0 %v145
  %v318 = vpop.f32.mrf.mxu0
  %v319 = vadd.f32 0.0, %v318
  %v320 = vpop.f32.mrf.mxu0
  %v321 = vpop.f32.mrf.mxu0
  %v322 = vadd.f32 0.0, %v321
  %v323 = vpop.f32.mrf.mxu0
  %324 = vmatprep.mubr.bf16.mxu0 %v259
  %325 = vmatmul.mubr.bf16.gmra.mxu0 %v147
  %v326 = vpop.f32.mrf.mxu0
  %v327 = vadd.f32 0.0, %v326
  %v328 = vpop.f32.mrf.mxu0
  %v329 = vpop.f32.mrf.mxu0
  %v330 = vadd.f32 0.0, %v329
  %v331 = vpop.f32.mrf.mxu0
  %332 = vmatprep.mubr.bf16.mxu0 %v262
  %333 = vmatmul.mubr.bf16.gmra.mxu0 %v149
  %v334 = vpop.f32.mrf.mxu0
  %v335 = vadd.f32 0.0, %v334
  %v336 = vpop.f32.mrf.mxu0
  %v337 = vpop.f32.mrf.mxu0
  %v338 = vadd.f32 0.0, %v337
  %v339 = vpop.f32.mrf.mxu0
  %340 = vmatprep.mubr.bf16.mxu0 %v265
  %341 = vmatmul.mubr.bf16.gmra.mxu0 %v151
  %v342 = vpop.f32.mrf.mxu0
  %v343 = vadd.f32 0.0, %v342
  %v344 = vpop.f32.mrf.mxu0
  %v345 = vpop.f32.mrf.mxu0
  %v346 = vadd.f32 0.0, %v345
  %v347 = vpop.f32.mrf.mxu0
  %348 = vmatprep.mubr.bf16.mxu0 %v268
  %349 = vmatmul.mubr.bf16.gmra.mxu0 %v153
  %v350 = vpop.f32.mrf.mxu0
  %v351 = vadd.f32 0.0, %v350
  %v352 = vpop.f32.mrf.mxu0
  %v353 = vpop.f32.mrf.mxu0
  %v354 = vadd.f32 0.0, %v353
  %v355 = vpop.f32.mrf.mxu0
  %356 = vmatprep.mubr.bf16.mxu0 %v271
  %357 = vmatmul.mubr.bf16.gmra.mxu0 %v155
  %v358 = vpop.f32.mrf.mxu0
  %v359 = vadd.f32 0.0, %v358
  %v360 = vpop.f32.mrf.mxu0
  %v361 = vpop.f32.mrf.mxu0
  %v362 = vadd.f32 0.0, %v361
  %v363 = vpop.f32.mrf.mxu0
  %364 = vmatprep.mubr.bf16.mxu0 %v274
  %365 = vmatmul.mubr.bf16.gmra.mxu0 %v157
  %v366 = vpop.f32.mrf.mxu0
  %v367 = vadd.f32 0.0, %v366
  %v368 = vpop.f32.mrf.mxu0
  %v369 = vpop.f32.mrf.mxu0
  %v370 = vadd.f32 0.0, %v369
  %v371 = vpop.f32.mrf.mxu0
  %372 = vdwg.mxu0
  %v373 = vadd.f32 %v35, %v311
  %v374 = vadd.f32 %v36, %v314
  %v375 = vadd.f32 %v37, %v319
  %v376 = vadd.f32 %v38, %v322
  %v377 = vadd.f32 %v39, %v327
  %v378 = vadd.f32 %v40, %v330
  %v379 = vadd.f32 %v41, %v335
  %v380 = vadd.f32 %v42, %v338
  %v381 = vadd.f32 %v43, %v343
  %v382 = vadd.f32 %v44, %v346
  %v383 = vadd.f32 %v45, %v351
  %v384 = vadd.f32 %v46, %v354
  %v385 = vadd.f32 %v47, %v359
  %v386 = vadd.f32 %v48, %v362
  %v387 = vadd.f32 %v49, %v367
  %v388 = vadd.f32 %v50, %v370
  %389 = vst [vmem:[#allocation2] sm:$0xff] %v373
  %390 = vst [vmem:[#allocation2 + $0x8] sm:$0xff] %v374
  %391 = vst [vmem:[#allocation2 + $0x10] sm:$0xff] %v375
  %392 = vst [vmem:[#allocation2 + $0x18] sm:$0xff] %v376
  %393 = vst [vmem:[#allocation2 + $0x20] sm:$0xff] %v377
  %394 = vst [vmem:[#allocation2 + $0x28] sm:$0xff] %v378
  %395 = vst [vmem:[#allocation2 + $0x30] sm:$0xff] %v379
  %396 = vst [vmem:[#allocation2 + $0x38] sm:$0xff] %v380
  %397 = vst [vmem:[#allocation2 + $0x40] sm:$0xff] %v381
  %398 = vst [vmem:[#allocation2 + $0x48] sm:$0xff] %v382
  %399 = vst [vmem:[#allocation2 + $0x50] sm:$0xff] %v383
  %400 = vst [vmem:[#allocation2 + $0x58] sm:$0xff] %v384
  %401 = vst [vmem:[#allocation2 + $0x60] sm:$0xff] %v385
  %402 = vst [vmem:[#allocation2 + $0x68] sm:$0xff] %v386
  %403 = vst [vmem:[#allocation2 + $0x70] sm:$0xff] %v387
  %404 = vst [vmem:[#allocation2 + $0x78] sm:$0xff] %v388
  // Predicated region
  $region18: #{vqvae_forward.25} parent=0 // pred_check
    %p405 = pneg %p15
  $region19: #{vqvae_forward.25} parent=0 // pred_check_branch
    %407 = sbr.rel (%p405) target = $region21
  $region20: #{vqvae_forward.25} parent=0 // pred_region
    %v408 = vld [vmem:[#allocation2] sm:$0xff]
    %v409 = vld [vmem:[#allocation2 + $0x8] sm:$0xff]
    %v410 = vld [vmem:[#allocation2 + $0x10] sm:$0xff]
    %v411 = vld [vmem:[#allocation2 + $0x18] sm:$0xff]
    %v412 = vld [vmem:[#allocation2 + $0x20] sm:$0xff]
    %v413 = vld [vmem:[#allocation2 + $0x28] sm:$0xff]
    %v414 = vld [vmem:[#allocation2 + $0x30] sm:$0xff]
    %v415 = vld [vmem:[#allocation2 + $0x38] sm:$0xff]
    %v416 = vld [vmem:[#allocation2 + $0x40] sm:$0xff]
    %v417 = vld [vmem:[#allocation2 + $0x48] sm:$0xff]
    %v418 = vld [vmem:[#allocation2 + $0x50] sm:$0xff]
    %v419 = vld [vmem:[#allocation2 + $0x58] sm:$0xff]
    %v420 = vld [vmem:[#allocation2 + $0x60] sm:$0xff]
    %v421 = vld [vmem:[#allocation2 + $0x68] sm:$0xff]
    %v422 = vld [vmem:[#allocation2 + $0x70] sm:$0xff]
    %v423 = vld [vmem:[#allocation2 + $0x78] sm:$0xff]
    %v424 = vld [vmem:[%s2] sm:$0x1]
    %v426 = vlaneseq
    %v427 = vshrl.u32 %v426, 7
    %v428 = vsub.s32 0, %v427
    %v429 = vrot.slane %v424, %v428
    %v431 = vadd.f32 %v408, %v429
    %v432 = vadd.f32 %v409, %v429
    %v433 = vadd.f32 %v410, %v429
    %v434 = vadd.f32 %v411, %v429
    %v435 = vadd.f32 %v412, %v429
    %v436 = vadd.f32 %v413, %v429
    %v437 = vadd.f32 %v414, %v429
    %v438 = vadd.f32 %v415, %v429
    %v439 = vadd.f32 %v416, %v429
    %v440 = vadd.f32 %v417, %v429
    %v441 = vadd.f32 %v418, %v429
    %v442 = vadd.f32 %v419, %v429
    %v443 = vadd.f32 %v420, %v429
    %v444 = vadd.f32 %v421, %v429
    %v445 = vadd.f32 %v422, %v429
    %v446 = vadd.f32 %v423, %v429
    %v447 = vpack.c.bf16 %v432, %v431
    %v448 = vpack.c.bf16 %v434, %v433
    %v449 = vpack.c.bf16 %v436, %v435
    %v450 = vpack.c.bf16 %v438, %v437
    %v451 = vpack.c.bf16 %v440, %v439
    %v452 = vpack.c.bf16 %v442, %v441
    %v453 = vpack.c.bf16 %v444, %v443
    %v454 = vpack.c.bf16 %v446, %v445
    %v463 = vunpack.c.l.b16 %v447
    %v464 = vunpack.c.h.b16 %v447
    %v465 = vunpack.c.l.b16 %v448
    %v466 = vunpack.c.h.b16 %v448
    %v467 = vunpack.c.l.b16 %v449
    %v468 = vunpack.c.h.b16 %v449
    %v469 = vunpack.c.l.b16 %v450
    %v470 = vunpack.c.h.b16 %v450
    %v471 = vunpack.c.l.b16 %v451
    %v472 = vunpack.c.h.b16 %v451
    %v473 = vunpack.c.l.b16 %v452
    %v474 = vunpack.c.h.b16 %v452
    %v475 = vunpack.c.l.b16 %v453
    %v476 = vunpack.c.h.b16 %v453
    %v477 = vunpack.c.l.b16 %v454
    %v478 = vunpack.c.h.b16 %v454
    %v479 = vpack.c.b16 %v463, %v463
    %v480 = vpack.c.b16 %v464, %v464
    %v481 = vpack.c.b16 %v465, %v465
    %v482 = vpack.c.b16 %v466, %v466
    %v483 = vpack.c.b16 %v467, %v467
    %v484 = vpack.c.b16 %v468, %v468
    %v485 = vpack.c.b16 %v469, %v469
    %v486 = vpack.c.b16 %v470, %v470
    %v487 = vpack.c.b16 %v471, %v471
    %v488 = vpack.c.b16 %v472, %v472
    %v489 = vpack.c.b16 %v473, %v473
    %v490 = vpack.c.b16 %v474, %v474
    %v491 = vpack.c.b16 %v475, %v475
    %v492 = vpack.c.b16 %v476, %v476
    %v493 = vpack.c.b16 %v477, %v477
    %v494 = vpack.c.b16 %v478, %v478
    %511 = vst [vmem:[%s3] sm:$0xf] %v479
    %512 = vst [vmem:[%s3 + $0x4] sm:$0xf] %v480
    %513 = vst [vmem:[%s3 + $0x8] sm:$0xf] %v481
    %514 = vst [vmem:[%s3 + $0xc] sm:$0xf] %v482
    %515 = vst [vmem:[%s3 + $0x10] sm:$0xf] %v483
    %516 = vst [vmem:[%s3 + $0x14] sm:$0xf] %v484
    %517 = vst [vmem:[%s3 + $0x18] sm:$0xf] %v485
    %518 = vst [vmem:[%s3 + $0x1c] sm:$0xf] %v486
    %519 = vst [vmem:[%s3 + $0x20] sm:$0xf] %v487
    %520 = vst [vmem:[%s3 + $0x24] sm:$0xf] %v488
    %521 = vst [vmem:[%s3 + $0x28] sm:$0xf] %v489
    %522 = vst [vmem:[%s3 + $0x2c] sm:$0xf] %v490
    %523 = vst [vmem:[%s3 + $0x30] sm:$0xf] %v491
    %524 = vst [vmem:[%s3 + $0x34] sm:$0xf] %v492
    %525 = vst [vmem:[%s3 + $0x38] sm:$0xf] %v493
    %526 = vst [vmem:[%s3 + $0x3c] sm:$0xf] %v494
  $region21: #{vqvae_forward.25} parent=0 // pred_fallthru
    _
  // Predicated region
  $region22: #{vqvae_forward.25} parent=0 // pred_check
    _
  $region23: #{vqvae_forward.25} parent=0 // pred_check_branch
    %528 = sbr.rel (0) target = $region25
  $region24: #{vqvae_forward.25} parent=0 // pred_region
    _
  $region25: #{vqvae_forward.25} parent=0 // pred_fallthru
    _
  // Predicated region
  $region26: #{vqvae_forward.25} parent=0 // pred_check
    _
  $region27: #{vqvae_forward.25} parent=0 // pred_check_branch
    %530 = sbr.rel (0) target = $region29
  $region28: #{vqvae_forward.25} parent=0 // pred_region
    _
  $region29: #{vqvae_forward.25} parent=0 // pred_fallthru
    _

</llo_original>
